<compile_context>
chip_gen: v7x
topology: tpu7x:2x2x1
jax: 0.10.0
libtpu: 0.0.40
codegen_flags: <defaults>
</compile_context>

<pallas_src>
import functools

import jax
import jax.numpy as jnp
from jax.experimental import pallas as pl
from jax.experimental.pallas import tpu as pltpu  # noqa: F401  (TPU backend)


# ----------------------------------------------------------------------------
# Fused Pallas kernel: 6 RGCN layers + fc1 in one launch
# ----------------------------------------------------------------------------
def _fused_state_network_kernel(adj_ref, rowsum_ref, ent_ref, wbx_ref,
                                relproj_ref, ww_ref, bias_ref, w3_ref,
                                fcb_ref, o_ref, *, num_layers, num_relations,
                                batch, n_nodes):
  """adj_ref:    (B, R*N, N)   flattened relational adjacencies
     rowsum_ref: (B, N, R)     row-sums of adj (per relation)
     ent_ref:    (N, E)        entity embedding table (shared across batch)
     wbx_ref:    (L, R, D, nb) x-part of basis weights, (in, out) layout
     relproj_ref:(L, R, nb)    rel[r] @ Wb_rel_r  (rank-1 relation term)
     ww_ref:     (L, nb, D)    basis-combination weights, (in, out) layout
     bias_ref:   (L, 1, D)     layer bias
     w3_ref:     (N, D, 128)   fc1 weight, reshaped + lane-padded
     fcb_ref:    (1, 128)      fc1 bias, lane-padded
     o_ref:      (B, 128)      lane-dense output (first 100 cols valid)"""
  ent = ent_ref[...]                                   # (N, E)
  xs = [ent for _ in range(batch)]                     # per-batch activations

  for l in range(num_layers):                          # static, unrolled (L=6)
    wbx_l = wbx_ref[l]                                 # (R, D, nb)
    relproj_l = relproj_ref[l]                         # (R, nb)
    ww_l = ww_ref[l]                                   # (nb, D)
    bias_l = bias_ref[l]                               # (1, D)
    new_xs = []
    for b in range(batch):                             # static, unrolled (B=2)
      # All R neighbourhood aggregations in ONE MXU call: (R*N, N) @ (N, D).
      y = jnp.dot(adj_ref[b], xs[b], preferred_element_type=jnp.float32)
      # Rank-1 relation-feature contribution: (N, R) @ (R, nb).
      acc = jnp.dot(rowsum_ref[b], relproj_l,
                    preferred_element_type=jnp.float32)        # (N, nb)
      for r in range(num_relations):                   # short unrolled accum
        acc = acc + jnp.dot(y[r * n_nodes:(r + 1) * n_nodes, :], wbx_l[r],
                            preferred_element_type=jnp.float32)
      h = jnp.dot(acc, ww_l, preferred_element_type=jnp.float32) + bias_l
      new_xs.append(jnp.maximum(h, 0.0))               # ReLU, (N, D)
    xs = new_xs

  # fc1 epilogue:  out[b] = sum_n x_b[n, :] @ W3[n]  (== x_b.flatten() @ W).
  rows = []
  for b in range(batch):
    xb = xs[b]                                         # (N, D)
    acc = jnp.dot(xb[0:1, :], w3_ref[0], preferred_element_type=jnp.float32)
    for n in range(1, n_nodes):
      acc = acc + jnp.dot(xb[n:n + 1, :], w3_ref[n],
                          preferred_element_type=jnp.float32)  # (1, 128)
    rows.append(acc)
  o_ref[...] = jnp.concatenate(rows, axis=0) + fcb_ref[...]    # (B, 128)


# ----------------------------------------------------------------------------
# StateNetwork forward (weight folding in plain JAX, hot path in one kernel)
# ----------------------------------------------------------------------------
def state_network_forward(params, adj):
  """adj: (B, R, N_ent, N_ent) float32  ->  (B, 100) float32."""
  b_sz, n_rel, n_nodes, _ = adj.shape
  ent_emb = params["state_ent_emb"]          # (N, E)
  rel_emb = params["state_rel_emb"]          # (R, E)
  e_dim = ent_emb.shape[1]

  # ---- weight folding (pure functions of the parameters, tiny) ----
  wbx_list, relproj_list, ww_list, bias_list = [], [], [], []
  d_in = e_dim
  for layer in params["rgcn_layers"]:
    wb_t = layer["wb_t"]                     # ((d_in+E)*R, nb), (in, out)
    nb = wb_t.shape[1]
    wb3 = wb_t.reshape(n_rel, d_in + e_dim, nb)
    wbx_list.append(wb3[:, :d_in, :])                                # (R, D, nb)
    relproj_list.append(jnp.einsum("re,rek->rk", rel_emb, wb3[:, d_in:, :]))
    ww_list.append(layer["ww_t"])                                    # (nb, D)
    bias_list.append(layer["bias"])                                  # (1, D)
    d_in = layer["ww_t"].shape[1]

  # Requires gat_emb_size == embedding_size (same assumption the module's fc1
  # makes about its input width).
  wbx_all = jnp.stack(wbx_list)              # (L, R, D, nb)
  relproj_all = jnp.stack(relproj_list)      # (L, R, nb)
  ww_all = jnp.stack(ww_list)                # (L, nb, D)
  bias_all = jnp.stack(bias_list)            # (L, 1, D)

  d_last = ww_all.shape[-1]
  fc_w_t = params["fc1_w_t"]                 # (N*D, 100), (in, out)
  d_fc = fc_w_t.shape[1]
  d_pad = ((d_fc + 127) // 128) * 128        # lane-dense output width
  w3 = fc_w_t.reshape(n_nodes, d_last, d_fc)
  w3p = jnp.pad(w3, ((0, 0), (0, 0), (0, d_pad - d_fc)))
  fcbp = jnp.pad(params["fc1_b"], ((0, 0), (0, d_pad - d_fc)))

  # ---- data-side reformat (contiguous reshape + tiny reduction) ----
  adj_flat = adj.reshape(b_sz, n_rel * n_nodes, n_nodes)       # (B, R*N, N)
  rowsums = jnp.transpose(jnp.sum(adj, axis=-1), (0, 2, 1))    # (B, N, R)

  kernel = functools.partial(
      _fused_state_network_kernel,
      num_layers=len(params["rgcn_layers"]),
      num_relations=n_rel, batch=b_sz, n_nodes=n_nodes)

  out_padded = pl.pallas_call(
      kernel,
      out_shape=jax.ShapeDtypeStruct((b_sz, d_pad), jnp.float32),
  )(adj_flat, rowsums, ent_emb, wbx_all, relproj_all, ww_all, bias_all,
    w3p, fcbp)
  return out_padded[:, :d_fc]


# Pure-JAX reference (mirrors the PyTorch forward) for correctness checking.
def state_network_ref(params, adj):
  b_sz, n_rel, n_nodes, _ = adj.shape
  ent = jnp.broadcast_to(params["state_ent_emb"][None],
                         (b_sz,) + params["state_ent_emb"].shape)
  rel = jnp.broadcast_to(params["state_rel_emb"][None],
                         (b_sz,) + params["state_rel_emb"].shape)
  x = ent
  for layer in params["rgcn_layers"]:
    supports = []
    for r in range(n_rel):
      rfeat = jnp.broadcast_to(rel[:, r:r + 1, :],
                               (b_sz, n_nodes, rel.shape[-1]))
      cat = jnp.concatenate([x, rfeat], axis=-1)
      supports.append(jnp.einsum("bij,bjk->bik", adj[:, r], cat))
    s = jnp.concatenate(supports, axis=-1)
    x = jax.nn.relu(s @ layer["wb_t"] @ layer["ww_t"] + layer["bias"])
  x_flat = x.reshape(b_sz, -1)
  return x_flat @ params["fc1_w_t"] + params["fc1_b"]


# ----------------------------------------------------------------------------
# Deterministic parameter construction (synthetic; mirrors module shapes)
# ----------------------------------------------------------------------------
def make_params(key, *, n_ent, n_rel, emb_size, gat_emb_size, num_bases,
                num_layers):
  keys = iter(jax.random.split(key, 4 + 3 * num_layers))
  params = {
      # nn.Embedding.from_pretrained(zeros) in the module; random here so the
      # synthetic test is non-trivial (deterministic via PRNGKey).
      "state_ent_emb": jax.random.normal(next(keys), (n_ent, emb_size),
                                         jnp.float32) * 0.1,
      "state_rel_emb": jax.random.normal(next(keys), (n_rel, emb_size),
                                         jnp.float32) * 0.1,
  }
  layers = []
  d_in = emb_size
  for _ in range(num_layers):
    d_out = gat_emb_size
    in_feats = (d_in + emb_size) * n_rel
    # torch Linear weights are (out, in); generate then transpose to (in, out).
    wb = jax.random.normal(next(keys), (num_bases, in_feats), jnp.float32)
    wb = wb * (1.0 / jnp.sqrt(in_feats))
    ww = jax.random.normal(next(keys), (d_out, num_bases), jnp.float32)
    ww = ww * (1.0 / jnp.sqrt(num_bases))
    bias = jax.random.normal(next(keys), (1, d_out), jnp.float32) * 0.01
    layers.append({"wb_t": wb.T, "ww_t": ww.T, "bias": bias})
    d_in = d_out
  params["rgcn_layers"] = layers

  k_w, k_b = jax.random.split(jax.random.fold_in(key, 123))
  fc_in = n_ent * emb_size  # module: len(vocab_kge) * embedding_size
  fc_w = jax.random.normal(k_w, (100, fc_in), jnp.float32) / jnp.sqrt(fc_in)
  params["fc1_w_t"] = fc_w.T
  params["fc1_b"] = jax.random.normal(k_b, (1, 100), jnp.float32) * 0.01
  return params


# ----------------------------------------------------------------------------
if __name__ == "__main__":
  # Small, self-consistent configuration.
  # Note: the module's fc1 expects n_ent * embedding_size inputs, which only
  # matches the RGCN output when gat_emb_size == embedding_size (as in the
  # original configs), so we set them equal.
  BATCH = 2
  N_ENT = 16        # len(vocab_kge)
  N_REL = 4         # len(vocab_kgr)
  EMB = 32          # embedding_size
  GAT_EMB = 32      # gat_emb_size (== EMB, see note above)
  NUM_BASES = 6
  NUM_LAYERS = 6

  key = jax.random.PRNGKey(0)
  k_params, k_adj = jax.random.split(key)

  params = make_params(k_params, n_ent=N_ENT, n_rel=N_REL, emb_size=EMB,
                       gat_emb_size=GAT_EMB, num_bases=NUM_BASES,
                       num_layers=NUM_LAYERS)

  # Relational adjacency matrices (0/1 floats), one per (batch, relation).
  adj = jax.random.bernoulli(
      k_adj, p=0.3, shape=(BATCH, N_REL, N_ENT, N_ENT)).astype(jnp.float32)

  fwd = jax.jit(state_network_forward)
  out = jax.block_until_ready(fwd(params, adj))
  ref = jax.block_until_ready(state_network_ref(params, adj))

  assert out.shape == (BATCH, 100), out.shape
  assert jnp.allclose(out, ref, rtol=1e-4, atol=1e-4), (
      float(jnp.max(jnp.abs(out - ref))))

  print("KERNEL_OK")
</pallas_src>

<mosaic_0001>
module attributes {stable_mosaic.version = 11 : i64} {
  func.func @_fused_state_network_kernel(%arg0: memref<2x64x16xf32, #tpu.memory_space<vmem>>, %arg1: memref<2x16x4xf32, #tpu.memory_space<vmem>>, %arg2: memref<16x32xf32, #tpu.memory_space<vmem>>, %arg3: memref<6x4x32x6xf32, #tpu.memory_space<vmem>>, %arg4: memref<6x4x6xf32, #tpu.memory_space<vmem>>, %arg5: memref<6x6x32xf32, #tpu.memory_space<vmem>>, %arg6: memref<6x1x32xf32, #tpu.memory_space<vmem>>, %arg7: memref<16x32x128xf32, #tpu.memory_space<vmem>>, %arg8: memref<1x128xf32, #tpu.memory_space<vmem>>, %arg9: memref<2x128xf32, #tpu.memory_space<vmem>>) attributes {dimension_semantics = [], scalar_prefetch = 0 : i64, scratch_operands = 0 : i64, tpu.core_type = #tpu.core_type<tc>} {
    %c0 = arith.constant 0 : index
    %c0_0 = arith.constant 0 : index
    %0 = vector.load %arg2[%c0, %c0_0] : memref<16x32xf32, #tpu.memory_space<vmem>>, vector<16x32xf32>
    %c0_1 = arith.constant 0 : index
    %c0_2 = arith.constant 0 : index
    %c0_3 = arith.constant 0 : index
    %c0_4 = arith.constant 0 : index
    %1 = vector.load %arg3[%c0_1, %c0_2, %c0_3, %c0_4] : memref<6x4x32x6xf32, #tpu.memory_space<vmem>>, vector<1x4x32x6xf32>
    %2 = vector.shape_cast %1 : vector<1x4x32x6xf32> to vector<4x32x6xf32>
    %c0_5 = arith.constant 0 : index
    %c0_6 = arith.constant 0 : index
    %c0_7 = arith.constant 0 : index
    %3 = vector.load %arg4[%c0_5, %c0_6, %c0_7] : memref<6x4x6xf32, #tpu.memory_space<vmem>>, vector<1x4x6xf32>
    %4 = vector.shape_cast %3 : vector<1x4x6xf32> to vector<4x6xf32>
    %c0_8 = arith.constant 0 : index
    %c0_9 = arith.constant 0 : index
    %c0_10 = arith.constant 0 : index
    %5 = vector.load %arg5[%c0_8, %c0_9, %c0_10] : memref<6x6x32xf32, #tpu.memory_space<vmem>>, vector<1x6x32xf32>
    %6 = vector.shape_cast %5 : vector<1x6x32xf32> to vector<6x32xf32>
    %c0_11 = arith.constant 0 : index
    %c0_12 = arith.constant 0 : index
    %c0_13 = arith.constant 0 : index
    %7 = vector.load %arg6[%c0_11, %c0_12, %c0_13] : memref<6x1x32xf32, #tpu.memory_space<vmem>>, vector<1x1x32xf32>
    %8 = vector.shape_cast %7 : vector<1x1x32xf32> to vector<1x32xf32>
    %c0_14 = arith.constant 0 : index
    %c0_15 = arith.constant 0 : index
    %c0_16 = arith.constant 0 : index
    %9 = vector.load %arg0[%c0_14, %c0_15, %c0_16] : memref<2x64x16xf32, #tpu.memory_space<vmem>>, vector<1x64x16xf32>
    %10 = vector.shape_cast %9 : vector<1x64x16xf32> to vector<64x16xf32>
    %cst = arith.constant dense<0.000000e+00> : vector<64x32xf32>
    %11 = tpu.matmul %10, %0, %cst {dimension_numbers = #tpu.dot_dimension_numbers<[1], [0], [0], [1], [0, 0, 1, 1], [], []>} : vector<64x16xf32>, vector<16x32xf32>, vector<64x32xf32> -> vector<64x32xf32>
    %c0_17 = arith.constant 0 : index
    %c0_18 = arith.constant 0 : index
    %c0_19 = arith.constant 0 : index
    %12 = vector.load %arg1[%c0_17, %c0_18, %c0_19] : memref<2x16x4xf32, #tpu.memory_space<vmem>>, vector<1x16x4xf32>
    %13 = vector.shape_cast %12 : vector<1x16x4xf32> to vector<16x4xf32>
    %cst_20 = arith.constant dense<0.000000e+00> : vector<16x6xf32>
    %14 = tpu.matmul %13, %4, %cst_20 {dimension_numbers = #tpu.dot_dimension_numbers<[1], [0], [0], [1], [0, 0, 1, 1], [], []>} : vector<16x4xf32>, vector<4x6xf32>, vector<16x6xf32> -> vector<16x6xf32>
    %15 = vector.extract_strided_slice %11 {offsets = [0, 0], sizes = [16, 32], strides = [1, 1]} : vector<64x32xf32> to vector<16x32xf32>
    %16 = vector.extract_strided_slice %2 {offsets = [0, 0, 0], sizes = [1, 32, 6], strides = [1, 1, 1]} : vector<4x32x6xf32> to vector<1x32x6xf32>
    %17 = vector.shape_cast %16 : vector<1x32x6xf32> to vector<32x6xf32>
    %cst_21 = arith.constant dense<0.000000e+00> : vector<16x6xf32>
    %18 = tpu.matmul %15, %17, %cst_21 {dimension_numbers = #tpu.dot_dimension_numbers<[1], [0], [0], [1], [0, 0, 1, 1], [], []>} : vector<16x32xf32>, vector<32x6xf32>, vector<16x6xf32> -> vector<16x6xf32>
    %19 = arith.addf %14, %18 : vector<16x6xf32>
    %20 = vector.extract_strided_slice %11 {offsets = [16, 0], sizes = [16, 32], strides = [1, 1]} : vector<64x32xf32> to vector<16x32xf32>
    %21 = vector.extract_strided_slice %2 {offsets = [1, 0, 0], sizes = [1, 32, 6], strides = [1, 1, 1]} : vector<4x32x6xf32> to vector<1x32x6xf32>
    %22 = vector.shape_cast %21 : vector<1x32x6xf32> to vector<32x6xf32>
    %cst_22 = arith.constant dense<0.000000e+00> : vector<16x6xf32>
    %23 = tpu.matmul %20, %22, %cst_22 {dimension_numbers = #tpu.dot_dimension_numbers<[1], [0], [0], [1], [0, 0, 1, 1], [], []>} : vector<16x32xf32>, vector<32x6xf32>, vector<16x6xf32> -> vector<16x6xf32>
    %24 = arith.addf %19, %23 : vector<16x6xf32>
    %25 = vector.extract_strided_slice %11 {offsets = [32, 0], sizes = [16, 32], strides = [1, 1]} : vector<64x32xf32> to vector<16x32xf32>
    %26 = vector.extract_strided_slice %2 {offsets = [2, 0, 0], sizes = [1, 32, 6], strides = [1, 1, 1]} : vector<4x32x6xf32> to vector<1x32x6xf32>
    %27 = vector.shape_cast %26 : vector<1x32x6xf32> to vector<32x6xf32>
    %cst_23 = arith.constant dense<0.000000e+00> : vector<16x6xf32>
    %28 = tpu.matmul %25, %27, %cst_23 {dimension_numbers = #tpu.dot_dimension_numbers<[1], [0], [0], [1], [0, 0, 1, 1], [], []>} : vector<16x32xf32>, vector<32x6xf32>, vector<16x6xf32> -> vector<16x6xf32>
    %29 = arith.addf %24, %28 : vector<16x6xf32>
    %30 = vector.extract_strided_slice %11 {offsets = [48, 0], sizes = [16, 32], strides = [1, 1]} : vector<64x32xf32> to vector<16x32xf32>
    %31 = vector.extract_strided_slice %2 {offsets = [3, 0, 0], sizes = [1, 32, 6], strides = [1, 1, 1]} : vector<4x32x6xf32> to vector<1x32x6xf32>
    %32 = vector.shape_cast %31 : vector<1x32x6xf32> to vector<32x6xf32>
    %cst_24 = arith.constant dense<0.000000e+00> : vector<16x6xf32>
    %33 = tpu.matmul %30, %32, %cst_24 {dimension_numbers = #tpu.dot_dimension_numbers<[1], [0], [0], [1], [0, 0, 1, 1], [], []>} : vector<16x32xf32>, vector<32x6xf32>, vector<16x6xf32> -> vector<16x6xf32>
    %34 = arith.addf %29, %33 : vector<16x6xf32>
    %cst_25 = arith.constant dense<0.000000e+00> : vector<16x32xf32>
    %35 = tpu.matmul %34, %6, %cst_25 {dimension_numbers = #tpu.dot_dimension_numbers<[1], [0], [0], [1], [0, 0, 1, 1], [], []>} : vector<16x6xf32>, vector<6x32xf32>, vector<16x32xf32> -> vector<16x32xf32>
    %36 = vector.broadcast %8 : vector<1x32xf32> to vector<16x32xf32>
    %37 = arith.addf %35, %36 : vector<16x32xf32>
    %cst_26 = arith.constant 0.000000e+00 : f32
    %38 = vector.broadcast %cst_26 : f32 to vector<16x32xf32>
    %39 = arith.maximumf %37, %38 : vector<16x32xf32>
    %c1 = arith.constant 1 : index
    %c0_27 = arith.constant 0 : index
    %c0_28 = arith.constant 0 : index
    %40 = vector.load %arg0[%c1, %c0_27, %c0_28] : memref<2x64x16xf32, #tpu.memory_space<vmem>>, vector<1x64x16xf32>
    %41 = vector.shape_cast %40 : vector<1x64x16xf32> to vector<64x16xf32>
    %cst_29 = arith.constant dense<0.000000e+00> : vector<64x32xf32>
    %42 = tpu.matmul %41, %0, %cst_29 {dimension_numbers = #tpu.dot_dimension_numbers<[1], [0], [0], [1], [0, 0, 1, 1], [], []>} : vector<64x16xf32>, vector<16x32xf32>, vector<64x32xf32> -> vector<64x32xf32>
    %c1_30 = arith.constant 1 : index
    %c0_31 = arith.constant 0 : index
    %c0_32 = arith.constant 0 : index
    %43 = vector.load %arg1[%c1_30, %c0_31, %c0_32] : memref<2x16x4xf32, #tpu.memory_space<vmem>>, vector<1x16x4xf32>
    %44 = vector.shape_cast %43 : vector<1x16x4xf32> to vector<16x4xf32>
    %cst_33 = arith.constant dense<0.000000e+00> : vector<16x6xf32>
    %45 = tpu.matmul %44, %4, %cst_33 {dimension_numbers = #tpu.dot_dimension_numbers<[1], [0], [0], [1], [0, 0, 1, 1], [], []>} : vector<16x4xf32>, vector<4x6xf32>, vector<16x6xf32> -> vector<16x6xf32>
    %46 = vector.extract_strided_slice %42 {offsets = [0, 0], sizes = [16, 32], strides = [1, 1]} : vector<64x32xf32> to vector<16x32xf32>
    %47 = vector.extract_strided_slice %2 {offsets = [0, 0, 0], sizes = [1, 32, 6], strides = [1, 1, 1]} : vector<4x32x6xf32> to vector<1x32x6xf32>
    %48 = vector.shape_cast %47 : vector<1x32x6xf32> to vector<32x6xf32>
    %cst_34 = arith.constant dense<0.000000e+00> : vector<16x6xf32>
    %49 = tpu.matmul %46, %48, %cst_34 {dimension_numbers = #tpu.dot_dimension_numbers<[1], [0], [0], [1], [0, 0, 1, 1], [], []>} : vector<16x32xf32>, vector<32x6xf32>, vector<16x6xf32> -> vector<16x6xf32>
    %50 = arith.addf %45, %49 : vector<16x6xf32>
    %51 = vector.extract_strided_slice %42 {offsets = [16, 0], sizes = [16, 32], strides = [1, 1]} : vector<64x32xf32> to vector<16x32xf32>
    %52 = vector.extract_strided_slice %2 {offsets = [1, 0, 0], sizes = [1, 32, 6], strides = [1, 1, 1]} : vector<4x32x6xf32> to vector<1x32x6xf32>
    %53 = vector.shape_cast %52 : vector<1x32x6xf32> to vector<32x6xf32>
    %cst_35 = arith.constant dense<0.000000e+00> : vector<16x6xf32>
    %54 = tpu.matmul %51, %53, %cst_35 {dimension_numbers = #tpu.dot_dimension_numbers<[1], [0], [0], [1], [0, 0, 1, 1], [], []>} : vector<16x32xf32>, vector<32x6xf32>, vector<16x6xf32> -> vector<16x6xf32>
    %55 = arith.addf %50, %54 : vector<16x6xf32>
    %56 = vector.extract_strided_slice %42 {offsets = [32, 0], sizes = [16, 32], strides = [1, 1]} : vector<64x32xf32> to vector<16x32xf32>
    %57 = vector.extract_strided_slice %2 {offsets = [2, 0, 0], sizes = [1, 32, 6], strides = [1, 1, 1]} : vector<4x32x6xf32> to vector<1x32x6xf32>
    %58 = vector.shape_cast %57 : vector<1x32x6xf32> to vector<32x6xf32>
    %cst_36 = arith.constant dense<0.000000e+00> : vector<16x6xf32>
    %59 = tpu.matmul %56, %58, %cst_36 {dimension_numbers = #tpu.dot_dimension_numbers<[1], [0], [0], [1], [0, 0, 1, 1], [], []>} : vector<16x32xf32>, vector<32x6xf32>, vector<16x6xf32> -> vector<16x6xf32>
    %60 = arith.addf %55, %59 : vector<16x6xf32>
    %61 = vector.extract_strided_slice %42 {offsets = [48, 0], sizes = [16, 32], strides = [1, 1]} : vector<64x32xf32> to vector<16x32xf32>
    %62 = vector.extract_strided_slice %2 {offsets = [3, 0, 0], sizes = [1, 32, 6], strides = [1, 1, 1]} : vector<4x32x6xf32> to vector<1x32x6xf32>
    %63 = vector.shape_cast %62 : vector<1x32x6xf32> to vector<32x6xf32>
    %cst_37 = arith.constant dense<0.000000e+00> : vector<16x6xf32>
    %64 = tpu.matmul %61, %63, %cst_37 {dimension_numbers = #tpu.dot_dimension_numbers<[1], [0], [0], [1], [0, 0, 1, 1], [], []>} : vector<16x32xf32>, vector<32x6xf32>, vector<16x6xf32> -> vector<16x6xf32>
    %65 = arith.addf %60, %64 : vector<16x6xf32>
    %cst_38 = arith.constant dense<0.000000e+00> : vector<16x32xf32>
    %66 = tpu.matmul %65, %6, %cst_38 {dimension_numbers = #tpu.dot_dimension_numbers<[1], [0], [0], [1], [0, 0, 1, 1], [], []>} : vector<16x6xf32>, vector<6x32xf32>, vector<16x32xf32> -> vector<16x32xf32>
    %67 = vector.broadcast %8 : vector<1x32xf32> to vector<16x32xf32>
    %68 = arith.addf %66, %67 : vector<16x32xf32>
    %cst_39 = arith.constant 0.000000e+00 : f32
    %69 = vector.broadcast %cst_39 : f32 to vector<16x32xf32>
    %70 = arith.maximumf %68, %69 : vector<16x32xf32>
    %c1_40 = arith.constant 1 : index
    %c0_41 = arith.constant 0 : index
    %c0_42 = arith.constant 0 : index
    %c0_43 = arith.constant 0 : index
    %71 = vector.load %arg3[%c1_40, %c0_41, %c0_42, %c0_43] : memref<6x4x32x6xf32, #tpu.memory_space<vmem>>, vector<1x4x32x6xf32>
    %72 = vector.shape_cast %71 : vector<1x4x32x6xf32> to vector<4x32x6xf32>
    %c1_44 = arith.constant 1 : index
    %c0_45 = arith.constant 0 : index
    %c0_46 = arith.constant 0 : index
    %73 = vector.load %arg4[%c1_44, %c0_45, %c0_46] : memref<6x4x6xf32, #tpu.memory_space<vmem>>, vector<1x4x6xf32>
    %74 = vector.shape_cast %73 : vector<1x4x6xf32> to vector<4x6xf32>
    %c1_47 = arith.constant 1 : index
    %c0_48 = arith.constant 0 : index
    %c0_49 = arith.constant 0 : index
    %75 = vector.load %arg5[%c1_47, %c0_48, %c0_49] : memref<6x6x32xf32, #tpu.memory_space<vmem>>, vector<1x6x32xf32>
    %76 = vector.shape_cast %75 : vector<1x6x32xf32> to vector<6x32xf32>
    %c1_50 = arith.constant 1 : index
    %c0_51 = arith.constant 0 : index
    %c0_52 = arith.constant 0 : index
    %77 = vector.load %arg6[%c1_50, %c0_51, %c0_52] : memref<6x1x32xf32, #tpu.memory_space<vmem>>, vector<1x1x32xf32>
    %78 = vector.shape_cast %77 : vector<1x1x32xf32> to vector<1x32xf32>
    %c0_53 = arith.constant 0 : index
    %c0_54 = arith.constant 0 : index
    %c0_55 = arith.constant 0 : index
    %79 = vector.load %arg0[%c0_53, %c0_54, %c0_55] : memref<2x64x16xf32, #tpu.memory_space<vmem>>, vector<1x64x16xf32>
    %80 = vector.shape_cast %79 : vector<1x64x16xf32> to vector<64x16xf32>
    %cst_56 = arith.constant dense<0.000000e+00> : vector<64x32xf32>
    %81 = tpu.matmul %80, %39, %cst_56 {dimension_numbers = #tpu.dot_dimension_numbers<[1], [0], [0], [1], [0, 0, 1, 1], [], []>} : vector<64x16xf32>, vector<16x32xf32>, vector<64x32xf32> -> vector<64x32xf32>
    %c0_57 = arith.constant 0 : index
    %c0_58 = arith.constant 0 : index
    %c0_59 = arith.constant 0 : index
    %82 = vector.load %arg1[%c0_57, %c0_58, %c0_59] : memref<2x16x4xf32, #tpu.memory_space<vmem>>, vector<1x16x4xf32>
    %83 = vector.shape_cast %82 : vector<1x16x4xf32> to vector<16x4xf32>
    %cst_60 = arith.constant dense<0.000000e+00> : vector<16x6xf32>
    %84 = tpu.matmul %83, %74, %cst_60 {dimension_numbers = #tpu.dot_dimension_numbers<[1], [0], [0], [1], [0, 0, 1, 1], [], []>} : vector<16x4xf32>, vector<4x6xf32>, vector<16x6xf32> -> vector<16x6xf32>
    %85 = vector.extract_strided_slice %81 {offsets = [0, 0], sizes = [16, 32], strides = [1, 1]} : vector<64x32xf32> to vector<16x32xf32>
    %86 = vector.extract_strided_slice %72 {offsets = [0, 0, 0], sizes = [1, 32, 6], strides = [1, 1, 1]} : vector<4x32x6xf32> to vector<1x32x6xf32>
    %87 = vector.shape_cast %86 : vector<1x32x6xf32> to vector<32x6xf32>
    %cst_61 = arith.constant dense<0.000000e+00> : vector<16x6xf32>
    %88 = tpu.matmul %85, %87, %cst_61 {dimension_numbers = #tpu.dot_dimension_numbers<[1], [0], [0], [1], [0, 0, 1, 1], [], []>} : vector<16x32xf32>, vector<32x6xf32>, vector<16x6xf32> -> vector<16x6xf32>
    %89 = arith.addf %84, %88 : vector<16x6xf32>
    %90 = vector.extract_strided_slice %81 {offsets = [16, 0], sizes = [16, 32], strides = [1, 1]} : vector<64x32xf32> to vector<16x32xf32>
    %91 = vector.extract_strided_slice %72 {offsets = [1, 0, 0], sizes = [1, 32, 6], strides = [1, 1, 1]} : vector<4x32x6xf32> to vector<1x32x6xf32>
    %92 = vector.shape_cast %91 : vector<1x32x6xf32> to vector<32x6xf32>
    %cst_62 = arith.constant dense<0.000000e+00> : vector<16x6xf32>
    %93 = tpu.matmul %90, %92, %cst_62 {dimension_numbers = #tpu.dot_dimension_numbers<[1], [0], [0], [1], [0, 0, 1, 1], [], []>} : vector<16x32xf32>, vector<32x6xf32>, vector<16x6xf32> -> vector<16x6xf32>
    %94 = arith.addf %89, %93 : vector<16x6xf32>
    %95 = vector.extract_strided_slice %81 {offsets = [32, 0], sizes = [16, 32], strides = [1, 1]} : vector<64x32xf32> to vector<16x32xf32>
    %96 = vector.extract_strided_slice %72 {offsets = [2, 0, 0], sizes = [1, 32, 6], strides = [1, 1, 1]} : vector<4x32x6xf32> to vector<1x32x6xf32>
    %97 = vector.shape_cast %96 : vector<1x32x6xf32> to vector<32x6xf32>
    %cst_63 = arith.constant dense<0.000000e+00> : vector<16x6xf32>
    %98 = tpu.matmul %95, %97, %cst_63 {dimension_numbers = #tpu.dot_dimension_numbers<[1], [0], [0], [1], [0, 0, 1, 1], [], []>} : vector<16x32xf32>, vector<32x6xf32>, vector<16x6xf32> -> vector<16x6xf32>
    %99 = arith.addf %94, %98 : vector<16x6xf32>
    %100 = vector.extract_strided_slice %81 {offsets = [48, 0], sizes = [16, 32], strides = [1, 1]} : vector<64x32xf32> to vector<16x32xf32>
    %101 = vector.extract_strided_slice %72 {offsets = [3, 0, 0], sizes = [1, 32, 6], strides = [1, 1, 1]} : vector<4x32x6xf32> to vector<1x32x6xf32>
    %102 = vector.shape_cast %101 : vector<1x32x6xf32> to vector<32x6xf32>
    %cst_64 = arith.constant dense<0.000000e+00> : vector<16x6xf32>
    %103 = tpu.matmul %100, %102, %cst_64 {dimension_numbers = #tpu.dot_dimension_numbers<[1], [0], [0], [1], [0, 0, 1, 1], [], []>} : vector<16x32xf32>, vector<32x6xf32>, vector<16x6xf32> -> vector<16x6xf32>
    %104 = arith.addf %99, %103 : vector<16x6xf32>
    %cst_65 = arith.constant dense<0.000000e+00> : vector<16x32xf32>
    %105 = tpu.matmul %104, %76, %cst_65 {dimension_numbers = #tpu.dot_dimension_numbers<[1], [0], [0], [1], [0, 0, 1, 1], [], []>} : vector<16x6xf32>, vector<6x32xf32>, vector<16x32xf32> -> vector<16x32xf32>
    %106 = vector.broadcast %78 : vector<1x32xf32> to vector<16x32xf32>
    %107 = arith.addf %105, %106 : vector<16x32xf32>
    %cst_66 = arith.constant 0.000000e+00 : f32
    %108 = vector.broadcast %cst_66 : f32 to vector<16x32xf32>
    %109 = arith.maximumf %107, %108 : vector<16x32xf32>
    %c1_67 = arith.constant 1 : index
    %c0_68 = arith.constant 0 : index
    %c0_69 = arith.constant 0 : index
    %110 = vector.load %arg0[%c1_67, %c0_68, %c0_69] : memref<2x64x16xf32, #tpu.memory_space<vmem>>, vector<1x64x16xf32>
    %111 = vector.shape_cast %110 : vector<1x64x16xf32> to vector<64x16xf32>
    %cst_70 = arith.constant dense<0.000000e+00> : vector<64x32xf32>
    %112 = tpu.matmul %111, %70, %cst_70 {dimension_numbers = #tpu.dot_dimension_numbers<[1], [0], [0], [1], [0, 0, 1, 1], [], []>} : vector<64x16xf32>, vector<16x32xf32>, vector<64x32xf32> -> vector<64x32xf32>
    %c1_71 = arith.constant 1 : index
    %c0_72 = arith.constant 0 : index
    %c0_73 = arith.constant 0 : index
    %113 = vector.load %arg1[%c1_71, %c0_72, %c0_73] : memref<2x16x4xf32, #tpu.memory_space<vmem>>, vector<1x16x4xf32>
    %114 = vector.shape_cast %113 : vector<1x16x4xf32> to vector<16x4xf32>
    %cst_74 = arith.constant dense<0.000000e+00> : vector<16x6xf32>
    %115 = tpu.matmul %114, %74, %cst_74 {dimension_numbers = #tpu.dot_dimension_numbers<[1], [0], [0], [1], [0, 0, 1, 1], [], []>} : vector<16x4xf32>, vector<4x6xf32>, vector<16x6xf32> -> vector<16x6xf32>
    %116 = vector.extract_strided_slice %112 {offsets = [0, 0], sizes = [16, 32], strides = [1, 1]} : vector<64x32xf32> to vector<16x32xf32>
    %117 = vector.extract_strided_slice %72 {offsets = [0, 0, 0], sizes = [1, 32, 6], strides = [1, 1, 1]} : vector<4x32x6xf32> to vector<1x32x6xf32>
    %118 = vector.shape_cast %117 : vector<1x32x6xf32> to vector<32x6xf32>
    %cst_75 = arith.constant dense<0.000000e+00> : vector<16x6xf32>
    %119 = tpu.matmul %116, %118, %cst_75 {dimension_numbers = #tpu.dot_dimension_numbers<[1], [0], [0], [1], [0, 0, 1, 1], [], []>} : vector<16x32xf32>, vector<32x6xf32>, vector<16x6xf32> -> vector<16x6xf32>
    %120 = arith.addf %115, %119 : vector<16x6xf32>
    %121 = vector.extract_strided_slice %112 {offsets = [16, 0], sizes = [16, 32], strides = [1, 1]} : vector<64x32xf32> to vector<16x32xf32>
    %122 = vector.extract_strided_slice %72 {offsets = [1, 0, 0], sizes = [1, 32, 6], strides = [1, 1, 1]} : vector<4x32x6xf32> to vector<1x32x6xf32>
    %123 = vector.shape_cast %122 : vector<1x32x6xf32> to vector<32x6xf32>
    %cst_76 = arith.constant dense<0.000000e+00> : vector<16x6xf32>
    %124 = tpu.matmul %121, %123, %cst_76 {dimension_numbers = #tpu.dot_dimension_numbers<[1], [0], [0], [1], [0, 0, 1, 1], [], []>} : vector<16x32xf32>, vector<32x6xf32>, vector<16x6xf32> -> vector<16x6xf32>
    %125 = arith.addf %120, %124 : vector<16x6xf32>
    %126 = vector.extract_strided_slice %112 {offsets = [32, 0], sizes = [16, 32], strides = [1, 1]} : vector<64x32xf32> to vector<16x32xf32>
    %127 = vector.extract_strided_slice %72 {offsets = [2, 0, 0], sizes = [1, 32, 6], strides = [1, 1, 1]} : vector<4x32x6xf32> to vector<1x32x6xf32>
    %128 = vector.shape_cast %127 : vector<1x32x6xf32> to vector<32x6xf32>
    %cst_77 = arith.constant dense<0.000000e+00> : vector<16x6xf32>
    %129 = tpu.matmul %126, %128, %cst_77 {dimension_numbers = #tpu.dot_dimension_numbers<[1], [0], [0], [1], [0, 0, 1, 1], [], []>} : vector<16x32xf32>, vector<32x6xf32>, vector<16x6xf32> -> vector<16x6xf32>
    %130 = arith.addf %125, %129 : vector<16x6xf32>
    %131 = vector.extract_strided_slice %112 {offsets = [48, 0], sizes = [16, 32], strides = [1, 1]} : vector<64x32xf32> to vector<16x32xf32>
    %132 = vector.extract_strided_slice %72 {offsets = [3, 0, 0], sizes = [1, 32, 6], strides = [1, 1, 1]} : vector<4x32x6xf32> to vector<1x32x6xf32>
    %133 = vector.shape_cast %132 : vector<1x32x6xf32> to vector<32x6xf32>
    %cst_78 = arith.constant dense<0.000000e+00> : vector<16x6xf32>
    %134 = tpu.matmul %131, %133, %cst_78 {dimension_numbers = #tpu.dot_dimension_numbers<[1], [0], [0], [1], [0, 0, 1, 1], [], []>} : vector<16x32xf32>, vector<32x6xf32>, vector<16x6xf32> -> vector<16x6xf32>
    %135 = arith.addf %130, %134 : vector<16x6xf32>
    %cst_79 = arith.constant dense<0.000000e+00> : vector<16x32xf32>
    %136 = tpu.matmul %135, %76, %cst_79 {dimension_numbers = #tpu.dot_dimension_numbers<[1], [0], [0], [1], [0, 0, 1, 1], [], []>} : vector<16x6xf32>, vector<6x32xf32>, vector<16x32xf32> -> vector<16x32xf32>
    %137 = vector.broadcast %78 : vector<1x32xf32> to vector<16x32xf32>
    %138 = arith.addf %136, %137 : vector<16x32xf32>
    %cst_80 = arith.constant 0.000000e+00 : f32
    %139 = vector.broadcast %cst_80 : f32 to vector<16x32xf32>
    %140 = arith.maximumf %138, %139 : vector<16x32xf32>
    %c2 = arith.constant 2 : index
    %c0_81 = arith.constant 0 : index
    %c0_82 = arith.constant 0 : index
    %c0_83 = arith.constant 0 : index
    %141 = vector.load %arg3[%c2, %c0_81, %c0_82, %c0_83] : memref<6x4x32x6xf32, #tpu.memory_space<vmem>>, vector<1x4x32x6xf32>
    %142 = vector.shape_cast %141 : vector<1x4x32x6xf32> to vector<4x32x6xf32>
    %c2_84 = arith.constant 2 : index
    %c0_85 = arith.constant 0 : index
    %c0_86 = arith.constant 0 : index
    %143 = vector.load %arg4[%c2_84, %c0_85, %c0_86] : memref<6x4x6xf32, #tpu.memory_space<vmem>>, vector<1x4x6xf32>
    %144 = vector.shape_cast %143 : vector<1x4x6xf32> to vector<4x6xf32>
    %c2_87 = arith.constant 2 : index
    %c0_88 = arith.constant 0 : index
    %c0_89 = arith.constant 0 : index
    %145 = vector.load %arg5[%c2_87, %c0_88, %c0_89] : memref<6x6x32xf32, #tpu.memory_space<vmem>>, vector<1x6x32xf32>
    %146 = vector.shape_cast %145 : vector<1x6x32xf32> to vector<6x32xf32>
    %c2_90 = arith.constant 2 : index
    %c0_91 = arith.constant 0 : index
    %c0_92 = arith.constant 0 : index
    %147 = vector.load %arg6[%c2_90, %c0_91, %c0_92] : memref<6x1x32xf32, #tpu.memory_space<vmem>>, vector<1x1x32xf32>
    %148 = vector.shape_cast %147 : vector<1x1x32xf32> to vector<1x32xf32>
    %c0_93 = arith.constant 0 : index
    %c0_94 = arith.constant 0 : index
    %c0_95 = arith.constant 0 : index
    %149 = vector.load %arg0[%c0_93, %c0_94, %c0_95] : memref<2x64x16xf32, #tpu.memory_space<vmem>>, vector<1x64x16xf32>
    %150 = vector.shape_cast %149 : vector<1x64x16xf32> to vector<64x16xf32>
    %cst_96 = arith.constant dense<0.000000e+00> : vector<64x32xf32>
    %151 = tpu.matmul %150, %109, %cst_96 {dimension_numbers = #tpu.dot_dimension_numbers<[1], [0], [0], [1], [0, 0, 1, 1], [], []>} : vector<64x16xf32>, vector<16x32xf32>, vector<64x32xf32> -> vector<64x32xf32>
    %c0_97 = arith.constant 0 : index
    %c0_98 = arith.constant 0 : index
    %c0_99 = arith.constant 0 : index
    %152 = vector.load %arg1[%c0_97, %c0_98, %c0_99] : memref<2x16x4xf32, #tpu.memory_space<vmem>>, vector<1x16x4xf32>
    %153 = vector.shape_cast %152 : vector<1x16x4xf32> to vector<16x4xf32>
    %cst_100 = arith.constant dense<0.000000e+00> : vector<16x6xf32>
    %154 = tpu.matmul %153, %144, %cst_100 {dimension_numbers = #tpu.dot_dimension_numbers<[1], [0], [0], [1], [0, 0, 1, 1], [], []>} : vector<16x4xf32>, vector<4x6xf32>, vector<16x6xf32> -> vector<16x6xf32>
    %155 = vector.extract_strided_slice %151 {offsets = [0, 0], sizes = [16, 32], strides = [1, 1]} : vector<64x32xf32> to vector<16x32xf32>
    %156 = vector.extract_strided_slice %142 {offsets = [0, 0, 0], sizes = [1, 32, 6], strides = [1, 1, 1]} : vector<4x32x6xf32> to vector<1x32x6xf32>
    %157 = vector.shape_cast %156 : vector<1x32x6xf32> to vector<32x6xf32>
    %cst_101 = arith.constant dense<0.000000e+00> : vector<16x6xf32>
    %158 = tpu.matmul %155, %157, %cst_101 {dimension_numbers = #tpu.dot_dimension_numbers<[1], [0], [0], [1], [0, 0, 1, 1], [], []>} : vector<16x32xf32>, vector<32x6xf32>, vector<16x6xf32> -> vector<16x6xf32>
    %159 = arith.addf %154, %158 : vector<16x6xf32>
    %160 = vector.extract_strided_slice %151 {offsets = [16, 0], sizes = [16, 32], strides = [1, 1]} : vector<64x32xf32> to vector<16x32xf32>
    %161 = vector.extract_strided_slice %142 {offsets = [1, 0, 0], sizes = [1, 32, 6], strides = [1, 1, 1]} : vector<4x32x6xf32> to vector<1x32x6xf32>
    %162 = vector.shape_cast %161 : vector<1x32x6xf32> to vector<32x6xf32>
    %cst_102 = arith.constant dense<0.000000e+00> : vector<16x6xf32>
    %163 = tpu.matmul %160, %162, %cst_102 {dimension_numbers = #tpu.dot_dimension_numbers<[1], [0], [0], [1], [0, 0, 1, 1], [], []>} : vector<16x32xf32>, vector<32x6xf32>, vector<16x6xf32> -> vector<16x6xf32>
    %164 = arith.addf %159, %163 : vector<16x6xf32>
    %165 = vector.extract_strided_slice %151 {offsets = [32, 0], sizes = [16, 32], strides = [1, 1]} : vector<64x32xf32> to vector<16x32xf32>
    %166 = vector.extract_strided_slice %142 {offsets = [2, 0, 0], sizes = [1, 32, 6], strides = [1, 1, 1]} : vector<4x32x6xf32> to vector<1x32x6xf32>
    %167 = vector.shape_cast %166 : vector<1x32x6xf32> to vector<32x6xf32>
    %cst_103 = arith.constant dense<0.000000e+00> : vector<16x6xf32>
    %168 = tpu.matmul %165, %167, %cst_103 {dimension_numbers = #tpu.dot_dimension_numbers<[1], [0], [0], [1], [0, 0, 1, 1], [], []>} : vector<16x32xf32>, vector<32x6xf32>, vector<16x6xf32> -> vector<16x6xf32>
    %169 = arith.addf %164, %168 : vector<16x6xf32>
    %170 = vector.extract_strided_slice %151 {offsets = [48, 0], sizes = [16, 32], strides = [1, 1]} : vector<64x32xf32> to vector<16x32xf32>
    %171 = vector.extract_strided_slice %142 {offsets = [3, 0, 0], sizes = [1, 32, 6], strides = [1, 1, 1]} : vector<4x32x6xf32> to vector<1x32x6xf32>
    %172 = vector.shape_cast %171 : vector<1x32x6xf32> to vector<32x6xf32>
    %cst_104 = arith.constant dense<0.000000e+00> : vector<16x6xf32>
    %173 = tpu.matmul %170, %172, %cst_104 {dimension_numbers = #tpu.dot_dimension_numbers<[1], [0], [0], [1], [0, 0, 1, 1], [], []>} : vector<16x32xf32>, vector<32x6xf32>, vector<16x6xf32> -> vector<16x6xf32>
    %174 = arith.addf %169, %173 : vector<16x6xf32>
    %cst_105 = arith.constant dense<0.000000e+00> : vector<16x32xf32>
    %175 = tpu.matmul %174, %146, %cst_105 {dimension_numbers = #tpu.dot_dimension_numbers<[1], [0], [0], [1], [0, 0, 1, 1], [], []>} : vector<16x6xf32>, vector<6x32xf32>, vector<16x32xf32> -> vector<16x32xf32>
    %176 = vector.broadcast %148 : vector<1x32xf32> to vector<16x32xf32>
    %177 = arith.addf %175, %176 : vector<16x32xf32>
    %cst_106 = arith.constant 0.000000e+00 : f32
    %178 = vector.broadcast %cst_106 : f32 to vector<16x32xf32>
    %179 = arith.maximumf %177, %178 : vector<16x32xf32>
    %c1_107 = arith.constant 1 : index
    %c0_108 = arith.constant 0 : index
    %c0_109 = arith.constant 0 : index
    %180 = vector.load %arg0[%c1_107, %c0_108, %c0_109] : memref<2x64x16xf32, #tpu.memory_space<vmem>>, vector<1x64x16xf32>
    %181 = vector.shape_cast %180 : vector<1x64x16xf32> to vector<64x16xf32>
    %cst_110 = arith.constant dense<0.000000e+00> : vector<64x32xf32>
    %182 = tpu.matmul %181, %140, %cst_110 {dimension_numbers = #tpu.dot_dimension_numbers<[1], [0], [0], [1], [0, 0, 1, 1], [], []>} : vector<64x16xf32>, vector<16x32xf32>, vector<64x32xf32> -> vector<64x32xf32>
    %c1_111 = arith.constant 1 : index
    %c0_112 = arith.constant 0 : index
    %c0_113 = arith.constant 0 : index
    %183 = vector.load %arg1[%c1_111, %c0_112, %c0_113] : memref<2x16x4xf32, #tpu.memory_space<vmem>>, vector<1x16x4xf32>
    %184 = vector.shape_cast %183 : vector<1x16x4xf32> to vector<16x4xf32>
    %cst_114 = arith.constant dense<0.000000e+00> : vector<16x6xf32>
    %185 = tpu.matmul %184, %144, %cst_114 {dimension_numbers = #tpu.dot_dimension_numbers<[1], [0], [0], [1], [0, 0, 1, 1], [], []>} : vector<16x4xf32>, vector<4x6xf32>, vector<16x6xf32> -> vector<16x6xf32>
    %186 = vector.extract_strided_slice %182 {offsets = [0, 0], sizes = [16, 32], strides = [1, 1]} : vector<64x32xf32> to vector<16x32xf32>
    %187 = vector.extract_strided_slice %142 {offsets = [0, 0, 0], sizes = [1, 32, 6], strides = [1, 1, 1]} : vector<4x32x6xf32> to vector<1x32x6xf32>
    %188 = vector.shape_cast %187 : vector<1x32x6xf32> to vector<32x6xf32>
    %cst_115 = arith.constant dense<0.000000e+00> : vector<16x6xf32>
    %189 = tpu.matmul %186, %188, %cst_115 {dimension_numbers = #tpu.dot_dimension_numbers<[1], [0], [0], [1], [0, 0, 1, 1], [], []>} : vector<16x32xf32>, vector<32x6xf32>, vector<16x6xf32> -> vector<16x6xf32>
    %190 = arith.addf %185, %189 : vector<16x6xf32>
    %191 = vector.extract_strided_slice %182 {offsets = [16, 0], sizes = [16, 32], strides = [1, 1]} : vector<64x32xf32> to vector<16x32xf32>
    %192 = vector.extract_strided_slice %142 {offsets = [1, 0, 0], sizes = [1, 32, 6], strides = [1, 1, 1]} : vector<4x32x6xf32> to vector<1x32x6xf32>
    %193 = vector.shape_cast %192 : vector<1x32x6xf32> to vector<32x6xf32>
    %cst_116 = arith.constant dense<0.000000e+00> : vector<16x6xf32>
    %194 = tpu.matmul %191, %193, %cst_116 {dimension_numbers = #tpu.dot_dimension_numbers<[1], [0], [0], [1], [0, 0, 1, 1], [], []>} : vector<16x32xf32>, vector<32x6xf32>, vector<16x6xf32> -> vector<16x6xf32>
    %195 = arith.addf %190, %194 : vector<16x6xf32>
    %196 = vector.extract_strided_slice %182 {offsets = [32, 0], sizes = [16, 32], strides = [1, 1]} : vector<64x32xf32> to vector<16x32xf32>
    %197 = vector.extract_strided_slice %142 {offsets = [2, 0, 0], sizes = [1, 32, 6], strides = [1, 1, 1]} : vector<4x32x6xf32> to vector<1x32x6xf32>
    %198 = vector.shape_cast %197 : vector<1x32x6xf32> to vector<32x6xf32>
    %cst_117 = arith.constant dense<0.000000e+00> : vector<16x6xf32>
    %199 = tpu.matmul %196, %198, %cst_117 {dimension_numbers = #tpu.dot_dimension_numbers<[1], [0], [0], [1], [0, 0, 1, 1], [], []>} : vector<16x32xf32>, vector<32x6xf32>, vector<16x6xf32> -> vector<16x6xf32>
    %200 = arith.addf %195, %199 : vector<16x6xf32>
    %201 = vector.extract_strided_slice %182 {offsets = [48, 0], sizes = [16, 32], strides = [1, 1]} : vector<64x32xf32> to vector<16x32xf32>
    %202 = vector.extract_strided_slice %142 {offsets = [3, 0, 0], sizes = [1, 32, 6], strides = [1, 1, 1]} : vector<4x32x6xf32> to vector<1x32x6xf32>
    %203 = vector.shape_cast %202 : vector<1x32x6xf32> to vector<32x6xf32>
    %cst_118 = arith.constant dense<0.000000e+00> : vector<16x6xf32>
    %204 = tpu.matmul %201, %203, %cst_118 {dimension_numbers = #tpu.dot_dimension_numbers<[1], [0], [0], [1], [0, 0, 1, 1], [], []>} : vector<16x32xf32>, vector<32x6xf32>, vector<16x6xf32> -> vector<16x6xf32>
    %205 = arith.addf %200, %204 : vector<16x6xf32>
    %cst_119 = arith.constant dense<0.000000e+00> : vector<16x32xf32>
    %206 = tpu.matmul %205, %146, %cst_119 {dimension_numbers = #tpu.dot_dimension_numbers<[1], [0], [0], [1], [0, 0, 1, 1], [], []>} : vector<16x6xf32>, vector<6x32xf32>, vector<16x32xf32> -> vector<16x32xf32>
    %207 = vector.broadcast %148 : vector<1x32xf32> to vector<16x32xf32>
    %208 = arith.addf %206, %207 : vector<16x32xf32>
    %cst_120 = arith.constant 0.000000e+00 : f32
    %209 = vector.broadcast %cst_120 : f32 to vector<16x32xf32>
    %210 = arith.maximumf %208, %209 : vector<16x32xf32>
    %c3 = arith.constant 3 : index
    %c0_121 = arith.constant 0 : index
    %c0_122 = arith.constant 0 : index
    %c0_123 = arith.constant 0 : index
    %211 = vector.load %arg3[%c3, %c0_121, %c0_122, %c0_123] : memref<6x4x32x6xf32, #tpu.memory_space<vmem>>, vector<1x4x32x6xf32>
    %212 = vector.shape_cast %211 : vector<1x4x32x6xf32> to vector<4x32x6xf32>
    %c3_124 = arith.constant 3 : index
    %c0_125 = arith.constant 0 : index
    %c0_126 = arith.constant 0 : index
    %213 = vector.load %arg4[%c3_124, %c0_125, %c0_126] : memref<6x4x6xf32, #tpu.memory_space<vmem>>, vector<1x4x6xf32>
    %214 = vector.shape_cast %213 : vector<1x4x6xf32> to vector<4x6xf32>
    %c3_127 = arith.constant 3 : index
    %c0_128 = arith.constant 0 : index
    %c0_129 = arith.constant 0 : index
    %215 = vector.load %arg5[%c3_127, %c0_128, %c0_129] : memref<6x6x32xf32, #tpu.memory_space<vmem>>, vector<1x6x32xf32>
    %216 = vector.shape_cast %215 : vector<1x6x32xf32> to vector<6x32xf32>
    %c3_130 = arith.constant 3 : index
    %c0_131 = arith.constant 0 : index
    %c0_132 = arith.constant 0 : index
    %217 = vector.load %arg6[%c3_130, %c0_131, %c0_132] : memref<6x1x32xf32, #tpu.memory_space<vmem>>, vector<1x1x32xf32>
    %218 = vector.shape_cast %217 : vector<1x1x32xf32> to vector<1x32xf32>
    %c0_133 = arith.constant 0 : index
    %c0_134 = arith.constant 0 : index
    %c0_135 = arith.constant 0 : index
    %219 = vector.load %arg0[%c0_133, %c0_134, %c0_135] : memref<2x64x16xf32, #tpu.memory_space<vmem>>, vector<1x64x16xf32>
    %220 = vector.shape_cast %219 : vector<1x64x16xf32> to vector<64x16xf32>
    %cst_136 = arith.constant dense<0.000000e+00> : vector<64x32xf32>
    %221 = tpu.matmul %220, %179, %cst_136 {dimension_numbers = #tpu.dot_dimension_numbers<[1], [0], [0], [1], [0, 0, 1, 1], [], []>} : vector<64x16xf32>, vector<16x32xf32>, vector<64x32xf32> -> vector<64x32xf32>
    %c0_137 = arith.constant 0 : index
    %c0_138 = arith.constant 0 : index
    %c0_139 = arith.constant 0 : index
    %222 = vector.load %arg1[%c0_137, %c0_138, %c0_139] : memref<2x16x4xf32, #tpu.memory_space<vmem>>, vector<1x16x4xf32>
    %223 = vector.shape_cast %222 : vector<1x16x4xf32> to vector<16x4xf32>
    %cst_140 = arith.constant dense<0.000000e+00> : vector<16x6xf32>
    %224 = tpu.matmul %223, %214, %cst_140 {dimension_numbers = #tpu.dot_dimension_numbers<[1], [0], [0], [1], [0, 0, 1, 1], [], []>} : vector<16x4xf32>, vector<4x6xf32>, vector<16x6xf32> -> vector<16x6xf32>
    %225 = vector.extract_strided_slice %221 {offsets = [0, 0], sizes = [16, 32], strides = [1, 1]} : vector<64x32xf32> to vector<16x32xf32>
    %226 = vector.extract_strided_slice %212 {offsets = [0, 0, 0], sizes = [1, 32, 6], strides = [1, 1, 1]} : vector<4x32x6xf32> to vector<1x32x6xf32>
    %227 = vector.shape_cast %226 : vector<1x32x6xf32> to vector<32x6xf32>
    %cst_141 = arith.constant dense<0.000000e+00> : vector<16x6xf32>
    %228 = tpu.matmul %225, %227, %cst_141 {dimension_numbers = #tpu.dot_dimension_numbers<[1], [0], [0], [1], [0, 0, 1, 1], [], []>} : vector<16x32xf32>, vector<32x6xf32>, vector<16x6xf32> -> vector<16x6xf32>
    %229 = arith.addf %224, %228 : vector<16x6xf32>
    %230 = vector.extract_strided_slice %221 {offsets = [16, 0], sizes = [16, 32], strides = [1, 1]} : vector<64x32xf32> to vector<16x32xf32>
    %231 = vector.extract_strided_slice %212 {offsets = [1, 0, 0], sizes = [1, 32, 6], strides = [1, 1, 1]} : vector<4x32x6xf32> to vector<1x32x6xf32>
    %232 = vector.shape_cast %231 : vector<1x32x6xf32> to vector<32x6xf32>
    %cst_142 = arith.constant dense<0.000000e+00> : vector<16x6xf32>
    %233 = tpu.matmul %230, %232, %cst_142 {dimension_numbers = #tpu.dot_dimension_numbers<[1], [0], [0], [1], [0, 0, 1, 1], [], []>} : vector<16x32xf32>, vector<32x6xf32>, vector<16x6xf32> -> vector<16x6xf32>
    %234 = arith.addf %229, %233 : vector<16x6xf32>
    %235 = vector.extract_strided_slice %221 {offsets = [32, 0], sizes = [16, 32], strides = [1, 1]} : vector<64x32xf32> to vector<16x32xf32>
    %236 = vector.extract_strided_slice %212 {offsets = [2, 0, 0], sizes = [1, 32, 6], strides = [1, 1, 1]} : vector<4x32x6xf32> to vector<1x32x6xf32>
    %237 = vector.shape_cast %236 : vector<1x32x6xf32> to vector<32x6xf32>
    %cst_143 = arith.constant dense<0.000000e+00> : vector<16x6xf32>
    %238 = tpu.matmul %235, %237, %cst_143 {dimension_numbers = #tpu.dot_dimension_numbers<[1], [0], [0], [1], [0, 0, 1, 1], [], []>} : vector<16x32xf32>, vector<32x6xf32>, vector<16x6xf32> -> vector<16x6xf32>
    %239 = arith.addf %234, %238 : vector<16x6xf32>
    %240 = vector.extract_strided_slice %221 {offsets = [48, 0], sizes = [16, 32], strides = [1, 1]} : vector<64x32xf32> to vector<16x32xf32>
    %241 = vector.extract_strided_slice %212 {offsets = [3, 0, 0], sizes = [1, 32, 6], strides = [1, 1, 1]} : vector<4x32x6xf32> to vector<1x32x6xf32>
    %242 = vector.shape_cast %241 : vector<1x32x6xf32> to vector<32x6xf32>
    %cst_144 = arith.constant dense<0.000000e+00> : vector<16x6xf32>
    %243 = tpu.matmul %240, %242, %cst_144 {dimension_numbers = #tpu.dot_dimension_numbers<[1], [0], [0], [1], [0, 0, 1, 1], [], []>} : vector<16x32xf32>, vector<32x6xf32>, vector<16x6xf32> -> vector<16x6xf32>
    %244 = arith.addf %239, %243 : vector<16x6xf32>
    %cst_145 = arith.constant dense<0.000000e+00> : vector<16x32xf32>
    %245 = tpu.matmul %244, %216, %cst_145 {dimension_numbers = #tpu.dot_dimension_numbers<[1], [0], [0], [1], [0, 0, 1, 1], [], []>} : vector<16x6xf32>, vector<6x32xf32>, vector<16x32xf32> -> vector<16x32xf32>
    %246 = vector.broadcast %218 : vector<1x32xf32> to vector<16x32xf32>
    %247 = arith.addf %245, %246 : vector<16x32xf32>
    %cst_146 = arith.constant 0.000000e+00 : f32
    %248 = vector.broadcast %cst_146 : f32 to vector<16x32xf32>
    %249 = arith.maximumf %247, %248 : vector<16x32xf32>
    %c1_147 = arith.constant 1 : index
    %c0_148 = arith.constant 0 : index
    %c0_149 = arith.constant 0 : index
    %250 = vector.load %arg0[%c1_147, %c0_148, %c0_149] : memref<2x64x16xf32, #tpu.memory_space<vmem>>, vector<1x64x16xf32>
    %251 = vector.shape_cast %250 : vector<1x64x16xf32> to vector<64x16xf32>
    %cst_150 = arith.constant dense<0.000000e+00> : vector<64x32xf32>
    %252 = tpu.matmul %251, %210, %cst_150 {dimension_numbers = #tpu.dot_dimension_numbers<[1], [0], [0], [1], [0, 0, 1, 1], [], []>} : vector<64x16xf32>, vector<16x32xf32>, vector<64x32xf32> -> vector<64x32xf32>
    %c1_151 = arith.constant 1 : index
    %c0_152 = arith.constant 0 : index
    %c0_153 = arith.constant 0 : index
    %253 = vector.load %arg1[%c1_151, %c0_152, %c0_153] : memref<2x16x4xf32, #tpu.memory_space<vmem>>, vector<1x16x4xf32>
    %254 = vector.shape_cast %253 : vector<1x16x4xf32> to vector<16x4xf32>
    %cst_154 = arith.constant dense<0.000000e+00> : vector<16x6xf32>
    %255 = tpu.matmul %254, %214, %cst_154 {dimension_numbers = #tpu.dot_dimension_numbers<[1], [0], [0], [1], [0, 0, 1, 1], [], []>} : vector<16x4xf32>, vector<4x6xf32>, vector<16x6xf32> -> vector<16x6xf32>
    %256 = vector.extract_strided_slice %252 {offsets = [0, 0], sizes = [16, 32], strides = [1, 1]} : vector<64x32xf32> to vector<16x32xf32>
    %257 = vector.extract_strided_slice %212 {offsets = [0, 0, 0], sizes = [1, 32, 6], strides = [1, 1, 1]} : vector<4x32x6xf32> to vector<1x32x6xf32>
    %258 = vector.shape_cast %257 : vector<1x32x6xf32> to vector<32x6xf32>
    %cst_155 = arith.constant dense<0.000000e+00> : vector<16x6xf32>
    %259 = tpu.matmul %256, %258, %cst_155 {dimension_numbers = #tpu.dot_dimension_numbers<[1], [0], [0], [1], [0, 0, 1, 1], [], []>} : vector<16x32xf32>, vector<32x6xf32>, vector<16x6xf32> -> vector<16x6xf32>
    %260 = arith.addf %255, %259 : vector<16x6xf32>
    %261 = vector.extract_strided_slice %252 {offsets = [16, 0], sizes = [16, 32], strides = [1, 1]} : vector<64x32xf32> to vector<16x32xf32>
    %262 = vector.extract_strided_slice %212 {offsets = [1, 0, 0], sizes = [1, 32, 6], strides = [1, 1, 1]} : vector<4x32x6xf32> to vector<1x32x6xf32>
    %263 = vector.shape_cast %262 : vector<1x32x6xf32> to vector<32x6xf32>
    %cst_156 = arith.constant dense<0.000000e+00> : vector<16x6xf32>
    %264 = tpu.matmul %261, %263, %cst_156 {dimension_numbers = #tpu.dot_dimension_numbers<[1], [0], [0], [1], [0, 0, 1, 1], [], []>} : vector<16x32xf32>, vector<32x6xf32>, vector<16x6xf32> -> vector<16x6xf32>
    %265 = arith.addf %260, %264 : vector<16x6xf32>
    %266 = vector.extract_strided_slice %252 {offsets = [32, 0], sizes = [16, 32], strides = [1, 1]} : vector<64x32xf32> to vector<16x32xf32>
    %267 = vector.extract_strided_slice %212 {offsets = [2, 0, 0], sizes = [1, 32, 6], strides = [1, 1, 1]} : vector<4x32x6xf32> to vector<1x32x6xf32>
    %268 = vector.shape_cast %267 : vector<1x32x6xf32> to vector<32x6xf32>
    %cst_157 = arith.constant dense<0.000000e+00> : vector<16x6xf32>
    %269 = tpu.matmul %266, %268, %cst_157 {dimension_numbers = #tpu.dot_dimension_numbers<[1], [0], [0], [1], [0, 0, 1, 1], [], []>} : vector<16x32xf32>, vector<32x6xf32>, vector<16x6xf32> -> vector<16x6xf32>
    %270 = arith.addf %265, %269 : vector<16x6xf32>
    %271 = vector.extract_strided_slice %252 {offsets = [48, 0], sizes = [16, 32], strides = [1, 1]} : vector<64x32xf32> to vector<16x32xf32>
    %272 = vector.extract_strided_slice %212 {offsets = [3, 0, 0], sizes = [1, 32, 6], strides = [1, 1, 1]} : vector<4x32x6xf32> to vector<1x32x6xf32>
    %273 = vector.shape_cast %272 : vector<1x32x6xf32> to vector<32x6xf32>
    %cst_158 = arith.constant dense<0.000000e+00> : vector<16x6xf32>
    %274 = tpu.matmul %271, %273, %cst_158 {dimension_numbers = #tpu.dot_dimension_numbers<[1], [0], [0], [1], [0, 0, 1, 1], [], []>} : vector<16x32xf32>, vector<32x6xf32>, vector<16x6xf32> -> vector<16x6xf32>
    %275 = arith.addf %270, %274 : vector<16x6xf32>
    %cst_159 = arith.constant dense<0.000000e+00> : vector<16x32xf32>
    %276 = tpu.matmul %275, %216, %cst_159 {dimension_numbers = #tpu.dot_dimension_numbers<[1], [0], [0], [1], [0, 0, 1, 1], [], []>} : vector<16x6xf32>, vector<6x32xf32>, vector<16x32xf32> -> vector<16x32xf32>
    %277 = vector.broadcast %218 : vector<1x32xf32> to vector<16x32xf32>
    %278 = arith.addf %276, %277 : vector<16x32xf32>
    %cst_160 = arith.constant 0.000000e+00 : f32
    %279 = vector.broadcast %cst_160 : f32 to vector<16x32xf32>
    %280 = arith.maximumf %278, %279 : vector<16x32xf32>
    %c4 = arith.constant 4 : index
    %c0_161 = arith.constant 0 : index
    %c0_162 = arith.constant 0 : index
    %c0_163 = arith.constant 0 : index
    %281 = vector.load %arg3[%c4, %c0_161, %c0_162, %c0_163] : memref<6x4x32x6xf32, #tpu.memory_space<vmem>>, vector<1x4x32x6xf32>
    %282 = vector.shape_cast %281 : vector<1x4x32x6xf32> to vector<4x32x6xf32>
    %c4_164 = arith.constant 4 : index
    %c0_165 = arith.constant 0 : index
    %c0_166 = arith.constant 0 : index
    %283 = vector.load %arg4[%c4_164, %c0_165, %c0_166] : memref<6x4x6xf32, #tpu.memory_space<vmem>>, vector<1x4x6xf32>
    %284 = vector.shape_cast %283 : vector<1x4x6xf32> to vector<4x6xf32>
    %c4_167 = arith.constant 4 : index
    %c0_168 = arith.constant 0 : index
    %c0_169 = arith.constant 0 : index
    %285 = vector.load %arg5[%c4_167, %c0_168, %c0_169] : memref<6x6x32xf32, #tpu.memory_space<vmem>>, vector<1x6x32xf32>
    %286 = vector.shape_cast %285 : vector<1x6x32xf32> to vector<6x32xf32>
    %c4_170 = arith.constant 4 : index
    %c0_171 = arith.constant 0 : index
    %c0_172 = arith.constant 0 : index
    %287 = vector.load %arg6[%c4_170, %c0_171, %c0_172] : memref<6x1x32xf32, #tpu.memory_space<vmem>>, vector<1x1x32xf32>
    %288 = vector.shape_cast %287 : vector<1x1x32xf32> to vector<1x32xf32>
    %c0_173 = arith.constant 0 : index
    %c0_174 = arith.constant 0 : index
    %c0_175 = arith.constant 0 : index
    %289 = vector.load %arg0[%c0_173, %c0_174, %c0_175] : memref<2x64x16xf32, #tpu.memory_space<vmem>>, vector<1x64x16xf32>
    %290 = vector.shape_cast %289 : vector<1x64x16xf32> to vector<64x16xf32>
    %cst_176 = arith.constant dense<0.000000e+00> : vector<64x32xf32>
    %291 = tpu.matmul %290, %249, %cst_176 {dimension_numbers = #tpu.dot_dimension_numbers<[1], [0], [0], [1], [0, 0, 1, 1], [], []>} : vector<64x16xf32>, vector<16x32xf32>, vector<64x32xf32> -> vector<64x32xf32>
    %c0_177 = arith.constant 0 : index
    %c0_178 = arith.constant 0 : index
    %c0_179 = arith.constant 0 : index
    %292 = vector.load %arg1[%c0_177, %c0_178, %c0_179] : memref<2x16x4xf32, #tpu.memory_space<vmem>>, vector<1x16x4xf32>
    %293 = vector.shape_cast %292 : vector<1x16x4xf32> to vector<16x4xf32>
    %cst_180 = arith.constant dense<0.000000e+00> : vector<16x6xf32>
    %294 = tpu.matmul %293, %284, %cst_180 {dimension_numbers = #tpu.dot_dimension_numbers<[1], [0], [0], [1], [0, 0, 1, 1], [], []>} : vector<16x4xf32>, vector<4x6xf32>, vector<16x6xf32> -> vector<16x6xf32>
    %295 = vector.extract_strided_slice %291 {offsets = [0, 0], sizes = [16, 32], strides = [1, 1]} : vector<64x32xf32> to vector<16x32xf32>
    %296 = vector.extract_strided_slice %282 {offsets = [0, 0, 0], sizes = [1, 32, 6], strides = [1, 1, 1]} : vector<4x32x6xf32> to vector<1x32x6xf32>
    %297 = vector.shape_cast %296 : vector<1x32x6xf32> to vector<32x6xf32>
    %cst_181 = arith.constant dense<0.000000e+00> : vector<16x6xf32>
    %298 = tpu.matmul %295, %297, %cst_181 {dimension_numbers = #tpu.dot_dimension_numbers<[1], [0], [0], [1], [0, 0, 1, 1], [], []>} : vector<16x32xf32>, vector<32x6xf32>, vector<16x6xf32> -> vector<16x6xf32>
    %299 = arith.addf %294, %298 : vector<16x6xf32>
    %300 = vector.extract_strided_slice %291 {offsets = [16, 0], sizes = [16, 32], strides = [1, 1]} : vector<64x32xf32> to vector<16x32xf32>
    %301 = vector.extract_strided_slice %282 {offsets = [1, 0, 0], sizes = [1, 32, 6], strides = [1, 1, 1]} : vector<4x32x6xf32> to vector<1x32x6xf32>
    %302 = vector.shape_cast %301 : vector<1x32x6xf32> to vector<32x6xf32>
    %cst_182 = arith.constant dense<0.000000e+00> : vector<16x6xf32>
    %303 = tpu.matmul %300, %302, %cst_182 {dimension_numbers = #tpu.dot_dimension_numbers<[1], [0], [0], [1], [0, 0, 1, 1], [], []>} : vector<16x32xf32>, vector<32x6xf32>, vector<16x6xf32> -> vector<16x6xf32>
    %304 = arith.addf %299, %303 : vector<16x6xf32>
    %305 = vector.extract_strided_slice %291 {offsets = [32, 0], sizes = [16, 32], strides = [1, 1]} : vector<64x32xf32> to vector<16x32xf32>
    %306 = vector.extract_strided_slice %282 {offsets = [2, 0, 0], sizes = [1, 32, 6], strides = [1, 1, 1]} : vector<4x32x6xf32> to vector<1x32x6xf32>
    %307 = vector.shape_cast %306 : vector<1x32x6xf32> to vector<32x6xf32>
    %cst_183 = arith.constant dense<0.000000e+00> : vector<16x6xf32>
    %308 = tpu.matmul %305, %307, %cst_183 {dimension_numbers = #tpu.dot_dimension_numbers<[1], [0], [0], [1], [0, 0, 1, 1], [], []>} : vector<16x32xf32>, vector<32x6xf32>, vector<16x6xf32> -> vector<16x6xf32>
    %309 = arith.addf %304, %308 : vector<16x6xf32>
    %310 = vector.extract_strided_slice %291 {offsets = [48, 0], sizes = [16, 32], strides = [1, 1]} : vector<64x32xf32> to vector<16x32xf32>
    %311 = vector.extract_strided_slice %282 {offsets = [3, 0, 0], sizes = [1, 32, 6], strides = [1, 1, 1]} : vector<4x32x6xf32> to vector<1x32x6xf32>
    %312 = vector.shape_cast %311 : vector<1x32x6xf32> to vector<32x6xf32>
    %cst_184 = arith.constant dense<0.000000e+00> : vector<16x6xf32>
    %313 = tpu.matmul %310, %312, %cst_184 {dimension_numbers = #tpu.dot_dimension_numbers<[1], [0], [0], [1], [0, 0, 1, 1], [], []>} : vector<16x32xf32>, vector<32x6xf32>, vector<16x6xf32> -> vector<16x6xf32>
    %314 = arith.addf %309, %313 : vector<16x6xf32>
    %cst_185 = arith.constant dense<0.000000e+00> : vector<16x32xf32>
    %315 = tpu.matmul %314, %286, %cst_185 {dimension_numbers = #tpu.dot_dimension_numbers<[1], [0], [0], [1], [0, 0, 1, 1], [], []>} : vector<16x6xf32>, vector<6x32xf32>, vector<16x32xf32> -> vector<16x32xf32>
    %316 = vector.broadcast %288 : vector<1x32xf32> to vector<16x32xf32>
    %317 = arith.addf %315, %316 : vector<16x32xf32>
    %cst_186 = arith.constant 0.000000e+00 : f32
    %318 = vector.broadcast %cst_186 : f32 to vector<16x32xf32>
    %319 = arith.maximumf %317, %318 : vector<16x32xf32>
    %c1_187 = arith.constant 1 : index
    %c0_188 = arith.constant 0 : index
    %c0_189 = arith.constant 0 : index
    %320 = vector.load %arg0[%c1_187, %c0_188, %c0_189] : memref<2x64x16xf32, #tpu.memory_space<vmem>>, vector<1x64x16xf32>
    %321 = vector.shape_cast %320 : vector<1x64x16xf32> to vector<64x16xf32>
    %cst_190 = arith.constant dense<0.000000e+00> : vector<64x32xf32>
    %322 = tpu.matmul %321, %280, %cst_190 {dimension_numbers = #tpu.dot_dimension_numbers<[1], [0], [0], [1], [0, 0, 1, 1], [], []>} : vector<64x16xf32>, vector<16x32xf32>, vector<64x32xf32> -> vector<64x32xf32>
    %c1_191 = arith.constant 1 : index
    %c0_192 = arith.constant 0 : index
    %c0_193 = arith.constant 0 : index
    %323 = vector.load %arg1[%c1_191, %c0_192, %c0_193] : memref<2x16x4xf32, #tpu.memory_space<vmem>>, vector<1x16x4xf32>
    %324 = vector.shape_cast %323 : vector<1x16x4xf32> to vector<16x4xf32>
    %cst_194 = arith.constant dense<0.000000e+00> : vector<16x6xf32>
    %325 = tpu.matmul %324, %284, %cst_194 {dimension_numbers = #tpu.dot_dimension_numbers<[1], [0], [0], [1], [0, 0, 1, 1], [], []>} : vector<16x4xf32>, vector<4x6xf32>, vector<16x6xf32> -> vector<16x6xf32>
    %326 = vector.extract_strided_slice %322 {offsets = [0, 0], sizes = [16, 32], strides = [1, 1]} : vector<64x32xf32> to vector<16x32xf32>
    %327 = vector.extract_strided_slice %282 {offsets = [0, 0, 0], sizes = [1, 32, 6], strides = [1, 1, 1]} : vector<4x32x6xf32> to vector<1x32x6xf32>
    %328 = vector.shape_cast %327 : vector<1x32x6xf32> to vector<32x6xf32>
    %cst_195 = arith.constant dense<0.000000e+00> : vector<16x6xf32>
    %329 = tpu.matmul %326, %328, %cst_195 {dimension_numbers = #tpu.dot_dimension_numbers<[1], [0], [0], [1], [0, 0, 1, 1], [], []>} : vector<16x32xf32>, vector<32x6xf32>, vector<16x6xf32> -> vector<16x6xf32>
    %330 = arith.addf %325, %329 : vector<16x6xf32>
    %331 = vector.extract_strided_slice %322 {offsets = [16, 0], sizes = [16, 32], strides = [1, 1]} : vector<64x32xf32> to vector<16x32xf32>
    %332 = vector.extract_strided_slice %282 {offsets = [1, 0, 0], sizes = [1, 32, 6], strides = [1, 1, 1]} : vector<4x32x6xf32> to vector<1x32x6xf32>
    %333 = vector.shape_cast %332 : vector<1x32x6xf32> to vector<32x6xf32>
    %cst_196 = arith.constant dense<0.000000e+00> : vector<16x6xf32>
    %334 = tpu.matmul %331, %333, %cst_196 {dimension_numbers = #tpu.dot_dimension_numbers<[1], [0], [0], [1], [0, 0, 1, 1], [], []>} : vector<16x32xf32>, vector<32x6xf32>, vector<16x6xf32> -> vector<16x6xf32>
    %335 = arith.addf %330, %334 : vector<16x6xf32>
    %336 = vector.extract_strided_slice %322 {offsets = [32, 0], sizes = [16, 32], strides = [1, 1]} : vector<64x32xf32> to vector<16x32xf32>
    %337 = vector.extract_strided_slice %282 {offsets = [2, 0, 0], sizes = [1, 32, 6], strides = [1, 1, 1]} : vector<4x32x6xf32> to vector<1x32x6xf32>
    %338 = vector.shape_cast %337 : vector<1x32x6xf32> to vector<32x6xf32>
    %cst_197 = arith.constant dense<0.000000e+00> : vector<16x6xf32>
    %339 = tpu.matmul %336, %338, %cst_197 {dimension_numbers = #tpu.dot_dimension_numbers<[1], [0], [0], [1], [0, 0, 1, 1], [], []>} : vector<16x32xf32>, vector<32x6xf32>, vector<16x6xf32> -> vector<16x6xf32>
    %340 = arith.addf %335, %339 : vector<16x6xf32>
    %341 = vector.extract_strided_slice %322 {offsets = [48, 0], sizes = [16, 32], strides = [1, 1]} : vector<64x32xf32> to vector<16x32xf32>
    %342 = vector.extract_strided_slice %282 {offsets = [3, 0, 0], sizes = [1, 32, 6], strides = [1, 1, 1]} : vector<4x32x6xf32> to vector<1x32x6xf32>
    %343 = vector.shape_cast %342 : vector<1x32x6xf32> to vector<32x6xf32>
    %cst_198 = arith.constant dense<0.000000e+00> : vector<16x6xf32>
    %344 = tpu.matmul %341, %343, %cst_198 {dimension_numbers = #tpu.dot_dimension_numbers<[1], [0], [0], [1], [0, 0, 1, 1], [], []>} : vector<16x32xf32>, vector<32x6xf32>, vector<16x6xf32> -> vector<16x6xf32>
    %345 = arith.addf %340, %344 : vector<16x6xf32>
    %cst_199 = arith.constant dense<0.000000e+00> : vector<16x32xf32>
    %346 = tpu.matmul %345, %286, %cst_199 {dimension_numbers = #tpu.dot_dimension_numbers<[1], [0], [0], [1], [0, 0, 1, 1], [], []>} : vector<16x6xf32>, vector<6x32xf32>, vector<16x32xf32> -> vector<16x32xf32>
    %347 = vector.broadcast %288 : vector<1x32xf32> to vector<16x32xf32>
    %348 = arith.addf %346, %347 : vector<16x32xf32>
    %cst_200 = arith.constant 0.000000e+00 : f32
    %349 = vector.broadcast %cst_200 : f32 to vector<16x32xf32>
    %350 = arith.maximumf %348, %349 : vector<16x32xf32>
    %c5 = arith.constant 5 : index
    %c0_201 = arith.constant 0 : index
    %c0_202 = arith.constant 0 : index
    %c0_203 = arith.constant 0 : index
    %351 = vector.load %arg3[%c5, %c0_201, %c0_202, %c0_203] : memref<6x4x32x6xf32, #tpu.memory_space<vmem>>, vector<1x4x32x6xf32>
    %352 = vector.shape_cast %351 : vector<1x4x32x6xf32> to vector<4x32x6xf32>
    %c5_204 = arith.constant 5 : index
    %c0_205 = arith.constant 0 : index
    %c0_206 = arith.constant 0 : index
    %353 = vector.load %arg4[%c5_204, %c0_205, %c0_206] : memref<6x4x6xf32, #tpu.memory_space<vmem>>, vector<1x4x6xf32>
    %354 = vector.shape_cast %353 : vector<1x4x6xf32> to vector<4x6xf32>
    %c5_207 = arith.constant 5 : index
    %c0_208 = arith.constant 0 : index
    %c0_209 = arith.constant 0 : index
    %355 = vector.load %arg5[%c5_207, %c0_208, %c0_209] : memref<6x6x32xf32, #tpu.memory_space<vmem>>, vector<1x6x32xf32>
    %356 = vector.shape_cast %355 : vector<1x6x32xf32> to vector<6x32xf32>
    %c5_210 = arith.constant 5 : index
    %c0_211 = arith.constant 0 : index
    %c0_212 = arith.constant 0 : index
    %357 = vector.load %arg6[%c5_210, %c0_211, %c0_212] : memref<6x1x32xf32, #tpu.memory_space<vmem>>, vector<1x1x32xf32>
    %358 = vector.shape_cast %357 : vector<1x1x32xf32> to vector<1x32xf32>
    %c0_213 = arith.constant 0 : index
    %c0_214 = arith.constant 0 : index
    %c0_215 = arith.constant 0 : index
    %359 = vector.load %arg0[%c0_213, %c0_214, %c0_215] : memref<2x64x16xf32, #tpu.memory_space<vmem>>, vector<1x64x16xf32>
    %360 = vector.shape_cast %359 : vector<1x64x16xf32> to vector<64x16xf32>
    %cst_216 = arith.constant dense<0.000000e+00> : vector<64x32xf32>
    %361 = tpu.matmul %360, %319, %cst_216 {dimension_numbers = #tpu.dot_dimension_numbers<[1], [0], [0], [1], [0, 0, 1, 1], [], []>} : vector<64x16xf32>, vector<16x32xf32>, vector<64x32xf32> -> vector<64x32xf32>
    %c0_217 = arith.constant 0 : index
    %c0_218 = arith.constant 0 : index
    %c0_219 = arith.constant 0 : index
    %362 = vector.load %arg1[%c0_217, %c0_218, %c0_219] : memref<2x16x4xf32, #tpu.memory_space<vmem>>, vector<1x16x4xf32>
    %363 = vector.shape_cast %362 : vector<1x16x4xf32> to vector<16x4xf32>
    %cst_220 = arith.constant dense<0.000000e+00> : vector<16x6xf32>
    %364 = tpu.matmul %363, %354, %cst_220 {dimension_numbers = #tpu.dot_dimension_numbers<[1], [0], [0], [1], [0, 0, 1, 1], [], []>} : vector<16x4xf32>, vector<4x6xf32>, vector<16x6xf32> -> vector<16x6xf32>
    %365 = vector.extract_strided_slice %361 {offsets = [0, 0], sizes = [16, 32], strides = [1, 1]} : vector<64x32xf32> to vector<16x32xf32>
    %366 = vector.extract_strided_slice %352 {offsets = [0, 0, 0], sizes = [1, 32, 6], strides = [1, 1, 1]} : vector<4x32x6xf32> to vector<1x32x6xf32>
    %367 = vector.shape_cast %366 : vector<1x32x6xf32> to vector<32x6xf32>
    %cst_221 = arith.constant dense<0.000000e+00> : vector<16x6xf32>
    %368 = tpu.matmul %365, %367, %cst_221 {dimension_numbers = #tpu.dot_dimension_numbers<[1], [0], [0], [1], [0, 0, 1, 1], [], []>} : vector<16x32xf32>, vector<32x6xf32>, vector<16x6xf32> -> vector<16x6xf32>
    %369 = arith.addf %364, %368 : vector<16x6xf32>
    %370 = vector.extract_strided_slice %361 {offsets = [16, 0], sizes = [16, 32], strides = [1, 1]} : vector<64x32xf32> to vector<16x32xf32>
    %371 = vector.extract_strided_slice %352 {offsets = [1, 0, 0], sizes = [1, 32, 6], strides = [1, 1, 1]} : vector<4x32x6xf32> to vector<1x32x6xf32>
    %372 = vector.shape_cast %371 : vector<1x32x6xf32> to vector<32x6xf32>
    %cst_222 = arith.constant dense<0.000000e+00> : vector<16x6xf32>
    %373 = tpu.matmul %370, %372, %cst_222 {dimension_numbers = #tpu.dot_dimension_numbers<[1], [0], [0], [1], [0, 0, 1, 1], [], []>} : vector<16x32xf32>, vector<32x6xf32>, vector<16x6xf32> -> vector<16x6xf32>
    %374 = arith.addf %369, %373 : vector<16x6xf32>
    %375 = vector.extract_strided_slice %361 {offsets = [32, 0], sizes = [16, 32], strides = [1, 1]} : vector<64x32xf32> to vector<16x32xf32>
    %376 = vector.extract_strided_slice %352 {offsets = [2, 0, 0], sizes = [1, 32, 6], strides = [1, 1, 1]} : vector<4x32x6xf32> to vector<1x32x6xf32>
    %377 = vector.shape_cast %376 : vector<1x32x6xf32> to vector<32x6xf32>
    %cst_223 = arith.constant dense<0.000000e+00> : vector<16x6xf32>
    %378 = tpu.matmul %375, %377, %cst_223 {dimension_numbers = #tpu.dot_dimension_numbers<[1], [0], [0], [1], [0, 0, 1, 1], [], []>} : vector<16x32xf32>, vector<32x6xf32>, vector<16x6xf32> -> vector<16x6xf32>
    %379 = arith.addf %374, %378 : vector<16x6xf32>
    %380 = vector.extract_strided_slice %361 {offsets = [48, 0], sizes = [16, 32], strides = [1, 1]} : vector<64x32xf32> to vector<16x32xf32>
    %381 = vector.extract_strided_slice %352 {offsets = [3, 0, 0], sizes = [1, 32, 6], strides = [1, 1, 1]} : vector<4x32x6xf32> to vector<1x32x6xf32>
    %382 = vector.shape_cast %381 : vector<1x32x6xf32> to vector<32x6xf32>
    %cst_224 = arith.constant dense<0.000000e+00> : vector<16x6xf32>
    %383 = tpu.matmul %380, %382, %cst_224 {dimension_numbers = #tpu.dot_dimension_numbers<[1], [0], [0], [1], [0, 0, 1, 1], [], []>} : vector<16x32xf32>, vector<32x6xf32>, vector<16x6xf32> -> vector<16x6xf32>
    %384 = arith.addf %379, %383 : vector<16x6xf32>
    %cst_225 = arith.constant dense<0.000000e+00> : vector<16x32xf32>
    %385 = tpu.matmul %384, %356, %cst_225 {dimension_numbers = #tpu.dot_dimension_numbers<[1], [0], [0], [1], [0, 0, 1, 1], [], []>} : vector<16x6xf32>, vector<6x32xf32>, vector<16x32xf32> -> vector<16x32xf32>
    %386 = vector.broadcast %358 : vector<1x32xf32> to vector<16x32xf32>
    %387 = arith.addf %385, %386 : vector<16x32xf32>
    %cst_226 = arith.constant 0.000000e+00 : f32
    %388 = vector.broadcast %cst_226 : f32 to vector<16x32xf32>
    %389 = arith.maximumf %387, %388 : vector<16x32xf32>
    %c1_227 = arith.constant 1 : index
    %c0_228 = arith.constant 0 : index
    %c0_229 = arith.constant 0 : index
    %390 = vector.load %arg0[%c1_227, %c0_228, %c0_229] : memref<2x64x16xf32, #tpu.memory_space<vmem>>, vector<1x64x16xf32>
    %391 = vector.shape_cast %390 : vector<1x64x16xf32> to vector<64x16xf32>
    %cst_230 = arith.constant dense<0.000000e+00> : vector<64x32xf32>
    %392 = tpu.matmul %391, %350, %cst_230 {dimension_numbers = #tpu.dot_dimension_numbers<[1], [0], [0], [1], [0, 0, 1, 1], [], []>} : vector<64x16xf32>, vector<16x32xf32>, vector<64x32xf32> -> vector<64x32xf32>
    %c1_231 = arith.constant 1 : index
    %c0_232 = arith.constant 0 : index
    %c0_233 = arith.constant 0 : index
    %393 = vector.load %arg1[%c1_231, %c0_232, %c0_233] : memref<2x16x4xf32, #tpu.memory_space<vmem>>, vector<1x16x4xf32>
    %394 = vector.shape_cast %393 : vector<1x16x4xf32> to vector<16x4xf32>
    %cst_234 = arith.constant dense<0.000000e+00> : vector<16x6xf32>
    %395 = tpu.matmul %394, %354, %cst_234 {dimension_numbers = #tpu.dot_dimension_numbers<[1], [0], [0], [1], [0, 0, 1, 1], [], []>} : vector<16x4xf32>, vector<4x6xf32>, vector<16x6xf32> -> vector<16x6xf32>
    %396 = vector.extract_strided_slice %392 {offsets = [0, 0], sizes = [16, 32], strides = [1, 1]} : vector<64x32xf32> to vector<16x32xf32>
    %397 = vector.extract_strided_slice %352 {offsets = [0, 0, 0], sizes = [1, 32, 6], strides = [1, 1, 1]} : vector<4x32x6xf32> to vector<1x32x6xf32>
    %398 = vector.shape_cast %397 : vector<1x32x6xf32> to vector<32x6xf32>
    %cst_235 = arith.constant dense<0.000000e+00> : vector<16x6xf32>
    %399 = tpu.matmul %396, %398, %cst_235 {dimension_numbers = #tpu.dot_dimension_numbers<[1], [0], [0], [1], [0, 0, 1, 1], [], []>} : vector<16x32xf32>, vector<32x6xf32>, vector<16x6xf32> -> vector<16x6xf32>
    %400 = arith.addf %395, %399 : vector<16x6xf32>
    %401 = vector.extract_strided_slice %392 {offsets = [16, 0], sizes = [16, 32], strides = [1, 1]} : vector<64x32xf32> to vector<16x32xf32>
    %402 = vector.extract_strided_slice %352 {offsets = [1, 0, 0], sizes = [1, 32, 6], strides = [1, 1, 1]} : vector<4x32x6xf32> to vector<1x32x6xf32>
    %403 = vector.shape_cast %402 : vector<1x32x6xf32> to vector<32x6xf32>
    %cst_236 = arith.constant dense<0.000000e+00> : vector<16x6xf32>
    %404 = tpu.matmul %401, %403, %cst_236 {dimension_numbers = #tpu.dot_dimension_numbers<[1], [0], [0], [1], [0, 0, 1, 1], [], []>} : vector<16x32xf32>, vector<32x6xf32>, vector<16x6xf32> -> vector<16x6xf32>
    %405 = arith.addf %400, %404 : vector<16x6xf32>
    %406 = vector.extract_strided_slice %392 {offsets = [32, 0], sizes = [16, 32], strides = [1, 1]} : vector<64x32xf32> to vector<16x32xf32>
    %407 = vector.extract_strided_slice %352 {offsets = [2, 0, 0], sizes = [1, 32, 6], strides = [1, 1, 1]} : vector<4x32x6xf32> to vector<1x32x6xf32>
    %408 = vector.shape_cast %407 : vector<1x32x6xf32> to vector<32x6xf32>
    %cst_237 = arith.constant dense<0.000000e+00> : vector<16x6xf32>
    %409 = tpu.matmul %406, %408, %cst_237 {dimension_numbers = #tpu.dot_dimension_numbers<[1], [0], [0], [1], [0, 0, 1, 1], [], []>} : vector<16x32xf32>, vector<32x6xf32>, vector<16x6xf32> -> vector<16x6xf32>
    %410 = arith.addf %405, %409 : vector<16x6xf32>
    %411 = vector.extract_strided_slice %392 {offsets = [48, 0], sizes = [16, 32], strides = [1, 1]} : vector<64x32xf32> to vector<16x32xf32>
    %412 = vector.extract_strided_slice %352 {offsets = [3, 0, 0], sizes = [1, 32, 6], strides = [1, 1, 1]} : vector<4x32x6xf32> to vector<1x32x6xf32>
    %413 = vector.shape_cast %412 : vector<1x32x6xf32> to vector<32x6xf32>
    %cst_238 = arith.constant dense<0.000000e+00> : vector<16x6xf32>
    %414 = tpu.matmul %411, %413, %cst_238 {dimension_numbers = #tpu.dot_dimension_numbers<[1], [0], [0], [1], [0, 0, 1, 1], [], []>} : vector<16x32xf32>, vector<32x6xf32>, vector<16x6xf32> -> vector<16x6xf32>
    %415 = arith.addf %410, %414 : vector<16x6xf32>
    %cst_239 = arith.constant dense<0.000000e+00> : vector<16x32xf32>
    %416 = tpu.matmul %415, %356, %cst_239 {dimension_numbers = #tpu.dot_dimension_numbers<[1], [0], [0], [1], [0, 0, 1, 1], [], []>} : vector<16x6xf32>, vector<6x32xf32>, vector<16x32xf32> -> vector<16x32xf32>
    %417 = vector.broadcast %358 : vector<1x32xf32> to vector<16x32xf32>
    %418 = arith.addf %416, %417 : vector<16x32xf32>
    %cst_240 = arith.constant 0.000000e+00 : f32
    %419 = vector.broadcast %cst_240 : f32 to vector<16x32xf32>
    %420 = arith.maximumf %418, %419 : vector<16x32xf32>
    %421 = vector.extract_strided_slice %389 {offsets = [0, 0], sizes = [1, 32], strides = [1, 1]} : vector<16x32xf32> to vector<1x32xf32>
    %c0_241 = arith.constant 0 : index
    %c0_242 = arith.constant 0 : index
    %c0_243 = arith.constant 0 : index
    %422 = vector.load %arg7[%c0_241, %c0_242, %c0_243] : memref<16x32x128xf32, #tpu.memory_space<vmem>>, vector<1x32x128xf32>
    %423 = vector.shape_cast %422 : vector<1x32x128xf32> to vector<32x128xf32>
    %cst_244 = arith.constant dense<0.000000e+00> : vector<1x128xf32>
    %424 = tpu.matmul %421, %423, %cst_244 {dimension_numbers = #tpu.dot_dimension_numbers<[1], [0], [0], [1], [0, 0, 1, 1], [], []>} : vector<1x32xf32>, vector<32x128xf32>, vector<1x128xf32> -> vector<1x128xf32>
    %425 = vector.extract_strided_slice %389 {offsets = [1, 0], sizes = [1, 32], strides = [1, 1]} : vector<16x32xf32> to vector<1x32xf32>
    %c1_245 = arith.constant 1 : index
    %c0_246 = arith.constant 0 : index
    %c0_247 = arith.constant 0 : index
    %426 = vector.load %arg7[%c1_245, %c0_246, %c0_247] : memref<16x32x128xf32, #tpu.memory_space<vmem>>, vector<1x32x128xf32>
    %427 = vector.shape_cast %426 : vector<1x32x128xf32> to vector<32x128xf32>
    %cst_248 = arith.constant dense<0.000000e+00> : vector<1x128xf32>
    %428 = tpu.matmul %425, %427, %cst_248 {dimension_numbers = #tpu.dot_dimension_numbers<[1], [0], [0], [1], [0, 0, 1, 1], [], []>} : vector<1x32xf32>, vector<32x128xf32>, vector<1x128xf32> -> vector<1x128xf32>
    %429 = arith.addf %424, %428 : vector<1x128xf32>
    %430 = vector.extract_strided_slice %389 {offsets = [2, 0], sizes = [1, 32], strides = [1, 1]} : vector<16x32xf32> to vector<1x32xf32>
    %c2_249 = arith.constant 2 : index
    %c0_250 = arith.constant 0 : index
    %c0_251 = arith.constant 0 : index
    %431 = vector.load %arg7[%c2_249, %c0_250, %c0_251] : memref<16x32x128xf32, #tpu.memory_space<vmem>>, vector<1x32x128xf32>
    %432 = vector.shape_cast %431 : vector<1x32x128xf32> to vector<32x128xf32>
    %cst_252 = arith.constant dense<0.000000e+00> : vector<1x128xf32>
    %433 = tpu.matmul %430, %432, %cst_252 {dimension_numbers = #tpu.dot_dimension_numbers<[1], [0], [0], [1], [0, 0, 1, 1], [], []>} : vector<1x32xf32>, vector<32x128xf32>, vector<1x128xf32> -> vector<1x128xf32>
    %434 = arith.addf %429, %433 : vector<1x128xf32>
    %435 = vector.extract_strided_slice %389 {offsets = [3, 0], sizes = [1, 32], strides = [1, 1]} : vector<16x32xf32> to vector<1x32xf32>
    %c3_253 = arith.constant 3 : index
    %c0_254 = arith.constant 0 : index
    %c0_255 = arith.constant 0 : index
    %436 = vector.load %arg7[%c3_253, %c0_254, %c0_255] : memref<16x32x128xf32, #tpu.memory_space<vmem>>, vector<1x32x128xf32>
    %437 = vector.shape_cast %436 : vector<1x32x128xf32> to vector<32x128xf32>
    %cst_256 = arith.constant dense<0.000000e+00> : vector<1x128xf32>
    %438 = tpu.matmul %435, %437, %cst_256 {dimension_numbers = #tpu.dot_dimension_numbers<[1], [0], [0], [1], [0, 0, 1, 1], [], []>} : vector<1x32xf32>, vector<32x128xf32>, vector<1x128xf32> -> vector<1x128xf32>
    %439 = arith.addf %434, %438 : vector<1x128xf32>
    %440 = vector.extract_strided_slice %389 {offsets = [4, 0], sizes = [1, 32], strides = [1, 1]} : vector<16x32xf32> to vector<1x32xf32>
    %c4_257 = arith.constant 4 : index
    %c0_258 = arith.constant 0 : index
    %c0_259 = arith.constant 0 : index
    %441 = vector.load %arg7[%c4_257, %c0_258, %c0_259] : memref<16x32x128xf32, #tpu.memory_space<vmem>>, vector<1x32x128xf32>
    %442 = vector.shape_cast %441 : vector<1x32x128xf32> to vector<32x128xf32>
    %cst_260 = arith.constant dense<0.000000e+00> : vector<1x128xf32>
    %443 = tpu.matmul %440, %442, %cst_260 {dimension_numbers = #tpu.dot_dimension_numbers<[1], [0], [0], [1], [0, 0, 1, 1], [], []>} : vector<1x32xf32>, vector<32x128xf32>, vector<1x128xf32> -> vector<1x128xf32>
    %444 = arith.addf %439, %443 : vector<1x128xf32>
    %445 = vector.extract_strided_slice %389 {offsets = [5, 0], sizes = [1, 32], strides = [1, 1]} : vector<16x32xf32> to vector<1x32xf32>
    %c5_261 = arith.constant 5 : index
    %c0_262 = arith.constant 0 : index
    %c0_263 = arith.constant 0 : index
    %446 = vector.load %arg7[%c5_261, %c0_262, %c0_263] : memref<16x32x128xf32, #tpu.memory_space<vmem>>, vector<1x32x128xf32>
    %447 = vector.shape_cast %446 : vector<1x32x128xf32> to vector<32x128xf32>
    %cst_264 = arith.constant dense<0.000000e+00> : vector<1x128xf32>
    %448 = tpu.matmul %445, %447, %cst_264 {dimension_numbers = #tpu.dot_dimension_numbers<[1], [0], [0], [1], [0, 0, 1, 1], [], []>} : vector<1x32xf32>, vector<32x128xf32>, vector<1x128xf32> -> vector<1x128xf32>
    %449 = arith.addf %444, %448 : vector<1x128xf32>
    %450 = vector.extract_strided_slice %389 {offsets = [6, 0], sizes = [1, 32], strides = [1, 1]} : vector<16x32xf32> to vector<1x32xf32>
    %c6 = arith.constant 6 : index
    %c0_265 = arith.constant 0 : index
    %c0_266 = arith.constant 0 : index
    %451 = vector.load %arg7[%c6, %c0_265, %c0_266] : memref<16x32x128xf32, #tpu.memory_space<vmem>>, vector<1x32x128xf32>
    %452 = vector.shape_cast %451 : vector<1x32x128xf32> to vector<32x128xf32>
    %cst_267 = arith.constant dense<0.000000e+00> : vector<1x128xf32>
    %453 = tpu.matmul %450, %452, %cst_267 {dimension_numbers = #tpu.dot_dimension_numbers<[1], [0], [0], [1], [0, 0, 1, 1], [], []>} : vector<1x32xf32>, vector<32x128xf32>, vector<1x128xf32> -> vector<1x128xf32>
    %454 = arith.addf %449, %453 : vector<1x128xf32>
    %455 = vector.extract_strided_slice %389 {offsets = [7, 0], sizes = [1, 32], strides = [1, 1]} : vector<16x32xf32> to vector<1x32xf32>
    %c7 = arith.constant 7 : index
    %c0_268 = arith.constant 0 : index
    %c0_269 = arith.constant 0 : index
    %456 = vector.load %arg7[%c7, %c0_268, %c0_269] : memref<16x32x128xf32, #tpu.memory_space<vmem>>, vector<1x32x128xf32>
    %457 = vector.shape_cast %456 : vector<1x32x128xf32> to vector<32x128xf32>
    %cst_270 = arith.constant dense<0.000000e+00> : vector<1x128xf32>
    %458 = tpu.matmul %455, %457, %cst_270 {dimension_numbers = #tpu.dot_dimension_numbers<[1], [0], [0], [1], [0, 0, 1, 1], [], []>} : vector<1x32xf32>, vector<32x128xf32>, vector<1x128xf32> -> vector<1x128xf32>
    %459 = arith.addf %454, %458 : vector<1x128xf32>
    %460 = vector.extract_strided_slice %389 {offsets = [8, 0], sizes = [1, 32], strides = [1, 1]} : vector<16x32xf32> to vector<1x32xf32>
    %c8 = arith.constant 8 : index
    %c0_271 = arith.constant 0 : index
    %c0_272 = arith.constant 0 : index
    %461 = vector.load %arg7[%c8, %c0_271, %c0_272] : memref<16x32x128xf32, #tpu.memory_space<vmem>>, vector<1x32x128xf32>
    %462 = vector.shape_cast %461 : vector<1x32x128xf32> to vector<32x128xf32>
    %cst_273 = arith.constant dense<0.000000e+00> : vector<1x128xf32>
    %463 = tpu.matmul %460, %462, %cst_273 {dimension_numbers = #tpu.dot_dimension_numbers<[1], [0], [0], [1], [0, 0, 1, 1], [], []>} : vector<1x32xf32>, vector<32x128xf32>, vector<1x128xf32> -> vector<1x128xf32>
    %464 = arith.addf %459, %463 : vector<1x128xf32>
    %465 = vector.extract_strided_slice %389 {offsets = [9, 0], sizes = [1, 32], strides = [1, 1]} : vector<16x32xf32> to vector<1x32xf32>
    %c9 = arith.constant 9 : index
    %c0_274 = arith.constant 0 : index
    %c0_275 = arith.constant 0 : index
    %466 = vector.load %arg7[%c9, %c0_274, %c0_275] : memref<16x32x128xf32, #tpu.memory_space<vmem>>, vector<1x32x128xf32>
    %467 = vector.shape_cast %466 : vector<1x32x128xf32> to vector<32x128xf32>
    %cst_276 = arith.constant dense<0.000000e+00> : vector<1x128xf32>
    %468 = tpu.matmul %465, %467, %cst_276 {dimension_numbers = #tpu.dot_dimension_numbers<[1], [0], [0], [1], [0, 0, 1, 1], [], []>} : vector<1x32xf32>, vector<32x128xf32>, vector<1x128xf32> -> vector<1x128xf32>
    %469 = arith.addf %464, %468 : vector<1x128xf32>
    %470 = vector.extract_strided_slice %389 {offsets = [10, 0], sizes = [1, 32], strides = [1, 1]} : vector<16x32xf32> to vector<1x32xf32>
    %c10 = arith.constant 10 : index
    %c0_277 = arith.constant 0 : index
    %c0_278 = arith.constant 0 : index
    %471 = vector.load %arg7[%c10, %c0_277, %c0_278] : memref<16x32x128xf32, #tpu.memory_space<vmem>>, vector<1x32x128xf32>
    %472 = vector.shape_cast %471 : vector<1x32x128xf32> to vector<32x128xf32>
    %cst_279 = arith.constant dense<0.000000e+00> : vector<1x128xf32>
    %473 = tpu.matmul %470, %472, %cst_279 {dimension_numbers = #tpu.dot_dimension_numbers<[1], [0], [0], [1], [0, 0, 1, 1], [], []>} : vector<1x32xf32>, vector<32x128xf32>, vector<1x128xf32> -> vector<1x128xf32>
    %474 = arith.addf %469, %473 : vector<1x128xf32>
    %475 = vector.extract_strided_slice %389 {offsets = [11, 0], sizes = [1, 32], strides = [1, 1]} : vector<16x32xf32> to vector<1x32xf32>
    %c11 = arith.constant 11 : index
    %c0_280 = arith.constant 0 : index
    %c0_281 = arith.constant 0 : index
    %476 = vector.load %arg7[%c11, %c0_280, %c0_281] : memref<16x32x128xf32, #tpu.memory_space<vmem>>, vector<1x32x128xf32>
    %477 = vector.shape_cast %476 : vector<1x32x128xf32> to vector<32x128xf32>
    %cst_282 = arith.constant dense<0.000000e+00> : vector<1x128xf32>
    %478 = tpu.matmul %475, %477, %cst_282 {dimension_numbers = #tpu.dot_dimension_numbers<[1], [0], [0], [1], [0, 0, 1, 1], [], []>} : vector<1x32xf32>, vector<32x128xf32>, vector<1x128xf32> -> vector<1x128xf32>
    %479 = arith.addf %474, %478 : vector<1x128xf32>
    %480 = vector.extract_strided_slice %389 {offsets = [12, 0], sizes = [1, 32], strides = [1, 1]} : vector<16x32xf32> to vector<1x32xf32>
    %c12 = arith.constant 12 : index
    %c0_283 = arith.constant 0 : index
    %c0_284 = arith.constant 0 : index
    %481 = vector.load %arg7[%c12, %c0_283, %c0_284] : memref<16x32x128xf32, #tpu.memory_space<vmem>>, vector<1x32x128xf32>
    %482 = vector.shape_cast %481 : vector<1x32x128xf32> to vector<32x128xf32>
    %cst_285 = arith.constant dense<0.000000e+00> : vector<1x128xf32>
    %483 = tpu.matmul %480, %482, %cst_285 {dimension_numbers = #tpu.dot_dimension_numbers<[1], [0], [0], [1], [0, 0, 1, 1], [], []>} : vector<1x32xf32>, vector<32x128xf32>, vector<1x128xf32> -> vector<1x128xf32>
    %484 = arith.addf %479, %483 : vector<1x128xf32>
    %485 = vector.extract_strided_slice %389 {offsets = [13, 0], sizes = [1, 32], strides = [1, 1]} : vector<16x32xf32> to vector<1x32xf32>
    %c13 = arith.constant 13 : index
    %c0_286 = arith.constant 0 : index
    %c0_287 = arith.constant 0 : index
    %486 = vector.load %arg7[%c13, %c0_286, %c0_287] : memref<16x32x128xf32, #tpu.memory_space<vmem>>, vector<1x32x128xf32>
    %487 = vector.shape_cast %486 : vector<1x32x128xf32> to vector<32x128xf32>
    %cst_288 = arith.constant dense<0.000000e+00> : vector<1x128xf32>
    %488 = tpu.matmul %485, %487, %cst_288 {dimension_numbers = #tpu.dot_dimension_numbers<[1], [0], [0], [1], [0, 0, 1, 1], [], []>} : vector<1x32xf32>, vector<32x128xf32>, vector<1x128xf32> -> vector<1x128xf32>
    %489 = arith.addf %484, %488 : vector<1x128xf32>
    %490 = vector.extract_strided_slice %389 {offsets = [14, 0], sizes = [1, 32], strides = [1, 1]} : vector<16x32xf32> to vector<1x32xf32>
    %c14 = arith.constant 14 : index
    %c0_289 = arith.constant 0 : index
    %c0_290 = arith.constant 0 : index
    %491 = vector.load %arg7[%c14, %c0_289, %c0_290] : memref<16x32x128xf32, #tpu.memory_space<vmem>>, vector<1x32x128xf32>
    %492 = vector.shape_cast %491 : vector<1x32x128xf32> to vector<32x128xf32>
    %cst_291 = arith.constant dense<0.000000e+00> : vector<1x128xf32>
    %493 = tpu.matmul %490, %492, %cst_291 {dimension_numbers = #tpu.dot_dimension_numbers<[1], [0], [0], [1], [0, 0, 1, 1], [], []>} : vector<1x32xf32>, vector<32x128xf32>, vector<1x128xf32> -> vector<1x128xf32>
    %494 = arith.addf %489, %493 : vector<1x128xf32>
    %495 = vector.extract_strided_slice %389 {offsets = [15, 0], sizes = [1, 32], strides = [1, 1]} : vector<16x32xf32> to vector<1x32xf32>
    %c15 = arith.constant 15 : index
    %c0_292 = arith.constant 0 : index
    %c0_293 = arith.constant 0 : index
    %496 = vector.load %arg7[%c15, %c0_292, %c0_293] : memref<16x32x128xf32, #tpu.memory_space<vmem>>, vector<1x32x128xf32>
    %497 = vector.shape_cast %496 : vector<1x32x128xf32> to vector<32x128xf32>
    %cst_294 = arith.constant dense<0.000000e+00> : vector<1x128xf32>
    %498 = tpu.matmul %495, %497, %cst_294 {dimension_numbers = #tpu.dot_dimension_numbers<[1], [0], [0], [1], [0, 0, 1, 1], [], []>} : vector<1x32xf32>, vector<32x128xf32>, vector<1x128xf32> -> vector<1x128xf32>
    %499 = arith.addf %494, %498 : vector<1x128xf32>
    %500 = vector.extract_strided_slice %420 {offsets = [0, 0], sizes = [1, 32], strides = [1, 1]} : vector<16x32xf32> to vector<1x32xf32>
    %c0_295 = arith.constant 0 : index
    %c0_296 = arith.constant 0 : index
    %c0_297 = arith.constant 0 : index
    %501 = vector.load %arg7[%c0_295, %c0_296, %c0_297] : memref<16x32x128xf32, #tpu.memory_space<vmem>>, vector<1x32x128xf32>
    %502 = vector.shape_cast %501 : vector<1x32x128xf32> to vector<32x128xf32>
    %cst_298 = arith.constant dense<0.000000e+00> : vector<1x128xf32>
    %503 = tpu.matmul %500, %502, %cst_298 {dimension_numbers = #tpu.dot_dimension_numbers<[1], [0], [0], [1], [0, 0, 1, 1], [], []>} : vector<1x32xf32>, vector<32x128xf32>, vector<1x128xf32> -> vector<1x128xf32>
    %504 = vector.extract_strided_slice %420 {offsets = [1, 0], sizes = [1, 32], strides = [1, 1]} : vector<16x32xf32> to vector<1x32xf32>
    %c1_299 = arith.constant 1 : index
    %c0_300 = arith.constant 0 : index
    %c0_301 = arith.constant 0 : index
    %505 = vector.load %arg7[%c1_299, %c0_300, %c0_301] : memref<16x32x128xf32, #tpu.memory_space<vmem>>, vector<1x32x128xf32>
    %506 = vector.shape_cast %505 : vector<1x32x128xf32> to vector<32x128xf32>
    %cst_302 = arith.constant dense<0.000000e+00> : vector<1x128xf32>
    %507 = tpu.matmul %504, %506, %cst_302 {dimension_numbers = #tpu.dot_dimension_numbers<[1], [0], [0], [1], [0, 0, 1, 1], [], []>} : vector<1x32xf32>, vector<32x128xf32>, vector<1x128xf32> -> vector<1x128xf32>
    %508 = arith.addf %503, %507 : vector<1x128xf32>
    %509 = vector.extract_strided_slice %420 {offsets = [2, 0], sizes = [1, 32], strides = [1, 1]} : vector<16x32xf32> to vector<1x32xf32>
    %c2_303 = arith.constant 2 : index
    %c0_304 = arith.constant 0 : index
    %c0_305 = arith.constant 0 : index
    %510 = vector.load %arg7[%c2_303, %c0_304, %c0_305] : memref<16x32x128xf32, #tpu.memory_space<vmem>>, vector<1x32x128xf32>
    %511 = vector.shape_cast %510 : vector<1x32x128xf32> to vector<32x128xf32>
    %cst_306 = arith.constant dense<0.000000e+00> : vector<1x128xf32>
    %512 = tpu.matmul %509, %511, %cst_306 {dimension_numbers = #tpu.dot_dimension_numbers<[1], [0], [0], [1], [0, 0, 1, 1], [], []>} : vector<1x32xf32>, vector<32x128xf32>, vector<1x128xf32> -> vector<1x128xf32>
    %513 = arith.addf %508, %512 : vector<1x128xf32>
    %514 = vector.extract_strided_slice %420 {offsets = [3, 0], sizes = [1, 32], strides = [1, 1]} : vector<16x32xf32> to vector<1x32xf32>
    %c3_307 = arith.constant 3 : index
    %c0_308 = arith.constant 0 : index
    %c0_309 = arith.constant 0 : index
    %515 = vector.load %arg7[%c3_307, %c0_308, %c0_309] : memref<16x32x128xf32, #tpu.memory_space<vmem>>, vector<1x32x128xf32>
    %516 = vector.shape_cast %515 : vector<1x32x128xf32> to vector<32x128xf32>
    %cst_310 = arith.constant dense<0.000000e+00> : vector<1x128xf32>
    %517 = tpu.matmul %514, %516, %cst_310 {dimension_numbers = #tpu.dot_dimension_numbers<[1], [0], [0], [1], [0, 0, 1, 1], [], []>} : vector<1x32xf32>, vector<32x128xf32>, vector<1x128xf32> -> vector<1x128xf32>
    %518 = arith.addf %513, %517 : vector<1x128xf32>
    %519 = vector.extract_strided_slice %420 {offsets = [4, 0], sizes = [1, 32], strides = [1, 1]} : vector<16x32xf32> to vector<1x32xf32>
    %c4_311 = arith.constant 4 : index
    %c0_312 = arith.constant 0 : index
    %c0_313 = arith.constant 0 : index
    %520 = vector.load %arg7[%c4_311, %c0_312, %c0_313] : memref<16x32x128xf32, #tpu.memory_space<vmem>>, vector<1x32x128xf32>
    %521 = vector.shape_cast %520 : vector<1x32x128xf32> to vector<32x128xf32>
    %cst_314 = arith.constant dense<0.000000e+00> : vector<1x128xf32>
    %522 = tpu.matmul %519, %521, %cst_314 {dimension_numbers = #tpu.dot_dimension_numbers<[1], [0], [0], [1], [0, 0, 1, 1], [], []>} : vector<1x32xf32>, vector<32x128xf32>, vector<1x128xf32> -> vector<1x128xf32>
    %523 = arith.addf %518, %522 : vector<1x128xf32>
    %524 = vector.extract_strided_slice %420 {offsets = [5, 0], sizes = [1, 32], strides = [1, 1]} : vector<16x32xf32> to vector<1x32xf32>
    %c5_315 = arith.constant 5 : index
    %c0_316 = arith.constant 0 : index
    %c0_317 = arith.constant 0 : index
    %525 = vector.load %arg7[%c5_315, %c0_316, %c0_317] : memref<16x32x128xf32, #tpu.memory_space<vmem>>, vector<1x32x128xf32>
    %526 = vector.shape_cast %525 : vector<1x32x128xf32> to vector<32x128xf32>
    %cst_318 = arith.constant dense<0.000000e+00> : vector<1x128xf32>
    %527 = tpu.matmul %524, %526, %cst_318 {dimension_numbers = #tpu.dot_dimension_numbers<[1], [0], [0], [1], [0, 0, 1, 1], [], []>} : vector<1x32xf32>, vector<32x128xf32>, vector<1x128xf32> -> vector<1x128xf32>
    %528 = arith.addf %523, %527 : vector<1x128xf32>
    %529 = vector.extract_strided_slice %420 {offsets = [6, 0], sizes = [1, 32], strides = [1, 1]} : vector<16x32xf32> to vector<1x32xf32>
    %c6_319 = arith.constant 6 : index
    %c0_320 = arith.constant 0 : index
    %c0_321 = arith.constant 0 : index
    %530 = vector.load %arg7[%c6_319, %c0_320, %c0_321] : memref<16x32x128xf32, #tpu.memory_space<vmem>>, vector<1x32x128xf32>
    %531 = vector.shape_cast %530 : vector<1x32x128xf32> to vector<32x128xf32>
    %cst_322 = arith.constant dense<0.000000e+00> : vector<1x128xf32>
    %532 = tpu.matmul %529, %531, %cst_322 {dimension_numbers = #tpu.dot_dimension_numbers<[1], [0], [0], [1], [0, 0, 1, 1], [], []>} : vector<1x32xf32>, vector<32x128xf32>, vector<1x128xf32> -> vector<1x128xf32>
    %533 = arith.addf %528, %532 : vector<1x128xf32>
    %534 = vector.extract_strided_slice %420 {offsets = [7, 0], sizes = [1, 32], strides = [1, 1]} : vector<16x32xf32> to vector<1x32xf32>
    %c7_323 = arith.constant 7 : index
    %c0_324 = arith.constant 0 : index
    %c0_325 = arith.constant 0 : index
    %535 = vector.load %arg7[%c7_323, %c0_324, %c0_325] : memref<16x32x128xf32, #tpu.memory_space<vmem>>, vector<1x32x128xf32>
    %536 = vector.shape_cast %535 : vector<1x32x128xf32> to vector<32x128xf32>
    %cst_326 = arith.constant dense<0.000000e+00> : vector<1x128xf32>
    %537 = tpu.matmul %534, %536, %cst_326 {dimension_numbers = #tpu.dot_dimension_numbers<[1], [0], [0], [1], [0, 0, 1, 1], [], []>} : vector<1x32xf32>, vector<32x128xf32>, vector<1x128xf32> -> vector<1x128xf32>
    %538 = arith.addf %533, %537 : vector<1x128xf32>
    %539 = vector.extract_strided_slice %420 {offsets = [8, 0], sizes = [1, 32], strides = [1, 1]} : vector<16x32xf32> to vector<1x32xf32>
    %c8_327 = arith.constant 8 : index
    %c0_328 = arith.constant 0 : index
    %c0_329 = arith.constant 0 : index
    %540 = vector.load %arg7[%c8_327, %c0_328, %c0_329] : memref<16x32x128xf32, #tpu.memory_space<vmem>>, vector<1x32x128xf32>
    %541 = vector.shape_cast %540 : vector<1x32x128xf32> to vector<32x128xf32>
    %cst_330 = arith.constant dense<0.000000e+00> : vector<1x128xf32>
    %542 = tpu.matmul %539, %541, %cst_330 {dimension_numbers = #tpu.dot_dimension_numbers<[1], [0], [0], [1], [0, 0, 1, 1], [], []>} : vector<1x32xf32>, vector<32x128xf32>, vector<1x128xf32> -> vector<1x128xf32>
    %543 = arith.addf %538, %542 : vector<1x128xf32>
    %544 = vector.extract_strided_slice %420 {offsets = [9, 0], sizes = [1, 32], strides = [1, 1]} : vector<16x32xf32> to vector<1x32xf32>
    %c9_331 = arith.constant 9 : index
    %c0_332 = arith.constant 0 : index
    %c0_333 = arith.constant 0 : index
    %545 = vector.load %arg7[%c9_331, %c0_332, %c0_333] : memref<16x32x128xf32, #tpu.memory_space<vmem>>, vector<1x32x128xf32>
    %546 = vector.shape_cast %545 : vector<1x32x128xf32> to vector<32x128xf32>
    %cst_334 = arith.constant dense<0.000000e+00> : vector<1x128xf32>
    %547 = tpu.matmul %544, %546, %cst_334 {dimension_numbers = #tpu.dot_dimension_numbers<[1], [0], [0], [1], [0, 0, 1, 1], [], []>} : vector<1x32xf32>, vector<32x128xf32>, vector<1x128xf32> -> vector<1x128xf32>
    %548 = arith.addf %543, %547 : vector<1x128xf32>
    %549 = vector.extract_strided_slice %420 {offsets = [10, 0], sizes = [1, 32], strides = [1, 1]} : vector<16x32xf32> to vector<1x32xf32>
    %c10_335 = arith.constant 10 : index
    %c0_336 = arith.constant 0 : index
    %c0_337 = arith.constant 0 : index
    %550 = vector.load %arg7[%c10_335, %c0_336, %c0_337] : memref<16x32x128xf32, #tpu.memory_space<vmem>>, vector<1x32x128xf32>
    %551 = vector.shape_cast %550 : vector<1x32x128xf32> to vector<32x128xf32>
    %cst_338 = arith.constant dense<0.000000e+00> : vector<1x128xf32>
    %552 = tpu.matmul %549, %551, %cst_338 {dimension_numbers = #tpu.dot_dimension_numbers<[1], [0], [0], [1], [0, 0, 1, 1], [], []>} : vector<1x32xf32>, vector<32x128xf32>, vector<1x128xf32> -> vector<1x128xf32>
    %553 = arith.addf %548, %552 : vector<1x128xf32>
    %554 = vector.extract_strided_slice %420 {offsets = [11, 0], sizes = [1, 32], strides = [1, 1]} : vector<16x32xf32> to vector<1x32xf32>
    %c11_339 = arith.constant 11 : index
    %c0_340 = arith.constant 0 : index
    %c0_341 = arith.constant 0 : index
    %555 = vector.load %arg7[%c11_339, %c0_340, %c0_341] : memref<16x32x128xf32, #tpu.memory_space<vmem>>, vector<1x32x128xf32>
    %556 = vector.shape_cast %555 : vector<1x32x128xf32> to vector<32x128xf32>
    %cst_342 = arith.constant dense<0.000000e+00> : vector<1x128xf32>
    %557 = tpu.matmul %554, %556, %cst_342 {dimension_numbers = #tpu.dot_dimension_numbers<[1], [0], [0], [1], [0, 0, 1, 1], [], []>} : vector<1x32xf32>, vector<32x128xf32>, vector<1x128xf32> -> vector<1x128xf32>
    %558 = arith.addf %553, %557 : vector<1x128xf32>
    %559 = vector.extract_strided_slice %420 {offsets = [12, 0], sizes = [1, 32], strides = [1, 1]} : vector<16x32xf32> to vector<1x32xf32>
    %c12_343 = arith.constant 12 : index
    %c0_344 = arith.constant 0 : index
    %c0_345 = arith.constant 0 : index
    %560 = vector.load %arg7[%c12_343, %c0_344, %c0_345] : memref<16x32x128xf32, #tpu.memory_space<vmem>>, vector<1x32x128xf32>
    %561 = vector.shape_cast %560 : vector<1x32x128xf32> to vector<32x128xf32>
    %cst_346 = arith.constant dense<0.000000e+00> : vector<1x128xf32>
    %562 = tpu.matmul %559, %561, %cst_346 {dimension_numbers = #tpu.dot_dimension_numbers<[1], [0], [0], [1], [0, 0, 1, 1], [], []>} : vector<1x32xf32>, vector<32x128xf32>, vector<1x128xf32> -> vector<1x128xf32>
    %563 = arith.addf %558, %562 : vector<1x128xf32>
    %564 = vector.extract_strided_slice %420 {offsets = [13, 0], sizes = [1, 32], strides = [1, 1]} : vector<16x32xf32> to vector<1x32xf32>
    %c13_347 = arith.constant 13 : index
    %c0_348 = arith.constant 0 : index
    %c0_349 = arith.constant 0 : index
    %565 = vector.load %arg7[%c13_347, %c0_348, %c0_349] : memref<16x32x128xf32, #tpu.memory_space<vmem>>, vector<1x32x128xf32>
    %566 = vector.shape_cast %565 : vector<1x32x128xf32> to vector<32x128xf32>
    %cst_350 = arith.constant dense<0.000000e+00> : vector<1x128xf32>
    %567 = tpu.matmul %564, %566, %cst_350 {dimension_numbers = #tpu.dot_dimension_numbers<[1], [0], [0], [1], [0, 0, 1, 1], [], []>} : vector<1x32xf32>, vector<32x128xf32>, vector<1x128xf32> -> vector<1x128xf32>
    %568 = arith.addf %563, %567 : vector<1x128xf32>
    %569 = vector.extract_strided_slice %420 {offsets = [14, 0], sizes = [1, 32], strides = [1, 1]} : vector<16x32xf32> to vector<1x32xf32>
    %c14_351 = arith.constant 14 : index
    %c0_352 = arith.constant 0 : index
    %c0_353 = arith.constant 0 : index
    %570 = vector.load %arg7[%c14_351, %c0_352, %c0_353] : memref<16x32x128xf32, #tpu.memory_space<vmem>>, vector<1x32x128xf32>
    %571 = vector.shape_cast %570 : vector<1x32x128xf32> to vector<32x128xf32>
    %cst_354 = arith.constant dense<0.000000e+00> : vector<1x128xf32>
    %572 = tpu.matmul %569, %571, %cst_354 {dimension_numbers = #tpu.dot_dimension_numbers<[1], [0], [0], [1], [0, 0, 1, 1], [], []>} : vector<1x32xf32>, vector<32x128xf32>, vector<1x128xf32> -> vector<1x128xf32>
    %573 = arith.addf %568, %572 : vector<1x128xf32>
    %574 = vector.extract_strided_slice %420 {offsets = [15, 0], sizes = [1, 32], strides = [1, 1]} : vector<16x32xf32> to vector<1x32xf32>
    %c15_355 = arith.constant 15 : index
    %c0_356 = arith.constant 0 : index
    %c0_357 = arith.constant 0 : index
    %575 = vector.load %arg7[%c15_355, %c0_356, %c0_357] : memref<16x32x128xf32, #tpu.memory_space<vmem>>, vector<1x32x128xf32>
    %576 = vector.shape_cast %575 : vector<1x32x128xf32> to vector<32x128xf32>
    %cst_358 = arith.constant dense<0.000000e+00> : vector<1x128xf32>
    %577 = tpu.matmul %574, %576, %cst_358 {dimension_numbers = #tpu.dot_dimension_numbers<[1], [0], [0], [1], [0, 0, 1, 1], [], []>} : vector<1x32xf32>, vector<32x128xf32>, vector<1x128xf32> -> vector<1x128xf32>
    %578 = arith.addf %573, %577 : vector<1x128xf32>
    %579 = tpu.concatenate %499, %578 in 0 : vector<1x128xf32>, vector<1x128xf32> -> vector<2x128xf32>
    %c0_359 = arith.constant 0 : index
    %c0_360 = arith.constant 0 : index
    %580 = vector.load %arg8[%c0_359, %c0_360] : memref<1x128xf32, #tpu.memory_space<vmem>>, vector<1x128xf32>
    %581 = vector.broadcast %580 : vector<1x128xf32> to vector<2x128xf32>
    %582 = arith.addf %579, %581 : vector<2x128xf32>
    %c0_361 = arith.constant 0 : index
    %c0_362 = arith.constant 0 : index
    %583 = vector.load %arg9[%c0_361, %c0_362] : memref<2x128xf32, #tpu.memory_space<vmem>>, vector<2x128xf32>
    tpu.vector_store %arg9[%c0_361, %c0_362], %582 {strides = array<i32>} : memref<2x128xf32, #tpu.memory_space<vmem>>, vector<2x128xf32>,
    return
  }
}

</mosaic_0001>

<llo_original>
// kernel: state_network_forward.1
$region0: #{state_network_forward.1}
  #allocation0 [shape = 'u32[]', space=smem, size = 0x4, offset = 0x4, fixed_abs, tag = 'smem constant byte address 0x4 - core index']
  #allocation1 [shape = 'u32[144,128]{1,0:T(1,128)}', space=vmem, size = 0x12000, scoped, tag = 'internal scratch']
  %s0 = inlined_call_operand.vmem [shape: f32[2,64,16], index: 0, kind: input, shape index: {}]
  %s1 = inlined_call_operand.vmem [shape: f32[2,16,4], index: 1, kind: input, shape index: {}]
  %s2 = inlined_call_operand.vmem [shape: f32[16,32], index: 2, kind: input, shape index: {}]
  %s3 = inlined_call_operand.vmem [shape: f32[6,4,32,6], index: 3, kind: input, shape index: {}]
  %s4 = inlined_call_operand.vmem [shape: f32[6,4,6], index: 4, kind: input, shape index: {}]
  %s5 = inlined_call_operand.vmem [shape: f32[6,6,32], index: 5, kind: input, shape index: {}]
  %s6 = inlined_call_operand.vmem [shape: f32[6,1,32], index: 6, kind: input, shape index: {}]
  %s7 = inlined_call_operand.vmem [shape: f32[16,32,128], index: 7, kind: input, shape index: {}]
  %s8 = inlined_call_operand.vmem [shape: f32[1,128], index: 8, kind: input, shape index: {}]
  %s9 = inlined_call_operand.hbm [shape: f32[2,128], index: 9, kind: output, shape index: {}]
  %s10 = sld [smem:[#allocation0]]
  $region46: #{state_network_forward.1} parent=0
    _
  %s12 = ssub.s32 1, %s10
  %s13 = scalar_select 0, %s12, %s10
  $region1: #{state_network_forward.1} parent=0
    #allocation2 [shape = 'u8[1024]{0}', space=vmem, size = 0x400, scoped, tag = 'output window, operand 0, single buffered']
    #allocation3 [shape = 's32[1]{0}', space=sflag, size = 0x4, scoped, tag = 'scoped memory for state_network_forward.1']
    %14 = vsyncpa [#allocation3], 0
    // Predicated region
    $region2: #{state_network_forward.1} parent=1 // pred_check
      _
    $region3: #{state_network_forward.1} parent=1 // pred_check_branch
      %16 = sbr.rel (0) target = $region5
    $region4: #{state_network_forward.1} parent=1 // pred_region
      _
    $region5: #{state_network_forward.1} parent=1 // pred_fallthru
      _
    // Predicated region
    $region6: #{state_network_forward.1} parent=1 // pred_check
      _
    $region7: #{state_network_forward.1} parent=1 // pred_check_branch
      %18 = sbr.rel (0) target = $region9
    $region8: #{state_network_forward.1} parent=1 // pred_region
      _
    $region9: #{state_network_forward.1} parent=1 // pred_fallthru
      _
    // Predicated region
    $region10: #{state_network_forward.1} parent=1 // pred_check
      _
    $region11: #{state_network_forward.1} parent=1 // pred_check_branch
      %20 = sbr.rel (0) target = $region13
    $region12: #{state_network_forward.1} parent=1 // pred_region
      _
    $region13: #{state_network_forward.1} parent=1 // pred_fallthru
      _
    // Predicated region
    $region14: #{state_network_forward.1} parent=1 // pred_check
      _
    $region15: #{state_network_forward.1} parent=1 // pred_check_branch
      %22 = sbr.rel (0) target = $region17
    $region16: #{state_network_forward.1} parent=1 // pred_region
      _
    $region17: #{state_network_forward.1} parent=1 // pred_fallthru
      _
    // Predicated region
    $region18: #{state_network_forward.1} parent=1 // pred_check
      _
    $region19: #{state_network_forward.1} parent=1 // pred_check_branch
      %24 = sbr.rel (0) target = $region21
    $region20: #{state_network_forward.1} parent=1 // pred_region
      _
    $region21: #{state_network_forward.1} parent=1 // pred_fallthru
      _
    // Predicated region
    $region22: #{state_network_forward.1} parent=1 // pred_check
      _
    $region23: #{state_network_forward.1} parent=1 // pred_check_branch
      %26 = sbr.rel (0) target = $region25
    $region24: #{state_network_forward.1} parent=1 // pred_region
      _
    $region25: #{state_network_forward.1} parent=1 // pred_fallthru
      _
    // Predicated region
    $region26: #{state_network_forward.1} parent=1 // pred_check
      _
    $region27: #{state_network_forward.1} parent=1 // pred_check_branch
      %28 = sbr.rel (0) target = $region29
    $region28: #{state_network_forward.1} parent=1 // pred_region
      _
    $region29: #{state_network_forward.1} parent=1 // pred_fallthru
      _
    // Predicated region
    $region30: #{state_network_forward.1} parent=1 // pred_check
      _
    $region31: #{state_network_forward.1} parent=1 // pred_check_branch
      %30 = sbr.rel (0) target = $region33
    $region32: #{state_network_forward.1} parent=1 // pred_region
      _
    $region33: #{state_network_forward.1} parent=1 // pred_fallthru
      _
    // Predicated region
    $region34: #{state_network_forward.1} parent=1 // pred_check
      _
    $region35: #{state_network_forward.1} parent=1 // pred_check_branch
      %32 = sbr.rel (0) target = $region37
    $region36: #{state_network_forward.1} parent=1 // pred_region
      _
    $region37: #{state_network_forward.1} parent=1 // pred_fallthru
      _
    %v33 = vld [vmem:[%s2] sm:$0xff]
    %v34 = vld [vmem:[%s2 + $0x8] sm:$0xff]
    %v35 = vld [vmem:[%s3] sm:$0xff]
    %v36 = vld [vmem:[%s3 + $0x8] sm:$0xff]
    %v37 = vld [vmem:[%s3 + $0x10] sm:$0xff]
    %v38 = vld [vmem:[%s3 + $0x18] sm:$0xff]
    %v39 = vld [vmem:[%s3 + $0x20] sm:$0xff]
    %v40 = vld [vmem:[%s3 + $0x28] sm:$0xff]
    %v41 = vld [vmem:[%s3 + $0x30] sm:$0xff]
    %v42 = vld [vmem:[%s3 + $0x38] sm:$0xff]
    %v43 = vld [vmem:[%s3 + $0x40] sm:$0xff]
    %v44 = vld [vmem:[%s3 + $0x48] sm:$0xff]
    %v45 = vld [vmem:[%s3 + $0x50] sm:$0xff]
    %v46 = vld [vmem:[%s3 + $0x58] sm:$0xff]
    %v47 = vld [vmem:[%s3 + $0x60] sm:$0xff]
    %v48 = vld [vmem:[%s3 + $0x68] sm:$0xff]
    %v49 = vld [vmem:[%s3 + $0x70] sm:$0xff]
    %v50 = vld [vmem:[%s3 + $0x78] sm:$0xff]
    %v51 = vld [vmem:[%s4] sm:$0xf]
    %v52 = vld [vmem:[%s5] sm:$0x3f]
    %v53 = vld [vmem:[%s6] sm:$0x1]
    %v54 = vld [vmem:[%s0] sm:$0xff]
    %v55 = vld [vmem:[%s0 + $0x8] sm:$0xff]
    %v56 = vld [vmem:[%s0 + $0x10] sm:$0xff]
    %v57 = vld [vmem:[%s0 + $0x18] sm:$0xff]
    %v58 = vld [vmem:[%s0 + $0x20] sm:$0xff]
    %v59 = vld [vmem:[%s0 + $0x28] sm:$0xff]
    %v60 = vld [vmem:[%s0 + $0x30] sm:$0xff]
    %v61 = vld [vmem:[%s0 + $0x38] sm:$0xff]
    %vm62 = vcmask 130048
    %v64 = vsel %vm62, %v54, 0
    %v67 = vsel %vm62, %v55, 0
    %v70 = vsel %vm62, %v56, 0
    %v73 = vsel %vm62, %v57, 0
    %v76 = vsel %vm62, %v58, 0
    %v79 = vsel %vm62, %v59, 0
    %v82 = vsel %vm62, %v60, 0
    %v85 = vsel %vm62, %v61, 0
    %87 = vmatprep.subr.mxu0 0.0
    %88 = vmatpush1.msra.mxu0 %v33
    %89 = vmatprep.subr.mxu0 0.0
    %90 = vmatpush1.msra.mxu0 %v34
    %91 = vmatprep.subr.mxu0 0.0
    %92 = vmatpush1.msra.mxu0 0.0
    %93 = vmatprep.subr.mxu0 0.0
    %94 = vmatpush1.msra.mxu0 0.0
    %95 = vmatprep.subr.mxu0 0.0
    %96 = vmatpush1.msra.mxu0 0.0
    %97 = vmatprep.subr.mxu0 0.0
    %98 = vmatpush1.msra.mxu0 0.0
    %99 = vmatprep.subr.mxu0 0.0
    %100 = vmatpush1.msra.mxu0 0.0
    %101 = vmatprep.subr.mxu0 0.0
    %102 = vmatpush1.msra.mxu0 0.0
    %103 = vmatprep.subr.mxu0 0.0
    %104 = vmatpush1.msra.mxu0 0.0
    %105 = vmatprep.subr.mxu0 0.0
    %106 = vmatpush1.msra.mxu0 0.0
    %107 = vmatprep.subr.mxu0 0.0
    %108 = vmatpush1.msra.mxu0 0.0
    %109 = vmatprep.subr.mxu0 0.0
    %110 = vmatpush1.msra.mxu0 0.0
    %111 = vmatprep.subr.mxu0 0.0
    %112 = vmatpush1.msra.mxu0 0.0
    %113 = vmatprep.subr.mxu0 0.0
    %114 = vmatpush1.msra.mxu0 0.0
    %115 = vmatprep.subr.mxu0 0.0
    %116 = vmatpush1.msra.mxu0 0.0
    %117 = vmatprep.subr.mxu0 0.0
    %118 = vmatpush1.msra.mxu0 0.0
    %119 = vmatprep.subr.mxu0 0.0
    %120 = vmatpush1.msra.mxu0 0.0
    %121 = vmatprep.subr.mxu0 0.0
    %122 = vmatpush1.msra.mxu0 0.0
    %123 = vmatprep.subr.mxu0 0.0
    %124 = vmatpush1.msra.mxu0 0.0
    %125 = vmatprep.subr.mxu0 0.0
    %126 = vmatpush1.msra.mxu0 0.0
    %127 = vmatprep.subr.mxu0 0.0
    %128 = vmatpush1.msra.mxu0 0.0
    %129 = vmatprep.subr.mxu0 0.0
    %130 = vmatpush1.msra.mxu0 0.0
    %131 = vmatprep.subr.mxu0 0.0
    %132 = vmatpush1.msra.mxu0 0.0
    %133 = vmatprep.subr.mxu0 0.0
    %134 = vmatpush1.msra.mxu0 0.0
    %135 = vmatprep.subr.mxu0 0.0
    %136 = vmatpush1.msra.mxu0 0.0
    %137 = vmatprep.subr.mxu0 0.0
    %138 = vmatpush1.msra.mxu0 0.0
    %139 = vmatprep.subr.mxu0 0.0
    %140 = vmatpush1.msra.mxu0 0.0
    %141 = vmatprep.subr.mxu0 0.0
    %142 = vmatpush1.msra.mxu0 0.0
    %143 = vmatprep.subr.mxu0 0.0
    %144 = vmatpush1.msra.mxu0 0.0
    %145 = vmatprep.subr.mxu0 0.0
    %146 = vmatpush1.msra.mxu0 0.0
    %147 = vmatprep.subr.mxu0 0.0
    %148 = vmatpush1.msra.mxu0 0.0
    %149 = vmatprep.subr.mxu0 0.0
    %150 = vmatpush1.msra.mxu0 0.0
    %151 = vmatprep.mubr.f32.mxu0 0.0
    %152 = vmatmul.mubr.f32.gmra.mrb[0].mxu0 %v64
    %v153 = vpop.f32.mrb[0].mxu0
    %v154 = vadd.f32 0.0, %v153
    %v155 = vpop.f32.mrb[0].mxu0
    %156 = vmatprep.mubr.f32.mxu0 0.0
    %157 = vmatmul.mubr.f32.gmra.mrb[0].mxu0 %v67
    %v158 = vpop.f32.mrb[0].mxu0
    %v159 = vadd.f32 0.0, %v158
    %v160 = vpop.f32.mrb[0].mxu0
    %161 = vmatprep.mubr.f32.mxu0 0.0
    %162 = vmatmul.mubr.f32.gmra.mrb[0].mxu0 %v70
    %v163 = vpop.f32.mrb[0].mxu0
    %v164 = vadd.f32 0.0, %v163
    %v165 = vpop.f32.mrb[0].mxu0
    %166 = vmatprep.mubr.f32.mxu0 0.0
    %167 = vmatmul.mubr.f32.gmra.mrb[0].mxu0 %v73
    %v168 = vpop.f32.mrb[0].mxu0
    %v169 = vadd.f32 0.0, %v168
    %v170 = vpop.f32.mrb[0].mxu0
    %171 = vmatprep.mubr.f32.mxu0 0.0
    %172 = vmatmul.mubr.f32.gmra.mrb[0].mxu0 %v76
    %v173 = vpop.f32.mrb[0].mxu0
    %v174 = vadd.f32 0.0, %v173
    %v175 = vpop.f32.mrb[0].mxu0
    %176 = vmatprep.mubr.f32.mxu0 0.0
    %177 = vmatmul.mubr.f32.gmra.mrb[0].mxu0 %v79
    %v178 = vpop.f32.mrb[0].mxu0
    %v179 = vadd.f32 0.0, %v178
    %v180 = vpop.f32.mrb[0].mxu0
    %181 = vmatprep.mubr.f32.mxu0 0.0
    %182 = vmatmul.mubr.f32.gmra.mrb[0].mxu0 %v82
    %v183 = vpop.f32.mrb[0].mxu0
    %v184 = vadd.f32 0.0, %v183
    %v185 = vpop.f32.mrb[0].mxu0
    %186 = vmatprep.mubr.f32.mxu0 0.0
    %187 = vmatmul.mubr.f32.gmra.mrb[0].mxu0 %v85
    %v188 = vpop.f32.mrb[0].mxu0
    %v189 = vadd.f32 0.0, %v188
    %v190 = vpop.f32.mrb[0].mxu0
    %191 = vdwg.mxu0
    %v192 = vld [vmem:[%s1] sm:$0xff]
    %v193 = vld [vmem:[%s1 + $0x8] sm:$0xff]
    %vm194 = vcmask 261120
    %v196 = vsel %vm194, %v154, 0
    %v199 = vsel %vm194, %v159, 0
    %201 = vmatprep.subr.mxu0 0.0
    %202 = vmatpush1.msra.mxu0 %v35
    %203 = vmatprep.subr.mxu0 0.0
    %204 = vmatpush1.msra.mxu0 %v36
    %205 = vmatprep.subr.mxu0 0.0
    %206 = vmatpush1.msra.mxu0 %v37
    %207 = vmatprep.subr.mxu0 0.0
    %208 = vmatpush1.msra.mxu0 %v38
    %209 = vmatprep.subr.mxu0 0.0
    %210 = vmatpush1.msra.mxu0 0.0
    %211 = vmatprep.subr.mxu0 0.0
    %212 = vmatpush1.msra.mxu0 0.0
    %213 = vmatprep.subr.mxu0 0.0
    %214 = vmatpush1.msra.mxu0 0.0
    %215 = vmatprep.subr.mxu0 0.0
    %216 = vmatpush1.msra.mxu0 0.0
    %217 = vmatprep.subr.mxu0 0.0
    %218 = vmatpush1.msra.mxu0 0.0
    %219 = vmatprep.subr.mxu0 0.0
    %220 = vmatpush1.msra.mxu0 0.0
    %221 = vmatprep.subr.mxu0 0.0
    %222 = vmatpush1.msra.mxu0 0.0
    %223 = vmatprep.subr.mxu0 0.0
    %224 = vmatpush1.msra.mxu0 0.0
    %225 = vmatprep.subr.mxu0 0.0
    %226 = vmatpush1.msra.mxu0 0.0
    %227 = vmatprep.subr.mxu0 0.0
    %228 = vmatpush1.msra.mxu0 0.0
    %229 = vmatprep.subr.mxu0 0.0
    %230 = vmatpush1.msra.mxu0 0.0
    %231 = vmatprep.subr.mxu0 0.0
    %232 = vmatpush1.msra.mxu0 0.0
    %233 = vmatprep.subr.mxu0 0.0
    %234 = vmatpush1.msra.mxu0 0.0
    %235 = vmatprep.subr.mxu0 0.0
    %236 = vmatpush1.msra.mxu0 0.0
    %237 = vmatprep.subr.mxu0 0.0
    %238 = vmatpush1.msra.mxu0 0.0
    %239 = vmatprep.subr.mxu0 0.0
    %240 = vmatpush1.msra.mxu0 0.0
    %241 = vmatprep.subr.mxu0 0.0
    %242 = vmatpush1.msra.mxu0 0.0
    %243 = vmatprep.subr.mxu0 0.0
    %244 = vmatpush1.msra.mxu0 0.0
    %245 = vmatprep.subr.mxu0 0.0
    %246 = vmatpush1.msra.mxu0 0.0
    %247 = vmatprep.subr.mxu0 0.0
    %248 = vmatpush1.msra.mxu0 0.0
    %249 = vmatprep.subr.mxu0 0.0
    %250 = vmatpush1.msra.mxu0 0.0
    %251 = vmatprep.subr.mxu0 0.0
    %252 = vmatpush1.msra.mxu0 0.0
    %253 = vmatprep.subr.mxu0 0.0
    %254 = vmatpush1.msra.mxu0 0.0
    %255 = vmatprep.subr.mxu0 0.0
    %256 = vmatpush1.msra.mxu0 0.0
    %257 = vmatprep.subr.mxu0 0.0
    %258 = vmatpush1.msra.mxu0 0.0
    %259 = vmatprep.subr.mxu0 0.0
    %260 = vmatpush1.msra.mxu0 0.0
    %261 = vmatprep.subr.mxu0 0.0
    %262 = vmatpush1.msra.mxu0 0.0
    %263 = vmatprep.subr.mxu0 0.0
    %264 = vmatpush1.msra.mxu0 0.0
    %265 = vmatprep.mubr.f32.mxu0 0.0
    %266 = vmatmul.mubr.f32.gmra.mrb[0].mxu0 %v196
    %v267 = vpop.f32.mrb[0].mxu0
    %v268 = vadd.f32 0.0, %v267
    %v269 = vpop.f32.mrb[0].mxu0
    %270 = vmatprep.mubr.f32.mxu0 0.0
    %271 = vmatmul.mubr.f32.gmra.mrb[0].mxu0 %v199
    %v272 = vpop.f32.mrb[0].mxu0
    %v273 = vadd.f32 0.0, %v272
    %v274 = vpop.f32.mrb[0].mxu0
    %275 = vdwg.mxu0
    %vm276 = vcmask 31744
    %v278 = vsel %vm276, %v192, 0
    %v281 = vsel %vm276, %v193, 0
    %vm283 = vcmask 1043456
    %v285 = vsel %vm283, %v51, 0
    %287 = vmatprep.subr.mxu0 0.0
    %288 = vmatpush1.msra.mxu0 %v285
    %289 = vmatprep.subr.mxu0 0.0
    %290 = vmatpush1.msra.mxu0 0.0
    %291 = vmatprep.subr.mxu0 0.0
    %292 = vmatpush1.msra.mxu0 0.0
    %293 = vmatprep.subr.mxu0 0.0
    %294 = vmatpush1.msra.mxu0 0.0
    %295 = vmatprep.subr.mxu0 0.0
    %296 = vmatpush1.msra.mxu0 0.0
    %297 = vmatprep.subr.mxu0 0.0
    %298 = vmatpush1.msra.mxu0 0.0
    %299 = vmatprep.subr.mxu0 0.0
    %300 = vmatpush1.msra.mxu0 0.0
    %301 = vmatprep.subr.mxu0 0.0
    %302 = vmatpush1.msra.mxu0 0.0
    %303 = vmatprep.subr.mxu0 0.0
    %304 = vmatpush1.msra.mxu0 0.0
    %305 = vmatprep.subr.mxu0 0.0
    %306 = vmatpush1.msra.mxu0 0.0
    %307 = vmatprep.subr.mxu0 0.0
    %308 = vmatpush1.msra.mxu0 0.0
    %309 = vmatprep.subr.mxu0 0.0
    %310 = vmatpush1.msra.mxu0 0.0
    %311 = vmatprep.subr.mxu0 0.0
    %312 = vmatpush1.msra.mxu0 0.0
    %313 = vmatprep.subr.mxu0 0.0
    %314 = vmatpush1.msra.mxu0 0.0
    %315 = vmatprep.subr.mxu0 0.0
    %316 = vmatpush1.msra.mxu0 0.0
    %317 = vmatprep.subr.mxu0 0.0
    %318 = vmatpush1.msra.mxu0 0.0
    %319 = vmatprep.subr.mxu0 0.0
    %320 = vmatpush1.msra.mxu0 0.0
    %321 = vmatprep.subr.mxu0 0.0
    %322 = vmatpush1.msra.mxu0 0.0
    %323 = vmatprep.subr.mxu0 0.0
    %324 = vmatpush1.msra.mxu0 0.0
    %325 = vmatprep.subr.mxu0 0.0
    %326 = vmatpush1.msra.mxu0 0.0
    %327 = vmatprep.subr.mxu0 0.0
    %328 = vmatpush1.msra.mxu0 0.0
    %329 = vmatprep.subr.mxu0 0.0
    %330 = vmatpush1.msra.mxu0 0.0
    %331 = vmatprep.subr.mxu0 0.0
    %332 = vmatpush1.msra.mxu0 0.0
    %333 = vmatprep.subr.mxu0 0.0
    %334 = vmatpush1.msra.mxu0 0.0
    %335 = vmatprep.subr.mxu0 0.0
    %336 = vmatpush1.msra.mxu0 0.0
    %337 = vmatprep.subr.mxu0 0.0
    %338 = vmatpush1.msra.mxu0 0.0
    %339 = vmatprep.subr.mxu0 0.0
    %340 = vmatpush1.msra.mxu0 0.0
    %341 = vmatprep.subr.mxu0 0.0
    %342 = vmatpush1.msra.mxu0 0.0
    %343 = vmatprep.subr.mxu0 0.0
    %344 = vmatpush1.msra.mxu0 0.0
    %345 = vmatprep.subr.mxu0 0.0
    %346 = vmatpush1.msra.mxu0 0.0
    %347 = vmatprep.subr.mxu0 0.0
    %348 = vmatpush1.msra.mxu0 0.0
    %349 = vmatprep.subr.mxu0 0.0
    %350 = vmatpush1.msra.mxu0 0.0
    %351 = vmatprep.mubr.f32.mxu0 0.0
    %352 = vmatmul.mubr.f32.gmra.mrb[0].mxu0 %v278
    %v353 = vpop.f32.mrb[0].mxu0
    %v354 = vadd.f32 %v268, %v353
    %v355 = vpop.f32.mrb[0].mxu0
    %356 = vmatprep.mubr.f32.mxu0 0.0
    %357 = vmatmul.mubr.f32.gmra.mrb[0].mxu0 %v281
    %v358 = vpop.f32.mrb[0].mxu0
    %v359 = vadd.f32 %v273, %v358
    %v360 = vpop.f32.mrb[0].mxu0
    %361 = vdwg.mxu0
    %v363 = vsel %vm194, %v164, 0
    %v366 = vsel %vm194, %v169, 0
    %368 = vmatprep.subr.mxu0 0.0
    %369 = vmatpush1.msra.mxu0 %v39
    %370 = vmatprep.subr.mxu0 0.0
    %371 = vmatpush1.msra.mxu0 %v40
    %372 = vmatprep.subr.mxu0 0.0
    %373 = vmatpush1.msra.mxu0 %v41
    %374 = vmatprep.subr.mxu0 0.0
    %375 = vmatpush1.msra.mxu0 %v42
    %376 = vmatprep.subr.mxu0 0.0
    %377 = vmatpush1.msra.mxu0 0.0
    %378 = vmatprep.subr.mxu0 0.0
    %379 = vmatpush1.msra.mxu0 0.0
    %380 = vmatprep.subr.mxu0 0.0
    %381 = vmatpush1.msra.mxu0 0.0
    %382 = vmatprep.subr.mxu0 0.0
    %383 = vmatpush1.msra.mxu0 0.0
    %384 = vmatprep.subr.mxu0 0.0
    %385 = vmatpush1.msra.mxu0 0.0
    %386 = vmatprep.subr.mxu0 0.0
    %387 = vmatpush1.msra.mxu0 0.0
    %388 = vmatprep.subr.mxu0 0.0
    %389 = vmatpush1.msra.mxu0 0.0
    %390 = vmatprep.subr.mxu0 0.0
    %391 = vmatpush1.msra.mxu0 0.0
    %392 = vmatprep.subr.mxu0 0.0
    %393 = vmatpush1.msra.mxu0 0.0
    %394 = vmatprep.subr.mxu0 0.0
    %395 = vmatpush1.msra.mxu0 0.0
    %396 = vmatprep.subr.mxu0 0.0
    %397 = vmatpush1.msra.mxu0 0.0
    %398 = vmatprep.subr.mxu0 0.0
    %399 = vmatpush1.msra.mxu0 0.0
    %400 = vmatprep.subr.mxu0 0.0
    %401 = vmatpush1.msra.mxu0 0.0
    %402 = vmatprep.subr.mxu0 0.0
    %403 = vmatpush1.msra.mxu0 0.0
    %404 = vmatprep.subr.mxu0 0.0
    %405 = vmatpush1.msra.mxu0 0.0
    %406 = vmatprep.subr.mxu0 0.0
    %407 = vmatpush1.msra.mxu0 0.0
    %408 = vmatprep.subr.mxu0 0.0
    %409 = vmatpush1.msra.mxu0 0.0
    %410 = vmatprep.subr.mxu0 0.0
    %411 = vmatpush1.msra.mxu0 0.0
    %412 = vmatprep.subr.mxu0 0.0
    %413 = vmatpush1.msra.mxu0 0.0
    %414 = vmatprep.subr.mxu0 0.0
    %415 = vmatpush1.msra.mxu0 0.0
    %416 = vmatprep.subr.mxu0 0.0
    %417 = vmatpush1.msra.mxu0 0.0
    %418 = vmatprep.subr.mxu0 0.0
    %419 = vmatpush1.msra.mxu0 0.0
    %420 = vmatprep.subr.mxu0 0.0
    %421 = vmatpush1.msra.mxu0 0.0
    %422 = vmatprep.subr.mxu0 0.0
    %423 = vmatpush1.msra.mxu0 0.0
    %424 = vmatprep.subr.mxu0 0.0
    %425 = vmatpush1.msra.mxu0 0.0
    %426 = vmatprep.subr.mxu0 0.0
    %427 = vmatpush1.msra.mxu0 0.0
    %428 = vmatprep.subr.mxu0 0.0
    %429 = vmatpush1.msra.mxu0 0.0
    %430 = vmatprep.subr.mxu0 0.0
    %431 = vmatpush1.msra.mxu0 0.0
    %432 = vmatprep.mubr.f32.mxu0 0.0
    %433 = vmatmul.mubr.f32.gmra.mrb[0].mxu0 %v363
    %v434 = vpop.f32.mrb[0].mxu0
    %v435 = vadd.f32 0.0, %v434
    %v436 = vpop.f32.mrb[0].mxu0
    %437 = vmatprep.mubr.f32.mxu0 0.0
    %438 = vmatmul.mubr.f32.gmra.mrb[0].mxu0 %v366
    %v439 = vpop.f32.mrb[0].mxu0
    %v440 = vadd.f32 0.0, %v439
    %v441 = vpop.f32.mrb[0].mxu0
    %442 = vdwg.mxu0
    %v443 = vadd.f32 %v354, %v435
    %v444 = vadd.f32 %v359, %v440
    %v446 = vsel %vm194, %v174, 0
    %v449 = vsel %vm194, %v179, 0
    %451 = vmatprep.subr.mxu0 0.0
    %452 = vmatpush1.msra.mxu0 %v43
    %453 = vmatprep.subr.mxu0 0.0
    %454 = vmatpush1.msra.mxu0 %v44
    %455 = vmatprep.subr.mxu0 0.0
    %456 = vmatpush1.msra.mxu0 %v45
    %457 = vmatprep.subr.mxu0 0.0
    %458 = vmatpush1.msra.mxu0 %v46
    %459 = vmatprep.subr.mxu0 0.0
    %460 = vmatpush1.msra.mxu0 0.0
    %461 = vmatprep.subr.mxu0 0.0
    %462 = vmatpush1.msra.mxu0 0.0
    %463 = vmatprep.subr.mxu0 0.0
    %464 = vmatpush1.msra.mxu0 0.0
    %465 = vmatprep.subr.mxu0 0.0
    %466 = vmatpush1.msra.mxu0 0.0
    %467 = vmatprep.subr.mxu0 0.0
    %468 = vmatpush1.msra.mxu0 0.0
    %469 = vmatprep.subr.mxu0 0.0
    %470 = vmatpush1.msra.mxu0 0.0
    %471 = vmatprep.subr.mxu0 0.0
    %472 = vmatpush1.msra.mxu0 0.0
    %473 = vmatprep.subr.mxu0 0.0
    %474 = vmatpush1.msra.mxu0 0.0
    %475 = vmatprep.subr.mxu0 0.0
    %476 = vmatpush1.msra.mxu0 0.0
    %477 = vmatprep.subr.mxu0 0.0
    %478 = vmatpush1.msra.mxu0 0.0
    %479 = vmatprep.subr.mxu0 0.0
    %480 = vmatpush1.msra.mxu0 0.0
    %481 = vmatprep.subr.mxu0 0.0
    %482 = vmatpush1.msra.mxu0 0.0
    %483 = vmatprep.subr.mxu0 0.0
    %484 = vmatpush1.msra.mxu0 0.0
    %485 = vmatprep.subr.mxu0 0.0
    %486 = vmatpush1.msra.mxu0 0.0
    %487 = vmatprep.subr.mxu0 0.0
    %488 = vmatpush1.msra.mxu0 0.0
    %489 = vmatprep.subr.mxu0 0.0
    %490 = vmatpush1.msra.mxu0 0.0
    %491 = vmatprep.subr.mxu0 0.0
    %492 = vmatpush1.msra.mxu0 0.0
    %493 = vmatprep.subr.mxu0 0.0
    %494 = vmatpush1.msra.mxu0 0.0
    %495 = vmatprep.subr.mxu0 0.0
    %496 = vmatpush1.msra.mxu0 0.0
    %497 = vmatprep.subr.mxu0 0.0
    %498 = vmatpush1.msra.mxu0 0.0
    %499 = vmatprep.subr.mxu0 0.0
    %500 = vmatpush1.msra.mxu0 0.0
    %501 = vmatprep.subr.mxu0 0.0
    %502 = vmatpush1.msra.mxu0 0.0
    %503 = vmatprep.subr.mxu0 0.0
    %504 = vmatpush1.msra.mxu0 0.0
    %505 = vmatprep.subr.mxu0 0.0
    %506 = vmatpush1.msra.mxu0 0.0
    %507 = vmatprep.subr.mxu0 0.0
    %508 = vmatpush1.msra.mxu0 0.0
    %509 = vmatprep.subr.mxu0 0.0
    %510 = vmatpush1.msra.mxu0 0.0
    %511 = vmatprep.subr.mxu0 0.0
    %512 = vmatpush1.msra.mxu0 0.0
    %513 = vmatprep.subr.mxu0 0.0
    %514 = vmatpush1.msra.mxu0 0.0
    %515 = vmatprep.mubr.f32.mxu0 0.0
    %516 = vmatmul.mubr.f32.gmra.mrb[0].mxu0 %v446
    %v517 = vpop.f32.mrb[0].mxu0
    %v518 = vadd.f32 0.0, %v517
    %v519 = vpop.f32.mrb[0].mxu0
    %520 = vmatprep.mubr.f32.mxu0 0.0
    %521 = vmatmul.mubr.f32.gmra.mrb[0].mxu0 %v449
    %v522 = vpop.f32.mrb[0].mxu0
    %v523 = vadd.f32 0.0, %v522
    %v524 = vpop.f32.mrb[0].mxu0
    %525 = vdwg.mxu0
    %v526 = vadd.f32 %v443, %v518
    %v527 = vadd.f32 %v444, %v523
    %v529 = vsel %vm194, %v184, 0
    %v532 = vsel %vm194, %v189, 0
    %534 = vmatprep.subr.mxu0 0.0
    %535 = vmatpush1.msra.mxu0 %v47
    %536 = vmatprep.subr.mxu0 0.0
    %537 = vmatpush1.msra.mxu0 %v48
    %538 = vmatprep.subr.mxu0 0.0
    %539 = vmatpush1.msra.mxu0 %v49
    %540 = vmatprep.subr.mxu0 0.0
    %541 = vmatpush1.msra.mxu0 %v50
    %542 = vmatprep.subr.mxu0 0.0
    %543 = vmatpush1.msra.mxu0 0.0
    %544 = vmatprep.subr.mxu0 0.0
    %545 = vmatpush1.msra.mxu0 0.0
    %546 = vmatprep.subr.mxu0 0.0
    %547 = vmatpush1.msra.mxu0 0.0
    %548 = vmatprep.subr.mxu0 0.0
    %549 = vmatpush1.msra.mxu0 0.0
    %550 = vmatprep.subr.mxu0 0.0
    %551 = vmatpush1.msra.mxu0 0.0
    %552 = vmatprep.subr.mxu0 0.0
    %553 = vmatpush1.msra.mxu0 0.0
    %554 = vmatprep.subr.mxu0 0.0
    %555 = vmatpush1.msra.mxu0 0.0
    %556 = vmatprep.subr.mxu0 0.0
    %557 = vmatpush1.msra.mxu0 0.0
    %558 = vmatprep.subr.mxu0 0.0
    %559 = vmatpush1.msra.mxu0 0.0
    %560 = vmatprep.subr.mxu0 0.0
    %561 = vmatpush1.msra.mxu0 0.0
    %562 = vmatprep.subr.mxu0 0.0
    %563 = vmatpush1.msra.mxu0 0.0
    %564 = vmatprep.subr.mxu0 0.0
    %565 = vmatpush1.msra.mxu0 0.0
    %566 = vmatprep.subr.mxu0 0.0
    %567 = vmatpush1.msra.mxu0 0.0
    %568 = vmatprep.subr.mxu0 0.0
    %569 = vmatpush1.msra.mxu0 0.0
    %570 = vmatprep.subr.mxu0 0.0
    %571 = vmatpush1.msra.mxu0 0.0
    %572 = vmatprep.subr.mxu0 0.0
    %573 = vmatpush1.msra.mxu0 0.0
    %574 = vmatprep.subr.mxu0 0.0
    %575 = vmatpush1.msra.mxu0 0.0
    %576 = vmatprep.subr.mxu0 0.0
    %577 = vmatpush1.msra.mxu0 0.0
    %578 = vmatprep.subr.mxu0 0.0
    %579 = vmatpush1.msra.mxu0 0.0
    %580 = vmatprep.subr.mxu0 0.0
    %581 = vmatpush1.msra.mxu0 0.0
    %582 = vmatprep.subr.mxu0 0.0
    %583 = vmatpush1.msra.mxu0 0.0
    %584 = vmatprep.subr.mxu0 0.0
    %585 = vmatpush1.msra.mxu0 0.0
    %586 = vmatprep.subr.mxu0 0.0
    %587 = vmatpush1.msra.mxu0 0.0
    %588 = vmatprep.subr.mxu0 0.0
    %589 = vmatpush1.msra.mxu0 0.0
    %590 = vmatprep.subr.mxu0 0.0
    %591 = vmatpush1.msra.mxu0 0.0
    %592 = vmatprep.subr.mxu0 0.0
    %593 = vmatpush1.msra.mxu0 0.0
    %594 = vmatprep.subr.mxu0 0.0
    %595 = vmatpush1.msra.mxu0 0.0
    %596 = vmatprep.subr.mxu0 0.0
    %597 = vmatpush1.msra.mxu0 0.0
    %598 = vmatprep.mubr.f32.mxu0 0.0
    %599 = vmatmul.mubr.f32.gmra.mrb[0].mxu0 %v529
    %v600 = vpop.f32.mrb[0].mxu0
    %v601 = vadd.f32 0.0, %v600
    %v602 = vpop.f32.mrb[0].mxu0
    %603 = vmatprep.mubr.f32.mxu0 0.0
    %604 = vmatmul.mubr.f32.gmra.mrb[0].mxu0 %v532
    %v605 = vpop.f32.mrb[0].mxu0
    %v606 = vadd.f32 0.0, %v605
    %v607 = vpop.f32.mrb[0].mxu0
    %608 = vdwg.mxu0
    %v609 = vadd.f32 %v526, %v601
    %v610 = vadd.f32 %v527, %v606
    %v612 = vlaneseq
    %v613 = vshrl.u32 %v612, 7
    %v614 = vsub.s32 0, %v613
    %v615 = vrot.slane %v53, %v614
    %vm617 = vcmask 48128
    %v619 = vsel %vm617, %v609, 0
    %v622 = vsel %vm617, %v610, 0
    %vm624 = vcmask 1045504
    %v626 = vsel %vm624, %v52, 0
    %628 = vmatprep.subr.mxu0 0.0
    %629 = vmatpush1.msra.mxu0 %v626
    %630 = vmatprep.subr.mxu0 0.0
    %631 = vmatpush1.msra.mxu0 0.0
    %632 = vmatprep.subr.mxu0 0.0
    %633 = vmatpush1.msra.mxu0 0.0
    %634 = vmatprep.subr.mxu0 0.0
    %635 = vmatpush1.msra.mxu0 0.0
    %636 = vmatprep.subr.mxu0 0.0
    %637 = vmatpush1.msra.mxu0 0.0
    %638 = vmatprep.subr.mxu0 0.0
    %639 = vmatpush1.msra.mxu0 0.0
    %640 = vmatprep.subr.mxu0 0.0
    %641 = vmatpush1.msra.mxu0 0.0
    %642 = vmatprep.subr.mxu0 0.0
    %643 = vmatpush1.msra.mxu0 0.0
    %644 = vmatprep.subr.mxu0 0.0
    %645 = vmatpush1.msra.mxu0 0.0
    %646 = vmatprep.subr.mxu0 0.0
    %647 = vmatpush1.msra.mxu0 0.0
    %648 = vmatprep.subr.mxu0 0.0
    %649 = vmatpush1.msra.mxu0 0.0
    %650 = vmatprep.subr.mxu0 0.0
    %651 = vmatpush1.msra.mxu0 0.0
    %652 = vmatprep.subr.mxu0 0.0
    %653 = vmatpush1.msra.mxu0 0.0
    %654 = vmatprep.subr.mxu0 0.0
    %655 = vmatpush1.msra.mxu0 0.0
    %656 = vmatprep.subr.mxu0 0.0
    %657 = vmatpush1.msra.mxu0 0.0
    %658 = vmatprep.subr.mxu0 0.0
    %659 = vmatpush1.msra.mxu0 0.0
    %660 = vmatprep.subr.mxu0 0.0
    %661 = vmatpush1.msra.mxu0 0.0
    %662 = vmatprep.subr.mxu0 0.0
    %663 = vmatpush1.msra.mxu0 0.0
    %664 = vmatprep.subr.mxu0 0.0
    %665 = vmatpush1.msra.mxu0 0.0
    %666 = vmatprep.subr.mxu0 0.0
    %667 = vmatpush1.msra.mxu0 0.0
    %668 = vmatprep.subr.mxu0 0.0
    %669 = vmatpush1.msra.mxu0 0.0
    %670 = vmatprep.subr.mxu0 0.0
    %671 = vmatpush1.msra.mxu0 0.0
    %672 = vmatprep.subr.mxu0 0.0
    %673 = vmatpush1.msra.mxu0 0.0
    %674 = vmatprep.subr.mxu0 0.0
    %675 = vmatpush1.msra.mxu0 0.0
    %676 = vmatprep.subr.mxu0 0.0
    %677 = vmatpush1.msra.mxu0 0.0
    %678 = vmatprep.subr.mxu0 0.0
    %679 = vmatpush1.msra.mxu0 0.0
    %680 = vmatprep.subr.mxu0 0.0
    %681 = vmatpush1.msra.mxu0 0.0
    %682 = vmatprep.subr.mxu0 0.0
    %683 = vmatpush1.msra.mxu0 0.0
    %684 = vmatprep.subr.mxu0 0.0
    %685 = vmatpush1.msra.mxu0 0.0
    %686 = vmatprep.subr.mxu0 0.0
    %687 = vmatpush1.msra.mxu0 0.0
    %688 = vmatprep.subr.mxu0 0.0
    %689 = vmatpush1.msra.mxu0 0.0
    %690 = vmatprep.subr.mxu0 0.0
    %691 = vmatpush1.msra.mxu0 0.0
    %692 = vmatprep.mubr.f32.mxu0 0.0
    %693 = vmatmul.mubr.f32.gmra.mrb[0].mxu0 %v619
    %v694 = vpop.f32.mrb[0].mxu0
    %v695 = vadd.f32 %v615, %v694
    %v696 = vpop.f32.mrb[0].mxu0
    %697 = vmatprep.mubr.f32.mxu0 0.0
    %698 = vmatmul.mubr.f32.gmra.mrb[0].mxu0 %v622
    %v699 = vpop.f32.mrb[0].mxu0
    %v700 = vadd.f32 %v615, %v699
    %v701 = vpop.f32.mrb[0].mxu0
    %702 = vdwg.mxu0
    %v703 = vmax.f32 %v695, 0.0
    %v704 = vmax.f32 %v700, 0.0
    %s705 = scalar_lea.vmem %s0, 64
    %v706 = vld [vmem:[%s705] sm:$0xff]
    %v707 = vld [vmem:[%s705 + $0x8] sm:$0xff]
    %v708 = vld [vmem:[%s705 + $0x10] sm:$0xff]
    %v709 = vld [vmem:[%s705 + $0x18] sm:$0xff]
    %v710 = vld [vmem:[%s705 + $0x20] sm:$0xff]
    %v711 = vld [vmem:[%s705 + $0x28] sm:$0xff]
    %v712 = vld [vmem:[%s705 + $0x30] sm:$0xff]
    %v713 = vld [vmem:[%s705 + $0x38] sm:$0xff]
    %v715 = vsel %vm62, %v706, 0
    %v718 = vsel %vm62, %v707, 0
    %v721 = vsel %vm62, %v708, 0
    %v724 = vsel %vm62, %v709, 0
    %v727 = vsel %vm62, %v710, 0
    %v730 = vsel %vm62, %v711, 0
    %v733 = vsel %vm62, %v712, 0
    %v736 = vsel %vm62, %v713, 0
    %738 = vmatprep.subr.mxu0 0.0
    %739 = vmatpush1.msra.mxu0 %v33
    %740 = vmatprep.subr.mxu0 0.0
    %741 = vmatpush1.msra.mxu0 %v34
    %742 = vmatprep.subr.mxu0 0.0
    %743 = vmatpush1.msra.mxu0 0.0
    %744 = vmatprep.subr.mxu0 0.0
    %745 = vmatpush1.msra.mxu0 0.0
    %746 = vmatprep.subr.mxu0 0.0
    %747 = vmatpush1.msra.mxu0 0.0
    %748 = vmatprep.subr.mxu0 0.0
    %749 = vmatpush1.msra.mxu0 0.0
    %750 = vmatprep.subr.mxu0 0.0
    %751 = vmatpush1.msra.mxu0 0.0
    %752 = vmatprep.subr.mxu0 0.0
    %753 = vmatpush1.msra.mxu0 0.0
    %754 = vmatprep.subr.mxu0 0.0
    %755 = vmatpush1.msra.mxu0 0.0
    %756 = vmatprep.subr.mxu0 0.0
    %757 = vmatpush1.msra.mxu0 0.0
    %758 = vmatprep.subr.mxu0 0.0
    %759 = vmatpush1.msra.mxu0 0.0
    %760 = vmatprep.subr.mxu0 0.0
    %761 = vmatpush1.msra.mxu0 0.0
    %762 = vmatprep.subr.mxu0 0.0
    %763 = vmatpush1.msra.mxu0 0.0
    %764 = vmatprep.subr.mxu0 0.0
    %765 = vmatpush1.msra.mxu0 0.0
    %766 = vmatprep.subr.mxu0 0.0
    %767 = vmatpush1.msra.mxu0 0.0
    %768 = vmatprep.subr.mxu0 0.0
    %769 = vmatpush1.msra.mxu0 0.0
    %770 = vmatprep.subr.mxu0 0.0
    %771 = vmatpush1.msra.mxu0 0.0
    %772 = vmatprep.subr.mxu0 0.0
    %773 = vmatpush1.msra.mxu0 0.0
    %774 = vmatprep.subr.mxu0 0.0
    %775 = vmatpush1.msra.mxu0 0.0
    %776 = vmatprep.subr.mxu0 0.0
    %777 = vmatpush1.msra.mxu0 0.0
    %778 = vmatprep.subr.mxu0 0.0
    %779 = vmatpush1.msra.mxu0 0.0
    %780 = vmatprep.subr.mxu0 0.0
    %781 = vmatpush1.msra.mxu0 0.0
    %782 = vmatprep.subr.mxu0 0.0
    %783 = vmatpush1.msra.mxu0 0.0
    %784 = vmatprep.subr.mxu0 0.0
    %785 = vmatpush1.msra.mxu0 0.0
    %786 = vmatprep.subr.mxu0 0.0
    %787 = vmatpush1.msra.mxu0 0.0
    %788 = vmatprep.subr.mxu0 0.0
    %789 = vmatpush1.msra.mxu0 0.0
    %790 = vmatprep.subr.mxu0 0.0
    %791 = vmatpush1.msra.mxu0 0.0
    %792 = vmatprep.subr.mxu0 0.0
    %793 = vmatpush1.msra.mxu0 0.0
    %794 = vmatprep.subr.mxu0 0.0
    %795 = vmatpush1.msra.mxu0 0.0
    %796 = vmatprep.subr.mxu0 0.0
    %797 = vmatpush1.msra.mxu0 0.0
    %798 = vmatprep.subr.mxu0 0.0
    %799 = vmatpush1.msra.mxu0 0.0
    %800 = vmatprep.subr.mxu0 0.0
    %801 = vmatpush1.msra.mxu0 0.0
    %802 = vmatprep.mubr.f32.mxu0 0.0
    %803 = vmatmul.mubr.f32.gmra.mrb[0].mxu0 %v715
    %v804 = vpop.f32.mrb[0].mxu0
    %v805 = vadd.f32 0.0, %v804
    %v806 = vpop.f32.mrb[0].mxu0
    %807 = vmatprep.mubr.f32.mxu0 0.0
    %808 = vmatmul.mubr.f32.gmra.mrb[0].mxu0 %v718
    %v809 = vpop.f32.mrb[0].mxu0
    %v810 = vadd.f32 0.0, %v809
    %v811 = vpop.f32.mrb[0].mxu0
    %812 = vmatprep.mubr.f32.mxu0 0.0
    %813 = vmatmul.mubr.f32.gmra.mrb[0].mxu0 %v721
    %v814 = vpop.f32.mrb[0].mxu0
    %v815 = vadd.f32 0.0, %v814
    %v816 = vpop.f32.mrb[0].mxu0
    %817 = vmatprep.mubr.f32.mxu0 0.0
    %818 = vmatmul.mubr.f32.gmra.mrb[0].mxu0 %v724
    %v819 = vpop.f32.mrb[0].mxu0
    %v820 = vadd.f32 0.0, %v819
    %v821 = vpop.f32.mrb[0].mxu0
    %822 = vmatprep.mubr.f32.mxu0 0.0
    %823 = vmatmul.mubr.f32.gmra.mrb[0].mxu0 %v727
    %v824 = vpop.f32.mrb[0].mxu0
    %v825 = vadd.f32 0.0, %v824
    %v826 = vpop.f32.mrb[0].mxu0
    %827 = vmatprep.mubr.f32.mxu0 0.0
    %828 = vmatmul.mubr.f32.gmra.mrb[0].mxu0 %v730
    %v829 = vpop.f32.mrb[0].mxu0
    %v830 = vadd.f32 0.0, %v829
    %v831 = vpop.f32.mrb[0].mxu0
    %832 = vmatprep.mubr.f32.mxu0 0.0
    %833 = vmatmul.mubr.f32.gmra.mrb[0].mxu0 %v733
    %v834 = vpop.f32.mrb[0].mxu0
    %v835 = vadd.f32 0.0, %v834
    %v836 = vpop.f32.mrb[0].mxu0
    %837 = vmatprep.mubr.f32.mxu0 0.0
    %838 = vmatmul.mubr.f32.gmra.mrb[0].mxu0 %v736
    %v839 = vpop.f32.mrb[0].mxu0
    %v840 = vadd.f32 0.0, %v839
    %v841 = vpop.f32.mrb[0].mxu0
    %842 = vdwg.mxu0
    %s843 = scalar_lea.vmem %s1, 16
    %v844 = vld [vmem:[%s843] sm:$0xff]
    %v845 = vld [vmem:[%s843 + $0x8] sm:$0xff]
    %v847 = vsel %vm194, %v805, 0
    %v850 = vsel %vm194, %v810, 0
    %852 = vmatprep.subr.mxu0 0.0
    %853 = vmatpush1.msra.mxu0 %v35
    %854 = vmatprep.subr.mxu0 0.0
    %855 = vmatpush1.msra.mxu0 %v36
    %856 = vmatprep.subr.mxu0 0.0
    %857 = vmatpush1.msra.mxu0 %v37
    %858 = vmatprep.subr.mxu0 0.0
    %859 = vmatpush1.msra.mxu0 %v38
    %860 = vmatprep.subr.mxu0 0.0
    %861 = vmatpush1.msra.mxu0 0.0
    %862 = vmatprep.subr.mxu0 0.0
    %863 = vmatpush1.msra.mxu0 0.0
    %864 = vmatprep.subr.mxu0 0.0
    %865 = vmatpush1.msra.mxu0 0.0
    %866 = vmatprep.subr.mxu0 0.0
    %867 = vmatpush1.msra.mxu0 0.0
    %868 = vmatprep.subr.mxu0 0.0
    %869 = vmatpush1.msra.mxu0 0.0
    %870 = vmatprep.subr.mxu0 0.0
    %871 = vmatpush1.msra.mxu0 0.0
    %872 = vmatprep.subr.mxu0 0.0
    %873 = vmatpush1.msra.mxu0 0.0
    %874 = vmatprep.subr.mxu0 0.0
    %875 = vmatpush1.msra.mxu0 0.0
    %876 = vmatprep.subr.mxu0 0.0
    %877 = vmatpush1.msra.mxu0 0.0
    %878 = vmatprep.subr.mxu0 0.0
    %879 = vmatpush1.msra.mxu0 0.0
    %880 = vmatprep.subr.mxu0 0.0
    %881 = vmatpush1.msra.mxu0 0.0
    %882 = vmatprep.subr.mxu0 0.0
    %883 = vmatpush1.msra.mxu0 0.0
    %884 = vmatprep.subr.mxu0 0.0
    %885 = vmatpush1.msra.mxu0 0.0
    %886 = vmatprep.subr.mxu0 0.0
    %887 = vmatpush1.msra.mxu0 0.0
    %888 = vmatprep.subr.mxu0 0.0
    %889 = vmatpush1.msra.mxu0 0.0
    %890 = vmatprep.subr.mxu0 0.0
    %891 = vmatpush1.msra.mxu0 0.0
    %892 = vmatprep.subr.mxu0 0.0
    %893 = vmatpush1.msra.mxu0 0.0
    %894 = vmatprep.subr.mxu0 0.0
    %895 = vmatpush1.msra.mxu0 0.0
    %896 = vmatprep.subr.mxu0 0.0
    %897 = vmatpush1.msra.mxu0 0.0
    %898 = vmatprep.subr.mxu0 0.0
    %899 = vmatpush1.msra.mxu0 0.0
    %900 = vmatprep.subr.mxu0 0.0
    %901 = vmatpush1.msra.mxu0 0.0
    %902 = vmatprep.subr.mxu0 0.0
    %903 = vmatpush1.msra.mxu0 0.0
    %904 = vmatprep.subr.mxu0 0.0
    %905 = vmatpush1.msra.mxu0 0.0
    %906 = vmatprep.subr.mxu0 0.0
    %907 = vmatpush1.msra.mxu0 0.0
    %908 = vmatprep.subr.mxu0 0.0
    %909 = vmatpush1.msra.mxu0 0.0
    %910 = vmatprep.subr.mxu0 0.0
    %911 = vmatpush1.msra.mxu0 0.0
    %912 = vmatprep.subr.mxu0 0.0
    %913 = vmatpush1.msra.mxu0 0.0
    %914 = vmatprep.subr.mxu0 0.0
    %915 = vmatpush1.msra.mxu0 0.0
    %916 = vmatprep.mubr.f32.mxu0 0.0
    %917 = vmatmul.mubr.f32.gmra.mrb[0].mxu0 %v847
    %v918 = vpop.f32.mrb[0].mxu0
    %v919 = vadd.f32 0.0, %v918
    %v920 = vpop.f32.mrb[0].mxu0
    %921 = vmatprep.mubr.f32.mxu0 0.0
    %922 = vmatmul.mubr.f32.gmra.mrb[0].mxu0 %v850
    %v923 = vpop.f32.mrb[0].mxu0
    %v924 = vadd.f32 0.0, %v923
    %v925 = vpop.f32.mrb[0].mxu0
    %926 = vdwg.mxu0
    %v928 = vsel %vm276, %v844, 0
    %v931 = vsel %vm276, %v845, 0
    %933 = vmatprep.subr.mxu0 0.0
    %934 = vmatpush1.msra.mxu0 %v285
    %935 = vmatprep.subr.mxu0 0.0
    %936 = vmatpush1.msra.mxu0 0.0
    %937 = vmatprep.subr.mxu0 0.0
    %938 = vmatpush1.msra.mxu0 0.0
    %939 = vmatprep.subr.mxu0 0.0
    %940 = vmatpush1.msra.mxu0 0.0
    %941 = vmatprep.subr.mxu0 0.0
    %942 = vmatpush1.msra.mxu0 0.0
    %943 = vmatprep.subr.mxu0 0.0
    %944 = vmatpush1.msra.mxu0 0.0
    %945 = vmatprep.subr.mxu0 0.0
    %946 = vmatpush1.msra.mxu0 0.0
    %947 = vmatprep.subr.mxu0 0.0
    %948 = vmatpush1.msra.mxu0 0.0
    %949 = vmatprep.subr.mxu0 0.0
    %950 = vmatpush1.msra.mxu0 0.0
    %951 = vmatprep.subr.mxu0 0.0
    %952 = vmatpush1.msra.mxu0 0.0
    %953 = vmatprep.subr.mxu0 0.0
    %954 = vmatpush1.msra.mxu0 0.0
    %955 = vmatprep.subr.mxu0 0.0
    %956 = vmatpush1.msra.mxu0 0.0
    %957 = vmatprep.subr.mxu0 0.0
    %958 = vmatpush1.msra.mxu0 0.0
    %959 = vmatprep.subr.mxu0 0.0
    %960 = vmatpush1.msra.mxu0 0.0
    %961 = vmatprep.subr.mxu0 0.0
    %962 = vmatpush1.msra.mxu0 0.0
    %963 = vmatprep.subr.mxu0 0.0
    %964 = vmatpush1.msra.mxu0 0.0
    %965 = vmatprep.subr.mxu0 0.0
    %966 = vmatpush1.msra.mxu0 0.0
    %967 = vmatprep.subr.mxu0 0.0
    %968 = vmatpush1.msra.mxu0 0.0
    %969 = vmatprep.subr.mxu0 0.0
    %970 = vmatpush1.msra.mxu0 0.0
    %971 = vmatprep.subr.mxu0 0.0
    %972 = vmatpush1.msra.mxu0 0.0
    %973 = vmatprep.subr.mxu0 0.0
    %974 = vmatpush1.msra.mxu0 0.0
    %975 = vmatprep.subr.mxu0 0.0
    %976 = vmatpush1.msra.mxu0 0.0
    %977 = vmatprep.subr.mxu0 0.0
    %978 = vmatpush1.msra.mxu0 0.0
    %979 = vmatprep.subr.mxu0 0.0
    %980 = vmatpush1.msra.mxu0 0.0
    %981 = vmatprep.subr.mxu0 0.0
    %982 = vmatpush1.msra.mxu0 0.0
    %983 = vmatprep.subr.mxu0 0.0
    %984 = vmatpush1.msra.mxu0 0.0
    %985 = vmatprep.subr.mxu0 0.0
    %986 = vmatpush1.msra.mxu0 0.0
    %987 = vmatprep.subr.mxu0 0.0
    %988 = vmatpush1.msra.mxu0 0.0
    %989 = vmatprep.subr.mxu0 0.0
    %990 = vmatpush1.msra.mxu0 0.0
    %991 = vmatprep.subr.mxu0 0.0
    %992 = vmatpush1.msra.mxu0 0.0
    %993 = vmatprep.subr.mxu0 0.0
    %994 = vmatpush1.msra.mxu0 0.0
    %995 = vmatprep.subr.mxu0 0.0
    %996 = vmatpush1.msra.mxu0 0.0
    %997 = vmatprep.mubr.f32.mxu0 0.0
    %998 = vmatmul.mubr.f32.gmra.mrb[0].mxu0 %v928
    %v999 = vpop.f32.mrb[0].mxu0
    %v1000 = vadd.f32 %v919, %v999
    %v1001 = vpop.f32.mrb[0].mxu0
    %1002 = vmatprep.mubr.f32.mxu0 0.0
    %1003 = vmatmul.mubr.f32.gmra.mrb[0].mxu0 %v931
    %v1004 = vpop.f32.mrb[0].mxu0
    %v1005 = vadd.f32 %v924, %v1004
    %v1006 = vpop.f32.mrb[0].mxu0
    %1007 = vdwg.mxu0
    %v1009 = vsel %vm194, %v815, 0
    %v1012 = vsel %vm194, %v820, 0
    %1014 = vmatprep.subr.mxu0 0.0
    %1015 = vmatpush1.msra.mxu0 %v39
    %1016 = vmatprep.subr.mxu0 0.0
    %1017 = vmatpush1.msra.mxu0 %v40
    %1018 = vmatprep.subr.mxu0 0.0
    %1019 = vmatpush1.msra.mxu0 %v41
    %1020 = vmatprep.subr.mxu0 0.0
    %1021 = vmatpush1.msra.mxu0 %v42
    %1022 = vmatprep.subr.mxu0 0.0
    %1023 = vmatpush1.msra.mxu0 0.0
    %1024 = vmatprep.subr.mxu0 0.0
    %1025 = vmatpush1.msra.mxu0 0.0
    %1026 = vmatprep.subr.mxu0 0.0
    %1027 = vmatpush1.msra.mxu0 0.0
    %1028 = vmatprep.subr.mxu0 0.0
    %1029 = vmatpush1.msra.mxu0 0.0
    %1030 = vmatprep.subr.mxu0 0.0
    %1031 = vmatpush1.msra.mxu0 0.0
    %1032 = vmatprep.subr.mxu0 0.0
    %1033 = vmatpush1.msra.mxu0 0.0
    %1034 = vmatprep.subr.mxu0 0.0
    %1035 = vmatpush1.msra.mxu0 0.0
    %1036 = vmatprep.subr.mxu0 0.0
    %1037 = vmatpush1.msra.mxu0 0.0
    %1038 = vmatprep.subr.mxu0 0.0
    %1039 = vmatpush1.msra.mxu0 0.0
    %1040 = vmatprep.subr.mxu0 0.0
    %1041 = vmatpush1.msra.mxu0 0.0
    %1042 = vmatprep.subr.mxu0 0.0
    %1043 = vmatpush1.msra.mxu0 0.0
    %1044 = vmatprep.subr.mxu0 0.0
    %1045 = vmatpush1.msra.mxu0 0.0
    %1046 = vmatprep.subr.mxu0 0.0
    %1047 = vmatpush1.msra.mxu0 0.0
    %1048 = vmatprep.subr.mxu0 0.0
    %1049 = vmatpush1.msra.mxu0 0.0
    %1050 = vmatprep.subr.mxu0 0.0
    %1051 = vmatpush1.msra.mxu0 0.0
    %1052 = vmatprep.subr.mxu0 0.0
    %1053 = vmatpush1.msra.mxu0 0.0
    %1054 = vmatprep.subr.mxu0 0.0
    %1055 = vmatpush1.msra.mxu0 0.0
    %1056 = vmatprep.subr.mxu0 0.0
    %1057 = vmatpush1.msra.mxu0 0.0
    %1058 = vmatprep.subr.mxu0 0.0
    %1059 = vmatpush1.msra.mxu0 0.0
    %1060 = vmatprep.subr.mxu0 0.0
    %1061 = vmatpush1.msra.mxu0 0.0
    %1062 = vmatprep.subr.mxu0 0.0
    %1063 = vmatpush1.msra.mxu0 0.0
    %1064 = vmatprep.subr.mxu0 0.0
    %1065 = vmatpush1.msra.mxu0 0.0
    %1066 = vmatprep.subr.mxu0 0.0
    %1067 = vmatpush1.msra.mxu0 0.0
    %1068 = vmatprep.subr.mxu0 0.0
    %1069 = vmatpush1.msra.mxu0 0.0
    %1070 = vmatprep.subr.mxu0 0.0
    %1071 = vmatpush1.msra.mxu0 0.0
    %1072 = vmatprep.subr.mxu0 0.0
    %1073 = vmatpush1.msra.mxu0 0.0
    %1074 = vmatprep.subr.mxu0 0.0
    %1075 = vmatpush1.msra.mxu0 0.0
    %1076 = vmatprep.subr.mxu0 0.0
    %1077 = vmatpush1.msra.mxu0 0.0
    %1078 = vmatprep.mubr.f32.mxu0 0.0
    %1079 = vmatmul.mubr.f32.gmra.mrb[0].mxu0 %v1009
    %v1080 = vpop.f32.mrb[0].mxu0
    %v1081 = vadd.f32 0.0, %v1080
    %v1082 = vpop.f32.mrb[0].mxu0
    %1083 = vmatprep.mubr.f32.mxu0 0.0
    %1084 = vmatmul.mubr.f32.gmra.mrb[0].mxu0 %v1012
    %v1085 = vpop.f32.mrb[0].mxu0
    %v1086 = vadd.f32 0.0, %v1085
    %v1087 = vpop.f32.mrb[0].mxu0
    %1088 = vdwg.mxu0
    %v1089 = vadd.f32 %v1000, %v1081
    %v1090 = vadd.f32 %v1005, %v1086
    %v1092 = vsel %vm194, %v825, 0
    %v1095 = vsel %vm194, %v830, 0
    %1097 = vmatprep.subr.mxu0 0.0
    %1098 = vmatpush1.msra.mxu0 %v43
    %1099 = vmatprep.subr.mxu0 0.0
    %1100 = vmatpush1.msra.mxu0 %v44
    %1101 = vmatprep.subr.mxu0 0.0
    %1102 = vmatpush1.msra.mxu0 %v45
    %1103 = vmatprep.subr.mxu0 0.0
    %1104 = vmatpush1.msra.mxu0 %v46
    %1105 = vmatprep.subr.mxu0 0.0
    %1106 = vmatpush1.msra.mxu0 0.0
    %1107 = vmatprep.subr.mxu0 0.0
    %1108 = vmatpush1.msra.mxu0 0.0
    %1109 = vmatprep.subr.mxu0 0.0
    %1110 = vmatpush1.msra.mxu0 0.0
    %1111 = vmatprep.subr.mxu0 0.0
    %1112 = vmatpush1.msra.mxu0 0.0
    %1113 = vmatprep.subr.mxu0 0.0
    %1114 = vmatpush1.msra.mxu0 0.0
    %1115 = vmatprep.subr.mxu0 0.0
    %1116 = vmatpush1.msra.mxu0 0.0
    %1117 = vmatprep.subr.mxu0 0.0
    %1118 = vmatpush1.msra.mxu0 0.0
    %1119 = vmatprep.subr.mxu0 0.0
    %1120 = vmatpush1.msra.mxu0 0.0
    %1121 = vmatprep.subr.mxu0 0.0
    %1122 = vmatpush1.msra.mxu0 0.0
    %1123 = vmatprep.subr.mxu0 0.0
    %1124 = vmatpush1.msra.mxu0 0.0
    %1125 = vmatprep.subr.mxu0 0.0
    %1126 = vmatpush1.msra.mxu0 0.0
    %1127 = vmatprep.subr.mxu0 0.0
    %1128 = vmatpush1.msra.mxu0 0.0
    %1129 = vmatprep.subr.mxu0 0.0
    %1130 = vmatpush1.msra.mxu0 0.0
    %1131 = vmatprep.subr.mxu0 0.0
    %1132 = vmatpush1.msra.mxu0 0.0
    %1133 = vmatprep.subr.mxu0 0.0
    %1134 = vmatpush1.msra.mxu0 0.0
    %1135 = vmatprep.subr.mxu0 0.0
    %1136 = vmatpush1.msra.mxu0 0.0
    %1137 = vmatprep.subr.mxu0 0.0
    %1138 = vmatpush1.msra.mxu0 0.0
    %1139 = vmatprep.subr.mxu0 0.0
    %1140 = vmatpush1.msra.mxu0 0.0
    %1141 = vmatprep.subr.mxu0 0.0
    %1142 = vmatpush1.msra.mxu0 0.0
    %1143 = vmatprep.subr.mxu0 0.0
    %1144 = vmatpush1.msra.mxu0 0.0
    %1145 = vmatprep.subr.mxu0 0.0
    %1146 = vmatpush1.msra.mxu0 0.0
    %1147 = vmatprep.subr.mxu0 0.0
    %1148 = vmatpush1.msra.mxu0 0.0
    %1149 = vmatprep.subr.mxu0 0.0
    %1150 = vmatpush1.msra.mxu0 0.0
    %1151 = vmatprep.subr.mxu0 0.0
    %1152 = vmatpush1.msra.mxu0 0.0
    %1153 = vmatprep.subr.mxu0 0.0
    %1154 = vmatpush1.msra.mxu0 0.0
    %1155 = vmatprep.subr.mxu0 0.0
    %1156 = vmatpush1.msra.mxu0 0.0
    %1157 = vmatprep.subr.mxu0 0.0
    %1158 = vmatpush1.msra.mxu0 0.0
    %1159 = vmatprep.subr.mxu0 0.0
    %1160 = vmatpush1.msra.mxu0 0.0
    %1161 = vmatprep.mubr.f32.mxu0 0.0
    %1162 = vmatmul.mubr.f32.gmra.mrb[0].mxu0 %v1092
    %v1163 = vpop.f32.mrb[0].mxu0
    %v1164 = vadd.f32 0.0, %v1163
    %v1165 = vpop.f32.mrb[0].mxu0
    %1166 = vmatprep.mubr.f32.mxu0 0.0
    %1167 = vmatmul.mubr.f32.gmra.mrb[0].mxu0 %v1095
    %v1168 = vpop.f32.mrb[0].mxu0
    %v1169 = vadd.f32 0.0, %v1168
    %v1170 = vpop.f32.mrb[0].mxu0
    %1171 = vdwg.mxu0
    %v1172 = vadd.f32 %v1089, %v1164
    %v1173 = vadd.f32 %v1090, %v1169
    %v1175 = vsel %vm194, %v835, 0
    %v1178 = vsel %vm194, %v840, 0
    %1180 = vmatprep.subr.mxu0 0.0
    %1181 = vmatpush1.msra.mxu0 %v47
    %1182 = vmatprep.subr.mxu0 0.0
    %1183 = vmatpush1.msra.mxu0 %v48
    %1184 = vmatprep.subr.mxu0 0.0
    %1185 = vmatpush1.msra.mxu0 %v49
    %1186 = vmatprep.subr.mxu0 0.0
    %1187 = vmatpush1.msra.mxu0 %v50
    %1188 = vmatprep.subr.mxu0 0.0
    %1189 = vmatpush1.msra.mxu0 0.0
    %1190 = vmatprep.subr.mxu0 0.0
    %1191 = vmatpush1.msra.mxu0 0.0
    %1192 = vmatprep.subr.mxu0 0.0
    %1193 = vmatpush1.msra.mxu0 0.0
    %1194 = vmatprep.subr.mxu0 0.0
    %1195 = vmatpush1.msra.mxu0 0.0
    %1196 = vmatprep.subr.mxu0 0.0
    %1197 = vmatpush1.msra.mxu0 0.0
    %1198 = vmatprep.subr.mxu0 0.0
    %1199 = vmatpush1.msra.mxu0 0.0
    %1200 = vmatprep.subr.mxu0 0.0
    %1201 = vmatpush1.msra.mxu0 0.0
    %1202 = vmatprep.subr.mxu0 0.0
    %1203 = vmatpush1.msra.mxu0 0.0
    %1204 = vmatprep.subr.mxu0 0.0
    %1205 = vmatpush1.msra.mxu0 0.0
    %1206 = vmatprep.subr.mxu0 0.0
    %1207 = vmatpush1.msra.mxu0 0.0
    %1208 = vmatprep.subr.mxu0 0.0
    %1209 = vmatpush1.msra.mxu0 0.0
    %1210 = vmatprep.subr.mxu0 0.0
    %1211 = vmatpush1.msra.mxu0 0.0
    %1212 = vmatprep.subr.mxu0 0.0
    %1213 = vmatpush1.msra.mxu0 0.0
    %1214 = vmatprep.subr.mxu0 0.0
    %1215 = vmatpush1.msra.mxu0 0.0
    %1216 = vmatprep.subr.mxu0 0.0
    %1217 = vmatpush1.msra.mxu0 0.0
    %1218 = vmatprep.subr.mxu0 0.0
    %1219 = vmatpush1.msra.mxu0 0.0
    %1220 = vmatprep.subr.mxu0 0.0
    %1221 = vmatpush1.msra.mxu0 0.0
    %1222 = vmatprep.subr.mxu0 0.0
    %1223 = vmatpush1.msra.mxu0 0.0
    %1224 = vmatprep.subr.mxu0 0.0
    %1225 = vmatpush1.msra.mxu0 0.0
    %1226 = vmatprep.subr.mxu0 0.0
    %1227 = vmatpush1.msra.mxu0 0.0
    %1228 = vmatprep.subr.mxu0 0.0
    %1229 = vmatpush1.msra.mxu0 0.0
    %1230 = vmatprep.subr.mxu0 0.0
    %1231 = vmatpush1.msra.mxu0 0.0
    %1232 = vmatprep.subr.mxu0 0.0
    %1233 = vmatpush1.msra.mxu0 0.0
    %1234 = vmatprep.subr.mxu0 0.0
    %1235 = vmatpush1.msra.mxu0 0.0
    %1236 = vmatprep.subr.mxu0 0.0
    %1237 = vmatpush1.msra.mxu0 0.0
    %1238 = vmatprep.subr.mxu0 0.0
    %1239 = vmatpush1.msra.mxu0 0.0
    %1240 = vmatprep.subr.mxu0 0.0
    %1241 = vmatpush1.msra.mxu0 0.0
    %1242 = vmatprep.subr.mxu0 0.0
    %1243 = vmatpush1.msra.mxu0 0.0
    %1244 = vmatprep.mubr.f32.mxu0 0.0
    %1245 = vmatmul.mubr.f32.gmra.mrb[0].mxu0 %v1175
    %v1246 = vpop.f32.mrb[0].mxu0
    %v1247 = vadd.f32 0.0, %v1246
    %v1248 = vpop.f32.mrb[0].mxu0
    %1249 = vmatprep.mubr.f32.mxu0 0.0
    %1250 = vmatmul.mubr.f32.gmra.mrb[0].mxu0 %v1178
    %v1251 = vpop.f32.mrb[0].mxu0
    %v1252 = vadd.f32 0.0, %v1251
    %v1253 = vpop.f32.mrb[0].mxu0
    %1254 = vdwg.mxu0
    %v1255 = vadd.f32 %v1172, %v1247
    %v1256 = vadd.f32 %v1173, %v1252
    %v1258 = vsel %vm617, %v1255, 0
    %v1261 = vsel %vm617, %v1256, 0
    %1263 = vmatprep.subr.mxu0 0.0
    %1264 = vmatpush1.msra.mxu0 %v626
    %1265 = vmatprep.subr.mxu0 0.0
    %1266 = vmatpush1.msra.mxu0 0.0
    %1267 = vmatprep.subr.mxu0 0.0
    %1268 = vmatpush1.msra.mxu0 0.0
    %1269 = vmatprep.subr.mxu0 0.0
    %1270 = vmatpush1.msra.mxu0 0.0
    %1271 = vmatprep.subr.mxu0 0.0
    %1272 = vmatpush1.msra.mxu0 0.0
    %1273 = vmatprep.subr.mxu0 0.0
    %1274 = vmatpush1.msra.mxu0 0.0
    %1275 = vmatprep.subr.mxu0 0.0
    %1276 = vmatpush1.msra.mxu0 0.0
    %1277 = vmatprep.subr.mxu0 0.0
    %1278 = vmatpush1.msra.mxu0 0.0
    %1279 = vmatprep.subr.mxu0 0.0
    %1280 = vmatpush1.msra.mxu0 0.0
    %1281 = vmatprep.subr.mxu0 0.0
    %1282 = vmatpush1.msra.mxu0 0.0
    %1283 = vmatprep.subr.mxu0 0.0
    %1284 = vmatpush1.msra.mxu0 0.0
    %1285 = vmatprep.subr.mxu0 0.0
    %1286 = vmatpush1.msra.mxu0 0.0
    %1287 = vmatprep.subr.mxu0 0.0
    %1288 = vmatpush1.msra.mxu0 0.0
    %1289 = vmatprep.subr.mxu0 0.0
    %1290 = vmatpush1.msra.mxu0 0.0
    %1291 = vmatprep.subr.mxu0 0.0
    %1292 = vmatpush1.msra.mxu0 0.0
    %1293 = vmatprep.subr.mxu0 0.0
    %1294 = vmatpush1.msra.mxu0 0.0
    %1295 = vmatprep.subr.mxu0 0.0
    %1296 = vmatpush1.msra.mxu0 0.0
    %1297 = vmatprep.subr.mxu0 0.0
    %1298 = vmatpush1.msra.mxu0 0.0
    %1299 = vmatprep.subr.mxu0 0.0
    %1300 = vmatpush1.msra.mxu0 0.0
    %1301 = vmatprep.subr.mxu0 0.0
    %1302 = vmatpush1.msra.mxu0 0.0
    %1303 = vmatprep.subr.mxu0 0.0
    %1304 = vmatpush1.msra.mxu0 0.0
    %1305 = vmatprep.subr.mxu0 0.0
    %1306 = vmatpush1.msra.mxu0 0.0
    %1307 = vmatprep.subr.mxu0 0.0
    %1308 = vmatpush1.msra.mxu0 0.0
    %1309 = vmatprep.subr.mxu0 0.0
    %1310 = vmatpush1.msra.mxu0 0.0
    %1311 = vmatprep.subr.mxu0 0.0
    %1312 = vmatpush1.msra.mxu0 0.0
    %1313 = vmatprep.subr.mxu0 0.0
    %1314 = vmatpush1.msra.mxu0 0.0
    %1315 = vmatprep.subr.mxu0 0.0
    %1316 = vmatpush1.msra.mxu0 0.0
    %1317 = vmatprep.subr.mxu0 0.0
    %1318 = vmatpush1.msra.mxu0 0.0
    %1319 = vmatprep.subr.mxu0 0.0
    %1320 = vmatpush1.msra.mxu0 0.0
    %1321 = vmatprep.subr.mxu0 0.0
    %1322 = vmatpush1.msra.mxu0 0.0
    %1323 = vmatprep.subr.mxu0 0.0
    %1324 = vmatpush1.msra.mxu0 0.0
    %1325 = vmatprep.subr.mxu0 0.0
    %1326 = vmatpush1.msra.mxu0 0.0
    %1327 = vmatprep.mubr.f32.mxu0 0.0
    %1328 = vmatmul.mubr.f32.gmra.mrb[0].mxu0 %v1258
    %v1329 = vpop.f32.mrb[0].mxu0
    %v1330 = vadd.f32 %v615, %v1329
    %v1331 = vpop.f32.mrb[0].mxu0
    %1332 = vmatprep.mubr.f32.mxu0 0.0
    %1333 = vmatmul.mubr.f32.gmra.mrb[0].mxu0 %v1261
    %v1334 = vpop.f32.mrb[0].mxu0
    %v1335 = vadd.f32 %v615, %v1334
    %v1336 = vpop.f32.mrb[0].mxu0
    %1337 = vdwg.mxu0
    %v1338 = vmax.f32 %v1330, 0.0
    %v1339 = vmax.f32 %v1335, 0.0
    %s1340 = scalar_lea.vmem %s3, 128
    %v1341 = vld [vmem:[%s1340] sm:$0xff]
    %v1342 = vld [vmem:[%s1340 + $0x8] sm:$0xff]
    %v1343 = vld [vmem:[%s1340 + $0x10] sm:$0xff]
    %v1344 = vld [vmem:[%s1340 + $0x18] sm:$0xff]
    %v1345 = vld [vmem:[%s1340 + $0x20] sm:$0xff]
    %v1346 = vld [vmem:[%s1340 + $0x28] sm:$0xff]
    %v1347 = vld [vmem:[%s1340 + $0x30] sm:$0xff]
    %v1348 = vld [vmem:[%s1340 + $0x38] sm:$0xff]
    %v1349 = vld [vmem:[%s1340 + $0x40] sm:$0xff]
    %v1350 = vld [vmem:[%s1340 + $0x48] sm:$0xff]
    %v1351 = vld [vmem:[%s1340 + $0x50] sm:$0xff]
    %v1352 = vld [vmem:[%s1340 + $0x58] sm:$0xff]
    %v1353 = vld [vmem:[%s1340 + $0x60] sm:$0xff]
    %v1354 = vld [vmem:[%s1340 + $0x68] sm:$0xff]
    %v1355 = vld [vmem:[%s1340 + $0x70] sm:$0xff]
    %v1356 = vld [vmem:[%s1340 + $0x78] sm:$0xff]
    %s1357 = scalar_lea.vmem %s4, 4
    %v1358 = vld [vmem:[%s1357] sm:$0xf]
    %s1359 = scalar_lea.vmem %s5, 8
    %v1360 = vld [vmem:[%s1359] sm:$0x3f]
    %s1361 = scalar_lea.vmem %s6, 1
    %v1362 = vld [vmem:[%s1361] sm:$0x1]
    %1363 = vmatprep.subr.mxu0 0.0
    %1364 = vmatpush1.msra.mxu0 %v703
    %1365 = vmatprep.subr.mxu0 0.0
    %1366 = vmatpush1.msra.mxu0 %v704
    %1367 = vmatprep.subr.mxu0 0.0
    %1368 = vmatpush1.msra.mxu0 0.0
    %1369 = vmatprep.subr.mxu0 0.0
    %1370 = vmatpush1.msra.mxu0 0.0
    %1371 = vmatprep.subr.mxu0 0.0
    %1372 = vmatpush1.msra.mxu0 0.0
    %1373 = vmatprep.subr.mxu0 0.0
    %1374 = vmatpush1.msra.mxu0 0.0
    %1375 = vmatprep.subr.mxu0 0.0
    %1376 = vmatpush1.msra.mxu0 0.0
    %1377 = vmatprep.subr.mxu0 0.0
    %1378 = vmatpush1.msra.mxu0 0.0
    %1379 = vmatprep.subr.mxu0 0.0
    %1380 = vmatpush1.msra.mxu0 0.0
    %1381 = vmatprep.subr.mxu0 0.0
    %1382 = vmatpush1.msra.mxu0 0.0
    %1383 = vmatprep.subr.mxu0 0.0
    %1384 = vmatpush1.msra.mxu0 0.0
    %1385 = vmatprep.subr.mxu0 0.0
    %1386 = vmatpush1.msra.mxu0 0.0
    %1387 = vmatprep.subr.mxu0 0.0
    %1388 = vmatpush1.msra.mxu0 0.0
    %1389 = vmatprep.subr.mxu0 0.0
    %1390 = vmatpush1.msra.mxu0 0.0
    %1391 = vmatprep.subr.mxu0 0.0
    %1392 = vmatpush1.msra.mxu0 0.0
    %1393 = vmatprep.subr.mxu0 0.0
    %1394 = vmatpush1.msra.mxu0 0.0
    %1395 = vmatprep.subr.mxu0 0.0
    %1396 = vmatpush1.msra.mxu0 0.0
    %1397 = vmatprep.subr.mxu0 0.0
    %1398 = vmatpush1.msra.mxu0 0.0
    %1399 = vmatprep.subr.mxu0 0.0
    %1400 = vmatpush1.msra.mxu0 0.0
    %1401 = vmatprep.subr.mxu0 0.0
    %1402 = vmatpush1.msra.mxu0 0.0
    %1403 = vmatprep.subr.mxu0 0.0
    %1404 = vmatpush1.msra.mxu0 0.0
    %1405 = vmatprep.subr.mxu0 0.0
    %1406 = vmatpush1.msra.mxu0 0.0
    %1407 = vmatprep.subr.mxu0 0.0
    %1408 = vmatpush1.msra.mxu0 0.0
    %1409 = vmatprep.subr.mxu0 0.0
    %1410 = vmatpush1.msra.mxu0 0.0
    %1411 = vmatprep.subr.mxu0 0.0
    %1412 = vmatpush1.msra.mxu0 0.0
    %1413 = vmatprep.subr.mxu0 0.0
    %1414 = vmatpush1.msra.mxu0 0.0
    %1415 = vmatprep.subr.mxu0 0.0
    %1416 = vmatpush1.msra.mxu0 0.0
    %1417 = vmatprep.subr.mxu0 0.0
    %1418 = vmatpush1.msra.mxu0 0.0
    %1419 = vmatprep.subr.mxu0 0.0
    %1420 = vmatpush1.msra.mxu0 0.0
    %1421 = vmatprep.subr.mxu0 0.0
    %1422 = vmatpush1.msra.mxu0 0.0
    %1423 = vmatprep.subr.mxu0 0.0
    %1424 = vmatpush1.msra.mxu0 0.0
    %1425 = vmatprep.subr.mxu0 0.0
    %1426 = vmatpush1.msra.mxu0 0.0
    %1427 = vmatprep.mubr.f32.mxu0 0.0
    %1428 = vmatmul.mubr.f32.gmra.mrb[0].mxu0 %v64
    %v1429 = vpop.f32.mrb[0].mxu0
    %v1430 = vadd.f32 0.0, %v1429
    %v1431 = vpop.f32.mrb[0].mxu0
    %1432 = vmatprep.mubr.f32.mxu0 0.0
    %1433 = vmatmul.mubr.f32.gmra.mrb[0].mxu0 %v67
    %v1434 = vpop.f32.mrb[0].mxu0
    %v1435 = vadd.f32 0.0, %v1434
    %v1436 = vpop.f32.mrb[0].mxu0
    %1437 = vmatprep.mubr.f32.mxu0 0.0
    %1438 = vmatmul.mubr.f32.gmra.mrb[0].mxu0 %v70
    %v1439 = vpop.f32.mrb[0].mxu0
    %v1440 = vadd.f32 0.0, %v1439
    %v1441 = vpop.f32.mrb[0].mxu0
    %1442 = vmatprep.mubr.f32.mxu0 0.0
    %1443 = vmatmul.mubr.f32.gmra.mrb[0].mxu0 %v73
    %v1444 = vpop.f32.mrb[0].mxu0
    %v1445 = vadd.f32 0.0, %v1444
    %v1446 = vpop.f32.mrb[0].mxu0
    %1447 = vmatprep.mubr.f32.mxu0 0.0
    %1448 = vmatmul.mubr.f32.gmra.mrb[0].mxu0 %v76
    %v1449 = vpop.f32.mrb[0].mxu0
    %v1450 = vadd.f32 0.0, %v1449
    %v1451 = vpop.f32.mrb[0].mxu0
    %1452 = vmatprep.mubr.f32.mxu0 0.0
    %1453 = vmatmul.mubr.f32.gmra.mrb[0].mxu0 %v79
    %v1454 = vpop.f32.mrb[0].mxu0
    %v1455 = vadd.f32 0.0, %v1454
    %v1456 = vpop.f32.mrb[0].mxu0
    %1457 = vmatprep.mubr.f32.mxu0 0.0
    %1458 = vmatmul.mubr.f32.gmra.mrb[0].mxu0 %v82
    %v1459 = vpop.f32.mrb[0].mxu0
    %v1460 = vadd.f32 0.0, %v1459
    %v1461 = vpop.f32.mrb[0].mxu0
    %1462 = vmatprep.mubr.f32.mxu0 0.0
    %1463 = vmatmul.mubr.f32.gmra.mrb[0].mxu0 %v85
    %v1464 = vpop.f32.mrb[0].mxu0
    %v1465 = vadd.f32 0.0, %v1464
    %v1466 = vpop.f32.mrb[0].mxu0
    %1467 = vdwg.mxu0
    %v1469 = vsel %vm194, %v1430, 0
    %v1472 = vsel %vm194, %v1435, 0
    %1474 = vmatprep.subr.mxu0 0.0
    %1475 = vmatpush1.msra.mxu0 %v1341
    %1476 = vmatprep.subr.mxu0 0.0
    %1477 = vmatpush1.msra.mxu0 %v1342
    %1478 = vmatprep.subr.mxu0 0.0
    %1479 = vmatpush1.msra.mxu0 %v1343
    %1480 = vmatprep.subr.mxu0 0.0
    %1481 = vmatpush1.msra.mxu0 %v1344
    %1482 = vmatprep.subr.mxu0 0.0
    %1483 = vmatpush1.msra.mxu0 0.0
    %1484 = vmatprep.subr.mxu0 0.0
    %1485 = vmatpush1.msra.mxu0 0.0
    %1486 = vmatprep.subr.mxu0 0.0
    %1487 = vmatpush1.msra.mxu0 0.0
    %1488 = vmatprep.subr.mxu0 0.0
    %1489 = vmatpush1.msra.mxu0 0.0
    %1490 = vmatprep.subr.mxu0 0.0
    %1491 = vmatpush1.msra.mxu0 0.0
    %1492 = vmatprep.subr.mxu0 0.0
    %1493 = vmatpush1.msra.mxu0 0.0
    %1494 = vmatprep.subr.mxu0 0.0
    %1495 = vmatpush1.msra.mxu0 0.0
    %1496 = vmatprep.subr.mxu0 0.0
    %1497 = vmatpush1.msra.mxu0 0.0
    %1498 = vmatprep.subr.mxu0 0.0
    %1499 = vmatpush1.msra.mxu0 0.0
    %1500 = vmatprep.subr.mxu0 0.0
    %1501 = vmatpush1.msra.mxu0 0.0
    %1502 = vmatprep.subr.mxu0 0.0
    %1503 = vmatpush1.msra.mxu0 0.0
    %1504 = vmatprep.subr.mxu0 0.0
    %1505 = vmatpush1.msra.mxu0 0.0
    %1506 = vmatprep.subr.mxu0 0.0
    %1507 = vmatpush1.msra.mxu0 0.0
    %1508 = vmatprep.subr.mxu0 0.0
    %1509 = vmatpush1.msra.mxu0 0.0
    %1510 = vmatprep.subr.mxu0 0.0
    %1511 = vmatpush1.msra.mxu0 0.0
    %1512 = vmatprep.subr.mxu0 0.0
    %1513 = vmatpush1.msra.mxu0 0.0
    %1514 = vmatprep.subr.mxu0 0.0
    %1515 = vmatpush1.msra.mxu0 0.0
    %1516 = vmatprep.subr.mxu0 0.0
    %1517 = vmatpush1.msra.mxu0 0.0
    %1518 = vmatprep.subr.mxu0 0.0
    %1519 = vmatpush1.msra.mxu0 0.0
    %1520 = vmatprep.subr.mxu0 0.0
    %1521 = vmatpush1.msra.mxu0 0.0
    %1522 = vmatprep.subr.mxu0 0.0
    %1523 = vmatpush1.msra.mxu0 0.0
    %1524 = vmatprep.subr.mxu0 0.0
    %1525 = vmatpush1.msra.mxu0 0.0
    %1526 = vmatprep.subr.mxu0 0.0
    %1527 = vmatpush1.msra.mxu0 0.0
    %1528 = vmatprep.subr.mxu0 0.0
    %1529 = vmatpush1.msra.mxu0 0.0
    %1530 = vmatprep.subr.mxu0 0.0
    %1531 = vmatpush1.msra.mxu0 0.0
    %1532 = vmatprep.subr.mxu0 0.0
    %1533 = vmatpush1.msra.mxu0 0.0
    %1534 = vmatprep.subr.mxu0 0.0
    %1535 = vmatpush1.msra.mxu0 0.0
    %1536 = vmatprep.subr.mxu0 0.0
    %1537 = vmatpush1.msra.mxu0 0.0
    %1538 = vmatprep.mubr.f32.mxu0 0.0
    %1539 = vmatmul.mubr.f32.gmra.mrb[0].mxu0 %v1469
    %v1540 = vpop.f32.mrb[0].mxu0
    %v1541 = vadd.f32 0.0, %v1540
    %v1542 = vpop.f32.mrb[0].mxu0
    %1543 = vmatprep.mubr.f32.mxu0 0.0
    %1544 = vmatmul.mubr.f32.gmra.mrb[0].mxu0 %v1472
    %v1545 = vpop.f32.mrb[0].mxu0
    %v1546 = vadd.f32 0.0, %v1545
    %v1547 = vpop.f32.mrb[0].mxu0
    %1548 = vdwg.mxu0
    %v1550 = vsel %vm283, %v1358, 0
    %1552 = vmatprep.subr.mxu0 0.0
    %1553 = vmatpush1.msra.mxu0 %v1550
    %1554 = vmatprep.subr.mxu0 0.0
    %1555 = vmatpush1.msra.mxu0 0.0
    %1556 = vmatprep.subr.mxu0 0.0
    %1557 = vmatpush1.msra.mxu0 0.0
    %1558 = vmatprep.subr.mxu0 0.0
    %1559 = vmatpush1.msra.mxu0 0.0
    %1560 = vmatprep.subr.mxu0 0.0
    %1561 = vmatpush1.msra.mxu0 0.0
    %1562 = vmatprep.subr.mxu0 0.0
    %1563 = vmatpush1.msra.mxu0 0.0
    %1564 = vmatprep.subr.mxu0 0.0
    %1565 = vmatpush1.msra.mxu0 0.0
    %1566 = vmatprep.subr.mxu0 0.0
    %1567 = vmatpush1.msra.mxu0 0.0
    %1568 = vmatprep.subr.mxu0 0.0
    %1569 = vmatpush1.msra.mxu0 0.0
    %1570 = vmatprep.subr.mxu0 0.0
    %1571 = vmatpush1.msra.mxu0 0.0
    %1572 = vmatprep.subr.mxu0 0.0
    %1573 = vmatpush1.msra.mxu0 0.0
    %1574 = vmatprep.subr.mxu0 0.0
    %1575 = vmatpush1.msra.mxu0 0.0
    %1576 = vmatprep.subr.mxu0 0.0
    %1577 = vmatpush1.msra.mxu0 0.0
    %1578 = vmatprep.subr.mxu0 0.0
    %1579 = vmatpush1.msra.mxu0 0.0
    %1580 = vmatprep.subr.mxu0 0.0
    %1581 = vmatpush1.msra.mxu0 0.0
    %1582 = vmatprep.subr.mxu0 0.0
    %1583 = vmatpush1.msra.mxu0 0.0
    %1584 = vmatprep.subr.mxu0 0.0
    %1585 = vmatpush1.msra.mxu0 0.0
    %1586 = vmatprep.subr.mxu0 0.0
    %1587 = vmatpush1.msra.mxu0 0.0
    %1588 = vmatprep.subr.mxu0 0.0
    %1589 = vmatpush1.msra.mxu0 0.0
    %1590 = vmatprep.subr.mxu0 0.0
    %1591 = vmatpush1.msra.mxu0 0.0
    %1592 = vmatprep.subr.mxu0 0.0
    %1593 = vmatpush1.msra.mxu0 0.0
    %1594 = vmatprep.subr.mxu0 0.0
    %1595 = vmatpush1.msra.mxu0 0.0
    %1596 = vmatprep.subr.mxu0 0.0
    %1597 = vmatpush1.msra.mxu0 0.0
    %1598 = vmatprep.subr.mxu0 0.0
    %1599 = vmatpush1.msra.mxu0 0.0
    %1600 = vmatprep.subr.mxu0 0.0
    %1601 = vmatpush1.msra.mxu0 0.0
    %1602 = vmatprep.subr.mxu0 0.0
    %1603 = vmatpush1.msra.mxu0 0.0
    %1604 = vmatprep.subr.mxu0 0.0
    %1605 = vmatpush1.msra.mxu0 0.0
    %1606 = vmatprep.subr.mxu0 0.0
    %1607 = vmatpush1.msra.mxu0 0.0
    %1608 = vmatprep.subr.mxu0 0.0
    %1609 = vmatpush1.msra.mxu0 0.0
    %1610 = vmatprep.subr.mxu0 0.0
    %1611 = vmatpush1.msra.mxu0 0.0
    %1612 = vmatprep.subr.mxu0 0.0
    %1613 = vmatpush1.msra.mxu0 0.0
    %1614 = vmatprep.subr.mxu0 0.0
    %1615 = vmatpush1.msra.mxu0 0.0
    %1616 = vmatprep.mubr.f32.mxu0 0.0
    %1617 = vmatmul.mubr.f32.gmra.mrb[0].mxu0 %v278
    %v1618 = vpop.f32.mrb[0].mxu0
    %v1619 = vadd.f32 %v1541, %v1618
    %v1620 = vpop.f32.mrb[0].mxu0
    %1621 = vmatprep.mubr.f32.mxu0 0.0
    %1622 = vmatmul.mubr.f32.gmra.mrb[0].mxu0 %v281
    %v1623 = vpop.f32.mrb[0].mxu0
    %v1624 = vadd.f32 %v1546, %v1623
    %v1625 = vpop.f32.mrb[0].mxu0
    %1626 = vdwg.mxu0
    %v1628 = vsel %vm194, %v1440, 0
    %v1631 = vsel %vm194, %v1445, 0
    %1633 = vmatprep.subr.mxu0 0.0
    %1634 = vmatpush1.msra.mxu0 %v1345
    %1635 = vmatprep.subr.mxu0 0.0
    %1636 = vmatpush1.msra.mxu0 %v1346
    %1637 = vmatprep.subr.mxu0 0.0
    %1638 = vmatpush1.msra.mxu0 %v1347
    %1639 = vmatprep.subr.mxu0 0.0
    %1640 = vmatpush1.msra.mxu0 %v1348
    %1641 = vmatprep.subr.mxu0 0.0
    %1642 = vmatpush1.msra.mxu0 0.0
    %1643 = vmatprep.subr.mxu0 0.0
    %1644 = vmatpush1.msra.mxu0 0.0
    %1645 = vmatprep.subr.mxu0 0.0
    %1646 = vmatpush1.msra.mxu0 0.0
    %1647 = vmatprep.subr.mxu0 0.0
    %1648 = vmatpush1.msra.mxu0 0.0
    %1649 = vmatprep.subr.mxu0 0.0
    %1650 = vmatpush1.msra.mxu0 0.0
    %1651 = vmatprep.subr.mxu0 0.0
    %1652 = vmatpush1.msra.mxu0 0.0
    %1653 = vmatprep.subr.mxu0 0.0
    %1654 = vmatpush1.msra.mxu0 0.0
    %1655 = vmatprep.subr.mxu0 0.0
    %1656 = vmatpush1.msra.mxu0 0.0
    %1657 = vmatprep.subr.mxu0 0.0
    %1658 = vmatpush1.msra.mxu0 0.0
    %1659 = vmatprep.subr.mxu0 0.0
    %1660 = vmatpush1.msra.mxu0 0.0
    %1661 = vmatprep.subr.mxu0 0.0
    %1662 = vmatpush1.msra.mxu0 0.0
    %1663 = vmatprep.subr.mxu0 0.0
    %1664 = vmatpush1.msra.mxu0 0.0
    %1665 = vmatprep.subr.mxu0 0.0
    %1666 = vmatpush1.msra.mxu0 0.0
    %1667 = vmatprep.subr.mxu0 0.0
    %1668 = vmatpush1.msra.mxu0 0.0
    %1669 = vmatprep.subr.mxu0 0.0
    %1670 = vmatpush1.msra.mxu0 0.0
    %1671 = vmatprep.subr.mxu0 0.0
    %1672 = vmatpush1.msra.mxu0 0.0
    %1673 = vmatprep.subr.mxu0 0.0
    %1674 = vmatpush1.msra.mxu0 0.0
    %1675 = vmatprep.subr.mxu0 0.0
    %1676 = vmatpush1.msra.mxu0 0.0
    %1677 = vmatprep.subr.mxu0 0.0
    %1678 = vmatpush1.msra.mxu0 0.0
    %1679 = vmatprep.subr.mxu0 0.0
    %1680 = vmatpush1.msra.mxu0 0.0
    %1681 = vmatprep.subr.mxu0 0.0
    %1682 = vmatpush1.msra.mxu0 0.0
    %1683 = vmatprep.subr.mxu0 0.0
    %1684 = vmatpush1.msra.mxu0 0.0
    %1685 = vmatprep.subr.mxu0 0.0
    %1686 = vmatpush1.msra.mxu0 0.0
    %1687 = vmatprep.subr.mxu0 0.0
    %1688 = vmatpush1.msra.mxu0 0.0
    %1689 = vmatprep.subr.mxu0 0.0
    %1690 = vmatpush1.msra.mxu0 0.0
    %1691 = vmatprep.subr.mxu0 0.0
    %1692 = vmatpush1.msra.mxu0 0.0
    %1693 = vmatprep.subr.mxu0 0.0
    %1694 = vmatpush1.msra.mxu0 0.0
    %1695 = vmatprep.subr.mxu0 0.0
    %1696 = vmatpush1.msra.mxu0 0.0
    %1697 = vmatprep.mubr.f32.mxu0 0.0
    %1698 = vmatmul.mubr.f32.gmra.mrb[0].mxu0 %v1628
    %v1699 = vpop.f32.mrb[0].mxu0
    %v1700 = vadd.f32 0.0, %v1699
    %v1701 = vpop.f32.mrb[0].mxu0
    %1702 = vmatprep.mubr.f32.mxu0 0.0
    %1703 = vmatmul.mubr.f32.gmra.mrb[0].mxu0 %v1631
    %v1704 = vpop.f32.mrb[0].mxu0
    %v1705 = vadd.f32 0.0, %v1704
    %v1706 = vpop.f32.mrb[0].mxu0
    %1707 = vdwg.mxu0
    %v1708 = vadd.f32 %v1619, %v1700
    %v1709 = vadd.f32 %v1624, %v1705
    %v1711 = vsel %vm194, %v1450, 0
    %v1714 = vsel %vm194, %v1455, 0
    %1716 = vmatprep.subr.mxu0 0.0
    %1717 = vmatpush1.msra.mxu0 %v1349
    %1718 = vmatprep.subr.mxu0 0.0
    %1719 = vmatpush1.msra.mxu0 %v1350
    %1720 = vmatprep.subr.mxu0 0.0
    %1721 = vmatpush1.msra.mxu0 %v1351
    %1722 = vmatprep.subr.mxu0 0.0
    %1723 = vmatpush1.msra.mxu0 %v1352
    %1724 = vmatprep.subr.mxu0 0.0
    %1725 = vmatpush1.msra.mxu0 0.0
    %1726 = vmatprep.subr.mxu0 0.0
    %1727 = vmatpush1.msra.mxu0 0.0
    %1728 = vmatprep.subr.mxu0 0.0
    %1729 = vmatpush1.msra.mxu0 0.0
    %1730 = vmatprep.subr.mxu0 0.0
    %1731 = vmatpush1.msra.mxu0 0.0
    %1732 = vmatprep.subr.mxu0 0.0
    %1733 = vmatpush1.msra.mxu0 0.0
    %1734 = vmatprep.subr.mxu0 0.0
    %1735 = vmatpush1.msra.mxu0 0.0
    %1736 = vmatprep.subr.mxu0 0.0
    %1737 = vmatpush1.msra.mxu0 0.0
    %1738 = vmatprep.subr.mxu0 0.0
    %1739 = vmatpush1.msra.mxu0 0.0
    %1740 = vmatprep.subr.mxu0 0.0
    %1741 = vmatpush1.msra.mxu0 0.0
    %1742 = vmatprep.subr.mxu0 0.0
    %1743 = vmatpush1.msra.mxu0 0.0
    %1744 = vmatprep.subr.mxu0 0.0
    %1745 = vmatpush1.msra.mxu0 0.0
    %1746 = vmatprep.subr.mxu0 0.0
    %1747 = vmatpush1.msra.mxu0 0.0
    %1748 = vmatprep.subr.mxu0 0.0
    %1749 = vmatpush1.msra.mxu0 0.0
    %1750 = vmatprep.subr.mxu0 0.0
    %1751 = vmatpush1.msra.mxu0 0.0
    %1752 = vmatprep.subr.mxu0 0.0
    %1753 = vmatpush1.msra.mxu0 0.0
    %1754 = vmatprep.subr.mxu0 0.0
    %1755 = vmatpush1.msra.mxu0 0.0
    %1756 = vmatprep.subr.mxu0 0.0
    %1757 = vmatpush1.msra.mxu0 0.0
    %1758 = vmatprep.subr.mxu0 0.0
    %1759 = vmatpush1.msra.mxu0 0.0
    %1760 = vmatprep.subr.mxu0 0.0
    %1761 = vmatpush1.msra.mxu0 0.0
    %1762 = vmatprep.subr.mxu0 0.0
    %1763 = vmatpush1.msra.mxu0 0.0
    %1764 = vmatprep.subr.mxu0 0.0
    %1765 = vmatpush1.msra.mxu0 0.0
    %1766 = vmatprep.subr.mxu0 0.0
    %1767 = vmatpush1.msra.mxu0 0.0
    %1768 = vmatprep.subr.mxu0 0.0
    %1769 = vmatpush1.msra.mxu0 0.0
    %1770 = vmatprep.subr.mxu0 0.0
    %1771 = vmatpush1.msra.mxu0 0.0
    %1772 = vmatprep.subr.mxu0 0.0
    %1773 = vmatpush1.msra.mxu0 0.0
    %1774 = vmatprep.subr.mxu0 0.0
    %1775 = vmatpush1.msra.mxu0 0.0
    %1776 = vmatprep.subr.mxu0 0.0
    %1777 = vmatpush1.msra.mxu0 0.0
    %1778 = vmatprep.subr.mxu0 0.0
    %1779 = vmatpush1.msra.mxu0 0.0
    %1780 = vmatprep.mubr.f32.mxu0 0.0
    %1781 = vmatmul.mubr.f32.gmra.mrb[0].mxu0 %v1711
    %v1782 = vpop.f32.mrb[0].mxu0
    %v1783 = vadd.f32 0.0, %v1782
    %v1784 = vpop.f32.mrb[0].mxu0
    %1785 = vmatprep.mubr.f32.mxu0 0.0
    %1786 = vmatmul.mubr.f32.gmra.mrb[0].mxu0 %v1714
    %v1787 = vpop.f32.mrb[0].mxu0
    %v1788 = vadd.f32 0.0, %v1787
    %v1789 = vpop.f32.mrb[0].mxu0
    %1790 = vdwg.mxu0
    %v1791 = vadd.f32 %v1708, %v1783
    %v1792 = vadd.f32 %v1709, %v1788
    %v1794 = vsel %vm194, %v1460, 0
    %v1797 = vsel %vm194, %v1465, 0
    %1799 = vmatprep.subr.mxu0 0.0
    %1800 = vmatpush1.msra.mxu0 %v1353
    %1801 = vmatprep.subr.mxu0 0.0
    %1802 = vmatpush1.msra.mxu0 %v1354
    %1803 = vmatprep.subr.mxu0 0.0
    %1804 = vmatpush1.msra.mxu0 %v1355
    %1805 = vmatprep.subr.mxu0 0.0
    %1806 = vmatpush1.msra.mxu0 %v1356
    %1807 = vmatprep.subr.mxu0 0.0
    %1808 = vmatpush1.msra.mxu0 0.0
    %1809 = vmatprep.subr.mxu0 0.0
    %1810 = vmatpush1.msra.mxu0 0.0
    %1811 = vmatprep.subr.mxu0 0.0
    %1812 = vmatpush1.msra.mxu0 0.0
    %1813 = vmatprep.subr.mxu0 0.0
    %1814 = vmatpush1.msra.mxu0 0.0
    %1815 = vmatprep.subr.mxu0 0.0
    %1816 = vmatpush1.msra.mxu0 0.0
    %1817 = vmatprep.subr.mxu0 0.0
    %1818 = vmatpush1.msra.mxu0 0.0
    %1819 = vmatprep.subr.mxu0 0.0
    %1820 = vmatpush1.msra.mxu0 0.0
    %1821 = vmatprep.subr.mxu0 0.0
    %1822 = vmatpush1.msra.mxu0 0.0
    %1823 = vmatprep.subr.mxu0 0.0
    %1824 = vmatpush1.msra.mxu0 0.0
    %1825 = vmatprep.subr.mxu0 0.0
    %1826 = vmatpush1.msra.mxu0 0.0
    %1827 = vmatprep.subr.mxu0 0.0
    %1828 = vmatpush1.msra.mxu0 0.0
    %1829 = vmatprep.subr.mxu0 0.0
    %1830 = vmatpush1.msra.mxu0 0.0
    %1831 = vmatprep.subr.mxu0 0.0
    %1832 = vmatpush1.msra.mxu0 0.0
    %1833 = vmatprep.subr.mxu0 0.0
    %1834 = vmatpush1.msra.mxu0 0.0
    %1835 = vmatprep.subr.mxu0 0.0
    %1836 = vmatpush1.msra.mxu0 0.0
    %1837 = vmatprep.subr.mxu0 0.0
    %1838 = vmatpush1.msra.mxu0 0.0
    %1839 = vmatprep.subr.mxu0 0.0
    %1840 = vmatpush1.msra.mxu0 0.0
    %1841 = vmatprep.subr.mxu0 0.0
    %1842 = vmatpush1.msra.mxu0 0.0
    %1843 = vmatprep.subr.mxu0 0.0
    %1844 = vmatpush1.msra.mxu0 0.0
    %1845 = vmatprep.subr.mxu0 0.0
    %1846 = vmatpush1.msra.mxu0 0.0
    %1847 = vmatprep.subr.mxu0 0.0
    %1848 = vmatpush1.msra.mxu0 0.0
    %1849 = vmatprep.subr.mxu0 0.0
    %1850 = vmatpush1.msra.mxu0 0.0
    %1851 = vmatprep.subr.mxu0 0.0
    %1852 = vmatpush1.msra.mxu0 0.0
    %1853 = vmatprep.subr.mxu0 0.0
    %1854 = vmatpush1.msra.mxu0 0.0
    %1855 = vmatprep.subr.mxu0 0.0
    %1856 = vmatpush1.msra.mxu0 0.0
    %1857 = vmatprep.subr.mxu0 0.0
    %1858 = vmatpush1.msra.mxu0 0.0
    %1859 = vmatprep.subr.mxu0 0.0
    %1860 = vmatpush1.msra.mxu0 0.0
    %1861 = vmatprep.subr.mxu0 0.0
    %1862 = vmatpush1.msra.mxu0 0.0
    %1863 = vmatprep.mubr.f32.mxu0 0.0
    %1864 = vmatmul.mubr.f32.gmra.mrb[0].mxu0 %v1794
    %v1865 = vpop.f32.mrb[0].mxu0
    %v1866 = vadd.f32 0.0, %v1865
    %v1867 = vpop.f32.mrb[0].mxu0
    %1868 = vmatprep.mubr.f32.mxu0 0.0
    %1869 = vmatmul.mubr.f32.gmra.mrb[0].mxu0 %v1797
    %v1870 = vpop.f32.mrb[0].mxu0
    %v1871 = vadd.f32 0.0, %v1870
    %v1872 = vpop.f32.mrb[0].mxu0
    %1873 = vdwg.mxu0
    %v1874 = vadd.f32 %v1791, %v1866
    %v1875 = vadd.f32 %v1792, %v1871
    %v1877 = vlaneseq
    %v1878 = vshrl.u32 %v1877, 7
    %v1879 = vsub.s32 0, %v1878
    %v1880 = vrot.slane %v1362, %v1879
    %v1883 = vsel %vm617, %v1874, 0
    %v1886 = vsel %vm617, %v1875, 0
    %v1889 = vsel %vm624, %v1360, 0
    %1891 = vmatprep.subr.mxu0 0.0
    %1892 = vmatpush1.msra.mxu0 %v1889
    %1893 = vmatprep.subr.mxu0 0.0
    %1894 = vmatpush1.msra.mxu0 0.0
    %1895 = vmatprep.subr.mxu0 0.0
    %1896 = vmatpush1.msra.mxu0 0.0
    %1897 = vmatprep.subr.mxu0 0.0
    %1898 = vmatpush1.msra.mxu0 0.0
    %1899 = vmatprep.subr.mxu0 0.0
    %1900 = vmatpush1.msra.mxu0 0.0
    %1901 = vmatprep.subr.mxu0 0.0
    %1902 = vmatpush1.msra.mxu0 0.0
    %1903 = vmatprep.subr.mxu0 0.0
    %1904 = vmatpush1.msra.mxu0 0.0
    %1905 = vmatprep.subr.mxu0 0.0
    %1906 = vmatpush1.msra.mxu0 0.0
    %1907 = vmatprep.subr.mxu0 0.0
    %1908 = vmatpush1.msra.mxu0 0.0
    %1909 = vmatprep.subr.mxu0 0.0
    %1910 = vmatpush1.msra.mxu0 0.0
    %1911 = vmatprep.subr.mxu0 0.0
    %1912 = vmatpush1.msra.mxu0 0.0
    %1913 = vmatprep.subr.mxu0 0.0
    %1914 = vmatpush1.msra.mxu0 0.0
    %1915 = vmatprep.subr.mxu0 0.0
    %1916 = vmatpush1.msra.mxu0 0.0
    %1917 = vmatprep.subr.mxu0 0.0
    %1918 = vmatpush1.msra.mxu0 0.0
    %1919 = vmatprep.subr.mxu0 0.0
    %1920 = vmatpush1.msra.mxu0 0.0
    %1921 = vmatprep.subr.mxu0 0.0
    %1922 = vmatpush1.msra.mxu0 0.0
    %1923 = vmatprep.subr.mxu0 0.0
    %1924 = vmatpush1.msra.mxu0 0.0
    %1925 = vmatprep.subr.mxu0 0.0
    %1926 = vmatpush1.msra.mxu0 0.0
    %1927 = vmatprep.subr.mxu0 0.0
    %1928 = vmatpush1.msra.mxu0 0.0
    %1929 = vmatprep.subr.mxu0 0.0
    %1930 = vmatpush1.msra.mxu0 0.0
    %1931 = vmatprep.subr.mxu0 0.0
    %1932 = vmatpush1.msra.mxu0 0.0
    %1933 = vmatprep.subr.mxu0 0.0
    %1934 = vmatpush1.msra.mxu0 0.0
    %1935 = vmatprep.subr.mxu0 0.0
    %1936 = vmatpush1.msra.mxu0 0.0
    %1937 = vmatprep.subr.mxu0 0.0
    %1938 = vmatpush1.msra.mxu0 0.0
    %1939 = vmatprep.subr.mxu0 0.0
    %1940 = vmatpush1.msra.mxu0 0.0
    %1941 = vmatprep.subr.mxu0 0.0
    %1942 = vmatpush1.msra.mxu0 0.0
    %1943 = vmatprep.subr.mxu0 0.0
    %1944 = vmatpush1.msra.mxu0 0.0
    %1945 = vmatprep.subr.mxu0 0.0
    %1946 = vmatpush1.msra.mxu0 0.0
    %1947 = vmatprep.subr.mxu0 0.0
    %1948 = vmatpush1.msra.mxu0 0.0
    %1949 = vmatprep.subr.mxu0 0.0
    %1950 = vmatpush1.msra.mxu0 0.0
    %1951 = vmatprep.subr.mxu0 0.0
    %1952 = vmatpush1.msra.mxu0 0.0
    %1953 = vmatprep.subr.mxu0 0.0
    %1954 = vmatpush1.msra.mxu0 0.0
    %1955 = vmatprep.mubr.f32.mxu0 0.0
    %1956 = vmatmul.mubr.f32.gmra.mrb[0].mxu0 %v1883
    %v1957 = vpop.f32.mrb[0].mxu0
    %v1958 = vadd.f32 %v1880, %v1957
    %v1959 = vpop.f32.mrb[0].mxu0
    %1960 = vmatprep.mubr.f32.mxu0 0.0
    %1961 = vmatmul.mubr.f32.gmra.mrb[0].mxu0 %v1886
    %v1962 = vpop.f32.mrb[0].mxu0
    %v1963 = vadd.f32 %v1880, %v1962
    %v1964 = vpop.f32.mrb[0].mxu0
    %1965 = vdwg.mxu0
    %v1966 = vmax.f32 %v1958, 0.0
    %v1967 = vmax.f32 %v1963, 0.0
    %1968 = vmatprep.subr.mxu0 0.0
    %1969 = vmatpush1.msra.mxu0 %v1338
    %1970 = vmatprep.subr.mxu0 0.0
    %1971 = vmatpush1.msra.mxu0 %v1339
    %1972 = vmatprep.subr.mxu0 0.0
    %1973 = vmatpush1.msra.mxu0 0.0
    %1974 = vmatprep.subr.mxu0 0.0
    %1975 = vmatpush1.msra.mxu0 0.0
    %1976 = vmatprep.subr.mxu0 0.0
    %1977 = vmatpush1.msra.mxu0 0.0
    %1978 = vmatprep.subr.mxu0 0.0
    %1979 = vmatpush1.msra.mxu0 0.0
    %1980 = vmatprep.subr.mxu0 0.0
    %1981 = vmatpush1.msra.mxu0 0.0
    %1982 = vmatprep.subr.mxu0 0.0
    %1983 = vmatpush1.msra.mxu0 0.0
    %1984 = vmatprep.subr.mxu0 0.0
    %1985 = vmatpush1.msra.mxu0 0.0
    %1986 = vmatprep.subr.mxu0 0.0
    %1987 = vmatpush1.msra.mxu0 0.0
    %1988 = vmatprep.subr.mxu0 0.0
    %1989 = vmatpush1.msra.mxu0 0.0
    %1990 = vmatprep.subr.mxu0 0.0
    %1991 = vmatpush1.msra.mxu0 0.0
    %1992 = vmatprep.subr.mxu0 0.0
    %1993 = vmatpush1.msra.mxu0 0.0
    %1994 = vmatprep.subr.mxu0 0.0
    %1995 = vmatpush1.msra.mxu0 0.0
    %1996 = vmatprep.subr.mxu0 0.0
    %1997 = vmatpush1.msra.mxu0 0.0
    %1998 = vmatprep.subr.mxu0 0.0
    %1999 = vmatpush1.msra.mxu0 0.0
    %2000 = vmatprep.subr.mxu0 0.0
    %2001 = vmatpush1.msra.mxu0 0.0
    %2002 = vmatprep.subr.mxu0 0.0
    %2003 = vmatpush1.msra.mxu0 0.0
    %2004 = vmatprep.subr.mxu0 0.0
    %2005 = vmatpush1.msra.mxu0 0.0
    %2006 = vmatprep.subr.mxu0 0.0
    %2007 = vmatpush1.msra.mxu0 0.0
    %2008 = vmatprep.subr.mxu0 0.0
    %2009 = vmatpush1.msra.mxu0 0.0
    %2010 = vmatprep.subr.mxu0 0.0
    %2011 = vmatpush1.msra.mxu0 0.0
    %2012 = vmatprep.subr.mxu0 0.0
    %2013 = vmatpush1.msra.mxu0 0.0
    %2014 = vmatprep.subr.mxu0 0.0
    %2015 = vmatpush1.msra.mxu0 0.0
    %2016 = vmatprep.subr.mxu0 0.0
    %2017 = vmatpush1.msra.mxu0 0.0
    %2018 = vmatprep.subr.mxu0 0.0
    %2019 = vmatpush1.msra.mxu0 0.0
    %2020 = vmatprep.subr.mxu0 0.0
    %2021 = vmatpush1.msra.mxu0 0.0
    %2022 = vmatprep.subr.mxu0 0.0
    %2023 = vmatpush1.msra.mxu0 0.0
    %2024 = vmatprep.subr.mxu0 0.0
    %2025 = vmatpush1.msra.mxu0 0.0
    %2026 = vmatprep.subr.mxu0 0.0
    %2027 = vmatpush1.msra.mxu0 0.0
    %2028 = vmatprep.subr.mxu0 0.0
    %2029 = vmatpush1.msra.mxu0 0.0
    %2030 = vmatprep.subr.mxu0 0.0
    %2031 = vmatpush1.msra.mxu0 0.0
    %2032 = vmatprep.mubr.f32.mxu0 0.0
    %2033 = vmatmul.mubr.f32.gmra.mrb[0].mxu0 %v715
    %v2034 = vpop.f32.mrb[0].mxu0
    %v2035 = vadd.f32 0.0, %v2034
    %v2036 = vpop.f32.mrb[0].mxu0
    %2037 = vmatprep.mubr.f32.mxu0 0.0
    %2038 = vmatmul.mubr.f32.gmra.mrb[0].mxu0 %v718
    %v2039 = vpop.f32.mrb[0].mxu0
    %v2040 = vadd.f32 0.0, %v2039
    %v2041 = vpop.f32.mrb[0].mxu0
    %2042 = vmatprep.mubr.f32.mxu0 0.0
    %2043 = vmatmul.mubr.f32.gmra.mrb[0].mxu0 %v721
    %v2044 = vpop.f32.mrb[0].mxu0
    %v2045 = vadd.f32 0.0, %v2044
    %v2046 = vpop.f32.mrb[0].mxu0
    %2047 = vmatprep.mubr.f32.mxu0 0.0
    %2048 = vmatmul.mubr.f32.gmra.mrb[0].mxu0 %v724
    %v2049 = vpop.f32.mrb[0].mxu0
    %v2050 = vadd.f32 0.0, %v2049
    %v2051 = vpop.f32.mrb[0].mxu0
    %2052 = vmatprep.mubr.f32.mxu0 0.0
    %2053 = vmatmul.mubr.f32.gmra.mrb[0].mxu0 %v727
    %v2054 = vpop.f32.mrb[0].mxu0
    %v2055 = vadd.f32 0.0, %v2054
    %v2056 = vpop.f32.mrb[0].mxu0
    %2057 = vmatprep.mubr.f32.mxu0 0.0
    %2058 = vmatmul.mubr.f32.gmra.mrb[0].mxu0 %v730
    %v2059 = vpop.f32.mrb[0].mxu0
    %v2060 = vadd.f32 0.0, %v2059
    %v2061 = vpop.f32.mrb[0].mxu0
    %2062 = vmatprep.mubr.f32.mxu0 0.0
    %2063 = vmatmul.mubr.f32.gmra.mrb[0].mxu0 %v733
    %v2064 = vpop.f32.mrb[0].mxu0
    %v2065 = vadd.f32 0.0, %v2064
    %v2066 = vpop.f32.mrb[0].mxu0
    %2067 = vmatprep.mubr.f32.mxu0 0.0
    %2068 = vmatmul.mubr.f32.gmra.mrb[0].mxu0 %v736
    %v2069 = vpop.f32.mrb[0].mxu0
    %v2070 = vadd.f32 0.0, %v2069
    %v2071 = vpop.f32.mrb[0].mxu0
    %2072 = vdwg.mxu0
    %v2074 = vsel %vm194, %v2035, 0
    %v2077 = vsel %vm194, %v2040, 0
    %2079 = vmatprep.subr.mxu0 0.0
    %2080 = vmatpush1.msra.mxu0 %v1341
    %2081 = vmatprep.subr.mxu0 0.0
    %2082 = vmatpush1.msra.mxu0 %v1342
    %2083 = vmatprep.subr.mxu0 0.0
    %2084 = vmatpush1.msra.mxu0 %v1343
    %2085 = vmatprep.subr.mxu0 0.0
    %2086 = vmatpush1.msra.mxu0 %v1344
    %2087 = vmatprep.subr.mxu0 0.0
    %2088 = vmatpush1.msra.mxu0 0.0
    %2089 = vmatprep.subr.mxu0 0.0
    %2090 = vmatpush1.msra.mxu0 0.0
    %2091 = vmatprep.subr.mxu0 0.0
    %2092 = vmatpush1.msra.mxu0 0.0
    %2093 = vmatprep.subr.mxu0 0.0
    %2094 = vmatpush1.msra.mxu0 0.0
    %2095 = vmatprep.subr.mxu0 0.0
    %2096 = vmatpush1.msra.mxu0 0.0
    %2097 = vmatprep.subr.mxu0 0.0
    %2098 = vmatpush1.msra.mxu0 0.0
    %2099 = vmatprep.subr.mxu0 0.0
    %2100 = vmatpush1.msra.mxu0 0.0
    %2101 = vmatprep.subr.mxu0 0.0
    %2102 = vmatpush1.msra.mxu0 0.0
    %2103 = vmatprep.subr.mxu0 0.0
    %2104 = vmatpush1.msra.mxu0 0.0
    %2105 = vmatprep.subr.mxu0 0.0
    %2106 = vmatpush1.msra.mxu0 0.0
    %2107 = vmatprep.subr.mxu0 0.0
    %2108 = vmatpush1.msra.mxu0 0.0
    %2109 = vmatprep.subr.mxu0 0.0
    %2110 = vmatpush1.msra.mxu0 0.0
    %2111 = vmatprep.subr.mxu0 0.0
    %2112 = vmatpush1.msra.mxu0 0.0
    %2113 = vmatprep.subr.mxu0 0.0
    %2114 = vmatpush1.msra.mxu0 0.0
    %2115 = vmatprep.subr.mxu0 0.0
    %2116 = vmatpush1.msra.mxu0 0.0
    %2117 = vmatprep.subr.mxu0 0.0
    %2118 = vmatpush1.msra.mxu0 0.0
    %2119 = vmatprep.subr.mxu0 0.0
    %2120 = vmatpush1.msra.mxu0 0.0
    %2121 = vmatprep.subr.mxu0 0.0
    %2122 = vmatpush1.msra.mxu0 0.0
    %2123 = vmatprep.subr.mxu0 0.0
    %2124 = vmatpush1.msra.mxu0 0.0
    %2125 = vmatprep.subr.mxu0 0.0
    %2126 = vmatpush1.msra.mxu0 0.0
    %2127 = vmatprep.subr.mxu0 0.0
    %2128 = vmatpush1.msra.mxu0 0.0
    %2129 = vmatprep.subr.mxu0 0.0
    %2130 = vmatpush1.msra.mxu0 0.0
    %2131 = vmatprep.subr.mxu0 0.0
    %2132 = vmatpush1.msra.mxu0 0.0
    %2133 = vmatprep.subr.mxu0 0.0
    %2134 = vmatpush1.msra.mxu0 0.0
    %2135 = vmatprep.subr.mxu0 0.0
    %2136 = vmatpush1.msra.mxu0 0.0
    %2137 = vmatprep.subr.mxu0 0.0
    %2138 = vmatpush1.msra.mxu0 0.0
    %2139 = vmatprep.subr.mxu0 0.0
    %2140 = vmatpush1.msra.mxu0 0.0
    %2141 = vmatprep.subr.mxu0 0.0
    %2142 = vmatpush1.msra.mxu0 0.0
    %2143 = vmatprep.mubr.f32.mxu0 0.0
    %2144 = vmatmul.mubr.f32.gmra.mrb[0].mxu0 %v2074
    %v2145 = vpop.f32.mrb[0].mxu0
    %v2146 = vadd.f32 0.0, %v2145
    %v2147 = vpop.f32.mrb[0].mxu0
    %2148 = vmatprep.mubr.f32.mxu0 0.0
    %2149 = vmatmul.mubr.f32.gmra.mrb[0].mxu0 %v2077
    %v2150 = vpop.f32.mrb[0].mxu0
    %v2151 = vadd.f32 0.0, %v2150
    %v2152 = vpop.f32.mrb[0].mxu0
    %2153 = vdwg.mxu0
    %2154 = vmatprep.subr.mxu0 0.0
    %2155 = vmatpush1.msra.mxu0 %v1550
    %2156 = vmatprep.subr.mxu0 0.0
    %2157 = vmatpush1.msra.mxu0 0.0
    %2158 = vmatprep.subr.mxu0 0.0
    %2159 = vmatpush1.msra.mxu0 0.0
    %2160 = vmatprep.subr.mxu0 0.0
    %2161 = vmatpush1.msra.mxu0 0.0
    %2162 = vmatprep.subr.mxu0 0.0
    %2163 = vmatpush1.msra.mxu0 0.0
    %2164 = vmatprep.subr.mxu0 0.0
    %2165 = vmatpush1.msra.mxu0 0.0
    %2166 = vmatprep.subr.mxu0 0.0
    %2167 = vmatpush1.msra.mxu0 0.0
    %2168 = vmatprep.subr.mxu0 0.0
    %2169 = vmatpush1.msra.mxu0 0.0
    %2170 = vmatprep.subr.mxu0 0.0
    %2171 = vmatpush1.msra.mxu0 0.0
    %2172 = vmatprep.subr.mxu0 0.0
    %2173 = vmatpush1.msra.mxu0 0.0
    %2174 = vmatprep.subr.mxu0 0.0
    %2175 = vmatpush1.msra.mxu0 0.0
    %2176 = vmatprep.subr.mxu0 0.0
    %2177 = vmatpush1.msra.mxu0 0.0
    %2178 = vmatprep.subr.mxu0 0.0
    %2179 = vmatpush1.msra.mxu0 0.0
    %2180 = vmatprep.subr.mxu0 0.0
    %2181 = vmatpush1.msra.mxu0 0.0
    %2182 = vmatprep.subr.mxu0 0.0
    %2183 = vmatpush1.msra.mxu0 0.0
    %2184 = vmatprep.subr.mxu0 0.0
    %2185 = vmatpush1.msra.mxu0 0.0
    %2186 = vmatprep.subr.mxu0 0.0
    %2187 = vmatpush1.msra.mxu0 0.0
    %2188 = vmatprep.subr.mxu0 0.0
    %2189 = vmatpush1.msra.mxu0 0.0
    %2190 = vmatprep.subr.mxu0 0.0
    %2191 = vmatpush1.msra.mxu0 0.0
    %2192 = vmatprep.subr.mxu0 0.0
    %2193 = vmatpush1.msra.mxu0 0.0
    %2194 = vmatprep.subr.mxu0 0.0
    %2195 = vmatpush1.msra.mxu0 0.0
    %2196 = vmatprep.subr.mxu0 0.0
    %2197 = vmatpush1.msra.mxu0 0.0
    %2198 = vmatprep.subr.mxu0 0.0
    %2199 = vmatpush1.msra.mxu0 0.0
    %2200 = vmatprep.subr.mxu0 0.0
    %2201 = vmatpush1.msra.mxu0 0.0
    %2202 = vmatprep.subr.mxu0 0.0
    %2203 = vmatpush1.msra.mxu0 0.0
    %2204 = vmatprep.subr.mxu0 0.0
    %2205 = vmatpush1.msra.mxu0 0.0
    %2206 = vmatprep.subr.mxu0 0.0
    %2207 = vmatpush1.msra.mxu0 0.0
    %2208 = vmatprep.subr.mxu0 0.0
    %2209 = vmatpush1.msra.mxu0 0.0
    %2210 = vmatprep.subr.mxu0 0.0
    %2211 = vmatpush1.msra.mxu0 0.0
    %2212 = vmatprep.subr.mxu0 0.0
    %2213 = vmatpush1.msra.mxu0 0.0
    %2214 = vmatprep.subr.mxu0 0.0
    %2215 = vmatpush1.msra.mxu0 0.0
    %2216 = vmatprep.subr.mxu0 0.0
    %2217 = vmatpush1.msra.mxu0 0.0
    %2218 = vmatprep.mubr.f32.mxu0 0.0
    %2219 = vmatmul.mubr.f32.gmra.mrb[0].mxu0 %v928
    %v2220 = vpop.f32.mrb[0].mxu0
    %v2221 = vadd.f32 %v2146, %v2220
    %v2222 = vpop.f32.mrb[0].mxu0
    %2223 = vmatprep.mubr.f32.mxu0 0.0
    %2224 = vmatmul.mubr.f32.gmra.mrb[0].mxu0 %v931
    %v2225 = vpop.f32.mrb[0].mxu0
    %v2226 = vadd.f32 %v2151, %v2225
    %v2227 = vpop.f32.mrb[0].mxu0
    %2228 = vdwg.mxu0
    %v2230 = vsel %vm194, %v2045, 0
    %v2233 = vsel %vm194, %v2050, 0
    %2235 = vmatprep.subr.mxu0 0.0
    %2236 = vmatpush1.msra.mxu0 %v1345
    %2237 = vmatprep.subr.mxu0 0.0
    %2238 = vmatpush1.msra.mxu0 %v1346
    %2239 = vmatprep.subr.mxu0 0.0
    %2240 = vmatpush1.msra.mxu0 %v1347
    %2241 = vmatprep.subr.mxu0 0.0
    %2242 = vmatpush1.msra.mxu0 %v1348
    %2243 = vmatprep.subr.mxu0 0.0
    %2244 = vmatpush1.msra.mxu0 0.0
    %2245 = vmatprep.subr.mxu0 0.0
    %2246 = vmatpush1.msra.mxu0 0.0
    %2247 = vmatprep.subr.mxu0 0.0
    %2248 = vmatpush1.msra.mxu0 0.0
    %2249 = vmatprep.subr.mxu0 0.0
    %2250 = vmatpush1.msra.mxu0 0.0
    %2251 = vmatprep.subr.mxu0 0.0
    %2252 = vmatpush1.msra.mxu0 0.0
    %2253 = vmatprep.subr.mxu0 0.0
    %2254 = vmatpush1.msra.mxu0 0.0
    %2255 = vmatprep.subr.mxu0 0.0
    %2256 = vmatpush1.msra.mxu0 0.0
    %2257 = vmatprep.subr.mxu0 0.0
    %2258 = vmatpush1.msra.mxu0 0.0
    %2259 = vmatprep.subr.mxu0 0.0
    %2260 = vmatpush1.msra.mxu0 0.0
    %2261 = vmatprep.subr.mxu0 0.0
    %2262 = vmatpush1.msra.mxu0 0.0
    %2263 = vmatprep.subr.mxu0 0.0
    %2264 = vmatpush1.msra.mxu0 0.0
    %2265 = vmatprep.subr.mxu0 0.0
    %2266 = vmatpush1.msra.mxu0 0.0
    %2267 = vmatprep.subr.mxu0 0.0
    %2268 = vmatpush1.msra.mxu0 0.0
    %2269 = vmatprep.subr.mxu0 0.0
    %2270 = vmatpush1.msra.mxu0 0.0
    %2271 = vmatprep.subr.mxu0 0.0
    %2272 = vmatpush1.msra.mxu0 0.0
    %2273 = vmatprep.subr.mxu0 0.0
    %2274 = vmatpush1.msra.mxu0 0.0
    %2275 = vmatprep.subr.mxu0 0.0
    %2276 = vmatpush1.msra.mxu0 0.0
    %2277 = vmatprep.subr.mxu0 0.0
    %2278 = vmatpush1.msra.mxu0 0.0
    %2279 = vmatprep.subr.mxu0 0.0
    %2280 = vmatpush1.msra.mxu0 0.0
    %2281 = vmatprep.subr.mxu0 0.0
    %2282 = vmatpush1.msra.mxu0 0.0
    %2283 = vmatprep.subr.mxu0 0.0
    %2284 = vmatpush1.msra.mxu0 0.0
    %2285 = vmatprep.subr.mxu0 0.0
    %2286 = vmatpush1.msra.mxu0 0.0
    %2287 = vmatprep.subr.mxu0 0.0
    %2288 = vmatpush1.msra.mxu0 0.0
    %2289 = vmatprep.subr.mxu0 0.0
    %2290 = vmatpush1.msra.mxu0 0.0
    %2291 = vmatprep.subr.mxu0 0.0
    %2292 = vmatpush1.msra.mxu0 0.0
    %2293 = vmatprep.subr.mxu0 0.0
    %2294 = vmatpush1.msra.mxu0 0.0
    %2295 = vmatprep.subr.mxu0 0.0
    %2296 = vmatpush1.msra.mxu0 0.0
    %2297 = vmatprep.subr.mxu0 0.0
    %2298 = vmatpush1.msra.mxu0 0.0
    %2299 = vmatprep.mubr.f32.mxu0 0.0
    %2300 = vmatmul.mubr.f32.gmra.mrb[0].mxu0 %v2230
    %v2301 = vpop.f32.mrb[0].mxu0
    %v2302 = vadd.f32 0.0, %v2301
    %v2303 = vpop.f32.mrb[0].mxu0
    %2304 = vmatprep.mubr.f32.mxu0 0.0
    %2305 = vmatmul.mubr.f32.gmra.mrb[0].mxu0 %v2233
    %v2306 = vpop.f32.mrb[0].mxu0
    %v2307 = vadd.f32 0.0, %v2306
    %v2308 = vpop.f32.mrb[0].mxu0
    %2309 = vdwg.mxu0
    %v2310 = vadd.f32 %v2221, %v2302
    %v2311 = vadd.f32 %v2226, %v2307
    %v2313 = vsel %vm194, %v2055, 0
    %v2316 = vsel %vm194, %v2060, 0
    %2318 = vmatprep.subr.mxu0 0.0
    %2319 = vmatpush1.msra.mxu0 %v1349
    %2320 = vmatprep.subr.mxu0 0.0
    %2321 = vmatpush1.msra.mxu0 %v1350
    %2322 = vmatprep.subr.mxu0 0.0
    %2323 = vmatpush1.msra.mxu0 %v1351
    %2324 = vmatprep.subr.mxu0 0.0
    %2325 = vmatpush1.msra.mxu0 %v1352
    %2326 = vmatprep.subr.mxu0 0.0
    %2327 = vmatpush1.msra.mxu0 0.0
    %2328 = vmatprep.subr.mxu0 0.0
    %2329 = vmatpush1.msra.mxu0 0.0
    %2330 = vmatprep.subr.mxu0 0.0
    %2331 = vmatpush1.msra.mxu0 0.0
    %2332 = vmatprep.subr.mxu0 0.0
    %2333 = vmatpush1.msra.mxu0 0.0
    %2334 = vmatprep.subr.mxu0 0.0
    %2335 = vmatpush1.msra.mxu0 0.0
    %2336 = vmatprep.subr.mxu0 0.0
    %2337 = vmatpush1.msra.mxu0 0.0
    %2338 = vmatprep.subr.mxu0 0.0
    %2339 = vmatpush1.msra.mxu0 0.0
    %2340 = vmatprep.subr.mxu0 0.0
    %2341 = vmatpush1.msra.mxu0 0.0
    %2342 = vmatprep.subr.mxu0 0.0
    %2343 = vmatpush1.msra.mxu0 0.0
    %2344 = vmatprep.subr.mxu0 0.0
    %2345 = vmatpush1.msra.mxu0 0.0
    %2346 = vmatprep.subr.mxu0 0.0
    %2347 = vmatpush1.msra.mxu0 0.0
    %2348 = vmatprep.subr.mxu0 0.0
    %2349 = vmatpush1.msra.mxu0 0.0
    %2350 = vmatprep.subr.mxu0 0.0
    %2351 = vmatpush1.msra.mxu0 0.0
    %2352 = vmatprep.subr.mxu0 0.0
    %2353 = vmatpush1.msra.mxu0 0.0
    %2354 = vmatprep.subr.mxu0 0.0
    %2355 = vmatpush1.msra.mxu0 0.0
    %2356 = vmatprep.subr.mxu0 0.0
    %2357 = vmatpush1.msra.mxu0 0.0
    %2358 = vmatprep.subr.mxu0 0.0
    %2359 = vmatpush1.msra.mxu0 0.0
    %2360 = vmatprep.subr.mxu0 0.0
    %2361 = vmatpush1.msra.mxu0 0.0
    %2362 = vmatprep.subr.mxu0 0.0
    %2363 = vmatpush1.msra.mxu0 0.0
    %2364 = vmatprep.subr.mxu0 0.0
    %2365 = vmatpush1.msra.mxu0 0.0
    %2366 = vmatprep.subr.mxu0 0.0
    %2367 = vmatpush1.msra.mxu0 0.0
    %2368 = vmatprep.subr.mxu0 0.0
    %2369 = vmatpush1.msra.mxu0 0.0
    %2370 = vmatprep.subr.mxu0 0.0
    %2371 = vmatpush1.msra.mxu0 0.0
    %2372 = vmatprep.subr.mxu0 0.0
    %2373 = vmatpush1.msra.mxu0 0.0
    %2374 = vmatprep.subr.mxu0 0.0
    %2375 = vmatpush1.msra.mxu0 0.0
    %2376 = vmatprep.subr.mxu0 0.0
    %2377 = vmatpush1.msra.mxu0 0.0
    %2378 = vmatprep.subr.mxu0 0.0
    %2379 = vmatpush1.msra.mxu0 0.0
    %2380 = vmatprep.subr.mxu0 0.0
    %2381 = vmatpush1.msra.mxu0 0.0
    %2382 = vmatprep.mubr.f32.mxu0 0.0
    %2383 = vmatmul.mubr.f32.gmra.mrb[0].mxu0 %v2313
    %v2384 = vpop.f32.mrb[0].mxu0
    %v2385 = vadd.f32 0.0, %v2384
    %v2386 = vpop.f32.mrb[0].mxu0
    %2387 = vmatprep.mubr.f32.mxu0 0.0
    %2388 = vmatmul.mubr.f32.gmra.mrb[0].mxu0 %v2316
    %v2389 = vpop.f32.mrb[0].mxu0
    %v2390 = vadd.f32 0.0, %v2389
    %v2391 = vpop.f32.mrb[0].mxu0
    %2392 = vdwg.mxu0
    %v2393 = vadd.f32 %v2310, %v2385
    %v2394 = vadd.f32 %v2311, %v2390
    %v2396 = vsel %vm194, %v2065, 0
    %v2399 = vsel %vm194, %v2070, 0
    %2401 = vmatprep.subr.mxu0 0.0
    %2402 = vmatpush1.msra.mxu0 %v1353
    %2403 = vmatprep.subr.mxu0 0.0
    %2404 = vmatpush1.msra.mxu0 %v1354
    %2405 = vmatprep.subr.mxu0 0.0
    %2406 = vmatpush1.msra.mxu0 %v1355
    %2407 = vmatprep.subr.mxu0 0.0
    %2408 = vmatpush1.msra.mxu0 %v1356
    %2409 = vmatprep.subr.mxu0 0.0
    %2410 = vmatpush1.msra.mxu0 0.0
    %2411 = vmatprep.subr.mxu0 0.0
    %2412 = vmatpush1.msra.mxu0 0.0
    %2413 = vmatprep.subr.mxu0 0.0
    %2414 = vmatpush1.msra.mxu0 0.0
    %2415 = vmatprep.subr.mxu0 0.0
    %2416 = vmatpush1.msra.mxu0 0.0
    %2417 = vmatprep.subr.mxu0 0.0
    %2418 = vmatpush1.msra.mxu0 0.0
    %2419 = vmatprep.subr.mxu0 0.0
    %2420 = vmatpush1.msra.mxu0 0.0
    %2421 = vmatprep.subr.mxu0 0.0
    %2422 = vmatpush1.msra.mxu0 0.0
    %2423 = vmatprep.subr.mxu0 0.0
    %2424 = vmatpush1.msra.mxu0 0.0
    %2425 = vmatprep.subr.mxu0 0.0
    %2426 = vmatpush1.msra.mxu0 0.0
    %2427 = vmatprep.subr.mxu0 0.0
    %2428 = vmatpush1.msra.mxu0 0.0
    %2429 = vmatprep.subr.mxu0 0.0
    %2430 = vmatpush1.msra.mxu0 0.0
    %2431 = vmatprep.subr.mxu0 0.0
    %2432 = vmatpush1.msra.mxu0 0.0
    %2433 = vmatprep.subr.mxu0 0.0
    %2434 = vmatpush1.msra.mxu0 0.0
    %2435 = vmatprep.subr.mxu0 0.0
    %2436 = vmatpush1.msra.mxu0 0.0
    %2437 = vmatprep.subr.mxu0 0.0
    %2438 = vmatpush1.msra.mxu0 0.0
    %2439 = vmatprep.subr.mxu0 0.0
    %2440 = vmatpush1.msra.mxu0 0.0
    %2441 = vmatprep.subr.mxu0 0.0
    %2442 = vmatpush1.msra.mxu0 0.0
    %2443 = vmatprep.subr.mxu0 0.0
    %2444 = vmatpush1.msra.mxu0 0.0
    %2445 = vmatprep.subr.mxu0 0.0
    %2446 = vmatpush1.msra.mxu0 0.0
    %2447 = vmatprep.subr.mxu0 0.0
    %2448 = vmatpush1.msra.mxu0 0.0
    %2449 = vmatprep.subr.mxu0 0.0
    %2450 = vmatpush1.msra.mxu0 0.0
    %2451 = vmatprep.subr.mxu0 0.0
    %2452 = vmatpush1.msra.mxu0 0.0
    %2453 = vmatprep.subr.mxu0 0.0
    %2454 = vmatpush1.msra.mxu0 0.0
    %2455 = vmatprep.subr.mxu0 0.0
    %2456 = vmatpush1.msra.mxu0 0.0
    %2457 = vmatprep.subr.mxu0 0.0
    %2458 = vmatpush1.msra.mxu0 0.0
    %2459 = vmatprep.subr.mxu0 0.0
    %2460 = vmatpush1.msra.mxu0 0.0
    %2461 = vmatprep.subr.mxu0 0.0
    %2462 = vmatpush1.msra.mxu0 0.0
    %2463 = vmatprep.subr.mxu0 0.0
    %2464 = vmatpush1.msra.mxu0 0.0
    %2465 = vmatprep.mubr.f32.mxu0 0.0
    %2466 = vmatmul.mubr.f32.gmra.mrb[0].mxu0 %v2396
    %v2467 = vpop.f32.mrb[0].mxu0
    %v2468 = vadd.f32 0.0, %v2467
    %v2469 = vpop.f32.mrb[0].mxu0
    %2470 = vmatprep.mubr.f32.mxu0 0.0
    %2471 = vmatmul.mubr.f32.gmra.mrb[0].mxu0 %v2399
    %v2472 = vpop.f32.mrb[0].mxu0
    %v2473 = vadd.f32 0.0, %v2472
    %v2474 = vpop.f32.mrb[0].mxu0
    %2475 = vdwg.mxu0
    %v2476 = vadd.f32 %v2393, %v2468
    %v2477 = vadd.f32 %v2394, %v2473
    %v2479 = vsel %vm617, %v2476, 0
    %v2482 = vsel %vm617, %v2477, 0
    %2484 = vmatprep.subr.mxu0 0.0
    %2485 = vmatpush1.msra.mxu0 %v1889
    %2486 = vmatprep.subr.mxu0 0.0
    %2487 = vmatpush1.msra.mxu0 0.0
    %2488 = vmatprep.subr.mxu0 0.0
    %2489 = vmatpush1.msra.mxu0 0.0
    %2490 = vmatprep.subr.mxu0 0.0
    %2491 = vmatpush1.msra.mxu0 0.0
    %2492 = vmatprep.subr.mxu0 0.0
    %2493 = vmatpush1.msra.mxu0 0.0
    %2494 = vmatprep.subr.mxu0 0.0
    %2495 = vmatpush1.msra.mxu0 0.0
    %2496 = vmatprep.subr.mxu0 0.0
    %2497 = vmatpush1.msra.mxu0 0.0
    %2498 = vmatprep.subr.mxu0 0.0
    %2499 = vmatpush1.msra.mxu0 0.0
    %2500 = vmatprep.subr.mxu0 0.0
    %2501 = vmatpush1.msra.mxu0 0.0
    %2502 = vmatprep.subr.mxu0 0.0
    %2503 = vmatpush1.msra.mxu0 0.0
    %2504 = vmatprep.subr.mxu0 0.0
    %2505 = vmatpush1.msra.mxu0 0.0
    %2506 = vmatprep.subr.mxu0 0.0
    %2507 = vmatpush1.msra.mxu0 0.0
    %2508 = vmatprep.subr.mxu0 0.0
    %2509 = vmatpush1.msra.mxu0 0.0
    %2510 = vmatprep.subr.mxu0 0.0
    %2511 = vmatpush1.msra.mxu0 0.0
    %2512 = vmatprep.subr.mxu0 0.0
    %2513 = vmatpush1.msra.mxu0 0.0
    %2514 = vmatprep.subr.mxu0 0.0
    %2515 = vmatpush1.msra.mxu0 0.0
    %2516 = vmatprep.subr.mxu0 0.0
    %2517 = vmatpush1.msra.mxu0 0.0
    %2518 = vmatprep.subr.mxu0 0.0
    %2519 = vmatpush1.msra.mxu0 0.0
    %2520 = vmatprep.subr.mxu0 0.0
    %2521 = vmatpush1.msra.mxu0 0.0
    %2522 = vmatprep.subr.mxu0 0.0
    %2523 = vmatpush1.msra.mxu0 0.0
    %2524 = vmatprep.subr.mxu0 0.0
    %2525 = vmatpush1.msra.mxu0 0.0
    %2526 = vmatprep.subr.mxu0 0.0
    %2527 = vmatpush1.msra.mxu0 0.0
    %2528 = vmatprep.subr.mxu0 0.0
    %2529 = vmatpush1.msra.mxu0 0.0
    %2530 = vmatprep.subr.mxu0 0.0
    %2531 = vmatpush1.msra.mxu0 0.0
    %2532 = vmatprep.subr.mxu0 0.0
    %2533 = vmatpush1.msra.mxu0 0.0
    %2534 = vmatprep.subr.mxu0 0.0
    %2535 = vmatpush1.msra.mxu0 0.0
    %2536 = vmatprep.subr.mxu0 0.0
    %2537 = vmatpush1.msra.mxu0 0.0
    %2538 = vmatprep.subr.mxu0 0.0
    %2539 = vmatpush1.msra.mxu0 0.0
    %2540 = vmatprep.subr.mxu0 0.0
    %2541 = vmatpush1.msra.mxu0 0.0
    %2542 = vmatprep.subr.mxu0 0.0
    %2543 = vmatpush1.msra.mxu0 0.0
    %2544 = vmatprep.subr.mxu0 0.0
    %2545 = vmatpush1.msra.mxu0 0.0
    %2546 = vmatprep.subr.mxu0 0.0
    %2547 = vmatpush1.msra.mxu0 0.0
    %2548 = vmatprep.mubr.f32.mxu0 0.0
    %2549 = vmatmul.mubr.f32.gmra.mrb[0].mxu0 %v2479
    %v2550 = vpop.f32.mrb[0].mxu0
    %v2551 = vadd.f32 %v1880, %v2550
    %v2552 = vpop.f32.mrb[0].mxu0
    %2553 = vmatprep.mubr.f32.mxu0 0.0
    %2554 = vmatmul.mubr.f32.gmra.mrb[0].mxu0 %v2482
    %v2555 = vpop.f32.mrb[0].mxu0
    %v2556 = vadd.f32 %v1880, %v2555
    %v2557 = vpop.f32.mrb[0].mxu0
    %2558 = vdwg.mxu0
    %v2559 = vmax.f32 %v2551, 0.0
    %v2560 = vmax.f32 %v2556, 0.0
    %s2561 = scalar_lea.vmem %s3, 256
    %v2562 = vld [vmem:[%s2561] sm:$0xff]
    %v2563 = vld [vmem:[%s2561 + $0x8] sm:$0xff]
    %v2564 = vld [vmem:[%s2561 + $0x10] sm:$0xff]
    %v2565 = vld [vmem:[%s2561 + $0x18] sm:$0xff]
    %v2566 = vld [vmem:[%s2561 + $0x20] sm:$0xff]
    %v2567 = vld [vmem:[%s2561 + $0x28] sm:$0xff]
    %v2568 = vld [vmem:[%s2561 + $0x30] sm:$0xff]
    %v2569 = vld [vmem:[%s2561 + $0x38] sm:$0xff]
    %v2570 = vld [vmem:[%s2561 + $0x40] sm:$0xff]
    %v2571 = vld [vmem:[%s2561 + $0x48] sm:$0xff]
    %v2572 = vld [vmem:[%s2561 + $0x50] sm:$0xff]
    %v2573 = vld [vmem:[%s2561 + $0x58] sm:$0xff]
    %v2574 = vld [vmem:[%s2561 + $0x60] sm:$0xff]
    %v2575 = vld [vmem:[%s2561 + $0x68] sm:$0xff]
    %v2576 = vld [vmem:[%s2561 + $0x70] sm:$0xff]
    %v2577 = vld [vmem:[%s2561 + $0x78] sm:$0xff]
    %s2578 = scalar_lea.vmem %s4, 8
    %v2579 = vld [vmem:[%s2578] sm:$0xf]
    %s2580 = scalar_lea.vmem %s5, 16
    %v2581 = vld [vmem:[%s2580] sm:$0x3f]
    %s2582 = scalar_lea.vmem %s6, 2
    %v2583 = vld [vmem:[%s2582] sm:$0x1]
    %2584 = vmatprep.subr.mxu0 0.0
    %2585 = vmatpush1.msra.mxu0 %v1966
    %2586 = vmatprep.subr.mxu0 0.0
    %2587 = vmatpush1.msra.mxu0 %v1967
    %2588 = vmatprep.subr.mxu0 0.0
    %2589 = vmatpush1.msra.mxu0 0.0
    %2590 = vmatprep.subr.mxu0 0.0
    %2591 = vmatpush1.msra.mxu0 0.0
    %2592 = vmatprep.subr.mxu0 0.0
    %2593 = vmatpush1.msra.mxu0 0.0
    %2594 = vmatprep.subr.mxu0 0.0
    %2595 = vmatpush1.msra.mxu0 0.0
    %2596 = vmatprep.subr.mxu0 0.0
    %2597 = vmatpush1.msra.mxu0 0.0
    %2598 = vmatprep.subr.mxu0 0.0
    %2599 = vmatpush1.msra.mxu0 0.0
    %2600 = vmatprep.subr.mxu0 0.0
    %2601 = vmatpush1.msra.mxu0 0.0
    %2602 = vmatprep.subr.mxu0 0.0
    %2603 = vmatpush1.msra.mxu0 0.0
    %2604 = vmatprep.subr.mxu0 0.0
    %2605 = vmatpush1.msra.mxu0 0.0
    %2606 = vmatprep.subr.mxu0 0.0
    %2607 = vmatpush1.msra.mxu0 0.0
    %2608 = vmatprep.subr.mxu0 0.0
    %2609 = vmatpush1.msra.mxu0 0.0
    %2610 = vmatprep.subr.mxu0 0.0
    %2611 = vmatpush1.msra.mxu0 0.0
    %2612 = vmatprep.subr.mxu0 0.0
    %2613 = vmatpush1.msra.mxu0 0.0
    %2614 = vmatprep.subr.mxu0 0.0
    %2615 = vmatpush1.msra.mxu0 0.0
    %2616 = vmatprep.subr.mxu0 0.0
    %2617 = vmatpush1.msra.mxu0 0.0
    %2618 = vmatprep.subr.mxu0 0.0
    %2619 = vmatpush1.msra.mxu0 0.0
    %2620 = vmatprep.subr.mxu0 0.0
    %2621 = vmatpush1.msra.mxu0 0.0
    %2622 = vmatprep.subr.mxu0 0.0
    %2623 = vmatpush1.msra.mxu0 0.0
    %2624 = vmatprep.subr.mxu0 0.0
    %2625 = vmatpush1.msra.mxu0 0.0
    %2626 = vmatprep.subr.mxu0 0.0
    %2627 = vmatpush1.msra.mxu0 0.0
    %2628 = vmatprep.subr.mxu0 0.0
    %2629 = vmatpush1.msra.mxu0 0.0
    %2630 = vmatprep.subr.mxu0 0.0
    %2631 = vmatpush1.msra.mxu0 0.0
    %2632 = vmatprep.subr.mxu0 0.0
    %2633 = vmatpush1.msra.mxu0 0.0
    %2634 = vmatprep.subr.mxu0 0.0
    %2635 = vmatpush1.msra.mxu0 0.0
    %2636 = vmatprep.subr.mxu0 0.0
    %2637 = vmatpush1.msra.mxu0 0.0
    %2638 = vmatprep.subr.mxu0 0.0
    %2639 = vmatpush1.msra.mxu0 0.0
    %2640 = vmatprep.subr.mxu0 0.0
    %2641 = vmatpush1.msra.mxu0 0.0
    %2642 = vmatprep.subr.mxu0 0.0
    %2643 = vmatpush1.msra.mxu0 0.0
    %2644 = vmatprep.subr.mxu0 0.0
    %2645 = vmatpush1.msra.mxu0 0.0
    %2646 = vmatprep.subr.mxu0 0.0
    %2647 = vmatpush1.msra.mxu0 0.0
    %2648 = vmatprep.mubr.f32.mxu0 0.0
    %2649 = vmatmul.mubr.f32.gmra.mrb[0].mxu0 %v64
    %v2650 = vpop.f32.mrb[0].mxu0
    %v2651 = vadd.f32 0.0, %v2650
    %v2652 = vpop.f32.mrb[0].mxu0
    %2653 = vmatprep.mubr.f32.mxu0 0.0
    %2654 = vmatmul.mubr.f32.gmra.mrb[0].mxu0 %v67
    %v2655 = vpop.f32.mrb[0].mxu0
    %v2656 = vadd.f32 0.0, %v2655
    %v2657 = vpop.f32.mrb[0].mxu0
    %2658 = vmatprep.mubr.f32.mxu0 0.0
    %2659 = vmatmul.mubr.f32.gmra.mrb[0].mxu0 %v70
    %v2660 = vpop.f32.mrb[0].mxu0
    %v2661 = vadd.f32 0.0, %v2660
    %v2662 = vpop.f32.mrb[0].mxu0
    %2663 = vmatprep.mubr.f32.mxu0 0.0
    %2664 = vmatmul.mubr.f32.gmra.mrb[0].mxu0 %v73
    %v2665 = vpop.f32.mrb[0].mxu0
    %v2666 = vadd.f32 0.0, %v2665
    %v2667 = vpop.f32.mrb[0].mxu0
    %2668 = vmatprep.mubr.f32.mxu0 0.0
    %2669 = vmatmul.mubr.f32.gmra.mrb[0].mxu0 %v76
    %v2670 = vpop.f32.mrb[0].mxu0
    %v2671 = vadd.f32 0.0, %v2670
    %v2672 = vpop.f32.mrb[0].mxu0
    %2673 = vmatprep.mubr.f32.mxu0 0.0
    %2674 = vmatmul.mubr.f32.gmra.mrb[0].mxu0 %v79
    %v2675 = vpop.f32.mrb[0].mxu0
    %v2676 = vadd.f32 0.0, %v2675
    %v2677 = vpop.f32.mrb[0].mxu0
    %2678 = vmatprep.mubr.f32.mxu0 0.0
    %2679 = vmatmul.mubr.f32.gmra.mrb[0].mxu0 %v82
    %v2680 = vpop.f32.mrb[0].mxu0
    %v2681 = vadd.f32 0.0, %v2680
    %v2682 = vpop.f32.mrb[0].mxu0
    %2683 = vmatprep.mubr.f32.mxu0 0.0
    %2684 = vmatmul.mubr.f32.gmra.mrb[0].mxu0 %v85
    %v2685 = vpop.f32.mrb[0].mxu0
    %v2686 = vadd.f32 0.0, %v2685
    %v2687 = vpop.f32.mrb[0].mxu0
    %2688 = vdwg.mxu0
    %v2690 = vsel %vm194, %v2651, 0
    %v2693 = vsel %vm194, %v2656, 0
    %2695 = vmatprep.subr.mxu0 0.0
    %2696 = vmatpush1.msra.mxu0 %v2562
    %2697 = vmatprep.subr.mxu0 0.0
    %2698 = vmatpush1.msra.mxu0 %v2563
    %2699 = vmatprep.subr.mxu0 0.0
    %2700 = vmatpush1.msra.mxu0 %v2564
    %2701 = vmatprep.subr.mxu0 0.0
    %2702 = vmatpush1.msra.mxu0 %v2565
    %2703 = vmatprep.subr.mxu0 0.0
    %2704 = vmatpush1.msra.mxu0 0.0
    %2705 = vmatprep.subr.mxu0 0.0
    %2706 = vmatpush1.msra.mxu0 0.0
    %2707 = vmatprep.subr.mxu0 0.0
    %2708 = vmatpush1.msra.mxu0 0.0
    %2709 = vmatprep.subr.mxu0 0.0
    %2710 = vmatpush1.msra.mxu0 0.0
    %2711 = vmatprep.subr.mxu0 0.0
    %2712 = vmatpush1.msra.mxu0 0.0
    %2713 = vmatprep.subr.mxu0 0.0
    %2714 = vmatpush1.msra.mxu0 0.0
    %2715 = vmatprep.subr.mxu0 0.0
    %2716 = vmatpush1.msra.mxu0 0.0
    %2717 = vmatprep.subr.mxu0 0.0
    %2718 = vmatpush1.msra.mxu0 0.0
    %2719 = vmatprep.subr.mxu0 0.0
    %2720 = vmatpush1.msra.mxu0 0.0
    %2721 = vmatprep.subr.mxu0 0.0
    %2722 = vmatpush1.msra.mxu0 0.0
    %2723 = vmatprep.subr.mxu0 0.0
    %2724 = vmatpush1.msra.mxu0 0.0
    %2725 = vmatprep.subr.mxu0 0.0
    %2726 = vmatpush1.msra.mxu0 0.0
    %2727 = vmatprep.subr.mxu0 0.0
    %2728 = vmatpush1.msra.mxu0 0.0
    %2729 = vmatprep.subr.mxu0 0.0
    %2730 = vmatpush1.msra.mxu0 0.0
    %2731 = vmatprep.subr.mxu0 0.0
    %2732 = vmatpush1.msra.mxu0 0.0
    %2733 = vmatprep.subr.mxu0 0.0
    %2734 = vmatpush1.msra.mxu0 0.0
    %2735 = vmatprep.subr.mxu0 0.0
    %2736 = vmatpush1.msra.mxu0 0.0
    %2737 = vmatprep.subr.mxu0 0.0
    %2738 = vmatpush1.msra.mxu0 0.0
    %2739 = vmatprep.subr.mxu0 0.0
    %2740 = vmatpush1.msra.mxu0 0.0
    %2741 = vmatprep.subr.mxu0 0.0
    %2742 = vmatpush1.msra.mxu0 0.0
    %2743 = vmatprep.subr.mxu0 0.0
    %2744 = vmatpush1.msra.mxu0 0.0
    %2745 = vmatprep.subr.mxu0 0.0
    %2746 = vmatpush1.msra.mxu0 0.0
    %2747 = vmatprep.subr.mxu0 0.0
    %2748 = vmatpush1.msra.mxu0 0.0
    %2749 = vmatprep.subr.mxu0 0.0
    %2750 = vmatpush1.msra.mxu0 0.0
    %2751 = vmatprep.subr.mxu0 0.0
    %2752 = vmatpush1.msra.mxu0 0.0
    %2753 = vmatprep.subr.mxu0 0.0
    %2754 = vmatpush1.msra.mxu0 0.0
    %2755 = vmatprep.subr.mxu0 0.0
    %2756 = vmatpush1.msra.mxu0 0.0
    %2757 = vmatprep.subr.mxu0 0.0
    %2758 = vmatpush1.msra.mxu0 0.0
    %2759 = vmatprep.mubr.f32.mxu0 0.0
    %2760 = vmatmul.mubr.f32.gmra.mrb[0].mxu0 %v2690
    %v2761 = vpop.f32.mrb[0].mxu0
    %v2762 = vadd.f32 0.0, %v2761
    %v2763 = vpop.f32.mrb[0].mxu0
    %2764 = vmatprep.mubr.f32.mxu0 0.0
    %2765 = vmatmul.mubr.f32.gmra.mrb[0].mxu0 %v2693
    %v2766 = vpop.f32.mrb[0].mxu0
    %v2767 = vadd.f32 0.0, %v2766
    %v2768 = vpop.f32.mrb[0].mxu0
    %2769 = vdwg.mxu0
    %v2771 = vsel %vm283, %v2579, 0
    %2773 = vmatprep.subr.mxu0 0.0
    %2774 = vmatpush1.msra.mxu0 %v2771
    %2775 = vmatprep.subr.mxu0 0.0
    %2776 = vmatpush1.msra.mxu0 0.0
    %2777 = vmatprep.subr.mxu0 0.0
    %2778 = vmatpush1.msra.mxu0 0.0
    %2779 = vmatprep.subr.mxu0 0.0
    %2780 = vmatpush1.msra.mxu0 0.0
    %2781 = vmatprep.subr.mxu0 0.0
    %2782 = vmatpush1.msra.mxu0 0.0
    %2783 = vmatprep.subr.mxu0 0.0
    %2784 = vmatpush1.msra.mxu0 0.0
    %2785 = vmatprep.subr.mxu0 0.0
    %2786 = vmatpush1.msra.mxu0 0.0
    %2787 = vmatprep.subr.mxu0 0.0
    %2788 = vmatpush1.msra.mxu0 0.0
    %2789 = vmatprep.subr.mxu0 0.0
    %2790 = vmatpush1.msra.mxu0 0.0
    %2791 = vmatprep.subr.mxu0 0.0
    %2792 = vmatpush1.msra.mxu0 0.0
    %2793 = vmatprep.subr.mxu0 0.0
    %2794 = vmatpush1.msra.mxu0 0.0
    %2795 = vmatprep.subr.mxu0 0.0
    %2796 = vmatpush1.msra.mxu0 0.0
    %2797 = vmatprep.subr.mxu0 0.0
    %2798 = vmatpush1.msra.mxu0 0.0
    %2799 = vmatprep.subr.mxu0 0.0
    %2800 = vmatpush1.msra.mxu0 0.0
    %2801 = vmatprep.subr.mxu0 0.0
    %2802 = vmatpush1.msra.mxu0 0.0
    %2803 = vmatprep.subr.mxu0 0.0
    %2804 = vmatpush1.msra.mxu0 0.0
    %2805 = vmatprep.subr.mxu0 0.0
    %2806 = vmatpush1.msra.mxu0 0.0
    %2807 = vmatprep.subr.mxu0 0.0
    %2808 = vmatpush1.msra.mxu0 0.0
    %2809 = vmatprep.subr.mxu0 0.0
    %2810 = vmatpush1.msra.mxu0 0.0
    %2811 = vmatprep.subr.mxu0 0.0
    %2812 = vmatpush1.msra.mxu0 0.0
    %2813 = vmatprep.subr.mxu0 0.0
    %2814 = vmatpush1.msra.mxu0 0.0
    %2815 = vmatprep.subr.mxu0 0.0
    %2816 = vmatpush1.msra.mxu0 0.0
    %2817 = vmatprep.subr.mxu0 0.0
    %2818 = vmatpush1.msra.mxu0 0.0
    %2819 = vmatprep.subr.mxu0 0.0
    %2820 = vmatpush1.msra.mxu0 0.0
    %2821 = vmatprep.subr.mxu0 0.0
    %2822 = vmatpush1.msra.mxu0 0.0
    %2823 = vmatprep.subr.mxu0 0.0
    %2824 = vmatpush1.msra.mxu0 0.0
    %2825 = vmatprep.subr.mxu0 0.0
    %2826 = vmatpush1.msra.mxu0 0.0
    %2827 = vmatprep.subr.mxu0 0.0
    %2828 = vmatpush1.msra.mxu0 0.0
    %2829 = vmatprep.subr.mxu0 0.0
    %2830 = vmatpush1.msra.mxu0 0.0
    %2831 = vmatprep.subr.mxu0 0.0
    %2832 = vmatpush1.msra.mxu0 0.0
    %2833 = vmatprep.subr.mxu0 0.0
    %2834 = vmatpush1.msra.mxu0 0.0
    %2835 = vmatprep.subr.mxu0 0.0
    %2836 = vmatpush1.msra.mxu0 0.0
    %2837 = vmatprep.mubr.f32.mxu0 0.0
    %2838 = vmatmul.mubr.f32.gmra.mrb[0].mxu0 %v278
    %v2839 = vpop.f32.mrb[0].mxu0
    %v2840 = vadd.f32 %v2762, %v2839
    %v2841 = vpop.f32.mrb[0].mxu0
    %2842 = vmatprep.mubr.f32.mxu0 0.0
    %2843 = vmatmul.mubr.f32.gmra.mrb[0].mxu0 %v281
    %v2844 = vpop.f32.mrb[0].mxu0
    %v2845 = vadd.f32 %v2767, %v2844
    %v2846 = vpop.f32.mrb[0].mxu0
    %2847 = vdwg.mxu0
    %v2849 = vsel %vm194, %v2661, 0
    %v2852 = vsel %vm194, %v2666, 0
    %2854 = vmatprep.subr.mxu0 0.0
    %2855 = vmatpush1.msra.mxu0 %v2566
    %2856 = vmatprep.subr.mxu0 0.0
    %2857 = vmatpush1.msra.mxu0 %v2567
    %2858 = vmatprep.subr.mxu0 0.0
    %2859 = vmatpush1.msra.mxu0 %v2568
    %2860 = vmatprep.subr.mxu0 0.0
    %2861 = vmatpush1.msra.mxu0 %v2569
    %2862 = vmatprep.subr.mxu0 0.0
    %2863 = vmatpush1.msra.mxu0 0.0
    %2864 = vmatprep.subr.mxu0 0.0
    %2865 = vmatpush1.msra.mxu0 0.0
    %2866 = vmatprep.subr.mxu0 0.0
    %2867 = vmatpush1.msra.mxu0 0.0
    %2868 = vmatprep.subr.mxu0 0.0
    %2869 = vmatpush1.msra.mxu0 0.0
    %2870 = vmatprep.subr.mxu0 0.0
    %2871 = vmatpush1.msra.mxu0 0.0
    %2872 = vmatprep.subr.mxu0 0.0
    %2873 = vmatpush1.msra.mxu0 0.0
    %2874 = vmatprep.subr.mxu0 0.0
    %2875 = vmatpush1.msra.mxu0 0.0
    %2876 = vmatprep.subr.mxu0 0.0
    %2877 = vmatpush1.msra.mxu0 0.0
    %2878 = vmatprep.subr.mxu0 0.0
    %2879 = vmatpush1.msra.mxu0 0.0
    %2880 = vmatprep.subr.mxu0 0.0
    %2881 = vmatpush1.msra.mxu0 0.0
    %2882 = vmatprep.subr.mxu0 0.0
    %2883 = vmatpush1.msra.mxu0 0.0
    %2884 = vmatprep.subr.mxu0 0.0
    %2885 = vmatpush1.msra.mxu0 0.0
    %2886 = vmatprep.subr.mxu0 0.0
    %2887 = vmatpush1.msra.mxu0 0.0
    %2888 = vmatprep.subr.mxu0 0.0
    %2889 = vmatpush1.msra.mxu0 0.0
    %2890 = vmatprep.subr.mxu0 0.0
    %2891 = vmatpush1.msra.mxu0 0.0
    %2892 = vmatprep.subr.mxu0 0.0
    %2893 = vmatpush1.msra.mxu0 0.0
    %2894 = vmatprep.subr.mxu0 0.0
    %2895 = vmatpush1.msra.mxu0 0.0
    %2896 = vmatprep.subr.mxu0 0.0
    %2897 = vmatpush1.msra.mxu0 0.0
    %2898 = vmatprep.subr.mxu0 0.0
    %2899 = vmatpush1.msra.mxu0 0.0
    %2900 = vmatprep.subr.mxu0 0.0
    %2901 = vmatpush1.msra.mxu0 0.0
    %2902 = vmatprep.subr.mxu0 0.0
    %2903 = vmatpush1.msra.mxu0 0.0
    %2904 = vmatprep.subr.mxu0 0.0
    %2905 = vmatpush1.msra.mxu0 0.0
    %2906 = vmatprep.subr.mxu0 0.0
    %2907 = vmatpush1.msra.mxu0 0.0
    %2908 = vmatprep.subr.mxu0 0.0
    %2909 = vmatpush1.msra.mxu0 0.0
    %2910 = vmatprep.subr.mxu0 0.0
    %2911 = vmatpush1.msra.mxu0 0.0
    %2912 = vmatprep.subr.mxu0 0.0
    %2913 = vmatpush1.msra.mxu0 0.0
    %2914 = vmatprep.subr.mxu0 0.0
    %2915 = vmatpush1.msra.mxu0 0.0
    %2916 = vmatprep.subr.mxu0 0.0
    %2917 = vmatpush1.msra.mxu0 0.0
    %2918 = vmatprep.mubr.f32.mxu0 0.0
    %2919 = vmatmul.mubr.f32.gmra.mrb[0].mxu0 %v2849
    %v2920 = vpop.f32.mrb[0].mxu0
    %v2921 = vadd.f32 0.0, %v2920
    %v2922 = vpop.f32.mrb[0].mxu0
    %2923 = vmatprep.mubr.f32.mxu0 0.0
    %2924 = vmatmul.mubr.f32.gmra.mrb[0].mxu0 %v2852
    %v2925 = vpop.f32.mrb[0].mxu0
    %v2926 = vadd.f32 0.0, %v2925
    %v2927 = vpop.f32.mrb[0].mxu0
    %2928 = vdwg.mxu0
    %v2929 = vadd.f32 %v2840, %v2921
    %v2930 = vadd.f32 %v2845, %v2926
    %v2932 = vsel %vm194, %v2671, 0
    %v2935 = vsel %vm194, %v2676, 0
    %2937 = vmatprep.subr.mxu0 0.0
    %2938 = vmatpush1.msra.mxu0 %v2570
    %2939 = vmatprep.subr.mxu0 0.0
    %2940 = vmatpush1.msra.mxu0 %v2571
    %2941 = vmatprep.subr.mxu0 0.0
    %2942 = vmatpush1.msra.mxu0 %v2572
    %2943 = vmatprep.subr.mxu0 0.0
    %2944 = vmatpush1.msra.mxu0 %v2573
    %2945 = vmatprep.subr.mxu0 0.0
    %2946 = vmatpush1.msra.mxu0 0.0
    %2947 = vmatprep.subr.mxu0 0.0
    %2948 = vmatpush1.msra.mxu0 0.0
    %2949 = vmatprep.subr.mxu0 0.0
    %2950 = vmatpush1.msra.mxu0 0.0
    %2951 = vmatprep.subr.mxu0 0.0
    %2952 = vmatpush1.msra.mxu0 0.0
    %2953 = vmatprep.subr.mxu0 0.0
    %2954 = vmatpush1.msra.mxu0 0.0
    %2955 = vmatprep.subr.mxu0 0.0
    %2956 = vmatpush1.msra.mxu0 0.0
    %2957 = vmatprep.subr.mxu0 0.0
    %2958 = vmatpush1.msra.mxu0 0.0
    %2959 = vmatprep.subr.mxu0 0.0
    %2960 = vmatpush1.msra.mxu0 0.0
    %2961 = vmatprep.subr.mxu0 0.0
    %2962 = vmatpush1.msra.mxu0 0.0
    %2963 = vmatprep.subr.mxu0 0.0
    %2964 = vmatpush1.msra.mxu0 0.0
    %2965 = vmatprep.subr.mxu0 0.0
    %2966 = vmatpush1.msra.mxu0 0.0
    %2967 = vmatprep.subr.mxu0 0.0
    %2968 = vmatpush1.msra.mxu0 0.0
    %2969 = vmatprep.subr.mxu0 0.0
    %2970 = vmatpush1.msra.mxu0 0.0
    %2971 = vmatprep.subr.mxu0 0.0
    %2972 = vmatpush1.msra.mxu0 0.0
    %2973 = vmatprep.subr.mxu0 0.0
    %2974 = vmatpush1.msra.mxu0 0.0
    %2975 = vmatprep.subr.mxu0 0.0
    %2976 = vmatpush1.msra.mxu0 0.0
    %2977 = vmatprep.subr.mxu0 0.0
    %2978 = vmatpush1.msra.mxu0 0.0
    %2979 = vmatprep.subr.mxu0 0.0
    %2980 = vmatpush1.msra.mxu0 0.0
    %2981 = vmatprep.subr.mxu0 0.0
    %2982 = vmatpush1.msra.mxu0 0.0
    %2983 = vmatprep.subr.mxu0 0.0
    %2984 = vmatpush1.msra.mxu0 0.0
    %2985 = vmatprep.subr.mxu0 0.0
    %2986 = vmatpush1.msra.mxu0 0.0
    %2987 = vmatprep.subr.mxu0 0.0
    %2988 = vmatpush1.msra.mxu0 0.0
    %2989 = vmatprep.subr.mxu0 0.0
    %2990 = vmatpush1.msra.mxu0 0.0
    %2991 = vmatprep.subr.mxu0 0.0
    %2992 = vmatpush1.msra.mxu0 0.0
    %2993 = vmatprep.subr.mxu0 0.0
    %2994 = vmatpush1.msra.mxu0 0.0
    %2995 = vmatprep.subr.mxu0 0.0
    %2996 = vmatpush1.msra.mxu0 0.0
    %2997 = vmatprep.subr.mxu0 0.0
    %2998 = vmatpush1.msra.mxu0 0.0
    %2999 = vmatprep.subr.mxu0 0.0
    %3000 = vmatpush1.msra.mxu0 0.0
    %3001 = vmatprep.mubr.f32.mxu0 0.0
    %3002 = vmatmul.mubr.f32.gmra.mrb[0].mxu0 %v2932
    %v3003 = vpop.f32.mrb[0].mxu0
    %v3004 = vadd.f32 0.0, %v3003
    %v3005 = vpop.f32.mrb[0].mxu0
    %3006 = vmatprep.mubr.f32.mxu0 0.0
    %3007 = vmatmul.mubr.f32.gmra.mrb[0].mxu0 %v2935
    %v3008 = vpop.f32.mrb[0].mxu0
    %v3009 = vadd.f32 0.0, %v3008
    %v3010 = vpop.f32.mrb[0].mxu0
    %3011 = vdwg.mxu0
    %v3012 = vadd.f32 %v2929, %v3004
    %v3013 = vadd.f32 %v2930, %v3009
    %v3015 = vsel %vm194, %v2681, 0
    %v3018 = vsel %vm194, %v2686, 0
    %3020 = vmatprep.subr.mxu0 0.0
    %3021 = vmatpush1.msra.mxu0 %v2574
    %3022 = vmatprep.subr.mxu0 0.0
    %3023 = vmatpush1.msra.mxu0 %v2575
    %3024 = vmatprep.subr.mxu0 0.0
    %3025 = vmatpush1.msra.mxu0 %v2576
    %3026 = vmatprep.subr.mxu0 0.0
    %3027 = vmatpush1.msra.mxu0 %v2577
    %3028 = vmatprep.subr.mxu0 0.0
    %3029 = vmatpush1.msra.mxu0 0.0
    %3030 = vmatprep.subr.mxu0 0.0
    %3031 = vmatpush1.msra.mxu0 0.0
    %3032 = vmatprep.subr.mxu0 0.0
    %3033 = vmatpush1.msra.mxu0 0.0
    %3034 = vmatprep.subr.mxu0 0.0
    %3035 = vmatpush1.msra.mxu0 0.0
    %3036 = vmatprep.subr.mxu0 0.0
    %3037 = vmatpush1.msra.mxu0 0.0
    %3038 = vmatprep.subr.mxu0 0.0
    %3039 = vmatpush1.msra.mxu0 0.0
    %3040 = vmatprep.subr.mxu0 0.0
    %3041 = vmatpush1.msra.mxu0 0.0
    %3042 = vmatprep.subr.mxu0 0.0
    %3043 = vmatpush1.msra.mxu0 0.0
    %3044 = vmatprep.subr.mxu0 0.0
    %3045 = vmatpush1.msra.mxu0 0.0
    %3046 = vmatprep.subr.mxu0 0.0
    %3047 = vmatpush1.msra.mxu0 0.0
    %3048 = vmatprep.subr.mxu0 0.0
    %3049 = vmatpush1.msra.mxu0 0.0
    %3050 = vmatprep.subr.mxu0 0.0
    %3051 = vmatpush1.msra.mxu0 0.0
    %3052 = vmatprep.subr.mxu0 0.0
    %3053 = vmatpush1.msra.mxu0 0.0
    %3054 = vmatprep.subr.mxu0 0.0
    %3055 = vmatpush1.msra.mxu0 0.0
    %3056 = vmatprep.subr.mxu0 0.0
    %3057 = vmatpush1.msra.mxu0 0.0
    %3058 = vmatprep.subr.mxu0 0.0
    %3059 = vmatpush1.msra.mxu0 0.0
    %3060 = vmatprep.subr.mxu0 0.0
    %3061 = vmatpush1.msra.mxu0 0.0
    %3062 = vmatprep.subr.mxu0 0.0
    %3063 = vmatpush1.msra.mxu0 0.0
    %3064 = vmatprep.subr.mxu0 0.0
    %3065 = vmatpush1.msra.mxu0 0.0
    %3066 = vmatprep.subr.mxu0 0.0
    %3067 = vmatpush1.msra.mxu0 0.0
    %3068 = vmatprep.subr.mxu0 0.0
    %3069 = vmatpush1.msra.mxu0 0.0
    %3070 = vmatprep.subr.mxu0 0.0
    %3071 = vmatpush1.msra.mxu0 0.0
    %3072 = vmatprep.subr.mxu0 0.0
    %3073 = vmatpush1.msra.mxu0 0.0
    %3074 = vmatprep.subr.mxu0 0.0
    %3075 = vmatpush1.msra.mxu0 0.0
    %3076 = vmatprep.subr.mxu0 0.0
    %3077 = vmatpush1.msra.mxu0 0.0
    %3078 = vmatprep.subr.mxu0 0.0
    %3079 = vmatpush1.msra.mxu0 0.0
    %3080 = vmatprep.subr.mxu0 0.0
    %3081 = vmatpush1.msra.mxu0 0.0
    %3082 = vmatprep.subr.mxu0 0.0
    %3083 = vmatpush1.msra.mxu0 0.0
    %3084 = vmatprep.mubr.f32.mxu0 0.0
    %3085 = vmatmul.mubr.f32.gmra.mrb[0].mxu0 %v3015
    %v3086 = vpop.f32.mrb[0].mxu0
    %v3087 = vadd.f32 0.0, %v3086
    %v3088 = vpop.f32.mrb[0].mxu0
    %3089 = vmatprep.mubr.f32.mxu0 0.0
    %3090 = vmatmul.mubr.f32.gmra.mrb[0].mxu0 %v3018
    %v3091 = vpop.f32.mrb[0].mxu0
    %v3092 = vadd.f32 0.0, %v3091
    %v3093 = vpop.f32.mrb[0].mxu0
    %3094 = vdwg.mxu0
    %v3095 = vadd.f32 %v3012, %v3087
    %v3096 = vadd.f32 %v3013, %v3092
    %v3098 = vlaneseq
    %v3099 = vshrl.u32 %v3098, 7
    %v3100 = vsub.s32 0, %v3099
    %v3101 = vrot.slane %v2583, %v3100
    %v3104 = vsel %vm617, %v3095, 0
    %v3107 = vsel %vm617, %v3096, 0
    %v3110 = vsel %vm624, %v2581, 0
    %3112 = vmatprep.subr.mxu0 0.0
    %3113 = vmatpush1.msra.mxu0 %v3110
    %3114 = vmatprep.subr.mxu0 0.0
    %3115 = vmatpush1.msra.mxu0 0.0
    %3116 = vmatprep.subr.mxu0 0.0
    %3117 = vmatpush1.msra.mxu0 0.0
    %3118 = vmatprep.subr.mxu0 0.0
    %3119 = vmatpush1.msra.mxu0 0.0
    %3120 = vmatprep.subr.mxu0 0.0
    %3121 = vmatpush1.msra.mxu0 0.0
    %3122 = vmatprep.subr.mxu0 0.0
    %3123 = vmatpush1.msra.mxu0 0.0
    %3124 = vmatprep.subr.mxu0 0.0
    %3125 = vmatpush1.msra.mxu0 0.0
    %3126 = vmatprep.subr.mxu0 0.0
    %3127 = vmatpush1.msra.mxu0 0.0
    %3128 = vmatprep.subr.mxu0 0.0
    %3129 = vmatpush1.msra.mxu0 0.0
    %3130 = vmatprep.subr.mxu0 0.0
    %3131 = vmatpush1.msra.mxu0 0.0
    %3132 = vmatprep.subr.mxu0 0.0
    %3133 = vmatpush1.msra.mxu0 0.0
    %3134 = vmatprep.subr.mxu0 0.0
    %3135 = vmatpush1.msra.mxu0 0.0
    %3136 = vmatprep.subr.mxu0 0.0
    %3137 = vmatpush1.msra.mxu0 0.0
    %3138 = vmatprep.subr.mxu0 0.0
    %3139 = vmatpush1.msra.mxu0 0.0
    %3140 = vmatprep.subr.mxu0 0.0
    %3141 = vmatpush1.msra.mxu0 0.0
    %3142 = vmatprep.subr.mxu0 0.0
    %3143 = vmatpush1.msra.mxu0 0.0
    %3144 = vmatprep.subr.mxu0 0.0
    %3145 = vmatpush1.msra.mxu0 0.0
    %3146 = vmatprep.subr.mxu0 0.0
    %3147 = vmatpush1.msra.mxu0 0.0
    %3148 = vmatprep.subr.mxu0 0.0
    %3149 = vmatpush1.msra.mxu0 0.0
    %3150 = vmatprep.subr.mxu0 0.0
    %3151 = vmatpush1.msra.mxu0 0.0
    %3152 = vmatprep.subr.mxu0 0.0
    %3153 = vmatpush1.msra.mxu0 0.0
    %3154 = vmatprep.subr.mxu0 0.0
    %3155 = vmatpush1.msra.mxu0 0.0
    %3156 = vmatprep.subr.mxu0 0.0
    %3157 = vmatpush1.msra.mxu0 0.0
    %3158 = vmatprep.subr.mxu0 0.0
    %3159 = vmatpush1.msra.mxu0 0.0
    %3160 = vmatprep.subr.mxu0 0.0
    %3161 = vmatpush1.msra.mxu0 0.0
    %3162 = vmatprep.subr.mxu0 0.0
    %3163 = vmatpush1.msra.mxu0 0.0
    %3164 = vmatprep.subr.mxu0 0.0
    %3165 = vmatpush1.msra.mxu0 0.0
    %3166 = vmatprep.subr.mxu0 0.0
    %3167 = vmatpush1.msra.mxu0 0.0
    %3168 = vmatprep.subr.mxu0 0.0
    %3169 = vmatpush1.msra.mxu0 0.0
    %3170 = vmatprep.subr.mxu0 0.0
    %3171 = vmatpush1.msra.mxu0 0.0
    %3172 = vmatprep.subr.mxu0 0.0
    %3173 = vmatpush1.msra.mxu0 0.0
    %3174 = vmatprep.subr.mxu0 0.0
    %3175 = vmatpush1.msra.mxu0 0.0
    %3176 = vmatprep.mubr.f32.mxu0 0.0
    %3177 = vmatmul.mubr.f32.gmra.mrb[0].mxu0 %v3104
    %v3178 = vpop.f32.mrb[0].mxu0
    %v3179 = vadd.f32 %v3101, %v3178
    %v3180 = vpop.f32.mrb[0].mxu0
    %3181 = vmatprep.mubr.f32.mxu0 0.0
    %3182 = vmatmul.mubr.f32.gmra.mrb[0].mxu0 %v3107
    %v3183 = vpop.f32.mrb[0].mxu0
    %v3184 = vadd.f32 %v3101, %v3183
    %v3185 = vpop.f32.mrb[0].mxu0
    %3186 = vdwg.mxu0
    %v3187 = vmax.f32 %v3179, 0.0
    %v3188 = vmax.f32 %v3184, 0.0
    %3189 = vmatprep.subr.mxu0 0.0
    %3190 = vmatpush1.msra.mxu0 %v2559
    %3191 = vmatprep.subr.mxu0 0.0
    %3192 = vmatpush1.msra.mxu0 %v2560
    %3193 = vmatprep.subr.mxu0 0.0
    %3194 = vmatpush1.msra.mxu0 0.0
    %3195 = vmatprep.subr.mxu0 0.0
    %3196 = vmatpush1.msra.mxu0 0.0
    %3197 = vmatprep.subr.mxu0 0.0
    %3198 = vmatpush1.msra.mxu0 0.0
    %3199 = vmatprep.subr.mxu0 0.0
    %3200 = vmatpush1.msra.mxu0 0.0
    %3201 = vmatprep.subr.mxu0 0.0
    %3202 = vmatpush1.msra.mxu0 0.0
    %3203 = vmatprep.subr.mxu0 0.0
    %3204 = vmatpush1.msra.mxu0 0.0
    %3205 = vmatprep.subr.mxu0 0.0
    %3206 = vmatpush1.msra.mxu0 0.0
    %3207 = vmatprep.subr.mxu0 0.0
    %3208 = vmatpush1.msra.mxu0 0.0
    %3209 = vmatprep.subr.mxu0 0.0
    %3210 = vmatpush1.msra.mxu0 0.0
    %3211 = vmatprep.subr.mxu0 0.0
    %3212 = vmatpush1.msra.mxu0 0.0
    %3213 = vmatprep.subr.mxu0 0.0
    %3214 = vmatpush1.msra.mxu0 0.0
    %3215 = vmatprep.subr.mxu0 0.0
    %3216 = vmatpush1.msra.mxu0 0.0
    %3217 = vmatprep.subr.mxu0 0.0
    %3218 = vmatpush1.msra.mxu0 0.0
    %3219 = vmatprep.subr.mxu0 0.0
    %3220 = vmatpush1.msra.mxu0 0.0
    %3221 = vmatprep.subr.mxu0 0.0
    %3222 = vmatpush1.msra.mxu0 0.0
    %3223 = vmatprep.subr.mxu0 0.0
    %3224 = vmatpush1.msra.mxu0 0.0
    %3225 = vmatprep.subr.mxu0 0.0
    %3226 = vmatpush1.msra.mxu0 0.0
    %3227 = vmatprep.subr.mxu0 0.0
    %3228 = vmatpush1.msra.mxu0 0.0
    %3229 = vmatprep.subr.mxu0 0.0
    %3230 = vmatpush1.msra.mxu0 0.0
    %3231 = vmatprep.subr.mxu0 0.0
    %3232 = vmatpush1.msra.mxu0 0.0
    %3233 = vmatprep.subr.mxu0 0.0
    %3234 = vmatpush1.msra.mxu0 0.0
    %3235 = vmatprep.subr.mxu0 0.0
    %3236 = vmatpush1.msra.mxu0 0.0
    %3237 = vmatprep.subr.mxu0 0.0
    %3238 = vmatpush1.msra.mxu0 0.0
    %3239 = vmatprep.subr.mxu0 0.0
    %3240 = vmatpush1.msra.mxu0 0.0
    %3241 = vmatprep.subr.mxu0 0.0
    %3242 = vmatpush1.msra.mxu0 0.0
    %3243 = vmatprep.subr.mxu0 0.0
    %3244 = vmatpush1.msra.mxu0 0.0
    %3245 = vmatprep.subr.mxu0 0.0
    %3246 = vmatpush1.msra.mxu0 0.0
    %3247 = vmatprep.subr.mxu0 0.0
    %3248 = vmatpush1.msra.mxu0 0.0
    %3249 = vmatprep.subr.mxu0 0.0
    %3250 = vmatpush1.msra.mxu0 0.0
    %3251 = vmatprep.subr.mxu0 0.0
    %3252 = vmatpush1.msra.mxu0 0.0
    %3253 = vmatprep.mubr.f32.mxu0 0.0
    %3254 = vmatmul.mubr.f32.gmra.mrb[0].mxu0 %v715
    %v3255 = vpop.f32.mrb[0].mxu0
    %v3256 = vadd.f32 0.0, %v3255
    %v3257 = vpop.f32.mrb[0].mxu0
    %3258 = vmatprep.mubr.f32.mxu0 0.0
    %3259 = vmatmul.mubr.f32.gmra.mrb[0].mxu0 %v718
    %v3260 = vpop.f32.mrb[0].mxu0
    %v3261 = vadd.f32 0.0, %v3260
    %v3262 = vpop.f32.mrb[0].mxu0
    %3263 = vmatprep.mubr.f32.mxu0 0.0
    %3264 = vmatmul.mubr.f32.gmra.mrb[0].mxu0 %v721
    %v3265 = vpop.f32.mrb[0].mxu0
    %v3266 = vadd.f32 0.0, %v3265
    %v3267 = vpop.f32.mrb[0].mxu0
    %3268 = vmatprep.mubr.f32.mxu0 0.0
    %3269 = vmatmul.mubr.f32.gmra.mrb[0].mxu0 %v724
    %v3270 = vpop.f32.mrb[0].mxu0
    %v3271 = vadd.f32 0.0, %v3270
    %v3272 = vpop.f32.mrb[0].mxu0
    %3273 = vmatprep.mubr.f32.mxu0 0.0
    %3274 = vmatmul.mubr.f32.gmra.mrb[0].mxu0 %v727
    %v3275 = vpop.f32.mrb[0].mxu0
    %v3276 = vadd.f32 0.0, %v3275
    %v3277 = vpop.f32.mrb[0].mxu0
    %3278 = vmatprep.mubr.f32.mxu0 0.0
    %3279 = vmatmul.mubr.f32.gmra.mrb[0].mxu0 %v730
    %v3280 = vpop.f32.mrb[0].mxu0
    %v3281 = vadd.f32 0.0, %v3280
    %v3282 = vpop.f32.mrb[0].mxu0
    %3283 = vmatprep.mubr.f32.mxu0 0.0
    %3284 = vmatmul.mubr.f32.gmra.mrb[0].mxu0 %v733
    %v3285 = vpop.f32.mrb[0].mxu0
    %v3286 = vadd.f32 0.0, %v3285
    %v3287 = vpop.f32.mrb[0].mxu0
    %3288 = vmatprep.mubr.f32.mxu0 0.0
    %3289 = vmatmul.mubr.f32.gmra.mrb[0].mxu0 %v736
    %v3290 = vpop.f32.mrb[0].mxu0
    %v3291 = vadd.f32 0.0, %v3290
    %v3292 = vpop.f32.mrb[0].mxu0
    %3293 = vdwg.mxu0
    %v3295 = vsel %vm194, %v3256, 0
    %v3298 = vsel %vm194, %v3261, 0
    %3300 = vmatprep.subr.mxu0 0.0
    %3301 = vmatpush1.msra.mxu0 %v2562
    %3302 = vmatprep.subr.mxu0 0.0
    %3303 = vmatpush1.msra.mxu0 %v2563
    %3304 = vmatprep.subr.mxu0 0.0
    %3305 = vmatpush1.msra.mxu0 %v2564
    %3306 = vmatprep.subr.mxu0 0.0
    %3307 = vmatpush1.msra.mxu0 %v2565
    %3308 = vmatprep.subr.mxu0 0.0
    %3309 = vmatpush1.msra.mxu0 0.0
    %3310 = vmatprep.subr.mxu0 0.0
    %3311 = vmatpush1.msra.mxu0 0.0
    %3312 = vmatprep.subr.mxu0 0.0
    %3313 = vmatpush1.msra.mxu0 0.0
    %3314 = vmatprep.subr.mxu0 0.0
    %3315 = vmatpush1.msra.mxu0 0.0
    %3316 = vmatprep.subr.mxu0 0.0
    %3317 = vmatpush1.msra.mxu0 0.0
    %3318 = vmatprep.subr.mxu0 0.0
    %3319 = vmatpush1.msra.mxu0 0.0
    %3320 = vmatprep.subr.mxu0 0.0
    %3321 = vmatpush1.msra.mxu0 0.0
    %3322 = vmatprep.subr.mxu0 0.0
    %3323 = vmatpush1.msra.mxu0 0.0
    %3324 = vmatprep.subr.mxu0 0.0
    %3325 = vmatpush1.msra.mxu0 0.0
    %3326 = vmatprep.subr.mxu0 0.0
    %3327 = vmatpush1.msra.mxu0 0.0
    %3328 = vmatprep.subr.mxu0 0.0
    %3329 = vmatpush1.msra.mxu0 0.0
    %3330 = vmatprep.subr.mxu0 0.0
    %3331 = vmatpush1.msra.mxu0 0.0
    %3332 = vmatprep.subr.mxu0 0.0
    %3333 = vmatpush1.msra.mxu0 0.0
    %3334 = vmatprep.subr.mxu0 0.0
    %3335 = vmatpush1.msra.mxu0 0.0
    %3336 = vmatprep.subr.mxu0 0.0
    %3337 = vmatpush1.msra.mxu0 0.0
    %3338 = vmatprep.subr.mxu0 0.0
    %3339 = vmatpush1.msra.mxu0 0.0
    %3340 = vmatprep.subr.mxu0 0.0
    %3341 = vmatpush1.msra.mxu0 0.0
    %3342 = vmatprep.subr.mxu0 0.0
    %3343 = vmatpush1.msra.mxu0 0.0
    %3344 = vmatprep.subr.mxu0 0.0
    %3345 = vmatpush1.msra.mxu0 0.0
    %3346 = vmatprep.subr.mxu0 0.0
    %3347 = vmatpush1.msra.mxu0 0.0
    %3348 = vmatprep.subr.mxu0 0.0
    %3349 = vmatpush1.msra.mxu0 0.0
    %3350 = vmatprep.subr.mxu0 0.0
    %3351 = vmatpush1.msra.mxu0 0.0
    %3352 = vmatprep.subr.mxu0 0.0
    %3353 = vmatpush1.msra.mxu0 0.0
    %3354 = vmatprep.subr.mxu0 0.0
    %3355 = vmatpush1.msra.mxu0 0.0
    %3356 = vmatprep.subr.mxu0 0.0
    %3357 = vmatpush1.msra.mxu0 0.0
    %3358 = vmatprep.subr.mxu0 0.0
    %3359 = vmatpush1.msra.mxu0 0.0
    %3360 = vmatprep.subr.mxu0 0.0
    %3361 = vmatpush1.msra.mxu0 0.0
    %3362 = vmatprep.subr.mxu0 0.0
    %3363 = vmatpush1.msra.mxu0 0.0
    %3364 = vmatprep.mubr.f32.mxu0 0.0
    %3365 = vmatmul.mubr.f32.gmra.mrb[0].mxu0 %v3295
    %v3366 = vpop.f32.mrb[0].mxu0
    %v3367 = vadd.f32 0.0, %v3366
    %v3368 = vpop.f32.mrb[0].mxu0
    %3369 = vmatprep.mubr.f32.mxu0 0.0
    %3370 = vmatmul.mubr.f32.gmra.mrb[0].mxu0 %v3298
    %v3371 = vpop.f32.mrb[0].mxu0
    %v3372 = vadd.f32 0.0, %v3371
    %v3373 = vpop.f32.mrb[0].mxu0
    %3374 = vdwg.mxu0
    %3375 = vmatprep.subr.mxu0 0.0
    %3376 = vmatpush1.msra.mxu0 %v2771
    %3377 = vmatprep.subr.mxu0 0.0
    %3378 = vmatpush1.msra.mxu0 0.0
    %3379 = vmatprep.subr.mxu0 0.0
    %3380 = vmatpush1.msra.mxu0 0.0
    %3381 = vmatprep.subr.mxu0 0.0
    %3382 = vmatpush1.msra.mxu0 0.0
    %3383 = vmatprep.subr.mxu0 0.0
    %3384 = vmatpush1.msra.mxu0 0.0
    %3385 = vmatprep.subr.mxu0 0.0
    %3386 = vmatpush1.msra.mxu0 0.0
    %3387 = vmatprep.subr.mxu0 0.0
    %3388 = vmatpush1.msra.mxu0 0.0
    %3389 = vmatprep.subr.mxu0 0.0
    %3390 = vmatpush1.msra.mxu0 0.0
    %3391 = vmatprep.subr.mxu0 0.0
    %3392 = vmatpush1.msra.mxu0 0.0
    %3393 = vmatprep.subr.mxu0 0.0
    %3394 = vmatpush1.msra.mxu0 0.0
    %3395 = vmatprep.subr.mxu0 0.0
    %3396 = vmatpush1.msra.mxu0 0.0
    %3397 = vmatprep.subr.mxu0 0.0
    %3398 = vmatpush1.msra.mxu0 0.0
    %3399 = vmatprep.subr.mxu0 0.0
    %3400 = vmatpush1.msra.mxu0 0.0
    %3401 = vmatprep.subr.mxu0 0.0
    %3402 = vmatpush1.msra.mxu0 0.0
    %3403 = vmatprep.subr.mxu0 0.0
    %3404 = vmatpush1.msra.mxu0 0.0
    %3405 = vmatprep.subr.mxu0 0.0
    %3406 = vmatpush1.msra.mxu0 0.0
    %3407 = vmatprep.subr.mxu0 0.0
    %3408 = vmatpush1.msra.mxu0 0.0
    %3409 = vmatprep.subr.mxu0 0.0
    %3410 = vmatpush1.msra.mxu0 0.0
    %3411 = vmatprep.subr.mxu0 0.0
    %3412 = vmatpush1.msra.mxu0 0.0
    %3413 = vmatprep.subr.mxu0 0.0
    %3414 = vmatpush1.msra.mxu0 0.0
    %3415 = vmatprep.subr.mxu0 0.0
    %3416 = vmatpush1.msra.mxu0 0.0
    %3417 = vmatprep.subr.mxu0 0.0
    %3418 = vmatpush1.msra.mxu0 0.0
    %3419 = vmatprep.subr.mxu0 0.0
    %3420 = vmatpush1.msra.mxu0 0.0
    %3421 = vmatprep.subr.mxu0 0.0
    %3422 = vmatpush1.msra.mxu0 0.0
    %3423 = vmatprep.subr.mxu0 0.0
    %3424 = vmatpush1.msra.mxu0 0.0
    %3425 = vmatprep.subr.mxu0 0.0
    %3426 = vmatpush1.msra.mxu0 0.0
    %3427 = vmatprep.subr.mxu0 0.0
    %3428 = vmatpush1.msra.mxu0 0.0
    %3429 = vmatprep.subr.mxu0 0.0
    %3430 = vmatpush1.msra.mxu0 0.0
    %3431 = vmatprep.subr.mxu0 0.0
    %3432 = vmatpush1.msra.mxu0 0.0
    %3433 = vmatprep.subr.mxu0 0.0
    %3434 = vmatpush1.msra.mxu0 0.0
    %3435 = vmatprep.subr.mxu0 0.0
    %3436 = vmatpush1.msra.mxu0 0.0
    %3437 = vmatprep.subr.mxu0 0.0
    %3438 = vmatpush1.msra.mxu0 0.0
    %3439 = vmatprep.mubr.f32.mxu0 0.0
    %3440 = vmatmul.mubr.f32.gmra.mrb[0].mxu0 %v928
    %v3441 = vpop.f32.mrb[0].mxu0
    %v3442 = vadd.f32 %v3367, %v3441
    %v3443 = vpop.f32.mrb[0].mxu0
    %3444 = vmatprep.mubr.f32.mxu0 0.0
    %3445 = vmatmul.mubr.f32.gmra.mrb[0].mxu0 %v931
    %v3446 = vpop.f32.mrb[0].mxu0
    %v3447 = vadd.f32 %v3372, %v3446
    %v3448 = vpop.f32.mrb[0].mxu0
    %3449 = vdwg.mxu0
    %v3451 = vsel %vm194, %v3266, 0
    %v3454 = vsel %vm194, %v3271, 0
    %3456 = vmatprep.subr.mxu0 0.0
    %3457 = vmatpush1.msra.mxu0 %v2566
    %3458 = vmatprep.subr.mxu0 0.0
    %3459 = vmatpush1.msra.mxu0 %v2567
    %3460 = vmatprep.subr.mxu0 0.0
    %3461 = vmatpush1.msra.mxu0 %v2568
    %3462 = vmatprep.subr.mxu0 0.0
    %3463 = vmatpush1.msra.mxu0 %v2569
    %3464 = vmatprep.subr.mxu0 0.0
    %3465 = vmatpush1.msra.mxu0 0.0
    %3466 = vmatprep.subr.mxu0 0.0
    %3467 = vmatpush1.msra.mxu0 0.0
    %3468 = vmatprep.subr.mxu0 0.0
    %3469 = vmatpush1.msra.mxu0 0.0
    %3470 = vmatprep.subr.mxu0 0.0
    %3471 = vmatpush1.msra.mxu0 0.0
    %3472 = vmatprep.subr.mxu0 0.0
    %3473 = vmatpush1.msra.mxu0 0.0
    %3474 = vmatprep.subr.mxu0 0.0
    %3475 = vmatpush1.msra.mxu0 0.0
    %3476 = vmatprep.subr.mxu0 0.0
    %3477 = vmatpush1.msra.mxu0 0.0
    %3478 = vmatprep.subr.mxu0 0.0
    %3479 = vmatpush1.msra.mxu0 0.0
    %3480 = vmatprep.subr.mxu0 0.0
    %3481 = vmatpush1.msra.mxu0 0.0
    %3482 = vmatprep.subr.mxu0 0.0
    %3483 = vmatpush1.msra.mxu0 0.0
    %3484 = vmatprep.subr.mxu0 0.0
    %3485 = vmatpush1.msra.mxu0 0.0
    %3486 = vmatprep.subr.mxu0 0.0
    %3487 = vmatpush1.msra.mxu0 0.0
    %3488 = vmatprep.subr.mxu0 0.0
    %3489 = vmatpush1.msra.mxu0 0.0
    %3490 = vmatprep.subr.mxu0 0.0
    %3491 = vmatpush1.msra.mxu0 0.0
    %3492 = vmatprep.subr.mxu0 0.0
    %3493 = vmatpush1.msra.mxu0 0.0
    %3494 = vmatprep.subr.mxu0 0.0
    %3495 = vmatpush1.msra.mxu0 0.0
    %3496 = vmatprep.subr.mxu0 0.0
    %3497 = vmatpush1.msra.mxu0 0.0
    %3498 = vmatprep.subr.mxu0 0.0
    %3499 = vmatpush1.msra.mxu0 0.0
    %3500 = vmatprep.subr.mxu0 0.0
    %3501 = vmatpush1.msra.mxu0 0.0
    %3502 = vmatprep.subr.mxu0 0.0
    %3503 = vmatpush1.msra.mxu0 0.0
    %3504 = vmatprep.subr.mxu0 0.0
    %3505 = vmatpush1.msra.mxu0 0.0
    %3506 = vmatprep.subr.mxu0 0.0
    %3507 = vmatpush1.msra.mxu0 0.0
    %3508 = vmatprep.subr.mxu0 0.0
    %3509 = vmatpush1.msra.mxu0 0.0
    %3510 = vmatprep.subr.mxu0 0.0
    %3511 = vmatpush1.msra.mxu0 0.0
    %3512 = vmatprep.subr.mxu0 0.0
    %3513 = vmatpush1.msra.mxu0 0.0
    %3514 = vmatprep.subr.mxu0 0.0
    %3515 = vmatpush1.msra.mxu0 0.0
    %3516 = vmatprep.subr.mxu0 0.0
    %3517 = vmatpush1.msra.mxu0 0.0
    %3518 = vmatprep.subr.mxu0 0.0
    %3519 = vmatpush1.msra.mxu0 0.0
    %3520 = vmatprep.mubr.f32.mxu0 0.0
    %3521 = vmatmul.mubr.f32.gmra.mrb[0].mxu0 %v3451
    %v3522 = vpop.f32.mrb[0].mxu0
    %v3523 = vadd.f32 0.0, %v3522
    %v3524 = vpop.f32.mrb[0].mxu0
    %3525 = vmatprep.mubr.f32.mxu0 0.0
    %3526 = vmatmul.mubr.f32.gmra.mrb[0].mxu0 %v3454
    %v3527 = vpop.f32.mrb[0].mxu0
    %v3528 = vadd.f32 0.0, %v3527
    %v3529 = vpop.f32.mrb[0].mxu0
    %3530 = vdwg.mxu0
    %v3531 = vadd.f32 %v3442, %v3523
    %v3532 = vadd.f32 %v3447, %v3528
    %v3534 = vsel %vm194, %v3276, 0
    %v3537 = vsel %vm194, %v3281, 0
    %3539 = vmatprep.subr.mxu0 0.0
    %3540 = vmatpush1.msra.mxu0 %v2570
    %3541 = vmatprep.subr.mxu0 0.0
    %3542 = vmatpush1.msra.mxu0 %v2571
    %3543 = vmatprep.subr.mxu0 0.0
    %3544 = vmatpush1.msra.mxu0 %v2572
    %3545 = vmatprep.subr.mxu0 0.0
    %3546 = vmatpush1.msra.mxu0 %v2573
    %3547 = vmatprep.subr.mxu0 0.0
    %3548 = vmatpush1.msra.mxu0 0.0
    %3549 = vmatprep.subr.mxu0 0.0
    %3550 = vmatpush1.msra.mxu0 0.0
    %3551 = vmatprep.subr.mxu0 0.0
    %3552 = vmatpush1.msra.mxu0 0.0
    %3553 = vmatprep.subr.mxu0 0.0
    %3554 = vmatpush1.msra.mxu0 0.0
    %3555 = vmatprep.subr.mxu0 0.0
    %3556 = vmatpush1.msra.mxu0 0.0
    %3557 = vmatprep.subr.mxu0 0.0
    %3558 = vmatpush1.msra.mxu0 0.0
    %3559 = vmatprep.subr.mxu0 0.0
    %3560 = vmatpush1.msra.mxu0 0.0
    %3561 = vmatprep.subr.mxu0 0.0
    %3562 = vmatpush1.msra.mxu0 0.0
    %3563 = vmatprep.subr.mxu0 0.0
    %3564 = vmatpush1.msra.mxu0 0.0
    %3565 = vmatprep.subr.mxu0 0.0
    %3566 = vmatpush1.msra.mxu0 0.0
    %3567 = vmatprep.subr.mxu0 0.0
    %3568 = vmatpush1.msra.mxu0 0.0
    %3569 = vmatprep.subr.mxu0 0.0
    %3570 = vmatpush1.msra.mxu0 0.0
    %3571 = vmatprep.subr.mxu0 0.0
    %3572 = vmatpush1.msra.mxu0 0.0
    %3573 = vmatprep.subr.mxu0 0.0
    %3574 = vmatpush1.msra.mxu0 0.0
    %3575 = vmatprep.subr.mxu0 0.0
    %3576 = vmatpush1.msra.mxu0 0.0
    %3577 = vmatprep.subr.mxu0 0.0
    %3578 = vmatpush1.msra.mxu0 0.0
    %3579 = vmatprep.subr.mxu0 0.0
    %3580 = vmatpush1.msra.mxu0 0.0
    %3581 = vmatprep.subr.mxu0 0.0
    %3582 = vmatpush1.msra.mxu0 0.0
    %3583 = vmatprep.subr.mxu0 0.0
    %3584 = vmatpush1.msra.mxu0 0.0
    %3585 = vmatprep.subr.mxu0 0.0
    %3586 = vmatpush1.msra.mxu0 0.0
    %3587 = vmatprep.subr.mxu0 0.0
    %3588 = vmatpush1.msra.mxu0 0.0
    %3589 = vmatprep.subr.mxu0 0.0
    %3590 = vmatpush1.msra.mxu0 0.0
    %3591 = vmatprep.subr.mxu0 0.0
    %3592 = vmatpush1.msra.mxu0 0.0
    %3593 = vmatprep.subr.mxu0 0.0
    %3594 = vmatpush1.msra.mxu0 0.0
    %3595 = vmatprep.subr.mxu0 0.0
    %3596 = vmatpush1.msra.mxu0 0.0
    %3597 = vmatprep.subr.mxu0 0.0
    %3598 = vmatpush1.msra.mxu0 0.0
    %3599 = vmatprep.subr.mxu0 0.0
    %3600 = vmatpush1.msra.mxu0 0.0
    %3601 = vmatprep.subr.mxu0 0.0
    %3602 = vmatpush1.msra.mxu0 0.0
    %3603 = vmatprep.mubr.f32.mxu0 0.0
    %3604 = vmatmul.mubr.f32.gmra.mrb[0].mxu0 %v3534
    %v3605 = vpop.f32.mrb[0].mxu0
    %v3606 = vadd.f32 0.0, %v3605
    %v3607 = vpop.f32.mrb[0].mxu0
    %3608 = vmatprep.mubr.f32.mxu0 0.0
    %3609 = vmatmul.mubr.f32.gmra.mrb[0].mxu0 %v3537
    %v3610 = vpop.f32.mrb[0].mxu0
    %v3611 = vadd.f32 0.0, %v3610
    %v3612 = vpop.f32.mrb[0].mxu0
    %3613 = vdwg.mxu0
    %v3614 = vadd.f32 %v3531, %v3606
    %v3615 = vadd.f32 %v3532, %v3611
    %v3617 = vsel %vm194, %v3286, 0
    %v3620 = vsel %vm194, %v3291, 0
    %3622 = vmatprep.subr.mxu0 0.0
    %3623 = vmatpush1.msra.mxu0 %v2574
    %3624 = vmatprep.subr.mxu0 0.0
    %3625 = vmatpush1.msra.mxu0 %v2575
    %3626 = vmatprep.subr.mxu0 0.0
    %3627 = vmatpush1.msra.mxu0 %v2576
    %3628 = vmatprep.subr.mxu0 0.0
    %3629 = vmatpush1.msra.mxu0 %v2577
    %3630 = vmatprep.subr.mxu0 0.0
    %3631 = vmatpush1.msra.mxu0 0.0
    %3632 = vmatprep.subr.mxu0 0.0
    %3633 = vmatpush1.msra.mxu0 0.0
    %3634 = vmatprep.subr.mxu0 0.0
    %3635 = vmatpush1.msra.mxu0 0.0
    %3636 = vmatprep.subr.mxu0 0.0
    %3637 = vmatpush1.msra.mxu0 0.0
    %3638 = vmatprep.subr.mxu0 0.0
    %3639 = vmatpush1.msra.mxu0 0.0
    %3640 = vmatprep.subr.mxu0 0.0
    %3641 = vmatpush1.msra.mxu0 0.0
    %3642 = vmatprep.subr.mxu0 0.0
    %3643 = vmatpush1.msra.mxu0 0.0
    %3644 = vmatprep.subr.mxu0 0.0
    %3645 = vmatpush1.msra.mxu0 0.0
    %3646 = vmatprep.subr.mxu0 0.0
    %3647 = vmatpush1.msra.mxu0 0.0
    %3648 = vmatprep.subr.mxu0 0.0
    %3649 = vmatpush1.msra.mxu0 0.0
    %3650 = vmatprep.subr.mxu0 0.0
    %3651 = vmatpush1.msra.mxu0 0.0
    %3652 = vmatprep.subr.mxu0 0.0
    %3653 = vmatpush1.msra.mxu0 0.0
    %3654 = vmatprep.subr.mxu0 0.0
    %3655 = vmatpush1.msra.mxu0 0.0
    %3656 = vmatprep.subr.mxu0 0.0
    %3657 = vmatpush1.msra.mxu0 0.0
    %3658 = vmatprep.subr.mxu0 0.0
    %3659 = vmatpush1.msra.mxu0 0.0
    %3660 = vmatprep.subr.mxu0 0.0
    %3661 = vmatpush1.msra.mxu0 0.0
    %3662 = vmatprep.subr.mxu0 0.0
    %3663 = vmatpush1.msra.mxu0 0.0
    %3664 = vmatprep.subr.mxu0 0.0
    %3665 = vmatpush1.msra.mxu0 0.0
    %3666 = vmatprep.subr.mxu0 0.0
    %3667 = vmatpush1.msra.mxu0 0.0
    %3668 = vmatprep.subr.mxu0 0.0
    %3669 = vmatpush1.msra.mxu0 0.0
    %3670 = vmatprep.subr.mxu0 0.0
    %3671 = vmatpush1.msra.mxu0 0.0
    %3672 = vmatprep.subr.mxu0 0.0
    %3673 = vmatpush1.msra.mxu0 0.0
    %3674 = vmatprep.subr.mxu0 0.0
    %3675 = vmatpush1.msra.mxu0 0.0
    %3676 = vmatprep.subr.mxu0 0.0
    %3677 = vmatpush1.msra.mxu0 0.0
    %3678 = vmatprep.subr.mxu0 0.0
    %3679 = vmatpush1.msra.mxu0 0.0
    %3680 = vmatprep.subr.mxu0 0.0
    %3681 = vmatpush1.msra.mxu0 0.0
    %3682 = vmatprep.subr.mxu0 0.0
    %3683 = vmatpush1.msra.mxu0 0.0
    %3684 = vmatprep.subr.mxu0 0.0
    %3685 = vmatpush1.msra.mxu0 0.0
    %3686 = vmatprep.mubr.f32.mxu0 0.0
    %3687 = vmatmul.mubr.f32.gmra.mrb[0].mxu0 %v3617
    %v3688 = vpop.f32.mrb[0].mxu0
    %v3689 = vadd.f32 0.0, %v3688
    %v3690 = vpop.f32.mrb[0].mxu0
    %3691 = vmatprep.mubr.f32.mxu0 0.0
    %3692 = vmatmul.mubr.f32.gmra.mrb[0].mxu0 %v3620
    %v3693 = vpop.f32.mrb[0].mxu0
    %v3694 = vadd.f32 0.0, %v3693
    %v3695 = vpop.f32.mrb[0].mxu0
    %3696 = vdwg.mxu0
    %v3697 = vadd.f32 %v3614, %v3689
    %v3698 = vadd.f32 %v3615, %v3694
    %v3700 = vsel %vm617, %v3697, 0
    %v3703 = vsel %vm617, %v3698, 0
    %3705 = vmatprep.subr.mxu0 0.0
    %3706 = vmatpush1.msra.mxu0 %v3110
    %3707 = vmatprep.subr.mxu0 0.0
    %3708 = vmatpush1.msra.mxu0 0.0
    %3709 = vmatprep.subr.mxu0 0.0
    %3710 = vmatpush1.msra.mxu0 0.0
    %3711 = vmatprep.subr.mxu0 0.0
    %3712 = vmatpush1.msra.mxu0 0.0
    %3713 = vmatprep.subr.mxu0 0.0
    %3714 = vmatpush1.msra.mxu0 0.0
    %3715 = vmatprep.subr.mxu0 0.0
    %3716 = vmatpush1.msra.mxu0 0.0
    %3717 = vmatprep.subr.mxu0 0.0
    %3718 = vmatpush1.msra.mxu0 0.0
    %3719 = vmatprep.subr.mxu0 0.0
    %3720 = vmatpush1.msra.mxu0 0.0
    %3721 = vmatprep.subr.mxu0 0.0
    %3722 = vmatpush1.msra.mxu0 0.0
    %3723 = vmatprep.subr.mxu0 0.0
    %3724 = vmatpush1.msra.mxu0 0.0
    %3725 = vmatprep.subr.mxu0 0.0
    %3726 = vmatpush1.msra.mxu0 0.0
    %3727 = vmatprep.subr.mxu0 0.0
    %3728 = vmatpush1.msra.mxu0 0.0
    %3729 = vmatprep.subr.mxu0 0.0
    %3730 = vmatpush1.msra.mxu0 0.0
    %3731 = vmatprep.subr.mxu0 0.0
    %3732 = vmatpush1.msra.mxu0 0.0
    %3733 = vmatprep.subr.mxu0 0.0
    %3734 = vmatpush1.msra.mxu0 0.0
    %3735 = vmatprep.subr.mxu0 0.0
    %3736 = vmatpush1.msra.mxu0 0.0
    %3737 = vmatprep.subr.mxu0 0.0
    %3738 = vmatpush1.msra.mxu0 0.0
    %3739 = vmatprep.subr.mxu0 0.0
    %3740 = vmatpush1.msra.mxu0 0.0
    %3741 = vmatprep.subr.mxu0 0.0
    %3742 = vmatpush1.msra.mxu0 0.0
    %3743 = vmatprep.subr.mxu0 0.0
    %3744 = vmatpush1.msra.mxu0 0.0
    %3745 = vmatprep.subr.mxu0 0.0
    %3746 = vmatpush1.msra.mxu0 0.0
    %3747 = vmatprep.subr.mxu0 0.0
    %3748 = vmatpush1.msra.mxu0 0.0
    %3749 = vmatprep.subr.mxu0 0.0
    %3750 = vmatpush1.msra.mxu0 0.0
    %3751 = vmatprep.subr.mxu0 0.0
    %3752 = vmatpush1.msra.mxu0 0.0
    %3753 = vmatprep.subr.mxu0 0.0
    %3754 = vmatpush1.msra.mxu0 0.0
    %3755 = vmatprep.subr.mxu0 0.0
    %3756 = vmatpush1.msra.mxu0 0.0
    %3757 = vmatprep.subr.mxu0 0.0
    %3758 = vmatpush1.msra.mxu0 0.0
    %3759 = vmatprep.subr.mxu0 0.0
    %3760 = vmatpush1.msra.mxu0 0.0
    %3761 = vmatprep.subr.mxu0 0.0
    %3762 = vmatpush1.msra.mxu0 0.0
    %3763 = vmatprep.subr.mxu0 0.0
    %3764 = vmatpush1.msra.mxu0 0.0
    %3765 = vmatprep.subr.mxu0 0.0
    %3766 = vmatpush1.msra.mxu0 0.0
    %3767 = vmatprep.subr.mxu0 0.0
    %3768 = vmatpush1.msra.mxu0 0.0
    %3769 = vmatprep.mubr.f32.mxu0 0.0
    %3770 = vmatmul.mubr.f32.gmra.mrb[0].mxu0 %v3700
    %v3771 = vpop.f32.mrb[0].mxu0
    %v3772 = vadd.f32 %v3101, %v3771
    %v3773 = vpop.f32.mrb[0].mxu0
    %3774 = vmatprep.mubr.f32.mxu0 0.0
    %3775 = vmatmul.mubr.f32.gmra.mrb[0].mxu0 %v3703
    %v3776 = vpop.f32.mrb[0].mxu0
    %v3777 = vadd.f32 %v3101, %v3776
    %v3778 = vpop.f32.mrb[0].mxu0
    %3779 = vdwg.mxu0
    %v3780 = vmax.f32 %v3772, 0.0
    %v3781 = vmax.f32 %v3777, 0.0
    %s3782 = scalar_lea.vmem %s3, 384
    %v3783 = vld [vmem:[%s3782] sm:$0xff]
    %v3784 = vld [vmem:[%s3782 + $0x8] sm:$0xff]
    %v3785 = vld [vmem:[%s3782 + $0x10] sm:$0xff]
    %v3786 = vld [vmem:[%s3782 + $0x18] sm:$0xff]
    %v3787 = vld [vmem:[%s3782 + $0x20] sm:$0xff]
    %v3788 = vld [vmem:[%s3782 + $0x28] sm:$0xff]
    %v3789 = vld [vmem:[%s3782 + $0x30] sm:$0xff]
    %v3790 = vld [vmem:[%s3782 + $0x38] sm:$0xff]
    %v3791 = vld [vmem:[%s3782 + $0x40] sm:$0xff]
    %v3792 = vld [vmem:[%s3782 + $0x48] sm:$0xff]
    %v3793 = vld [vmem:[%s3782 + $0x50] sm:$0xff]
    %v3794 = vld [vmem:[%s3782 + $0x58] sm:$0xff]
    %v3795 = vld [vmem:[%s3782 + $0x60] sm:$0xff]
    %v3796 = vld [vmem:[%s3782 + $0x68] sm:$0xff]
    %v3797 = vld [vmem:[%s3782 + $0x70] sm:$0xff]
    %v3798 = vld [vmem:[%s3782 + $0x78] sm:$0xff]
    %s3799 = scalar_lea.vmem %s4, 12
    %v3800 = vld [vmem:[%s3799] sm:$0xf]
    %s3801 = scalar_lea.vmem %s5, 24
    %v3802 = vld [vmem:[%s3801] sm:$0x3f]
    %s3803 = scalar_lea.vmem %s6, 3
    %v3804 = vld [vmem:[%s3803] sm:$0x1]
    %3805 = vmatprep.subr.mxu0 0.0
    %3806 = vmatpush1.msra.mxu0 %v3187
    %3807 = vmatprep.subr.mxu0 0.0
    %3808 = vmatpush1.msra.mxu0 %v3188
    %3809 = vmatprep.subr.mxu0 0.0
    %3810 = vmatpush1.msra.mxu0 0.0
    %3811 = vmatprep.subr.mxu0 0.0
    %3812 = vmatpush1.msra.mxu0 0.0
    %3813 = vmatprep.subr.mxu0 0.0
    %3814 = vmatpush1.msra.mxu0 0.0
    %3815 = vmatprep.subr.mxu0 0.0
    %3816 = vmatpush1.msra.mxu0 0.0
    %3817 = vmatprep.subr.mxu0 0.0
    %3818 = vmatpush1.msra.mxu0 0.0
    %3819 = vmatprep.subr.mxu0 0.0
    %3820 = vmatpush1.msra.mxu0 0.0
    %3821 = vmatprep.subr.mxu0 0.0
    %3822 = vmatpush1.msra.mxu0 0.0
    %3823 = vmatprep.subr.mxu0 0.0
    %3824 = vmatpush1.msra.mxu0 0.0
    %3825 = vmatprep.subr.mxu0 0.0
    %3826 = vmatpush1.msra.mxu0 0.0
    %3827 = vmatprep.subr.mxu0 0.0
    %3828 = vmatpush1.msra.mxu0 0.0
    %3829 = vmatprep.subr.mxu0 0.0
    %3830 = vmatpush1.msra.mxu0 0.0
    %3831 = vmatprep.subr.mxu0 0.0
    %3832 = vmatpush1.msra.mxu0 0.0
    %3833 = vmatprep.subr.mxu0 0.0
    %3834 = vmatpush1.msra.mxu0 0.0
    %3835 = vmatprep.subr.mxu0 0.0
    %3836 = vmatpush1.msra.mxu0 0.0
    %3837 = vmatprep.subr.mxu0 0.0
    %3838 = vmatpush1.msra.mxu0 0.0
    %3839 = vmatprep.subr.mxu0 0.0
    %3840 = vmatpush1.msra.mxu0 0.0
    %3841 = vmatprep.subr.mxu0 0.0
    %3842 = vmatpush1.msra.mxu0 0.0
    %3843 = vmatprep.subr.mxu0 0.0
    %3844 = vmatpush1.msra.mxu0 0.0
    %3845 = vmatprep.subr.mxu0 0.0
    %3846 = vmatpush1.msra.mxu0 0.0
    %3847 = vmatprep.subr.mxu0 0.0
    %3848 = vmatpush1.msra.mxu0 0.0
    %3849 = vmatprep.subr.mxu0 0.0
    %3850 = vmatpush1.msra.mxu0 0.0
    %3851 = vmatprep.subr.mxu0 0.0
    %3852 = vmatpush1.msra.mxu0 0.0
    %3853 = vmatprep.subr.mxu0 0.0
    %3854 = vmatpush1.msra.mxu0 0.0
    %3855 = vmatprep.subr.mxu0 0.0
    %3856 = vmatpush1.msra.mxu0 0.0
    %3857 = vmatprep.subr.mxu0 0.0
    %3858 = vmatpush1.msra.mxu0 0.0
    %3859 = vmatprep.subr.mxu0 0.0
    %3860 = vmatpush1.msra.mxu0 0.0
    %3861 = vmatprep.subr.mxu0 0.0
    %3862 = vmatpush1.msra.mxu0 0.0
    %3863 = vmatprep.subr.mxu0 0.0
    %3864 = vmatpush1.msra.mxu0 0.0
    %3865 = vmatprep.subr.mxu0 0.0
    %3866 = vmatpush1.msra.mxu0 0.0
    %3867 = vmatprep.subr.mxu0 0.0
    %3868 = vmatpush1.msra.mxu0 0.0
    %3869 = vmatprep.mubr.f32.mxu0 0.0
    %3870 = vmatmul.mubr.f32.gmra.mrb[0].mxu0 %v64
    %v3871 = vpop.f32.mrb[0].mxu0
    %v3872 = vadd.f32 0.0, %v3871
    %v3873 = vpop.f32.mrb[0].mxu0
    %3874 = vmatprep.mubr.f32.mxu0 0.0
    %3875 = vmatmul.mubr.f32.gmra.mrb[0].mxu0 %v67
    %v3876 = vpop.f32.mrb[0].mxu0
    %v3877 = vadd.f32 0.0, %v3876
    %v3878 = vpop.f32.mrb[0].mxu0
    %3879 = vmatprep.mubr.f32.mxu0 0.0
    %3880 = vmatmul.mubr.f32.gmra.mrb[0].mxu0 %v70
    %v3881 = vpop.f32.mrb[0].mxu0
    %v3882 = vadd.f32 0.0, %v3881
    %v3883 = vpop.f32.mrb[0].mxu0
    %3884 = vmatprep.mubr.f32.mxu0 0.0
    %3885 = vmatmul.mubr.f32.gmra.mrb[0].mxu0 %v73
    %v3886 = vpop.f32.mrb[0].mxu0
    %v3887 = vadd.f32 0.0, %v3886
    %v3888 = vpop.f32.mrb[0].mxu0
    %3889 = vmatprep.mubr.f32.mxu0 0.0
    %3890 = vmatmul.mubr.f32.gmra.mrb[0].mxu0 %v76
    %v3891 = vpop.f32.mrb[0].mxu0
    %v3892 = vadd.f32 0.0, %v3891
    %v3893 = vpop.f32.mrb[0].mxu0
    %3894 = vmatprep.mubr.f32.mxu0 0.0
    %3895 = vmatmul.mubr.f32.gmra.mrb[0].mxu0 %v79
    %v3896 = vpop.f32.mrb[0].mxu0
    %v3897 = vadd.f32 0.0, %v3896
    %v3898 = vpop.f32.mrb[0].mxu0
    %3899 = vmatprep.mubr.f32.mxu0 0.0
    %3900 = vmatmul.mubr.f32.gmra.mrb[0].mxu0 %v82
    %v3901 = vpop.f32.mrb[0].mxu0
    %v3902 = vadd.f32 0.0, %v3901
    %v3903 = vpop.f32.mrb[0].mxu0
    %3904 = vmatprep.mubr.f32.mxu0 0.0
    %3905 = vmatmul.mubr.f32.gmra.mrb[0].mxu0 %v85
    %v3906 = vpop.f32.mrb[0].mxu0
    %v3907 = vadd.f32 0.0, %v3906
    %v3908 = vpop.f32.mrb[0].mxu0
    %3909 = vdwg.mxu0
    %v3911 = vsel %vm194, %v3872, 0
    %v3914 = vsel %vm194, %v3877, 0
    %3916 = vmatprep.subr.mxu0 0.0
    %3917 = vmatpush1.msra.mxu0 %v3783
    %3918 = vmatprep.subr.mxu0 0.0
    %3919 = vmatpush1.msra.mxu0 %v3784
    %3920 = vmatprep.subr.mxu0 0.0
    %3921 = vmatpush1.msra.mxu0 %v3785
    %3922 = vmatprep.subr.mxu0 0.0
    %3923 = vmatpush1.msra.mxu0 %v3786
    %3924 = vmatprep.subr.mxu0 0.0
    %3925 = vmatpush1.msra.mxu0 0.0
    %3926 = vmatprep.subr.mxu0 0.0
    %3927 = vmatpush1.msra.mxu0 0.0
    %3928 = vmatprep.subr.mxu0 0.0
    %3929 = vmatpush1.msra.mxu0 0.0
    %3930 = vmatprep.subr.mxu0 0.0
    %3931 = vmatpush1.msra.mxu0 0.0
    %3932 = vmatprep.subr.mxu0 0.0
    %3933 = vmatpush1.msra.mxu0 0.0
    %3934 = vmatprep.subr.mxu0 0.0
    %3935 = vmatpush1.msra.mxu0 0.0
    %3936 = vmatprep.subr.mxu0 0.0
    %3937 = vmatpush1.msra.mxu0 0.0
    %3938 = vmatprep.subr.mxu0 0.0
    %3939 = vmatpush1.msra.mxu0 0.0
    %3940 = vmatprep.subr.mxu0 0.0
    %3941 = vmatpush1.msra.mxu0 0.0
    %3942 = vmatprep.subr.mxu0 0.0
    %3943 = vmatpush1.msra.mxu0 0.0
    %3944 = vmatprep.subr.mxu0 0.0
    %3945 = vmatpush1.msra.mxu0 0.0
    %3946 = vmatprep.subr.mxu0 0.0
    %3947 = vmatpush1.msra.mxu0 0.0
    %3948 = vmatprep.subr.mxu0 0.0
    %3949 = vmatpush1.msra.mxu0 0.0
    %3950 = vmatprep.subr.mxu0 0.0
    %3951 = vmatpush1.msra.mxu0 0.0
    %3952 = vmatprep.subr.mxu0 0.0
    %3953 = vmatpush1.msra.mxu0 0.0
    %3954 = vmatprep.subr.mxu0 0.0
    %3955 = vmatpush1.msra.mxu0 0.0
    %3956 = vmatprep.subr.mxu0 0.0
    %3957 = vmatpush1.msra.mxu0 0.0
    %3958 = vmatprep.subr.mxu0 0.0
    %3959 = vmatpush1.msra.mxu0 0.0
    %3960 = vmatprep.subr.mxu0 0.0
    %3961 = vmatpush1.msra.mxu0 0.0
    %3962 = vmatprep.subr.mxu0 0.0
    %3963 = vmatpush1.msra.mxu0 0.0
    %3964 = vmatprep.subr.mxu0 0.0
    %3965 = vmatpush1.msra.mxu0 0.0
    %3966 = vmatprep.subr.mxu0 0.0
    %3967 = vmatpush1.msra.mxu0 0.0
    %3968 = vmatprep.subr.mxu0 0.0
    %3969 = vmatpush1.msra.mxu0 0.0
    %3970 = vmatprep.subr.mxu0 0.0
    %3971 = vmatpush1.msra.mxu0 0.0
    %3972 = vmatprep.subr.mxu0 0.0
    %3973 = vmatpush1.msra.mxu0 0.0
    %3974 = vmatprep.subr.mxu0 0.0
    %3975 = vmatpush1.msra.mxu0 0.0
    %3976 = vmatprep.subr.mxu0 0.0
    %3977 = vmatpush1.msra.mxu0 0.0
    %3978 = vmatprep.subr.mxu0 0.0
    %3979 = vmatpush1.msra.mxu0 0.0
    %3980 = vmatprep.mubr.f32.mxu0 0.0
    %3981 = vmatmul.mubr.f32.gmra.mrb[0].mxu0 %v3911
    %v3982 = vpop.f32.mrb[0].mxu0
    %v3983 = vadd.f32 0.0, %v3982
    %v3984 = vpop.f32.mrb[0].mxu0
    %3985 = vmatprep.mubr.f32.mxu0 0.0
    %3986 = vmatmul.mubr.f32.gmra.mrb[0].mxu0 %v3914
    %v3987 = vpop.f32.mrb[0].mxu0
    %v3988 = vadd.f32 0.0, %v3987
    %v3989 = vpop.f32.mrb[0].mxu0
    %3990 = vdwg.mxu0
    %v3992 = vsel %vm283, %v3800, 0
    %3994 = vmatprep.subr.mxu0 0.0
    %3995 = vmatpush1.msra.mxu0 %v3992
    %3996 = vmatprep.subr.mxu0 0.0
    %3997 = vmatpush1.msra.mxu0 0.0
    %3998 = vmatprep.subr.mxu0 0.0
    %3999 = vmatpush1.msra.mxu0 0.0
    %4000 = vmatprep.subr.mxu0 0.0
    %4001 = vmatpush1.msra.mxu0 0.0
    %4002 = vmatprep.subr.mxu0 0.0
    %4003 = vmatpush1.msra.mxu0 0.0
    %4004 = vmatprep.subr.mxu0 0.0
    %4005 = vmatpush1.msra.mxu0 0.0
    %4006 = vmatprep.subr.mxu0 0.0
    %4007 = vmatpush1.msra.mxu0 0.0
    %4008 = vmatprep.subr.mxu0 0.0
    %4009 = vmatpush1.msra.mxu0 0.0
    %4010 = vmatprep.subr.mxu0 0.0
    %4011 = vmatpush1.msra.mxu0 0.0
    %4012 = vmatprep.subr.mxu0 0.0
    %4013 = vmatpush1.msra.mxu0 0.0
    %4014 = vmatprep.subr.mxu0 0.0
    %4015 = vmatpush1.msra.mxu0 0.0
    %4016 = vmatprep.subr.mxu0 0.0
    %4017 = vmatpush1.msra.mxu0 0.0
    %4018 = vmatprep.subr.mxu0 0.0
    %4019 = vmatpush1.msra.mxu0 0.0
    %4020 = vmatprep.subr.mxu0 0.0
    %4021 = vmatpush1.msra.mxu0 0.0
    %4022 = vmatprep.subr.mxu0 0.0
    %4023 = vmatpush1.msra.mxu0 0.0
    %4024 = vmatprep.subr.mxu0 0.0
    %4025 = vmatpush1.msra.mxu0 0.0
    %4026 = vmatprep.subr.mxu0 0.0
    %4027 = vmatpush1.msra.mxu0 0.0
    %4028 = vmatprep.subr.mxu0 0.0
    %4029 = vmatpush1.msra.mxu0 0.0
    %4030 = vmatprep.subr.mxu0 0.0
    %4031 = vmatpush1.msra.mxu0 0.0
    %4032 = vmatprep.subr.mxu0 0.0
    %4033 = vmatpush1.msra.mxu0 0.0
    %4034 = vmatprep.subr.mxu0 0.0
    %4035 = vmatpush1.msra.mxu0 0.0
    %4036 = vmatprep.subr.mxu0 0.0
    %4037 = vmatpush1.msra.mxu0 0.0
    %4038 = vmatprep.subr.mxu0 0.0
    %4039 = vmatpush1.msra.mxu0 0.0
    %4040 = vmatprep.subr.mxu0 0.0
    %4041 = vmatpush1.msra.mxu0 0.0
    %4042 = vmatprep.subr.mxu0 0.0
    %4043 = vmatpush1.msra.mxu0 0.0
    %4044 = vmatprep.subr.mxu0 0.0
    %4045 = vmatpush1.msra.mxu0 0.0
    %4046 = vmatprep.subr.mxu0 0.0
    %4047 = vmatpush1.msra.mxu0 0.0
    %4048 = vmatprep.subr.mxu0 0.0
    %4049 = vmatpush1.msra.mxu0 0.0
    %4050 = vmatprep.subr.mxu0 0.0
    %4051 = vmatpush1.msra.mxu0 0.0
    %4052 = vmatprep.subr.mxu0 0.0
    %4053 = vmatpush1.msra.mxu0 0.0
    %4054 = vmatprep.subr.mxu0 0.0
    %4055 = vmatpush1.msra.mxu0 0.0
    %4056 = vmatprep.subr.mxu0 0.0
    %4057 = vmatpush1.msra.mxu0 0.0
    %4058 = vmatprep.mubr.f32.mxu0 0.0
    %4059 = vmatmul.mubr.f32.gmra.mrb[0].mxu0 %v278
    %v4060 = vpop.f32.mrb[0].mxu0
    %v4061 = vadd.f32 %v3983, %v4060
    %v4062 = vpop.f32.mrb[0].mxu0
    %4063 = vmatprep.mubr.f32.mxu0 0.0
    %4064 = vmatmul.mubr.f32.gmra.mrb[0].mxu0 %v281
    %v4065 = vpop.f32.mrb[0].mxu0
    %v4066 = vadd.f32 %v3988, %v4065
    %v4067 = vpop.f32.mrb[0].mxu0
    %4068 = vdwg.mxu0
    %v4070 = vsel %vm194, %v3882, 0
    %v4073 = vsel %vm194, %v3887, 0
    %4075 = vmatprep.subr.mxu0 0.0
    %4076 = vmatpush1.msra.mxu0 %v3787
    %4077 = vmatprep.subr.mxu0 0.0
    %4078 = vmatpush1.msra.mxu0 %v3788
    %4079 = vmatprep.subr.mxu0 0.0
    %4080 = vmatpush1.msra.mxu0 %v3789
    %4081 = vmatprep.subr.mxu0 0.0
    %4082 = vmatpush1.msra.mxu0 %v3790
    %4083 = vmatprep.subr.mxu0 0.0
    %4084 = vmatpush1.msra.mxu0 0.0
    %4085 = vmatprep.subr.mxu0 0.0
    %4086 = vmatpush1.msra.mxu0 0.0
    %4087 = vmatprep.subr.mxu0 0.0
    %4088 = vmatpush1.msra.mxu0 0.0
    %4089 = vmatprep.subr.mxu0 0.0
    %4090 = vmatpush1.msra.mxu0 0.0
    %4091 = vmatprep.subr.mxu0 0.0
    %4092 = vmatpush1.msra.mxu0 0.0
    %4093 = vmatprep.subr.mxu0 0.0
    %4094 = vmatpush1.msra.mxu0 0.0
    %4095 = vmatprep.subr.mxu0 0.0
    %4096 = vmatpush1.msra.mxu0 0.0
    %4097 = vmatprep.subr.mxu0 0.0
    %4098 = vmatpush1.msra.mxu0 0.0
    %4099 = vmatprep.subr.mxu0 0.0
    %4100 = vmatpush1.msra.mxu0 0.0
    %4101 = vmatprep.subr.mxu0 0.0
    %4102 = vmatpush1.msra.mxu0 0.0
    %4103 = vmatprep.subr.mxu0 0.0
    %4104 = vmatpush1.msra.mxu0 0.0
    %4105 = vmatprep.subr.mxu0 0.0
    %4106 = vmatpush1.msra.mxu0 0.0
    %4107 = vmatprep.subr.mxu0 0.0
    %4108 = vmatpush1.msra.mxu0 0.0
    %4109 = vmatprep.subr.mxu0 0.0
    %4110 = vmatpush1.msra.mxu0 0.0
    %4111 = vmatprep.subr.mxu0 0.0
    %4112 = vmatpush1.msra.mxu0 0.0
    %4113 = vmatprep.subr.mxu0 0.0
    %4114 = vmatpush1.msra.mxu0 0.0
    %4115 = vmatprep.subr.mxu0 0.0
    %4116 = vmatpush1.msra.mxu0 0.0
    %4117 = vmatprep.subr.mxu0 0.0
    %4118 = vmatpush1.msra.mxu0 0.0
    %4119 = vmatprep.subr.mxu0 0.0
    %4120 = vmatpush1.msra.mxu0 0.0
    %4121 = vmatprep.subr.mxu0 0.0
    %4122 = vmatpush1.msra.mxu0 0.0
    %4123 = vmatprep.subr.mxu0 0.0
    %4124 = vmatpush1.msra.mxu0 0.0
    %4125 = vmatprep.subr.mxu0 0.0
    %4126 = vmatpush1.msra.mxu0 0.0
    %4127 = vmatprep.subr.mxu0 0.0
    %4128 = vmatpush1.msra.mxu0 0.0
    %4129 = vmatprep.subr.mxu0 0.0
    %4130 = vmatpush1.msra.mxu0 0.0
    %4131 = vmatprep.subr.mxu0 0.0
    %4132 = vmatpush1.msra.mxu0 0.0
    %4133 = vmatprep.subr.mxu0 0.0
    %4134 = vmatpush1.msra.mxu0 0.0
    %4135 = vmatprep.subr.mxu0 0.0
    %4136 = vmatpush1.msra.mxu0 0.0
    %4137 = vmatprep.subr.mxu0 0.0
    %4138 = vmatpush1.msra.mxu0 0.0
    %4139 = vmatprep.mubr.f32.mxu0 0.0
    %4140 = vmatmul.mubr.f32.gmra.mrb[0].mxu0 %v4070
    %v4141 = vpop.f32.mrb[0].mxu0
    %v4142 = vadd.f32 0.0, %v4141
    %v4143 = vpop.f32.mrb[0].mxu0
    %4144 = vmatprep.mubr.f32.mxu0 0.0
    %4145 = vmatmul.mubr.f32.gmra.mrb[0].mxu0 %v4073
    %v4146 = vpop.f32.mrb[0].mxu0
    %v4147 = vadd.f32 0.0, %v4146
    %v4148 = vpop.f32.mrb[0].mxu0
    %4149 = vdwg.mxu0
    %v4150 = vadd.f32 %v4061, %v4142
    %v4151 = vadd.f32 %v4066, %v4147
    %v4153 = vsel %vm194, %v3892, 0
    %v4156 = vsel %vm194, %v3897, 0
    %4158 = vmatprep.subr.mxu0 0.0
    %4159 = vmatpush1.msra.mxu0 %v3791
    %4160 = vmatprep.subr.mxu0 0.0
    %4161 = vmatpush1.msra.mxu0 %v3792
    %4162 = vmatprep.subr.mxu0 0.0
    %4163 = vmatpush1.msra.mxu0 %v3793
    %4164 = vmatprep.subr.mxu0 0.0
    %4165 = vmatpush1.msra.mxu0 %v3794
    %4166 = vmatprep.subr.mxu0 0.0
    %4167 = vmatpush1.msra.mxu0 0.0
    %4168 = vmatprep.subr.mxu0 0.0
    %4169 = vmatpush1.msra.mxu0 0.0
    %4170 = vmatprep.subr.mxu0 0.0
    %4171 = vmatpush1.msra.mxu0 0.0
    %4172 = vmatprep.subr.mxu0 0.0
    %4173 = vmatpush1.msra.mxu0 0.0
    %4174 = vmatprep.subr.mxu0 0.0
    %4175 = vmatpush1.msra.mxu0 0.0
    %4176 = vmatprep.subr.mxu0 0.0
    %4177 = vmatpush1.msra.mxu0 0.0
    %4178 = vmatprep.subr.mxu0 0.0
    %4179 = vmatpush1.msra.mxu0 0.0
    %4180 = vmatprep.subr.mxu0 0.0
    %4181 = vmatpush1.msra.mxu0 0.0
    %4182 = vmatprep.subr.mxu0 0.0
    %4183 = vmatpush1.msra.mxu0 0.0
    %4184 = vmatprep.subr.mxu0 0.0
    %4185 = vmatpush1.msra.mxu0 0.0
    %4186 = vmatprep.subr.mxu0 0.0
    %4187 = vmatpush1.msra.mxu0 0.0
    %4188 = vmatprep.subr.mxu0 0.0
    %4189 = vmatpush1.msra.mxu0 0.0
    %4190 = vmatprep.subr.mxu0 0.0
    %4191 = vmatpush1.msra.mxu0 0.0
    %4192 = vmatprep.subr.mxu0 0.0
    %4193 = vmatpush1.msra.mxu0 0.0
    %4194 = vmatprep.subr.mxu0 0.0
    %4195 = vmatpush1.msra.mxu0 0.0
    %4196 = vmatprep.subr.mxu0 0.0
    %4197 = vmatpush1.msra.mxu0 0.0
    %4198 = vmatprep.subr.mxu0 0.0
    %4199 = vmatpush1.msra.mxu0 0.0
    %4200 = vmatprep.subr.mxu0 0.0
    %4201 = vmatpush1.msra.mxu0 0.0
    %4202 = vmatprep.subr.mxu0 0.0
    %4203 = vmatpush1.msra.mxu0 0.0
    %4204 = vmatprep.subr.mxu0 0.0
    %4205 = vmatpush1.msra.mxu0 0.0
    %4206 = vmatprep.subr.mxu0 0.0
    %4207 = vmatpush1.msra.mxu0 0.0
    %4208 = vmatprep.subr.mxu0 0.0
    %4209 = vmatpush1.msra.mxu0 0.0
    %4210 = vmatprep.subr.mxu0 0.0
    %4211 = vmatpush1.msra.mxu0 0.0
    %4212 = vmatprep.subr.mxu0 0.0
    %4213 = vmatpush1.msra.mxu0 0.0
    %4214 = vmatprep.subr.mxu0 0.0
    %4215 = vmatpush1.msra.mxu0 0.0
    %4216 = vmatprep.subr.mxu0 0.0
    %4217 = vmatpush1.msra.mxu0 0.0
    %4218 = vmatprep.subr.mxu0 0.0
    %4219 = vmatpush1.msra.mxu0 0.0
    %4220 = vmatprep.subr.mxu0 0.0
    %4221 = vmatpush1.msra.mxu0 0.0
    %4222 = vmatprep.mubr.f32.mxu0 0.0
    %4223 = vmatmul.mubr.f32.gmra.mrb[0].mxu0 %v4153
    %v4224 = vpop.f32.mrb[0].mxu0
    %v4225 = vadd.f32 0.0, %v4224
    %v4226 = vpop.f32.mrb[0].mxu0
    %4227 = vmatprep.mubr.f32.mxu0 0.0
    %4228 = vmatmul.mubr.f32.gmra.mrb[0].mxu0 %v4156
    %v4229 = vpop.f32.mrb[0].mxu0
    %v4230 = vadd.f32 0.0, %v4229
    %v4231 = vpop.f32.mrb[0].mxu0
    %4232 = vdwg.mxu0
    %v4233 = vadd.f32 %v4150, %v4225
    %v4234 = vadd.f32 %v4151, %v4230
    %v4236 = vsel %vm194, %v3902, 0
    %v4239 = vsel %vm194, %v3907, 0
    %4241 = vmatprep.subr.mxu0 0.0
    %4242 = vmatpush1.msra.mxu0 %v3795
    %4243 = vmatprep.subr.mxu0 0.0
    %4244 = vmatpush1.msra.mxu0 %v3796
    %4245 = vmatprep.subr.mxu0 0.0
    %4246 = vmatpush1.msra.mxu0 %v3797
    %4247 = vmatprep.subr.mxu0 0.0
    %4248 = vmatpush1.msra.mxu0 %v3798
    %4249 = vmatprep.subr.mxu0 0.0
    %4250 = vmatpush1.msra.mxu0 0.0
    %4251 = vmatprep.subr.mxu0 0.0
    %4252 = vmatpush1.msra.mxu0 0.0
    %4253 = vmatprep.subr.mxu0 0.0
    %4254 = vmatpush1.msra.mxu0 0.0
    %4255 = vmatprep.subr.mxu0 0.0
    %4256 = vmatpush1.msra.mxu0 0.0
    %4257 = vmatprep.subr.mxu0 0.0
    %4258 = vmatpush1.msra.mxu0 0.0
    %4259 = vmatprep.subr.mxu0 0.0
    %4260 = vmatpush1.msra.mxu0 0.0
    %4261 = vmatprep.subr.mxu0 0.0
    %4262 = vmatpush1.msra.mxu0 0.0
    %4263 = vmatprep.subr.mxu0 0.0
    %4264 = vmatpush1.msra.mxu0 0.0
    %4265 = vmatprep.subr.mxu0 0.0
    %4266 = vmatpush1.msra.mxu0 0.0
    %4267 = vmatprep.subr.mxu0 0.0
    %4268 = vmatpush1.msra.mxu0 0.0
    %4269 = vmatprep.subr.mxu0 0.0
    %4270 = vmatpush1.msra.mxu0 0.0
    %4271 = vmatprep.subr.mxu0 0.0
    %4272 = vmatpush1.msra.mxu0 0.0
    %4273 = vmatprep.subr.mxu0 0.0
    %4274 = vmatpush1.msra.mxu0 0.0
    %4275 = vmatprep.subr.mxu0 0.0
    %4276 = vmatpush1.msra.mxu0 0.0
    %4277 = vmatprep.subr.mxu0 0.0
    %4278 = vmatpush1.msra.mxu0 0.0
    %4279 = vmatprep.subr.mxu0 0.0
    %4280 = vmatpush1.msra.mxu0 0.0
    %4281 = vmatprep.subr.mxu0 0.0
    %4282 = vmatpush1.msra.mxu0 0.0
    %4283 = vmatprep.subr.mxu0 0.0
    %4284 = vmatpush1.msra.mxu0 0.0
    %4285 = vmatprep.subr.mxu0 0.0
    %4286 = vmatpush1.msra.mxu0 0.0
    %4287 = vmatprep.subr.mxu0 0.0
    %4288 = vmatpush1.msra.mxu0 0.0
    %4289 = vmatprep.subr.mxu0 0.0
    %4290 = vmatpush1.msra.mxu0 0.0
    %4291 = vmatprep.subr.mxu0 0.0
    %4292 = vmatpush1.msra.mxu0 0.0
    %4293 = vmatprep.subr.mxu0 0.0
    %4294 = vmatpush1.msra.mxu0 0.0
    %4295 = vmatprep.subr.mxu0 0.0
    %4296 = vmatpush1.msra.mxu0 0.0
    %4297 = vmatprep.subr.mxu0 0.0
    %4298 = vmatpush1.msra.mxu0 0.0
    %4299 = vmatprep.subr.mxu0 0.0
    %4300 = vmatpush1.msra.mxu0 0.0
    %4301 = vmatprep.subr.mxu0 0.0
    %4302 = vmatpush1.msra.mxu0 0.0
    %4303 = vmatprep.subr.mxu0 0.0
    %4304 = vmatpush1.msra.mxu0 0.0
    %4305 = vmatprep.mubr.f32.mxu0 0.0
    %4306 = vmatmul.mubr.f32.gmra.mrb[0].mxu0 %v4236
    %v4307 = vpop.f32.mrb[0].mxu0
    %v4308 = vadd.f32 0.0, %v4307
    %v4309 = vpop.f32.mrb[0].mxu0
    %4310 = vmatprep.mubr.f32.mxu0 0.0
    %4311 = vmatmul.mubr.f32.gmra.mrb[0].mxu0 %v4239
    %v4312 = vpop.f32.mrb[0].mxu0
    %v4313 = vadd.f32 0.0, %v4312
    %v4314 = vpop.f32.mrb[0].mxu0
    %4315 = vdwg.mxu0
    %v4316 = vadd.f32 %v4233, %v4308
    %v4317 = vadd.f32 %v4234, %v4313
    %v4319 = vlaneseq
    %v4320 = vshrl.u32 %v4319, 7
    %v4321 = vsub.s32 0, %v4320
    %v4322 = vrot.slane %v3804, %v4321
    %v4325 = vsel %vm617, %v4316, 0
    %v4328 = vsel %vm617, %v4317, 0
    %v4331 = vsel %vm624, %v3802, 0
    %4333 = vmatprep.subr.mxu0 0.0
    %4334 = vmatpush1.msra.mxu0 %v4331
    %4335 = vmatprep.subr.mxu0 0.0
    %4336 = vmatpush1.msra.mxu0 0.0
    %4337 = vmatprep.subr.mxu0 0.0
    %4338 = vmatpush1.msra.mxu0 0.0
    %4339 = vmatprep.subr.mxu0 0.0
    %4340 = vmatpush1.msra.mxu0 0.0
    %4341 = vmatprep.subr.mxu0 0.0
    %4342 = vmatpush1.msra.mxu0 0.0
    %4343 = vmatprep.subr.mxu0 0.0
    %4344 = vmatpush1.msra.mxu0 0.0
    %4345 = vmatprep.subr.mxu0 0.0
    %4346 = vmatpush1.msra.mxu0 0.0
    %4347 = vmatprep.subr.mxu0 0.0
    %4348 = vmatpush1.msra.mxu0 0.0
    %4349 = vmatprep.subr.mxu0 0.0
    %4350 = vmatpush1.msra.mxu0 0.0
    %4351 = vmatprep.subr.mxu0 0.0
    %4352 = vmatpush1.msra.mxu0 0.0
    %4353 = vmatprep.subr.mxu0 0.0
    %4354 = vmatpush1.msra.mxu0 0.0
    %4355 = vmatprep.subr.mxu0 0.0
    %4356 = vmatpush1.msra.mxu0 0.0
    %4357 = vmatprep.subr.mxu0 0.0
    %4358 = vmatpush1.msra.mxu0 0.0
    %4359 = vmatprep.subr.mxu0 0.0
    %4360 = vmatpush1.msra.mxu0 0.0
    %4361 = vmatprep.subr.mxu0 0.0
    %4362 = vmatpush1.msra.mxu0 0.0
    %4363 = vmatprep.subr.mxu0 0.0
    %4364 = vmatpush1.msra.mxu0 0.0
    %4365 = vmatprep.subr.mxu0 0.0
    %4366 = vmatpush1.msra.mxu0 0.0
    %4367 = vmatprep.subr.mxu0 0.0
    %4368 = vmatpush1.msra.mxu0 0.0
    %4369 = vmatprep.subr.mxu0 0.0
    %4370 = vmatpush1.msra.mxu0 0.0
    %4371 = vmatprep.subr.mxu0 0.0
    %4372 = vmatpush1.msra.mxu0 0.0
    %4373 = vmatprep.subr.mxu0 0.0
    %4374 = vmatpush1.msra.mxu0 0.0
    %4375 = vmatprep.subr.mxu0 0.0
    %4376 = vmatpush1.msra.mxu0 0.0
    %4377 = vmatprep.subr.mxu0 0.0
    %4378 = vmatpush1.msra.mxu0 0.0
    %4379 = vmatprep.subr.mxu0 0.0
    %4380 = vmatpush1.msra.mxu0 0.0
    %4381 = vmatprep.subr.mxu0 0.0
    %4382 = vmatpush1.msra.mxu0 0.0
    %4383 = vmatprep.subr.mxu0 0.0
    %4384 = vmatpush1.msra.mxu0 0.0
    %4385 = vmatprep.subr.mxu0 0.0
    %4386 = vmatpush1.msra.mxu0 0.0
    %4387 = vmatprep.subr.mxu0 0.0
    %4388 = vmatpush1.msra.mxu0 0.0
    %4389 = vmatprep.subr.mxu0 0.0
    %4390 = vmatpush1.msra.mxu0 0.0
    %4391 = vmatprep.subr.mxu0 0.0
    %4392 = vmatpush1.msra.mxu0 0.0
    %4393 = vmatprep.subr.mxu0 0.0
    %4394 = vmatpush1.msra.mxu0 0.0
    %4395 = vmatprep.subr.mxu0 0.0
    %4396 = vmatpush1.msra.mxu0 0.0
    %4397 = vmatprep.mubr.f32.mxu0 0.0
    %4398 = vmatmul.mubr.f32.gmra.mrb[0].mxu0 %v4325
    %v4399 = vpop.f32.mrb[0].mxu0
    %v4400 = vadd.f32 %v4322, %v4399
    %v4401 = vpop.f32.mrb[0].mxu0
    %4402 = vmatprep.mubr.f32.mxu0 0.0
    %4403 = vmatmul.mubr.f32.gmra.mrb[0].mxu0 %v4328
    %v4404 = vpop.f32.mrb[0].mxu0
    %v4405 = vadd.f32 %v4322, %v4404
    %v4406 = vpop.f32.mrb[0].mxu0
    %4407 = vdwg.mxu0
    %v4408 = vmax.f32 %v4400, 0.0
    %v4409 = vmax.f32 %v4405, 0.0
    %4410 = vmatprep.subr.mxu0 0.0
    %4411 = vmatpush1.msra.mxu0 %v3780
    %4412 = vmatprep.subr.mxu0 0.0
    %4413 = vmatpush1.msra.mxu0 %v3781
    %4414 = vmatprep.subr.mxu0 0.0
    %4415 = vmatpush1.msra.mxu0 0.0
    %4416 = vmatprep.subr.mxu0 0.0
    %4417 = vmatpush1.msra.mxu0 0.0
    %4418 = vmatprep.subr.mxu0 0.0
    %4419 = vmatpush1.msra.mxu0 0.0
    %4420 = vmatprep.subr.mxu0 0.0
    %4421 = vmatpush1.msra.mxu0 0.0
    %4422 = vmatprep.subr.mxu0 0.0
    %4423 = vmatpush1.msra.mxu0 0.0
    %4424 = vmatprep.subr.mxu0 0.0
    %4425 = vmatpush1.msra.mxu0 0.0
    %4426 = vmatprep.subr.mxu0 0.0
    %4427 = vmatpush1.msra.mxu0 0.0
    %4428 = vmatprep.subr.mxu0 0.0
    %4429 = vmatpush1.msra.mxu0 0.0
    %4430 = vmatprep.subr.mxu0 0.0
    %4431 = vmatpush1.msra.mxu0 0.0
    %4432 = vmatprep.subr.mxu0 0.0
    %4433 = vmatpush1.msra.mxu0 0.0
    %4434 = vmatprep.subr.mxu0 0.0
    %4435 = vmatpush1.msra.mxu0 0.0
    %4436 = vmatprep.subr.mxu0 0.0
    %4437 = vmatpush1.msra.mxu0 0.0
    %4438 = vmatprep.subr.mxu0 0.0
    %4439 = vmatpush1.msra.mxu0 0.0
    %4440 = vmatprep.subr.mxu0 0.0
    %4441 = vmatpush1.msra.mxu0 0.0
    %4442 = vmatprep.subr.mxu0 0.0
    %4443 = vmatpush1.msra.mxu0 0.0
    %4444 = vmatprep.subr.mxu0 0.0
    %4445 = vmatpush1.msra.mxu0 0.0
    %4446 = vmatprep.subr.mxu0 0.0
    %4447 = vmatpush1.msra.mxu0 0.0
    %4448 = vmatprep.subr.mxu0 0.0
    %4449 = vmatpush1.msra.mxu0 0.0
    %4450 = vmatprep.subr.mxu0 0.0
    %4451 = vmatpush1.msra.mxu0 0.0
    %4452 = vmatprep.subr.mxu0 0.0
    %4453 = vmatpush1.msra.mxu0 0.0
    %4454 = vmatprep.subr.mxu0 0.0
    %4455 = vmatpush1.msra.mxu0 0.0
    %4456 = vmatprep.subr.mxu0 0.0
    %4457 = vmatpush1.msra.mxu0 0.0
    %4458 = vmatprep.subr.mxu0 0.0
    %4459 = vmatpush1.msra.mxu0 0.0
    %4460 = vmatprep.subr.mxu0 0.0
    %4461 = vmatpush1.msra.mxu0 0.0
    %4462 = vmatprep.subr.mxu0 0.0
    %4463 = vmatpush1.msra.mxu0 0.0
    %4464 = vmatprep.subr.mxu0 0.0
    %4465 = vmatpush1.msra.mxu0 0.0
    %4466 = vmatprep.subr.mxu0 0.0
    %4467 = vmatpush1.msra.mxu0 0.0
    %4468 = vmatprep.subr.mxu0 0.0
    %4469 = vmatpush1.msra.mxu0 0.0
    %4470 = vmatprep.subr.mxu0 0.0
    %4471 = vmatpush1.msra.mxu0 0.0
    %4472 = vmatprep.subr.mxu0 0.0
    %4473 = vmatpush1.msra.mxu0 0.0
    %4474 = vmatprep.mubr.f32.mxu0 0.0
    %4475 = vmatmul.mubr.f32.gmra.mrb[0].mxu0 %v715
    %v4476 = vpop.f32.mrb[0].mxu0
    %v4477 = vadd.f32 0.0, %v4476
    %v4478 = vpop.f32.mrb[0].mxu0
    %4479 = vmatprep.mubr.f32.mxu0 0.0
    %4480 = vmatmul.mubr.f32.gmra.mrb[0].mxu0 %v718
    %v4481 = vpop.f32.mrb[0].mxu0
    %v4482 = vadd.f32 0.0, %v4481
    %v4483 = vpop.f32.mrb[0].mxu0
    %4484 = vmatprep.mubr.f32.mxu0 0.0
    %4485 = vmatmul.mubr.f32.gmra.mrb[0].mxu0 %v721
    %v4486 = vpop.f32.mrb[0].mxu0
    %v4487 = vadd.f32 0.0, %v4486
    %v4488 = vpop.f32.mrb[0].mxu0
    %4489 = vmatprep.mubr.f32.mxu0 0.0
    %4490 = vmatmul.mubr.f32.gmra.mrb[0].mxu0 %v724
    %v4491 = vpop.f32.mrb[0].mxu0
    %v4492 = vadd.f32 0.0, %v4491
    %v4493 = vpop.f32.mrb[0].mxu0
    %4494 = vmatprep.mubr.f32.mxu0 0.0
    %4495 = vmatmul.mubr.f32.gmra.mrb[0].mxu0 %v727
    %v4496 = vpop.f32.mrb[0].mxu0
    %v4497 = vadd.f32 0.0, %v4496
    %v4498 = vpop.f32.mrb[0].mxu0
    %4499 = vmatprep.mubr.f32.mxu0 0.0
    %4500 = vmatmul.mubr.f32.gmra.mrb[0].mxu0 %v730
    %v4501 = vpop.f32.mrb[0].mxu0
    %v4502 = vadd.f32 0.0, %v4501
    %v4503 = vpop.f32.mrb[0].mxu0
    %4504 = vmatprep.mubr.f32.mxu0 0.0
    %4505 = vmatmul.mubr.f32.gmra.mrb[0].mxu0 %v733
    %v4506 = vpop.f32.mrb[0].mxu0
    %v4507 = vadd.f32 0.0, %v4506
    %v4508 = vpop.f32.mrb[0].mxu0
    %4509 = vmatprep.mubr.f32.mxu0 0.0
    %4510 = vmatmul.mubr.f32.gmra.mrb[0].mxu0 %v736
    %v4511 = vpop.f32.mrb[0].mxu0
    %v4512 = vadd.f32 0.0, %v4511
    %v4513 = vpop.f32.mrb[0].mxu0
    %4514 = vdwg.mxu0
    %v4516 = vsel %vm194, %v4477, 0
    %v4519 = vsel %vm194, %v4482, 0
    %4521 = vmatprep.subr.mxu0 0.0
    %4522 = vmatpush1.msra.mxu0 %v3783
    %4523 = vmatprep.subr.mxu0 0.0
    %4524 = vmatpush1.msra.mxu0 %v3784
    %4525 = vmatprep.subr.mxu0 0.0
    %4526 = vmatpush1.msra.mxu0 %v3785
    %4527 = vmatprep.subr.mxu0 0.0
    %4528 = vmatpush1.msra.mxu0 %v3786
    %4529 = vmatprep.subr.mxu0 0.0
    %4530 = vmatpush1.msra.mxu0 0.0
    %4531 = vmatprep.subr.mxu0 0.0
    %4532 = vmatpush1.msra.mxu0 0.0
    %4533 = vmatprep.subr.mxu0 0.0
    %4534 = vmatpush1.msra.mxu0 0.0
    %4535 = vmatprep.subr.mxu0 0.0
    %4536 = vmatpush1.msra.mxu0 0.0
    %4537 = vmatprep.subr.mxu0 0.0
    %4538 = vmatpush1.msra.mxu0 0.0
    %4539 = vmatprep.subr.mxu0 0.0
    %4540 = vmatpush1.msra.mxu0 0.0
    %4541 = vmatprep.subr.mxu0 0.0
    %4542 = vmatpush1.msra.mxu0 0.0
    %4543 = vmatprep.subr.mxu0 0.0
    %4544 = vmatpush1.msra.mxu0 0.0
    %4545 = vmatprep.subr.mxu0 0.0
    %4546 = vmatpush1.msra.mxu0 0.0
    %4547 = vmatprep.subr.mxu0 0.0
    %4548 = vmatpush1.msra.mxu0 0.0
    %4549 = vmatprep.subr.mxu0 0.0
    %4550 = vmatpush1.msra.mxu0 0.0
    %4551 = vmatprep.subr.mxu0 0.0
    %4552 = vmatpush1.msra.mxu0 0.0
    %4553 = vmatprep.subr.mxu0 0.0
    %4554 = vmatpush1.msra.mxu0 0.0
    %4555 = vmatprep.subr.mxu0 0.0
    %4556 = vmatpush1.msra.mxu0 0.0
    %4557 = vmatprep.subr.mxu0 0.0
    %4558 = vmatpush1.msra.mxu0 0.0
    %4559 = vmatprep.subr.mxu0 0.0
    %4560 = vmatpush1.msra.mxu0 0.0
    %4561 = vmatprep.subr.mxu0 0.0
    %4562 = vmatpush1.msra.mxu0 0.0
    %4563 = vmatprep.subr.mxu0 0.0
    %4564 = vmatpush1.msra.mxu0 0.0
    %4565 = vmatprep.subr.mxu0 0.0
    %4566 = vmatpush1.msra.mxu0 0.0
    %4567 = vmatprep.subr.mxu0 0.0
    %4568 = vmatpush1.msra.mxu0 0.0
    %4569 = vmatprep.subr.mxu0 0.0
    %4570 = vmatpush1.msra.mxu0 0.0
    %4571 = vmatprep.subr.mxu0 0.0
    %4572 = vmatpush1.msra.mxu0 0.0
    %4573 = vmatprep.subr.mxu0 0.0
    %4574 = vmatpush1.msra.mxu0 0.0
    %4575 = vmatprep.subr.mxu0 0.0
    %4576 = vmatpush1.msra.mxu0 0.0
    %4577 = vmatprep.subr.mxu0 0.0
    %4578 = vmatpush1.msra.mxu0 0.0
    %4579 = vmatprep.subr.mxu0 0.0
    %4580 = vmatpush1.msra.mxu0 0.0
    %4581 = vmatprep.subr.mxu0 0.0
    %4582 = vmatpush1.msra.mxu0 0.0
    %4583 = vmatprep.subr.mxu0 0.0
    %4584 = vmatpush1.msra.mxu0 0.0
    %4585 = vmatprep.mubr.f32.mxu0 0.0
    %4586 = vmatmul.mubr.f32.gmra.mrb[0].mxu0 %v4516
    %v4587 = vpop.f32.mrb[0].mxu0
    %v4588 = vadd.f32 0.0, %v4587
    %v4589 = vpop.f32.mrb[0].mxu0
    %4590 = vmatprep.mubr.f32.mxu0 0.0
    %4591 = vmatmul.mubr.f32.gmra.mrb[0].mxu0 %v4519
    %v4592 = vpop.f32.mrb[0].mxu0
    %v4593 = vadd.f32 0.0, %v4592
    %v4594 = vpop.f32.mrb[0].mxu0
    %4595 = vdwg.mxu0
    %4596 = vmatprep.subr.mxu0 0.0
    %4597 = vmatpush1.msra.mxu0 %v3992
    %4598 = vmatprep.subr.mxu0 0.0
    %4599 = vmatpush1.msra.mxu0 0.0
    %4600 = vmatprep.subr.mxu0 0.0
    %4601 = vmatpush1.msra.mxu0 0.0
    %4602 = vmatprep.subr.mxu0 0.0
    %4603 = vmatpush1.msra.mxu0 0.0
    %4604 = vmatprep.subr.mxu0 0.0
    %4605 = vmatpush1.msra.mxu0 0.0
    %4606 = vmatprep.subr.mxu0 0.0
    %4607 = vmatpush1.msra.mxu0 0.0
    %4608 = vmatprep.subr.mxu0 0.0
    %4609 = vmatpush1.msra.mxu0 0.0
    %4610 = vmatprep.subr.mxu0 0.0
    %4611 = vmatpush1.msra.mxu0 0.0
    %4612 = vmatprep.subr.mxu0 0.0
    %4613 = vmatpush1.msra.mxu0 0.0
    %4614 = vmatprep.subr.mxu0 0.0
    %4615 = vmatpush1.msra.mxu0 0.0
    %4616 = vmatprep.subr.mxu0 0.0
    %4617 = vmatpush1.msra.mxu0 0.0
    %4618 = vmatprep.subr.mxu0 0.0
    %4619 = vmatpush1.msra.mxu0 0.0
    %4620 = vmatprep.subr.mxu0 0.0
    %4621 = vmatpush1.msra.mxu0 0.0
    %4622 = vmatprep.subr.mxu0 0.0
    %4623 = vmatpush1.msra.mxu0 0.0
    %4624 = vmatprep.subr.mxu0 0.0
    %4625 = vmatpush1.msra.mxu0 0.0
    %4626 = vmatprep.subr.mxu0 0.0
    %4627 = vmatpush1.msra.mxu0 0.0
    %4628 = vmatprep.subr.mxu0 0.0
    %4629 = vmatpush1.msra.mxu0 0.0
    %4630 = vmatprep.subr.mxu0 0.0
    %4631 = vmatpush1.msra.mxu0 0.0
    %4632 = vmatprep.subr.mxu0 0.0
    %4633 = vmatpush1.msra.mxu0 0.0
    %4634 = vmatprep.subr.mxu0 0.0
    %4635 = vmatpush1.msra.mxu0 0.0
    %4636 = vmatprep.subr.mxu0 0.0
    %4637 = vmatpush1.msra.mxu0 0.0
    %4638 = vmatprep.subr.mxu0 0.0
    %4639 = vmatpush1.msra.mxu0 0.0
    %4640 = vmatprep.subr.mxu0 0.0
    %4641 = vmatpush1.msra.mxu0 0.0
    %4642 = vmatprep.subr.mxu0 0.0
    %4643 = vmatpush1.msra.mxu0 0.0
    %4644 = vmatprep.subr.mxu0 0.0
    %4645 = vmatpush1.msra.mxu0 0.0
    %4646 = vmatprep.subr.mxu0 0.0
    %4647 = vmatpush1.msra.mxu0 0.0
    %4648 = vmatprep.subr.mxu0 0.0
    %4649 = vmatpush1.msra.mxu0 0.0
    %4650 = vmatprep.subr.mxu0 0.0
    %4651 = vmatpush1.msra.mxu0 0.0
    %4652 = vmatprep.subr.mxu0 0.0
    %4653 = vmatpush1.msra.mxu0 0.0
    %4654 = vmatprep.subr.mxu0 0.0
    %4655 = vmatpush1.msra.mxu0 0.0
    %4656 = vmatprep.subr.mxu0 0.0
    %4657 = vmatpush1.msra.mxu0 0.0
    %4658 = vmatprep.subr.mxu0 0.0
    %4659 = vmatpush1.msra.mxu0 0.0
    %4660 = vmatprep.mubr.f32.mxu0 0.0
    %4661 = vmatmul.mubr.f32.gmra.mrb[0].mxu0 %v928
    %v4662 = vpop.f32.mrb[0].mxu0
    %v4663 = vadd.f32 %v4588, %v4662
    %v4664 = vpop.f32.mrb[0].mxu0
    %4665 = vmatprep.mubr.f32.mxu0 0.0
    %4666 = vmatmul.mubr.f32.gmra.mrb[0].mxu0 %v931
    %v4667 = vpop.f32.mrb[0].mxu0
    %v4668 = vadd.f32 %v4593, %v4667
    %v4669 = vpop.f32.mrb[0].mxu0
    %4670 = vdwg.mxu0
    %v4672 = vsel %vm194, %v4487, 0
    %v4675 = vsel %vm194, %v4492, 0
    %4677 = vmatprep.subr.mxu0 0.0
    %4678 = vmatpush1.msra.mxu0 %v3787
    %4679 = vmatprep.subr.mxu0 0.0
    %4680 = vmatpush1.msra.mxu0 %v3788
    %4681 = vmatprep.subr.mxu0 0.0
    %4682 = vmatpush1.msra.mxu0 %v3789
    %4683 = vmatprep.subr.mxu0 0.0
    %4684 = vmatpush1.msra.mxu0 %v3790
    %4685 = vmatprep.subr.mxu0 0.0
    %4686 = vmatpush1.msra.mxu0 0.0
    %4687 = vmatprep.subr.mxu0 0.0
    %4688 = vmatpush1.msra.mxu0 0.0
    %4689 = vmatprep.subr.mxu0 0.0
    %4690 = vmatpush1.msra.mxu0 0.0
    %4691 = vmatprep.subr.mxu0 0.0
    %4692 = vmatpush1.msra.mxu0 0.0
    %4693 = vmatprep.subr.mxu0 0.0
    %4694 = vmatpush1.msra.mxu0 0.0
    %4695 = vmatprep.subr.mxu0 0.0
    %4696 = vmatpush1.msra.mxu0 0.0
    %4697 = vmatprep.subr.mxu0 0.0
    %4698 = vmatpush1.msra.mxu0 0.0
    %4699 = vmatprep.subr.mxu0 0.0
    %4700 = vmatpush1.msra.mxu0 0.0
    %4701 = vmatprep.subr.mxu0 0.0
    %4702 = vmatpush1.msra.mxu0 0.0
    %4703 = vmatprep.subr.mxu0 0.0
    %4704 = vmatpush1.msra.mxu0 0.0
    %4705 = vmatprep.subr.mxu0 0.0
    %4706 = vmatpush1.msra.mxu0 0.0
    %4707 = vmatprep.subr.mxu0 0.0
    %4708 = vmatpush1.msra.mxu0 0.0
    %4709 = vmatprep.subr.mxu0 0.0
    %4710 = vmatpush1.msra.mxu0 0.0
    %4711 = vmatprep.subr.mxu0 0.0
    %4712 = vmatpush1.msra.mxu0 0.0
    %4713 = vmatprep.subr.mxu0 0.0
    %4714 = vmatpush1.msra.mxu0 0.0
    %4715 = vmatprep.subr.mxu0 0.0
    %4716 = vmatpush1.msra.mxu0 0.0
    %4717 = vmatprep.subr.mxu0 0.0
    %4718 = vmatpush1.msra.mxu0 0.0
    %4719 = vmatprep.subr.mxu0 0.0
    %4720 = vmatpush1.msra.mxu0 0.0
    %4721 = vmatprep.subr.mxu0 0.0
    %4722 = vmatpush1.msra.mxu0 0.0
    %4723 = vmatprep.subr.mxu0 0.0
    %4724 = vmatpush1.msra.mxu0 0.0
    %4725 = vmatprep.subr.mxu0 0.0
    %4726 = vmatpush1.msra.mxu0 0.0
    %4727 = vmatprep.subr.mxu0 0.0
    %4728 = vmatpush1.msra.mxu0 0.0
    %4729 = vmatprep.subr.mxu0 0.0
    %4730 = vmatpush1.msra.mxu0 0.0
    %4731 = vmatprep.subr.mxu0 0.0
    %4732 = vmatpush1.msra.mxu0 0.0
    %4733 = vmatprep.subr.mxu0 0.0
    %4734 = vmatpush1.msra.mxu0 0.0
    %4735 = vmatprep.subr.mxu0 0.0
    %4736 = vmatpush1.msra.mxu0 0.0
    %4737 = vmatprep.subr.mxu0 0.0
    %4738 = vmatpush1.msra.mxu0 0.0
    %4739 = vmatprep.subr.mxu0 0.0
    %4740 = vmatpush1.msra.mxu0 0.0
    %4741 = vmatprep.mubr.f32.mxu0 0.0
    %4742 = vmatmul.mubr.f32.gmra.mrb[0].mxu0 %v4672
    %v4743 = vpop.f32.mrb[0].mxu0
    %v4744 = vadd.f32 0.0, %v4743
    %v4745 = vpop.f32.mrb[0].mxu0
    %4746 = vmatprep.mubr.f32.mxu0 0.0
    %4747 = vmatmul.mubr.f32.gmra.mrb[0].mxu0 %v4675
    %v4748 = vpop.f32.mrb[0].mxu0
    %v4749 = vadd.f32 0.0, %v4748
    %v4750 = vpop.f32.mrb[0].mxu0
    %4751 = vdwg.mxu0
    %v4752 = vadd.f32 %v4663, %v4744
    %v4753 = vadd.f32 %v4668, %v4749
    %v4755 = vsel %vm194, %v4497, 0
    %v4758 = vsel %vm194, %v4502, 0
    %4760 = vmatprep.subr.mxu0 0.0
    %4761 = vmatpush1.msra.mxu0 %v3791
    %4762 = vmatprep.subr.mxu0 0.0
    %4763 = vmatpush1.msra.mxu0 %v3792
    %4764 = vmatprep.subr.mxu0 0.0
    %4765 = vmatpush1.msra.mxu0 %v3793
    %4766 = vmatprep.subr.mxu0 0.0
    %4767 = vmatpush1.msra.mxu0 %v3794
    %4768 = vmatprep.subr.mxu0 0.0
    %4769 = vmatpush1.msra.mxu0 0.0
    %4770 = vmatprep.subr.mxu0 0.0
    %4771 = vmatpush1.msra.mxu0 0.0
    %4772 = vmatprep.subr.mxu0 0.0
    %4773 = vmatpush1.msra.mxu0 0.0
    %4774 = vmatprep.subr.mxu0 0.0
    %4775 = vmatpush1.msra.mxu0 0.0
    %4776 = vmatprep.subr.mxu0 0.0
    %4777 = vmatpush1.msra.mxu0 0.0
    %4778 = vmatprep.subr.mxu0 0.0
    %4779 = vmatpush1.msra.mxu0 0.0
    %4780 = vmatprep.subr.mxu0 0.0
    %4781 = vmatpush1.msra.mxu0 0.0
    %4782 = vmatprep.subr.mxu0 0.0
    %4783 = vmatpush1.msra.mxu0 0.0
    %4784 = vmatprep.subr.mxu0 0.0
    %4785 = vmatpush1.msra.mxu0 0.0
    %4786 = vmatprep.subr.mxu0 0.0
    %4787 = vmatpush1.msra.mxu0 0.0
    %4788 = vmatprep.subr.mxu0 0.0
    %4789 = vmatpush1.msra.mxu0 0.0
    %4790 = vmatprep.subr.mxu0 0.0
    %4791 = vmatpush1.msra.mxu0 0.0
    %4792 = vmatprep.subr.mxu0 0.0
    %4793 = vmatpush1.msra.mxu0 0.0
    %4794 = vmatprep.subr.mxu0 0.0
    %4795 = vmatpush1.msra.mxu0 0.0
    %4796 = vmatprep.subr.mxu0 0.0
    %4797 = vmatpush1.msra.mxu0 0.0
    %4798 = vmatprep.subr.mxu0 0.0
    %4799 = vmatpush1.msra.mxu0 0.0
    %4800 = vmatprep.subr.mxu0 0.0
    %4801 = vmatpush1.msra.mxu0 0.0
    %4802 = vmatprep.subr.mxu0 0.0
    %4803 = vmatpush1.msra.mxu0 0.0
    %4804 = vmatprep.subr.mxu0 0.0
    %4805 = vmatpush1.msra.mxu0 0.0
    %4806 = vmatprep.subr.mxu0 0.0
    %4807 = vmatpush1.msra.mxu0 0.0
    %4808 = vmatprep.subr.mxu0 0.0
    %4809 = vmatpush1.msra.mxu0 0.0
    %4810 = vmatprep.subr.mxu0 0.0
    %4811 = vmatpush1.msra.mxu0 0.0
    %4812 = vmatprep.subr.mxu0 0.0
    %4813 = vmatpush1.msra.mxu0 0.0
    %4814 = vmatprep.subr.mxu0 0.0
    %4815 = vmatpush1.msra.mxu0 0.0
    %4816 = vmatprep.subr.mxu0 0.0
    %4817 = vmatpush1.msra.mxu0 0.0
    %4818 = vmatprep.subr.mxu0 0.0
    %4819 = vmatpush1.msra.mxu0 0.0
    %4820 = vmatprep.subr.mxu0 0.0
    %4821 = vmatpush1.msra.mxu0 0.0
    %4822 = vmatprep.subr.mxu0 0.0
    %4823 = vmatpush1.msra.mxu0 0.0
    %4824 = vmatprep.mubr.f32.mxu0 0.0
    %4825 = vmatmul.mubr.f32.gmra.mrb[0].mxu0 %v4755
    %v4826 = vpop.f32.mrb[0].mxu0
    %v4827 = vadd.f32 0.0, %v4826
    %v4828 = vpop.f32.mrb[0].mxu0
    %4829 = vmatprep.mubr.f32.mxu0 0.0
    %4830 = vmatmul.mubr.f32.gmra.mrb[0].mxu0 %v4758
    %v4831 = vpop.f32.mrb[0].mxu0
    %v4832 = vadd.f32 0.0, %v4831
    %v4833 = vpop.f32.mrb[0].mxu0
    %4834 = vdwg.mxu0
    %v4835 = vadd.f32 %v4752, %v4827
    %v4836 = vadd.f32 %v4753, %v4832
    %v4838 = vsel %vm194, %v4507, 0
    %v4841 = vsel %vm194, %v4512, 0
    %4843 = vmatprep.subr.mxu0 0.0
    %4844 = vmatpush1.msra.mxu0 %v3795
    %4845 = vmatprep.subr.mxu0 0.0
    %4846 = vmatpush1.msra.mxu0 %v3796
    %4847 = vmatprep.subr.mxu0 0.0
    %4848 = vmatpush1.msra.mxu0 %v3797
    %4849 = vmatprep.subr.mxu0 0.0
    %4850 = vmatpush1.msra.mxu0 %v3798
    %4851 = vmatprep.subr.mxu0 0.0
    %4852 = vmatpush1.msra.mxu0 0.0
    %4853 = vmatprep.subr.mxu0 0.0
    %4854 = vmatpush1.msra.mxu0 0.0
    %4855 = vmatprep.subr.mxu0 0.0
    %4856 = vmatpush1.msra.mxu0 0.0
    %4857 = vmatprep.subr.mxu0 0.0
    %4858 = vmatpush1.msra.mxu0 0.0
    %4859 = vmatprep.subr.mxu0 0.0
    %4860 = vmatpush1.msra.mxu0 0.0
    %4861 = vmatprep.subr.mxu0 0.0
    %4862 = vmatpush1.msra.mxu0 0.0
    %4863 = vmatprep.subr.mxu0 0.0
    %4864 = vmatpush1.msra.mxu0 0.0
    %4865 = vmatprep.subr.mxu0 0.0
    %4866 = vmatpush1.msra.mxu0 0.0
    %4867 = vmatprep.subr.mxu0 0.0
    %4868 = vmatpush1.msra.mxu0 0.0
    %4869 = vmatprep.subr.mxu0 0.0
    %4870 = vmatpush1.msra.mxu0 0.0
    %4871 = vmatprep.subr.mxu0 0.0
    %4872 = vmatpush1.msra.mxu0 0.0
    %4873 = vmatprep.subr.mxu0 0.0
    %4874 = vmatpush1.msra.mxu0 0.0
    %4875 = vmatprep.subr.mxu0 0.0
    %4876 = vmatpush1.msra.mxu0 0.0
    %4877 = vmatprep.subr.mxu0 0.0
    %4878 = vmatpush1.msra.mxu0 0.0
    %4879 = vmatprep.subr.mxu0 0.0
    %4880 = vmatpush1.msra.mxu0 0.0
    %4881 = vmatprep.subr.mxu0 0.0
    %4882 = vmatpush1.msra.mxu0 0.0
    %4883 = vmatprep.subr.mxu0 0.0
    %4884 = vmatpush1.msra.mxu0 0.0
    %4885 = vmatprep.subr.mxu0 0.0
    %4886 = vmatpush1.msra.mxu0 0.0
    %4887 = vmatprep.subr.mxu0 0.0
    %4888 = vmatpush1.msra.mxu0 0.0
    %4889 = vmatprep.subr.mxu0 0.0
    %4890 = vmatpush1.msra.mxu0 0.0
    %4891 = vmatprep.subr.mxu0 0.0
    %4892 = vmatpush1.msra.mxu0 0.0
    %4893 = vmatprep.subr.mxu0 0.0
    %4894 = vmatpush1.msra.mxu0 0.0
    %4895 = vmatprep.subr.mxu0 0.0
    %4896 = vmatpush1.msra.mxu0 0.0
    %4897 = vmatprep.subr.mxu0 0.0
    %4898 = vmatpush1.msra.mxu0 0.0
    %4899 = vmatprep.subr.mxu0 0.0
    %4900 = vmatpush1.msra.mxu0 0.0
    %4901 = vmatprep.subr.mxu0 0.0
    %4902 = vmatpush1.msra.mxu0 0.0
    %4903 = vmatprep.subr.mxu0 0.0
    %4904 = vmatpush1.msra.mxu0 0.0
    %4905 = vmatprep.subr.mxu0 0.0
    %4906 = vmatpush1.msra.mxu0 0.0
    %4907 = vmatprep.mubr.f32.mxu0 0.0
    %4908 = vmatmul.mubr.f32.gmra.mrb[0].mxu0 %v4838
    %v4909 = vpop.f32.mrb[0].mxu0
    %v4910 = vadd.f32 0.0, %v4909
    %v4911 = vpop.f32.mrb[0].mxu0
    %4912 = vmatprep.mubr.f32.mxu0 0.0
    %4913 = vmatmul.mubr.f32.gmra.mrb[0].mxu0 %v4841
    %v4914 = vpop.f32.mrb[0].mxu0
    %v4915 = vadd.f32 0.0, %v4914
    %v4916 = vpop.f32.mrb[0].mxu0
    %4917 = vdwg.mxu0
    %v4918 = vadd.f32 %v4835, %v4910
    %v4919 = vadd.f32 %v4836, %v4915
    %v4921 = vsel %vm617, %v4918, 0
    %v4924 = vsel %vm617, %v4919, 0
    %4926 = vmatprep.subr.mxu0 0.0
    %4927 = vmatpush1.msra.mxu0 %v4331
    %4928 = vmatprep.subr.mxu0 0.0
    %4929 = vmatpush1.msra.mxu0 0.0
    %4930 = vmatprep.subr.mxu0 0.0
    %4931 = vmatpush1.msra.mxu0 0.0
    %4932 = vmatprep.subr.mxu0 0.0
    %4933 = vmatpush1.msra.mxu0 0.0
    %4934 = vmatprep.subr.mxu0 0.0
    %4935 = vmatpush1.msra.mxu0 0.0
    %4936 = vmatprep.subr.mxu0 0.0
    %4937 = vmatpush1.msra.mxu0 0.0
    %4938 = vmatprep.subr.mxu0 0.0
    %4939 = vmatpush1.msra.mxu0 0.0
    %4940 = vmatprep.subr.mxu0 0.0
    %4941 = vmatpush1.msra.mxu0 0.0
    %4942 = vmatprep.subr.mxu0 0.0
    %4943 = vmatpush1.msra.mxu0 0.0
    %4944 = vmatprep.subr.mxu0 0.0
    %4945 = vmatpush1.msra.mxu0 0.0
    %4946 = vmatprep.subr.mxu0 0.0
    %4947 = vmatpush1.msra.mxu0 0.0
    %4948 = vmatprep.subr.mxu0 0.0
    %4949 = vmatpush1.msra.mxu0 0.0
    %4950 = vmatprep.subr.mxu0 0.0
    %4951 = vmatpush1.msra.mxu0 0.0
    %4952 = vmatprep.subr.mxu0 0.0
    %4953 = vmatpush1.msra.mxu0 0.0
    %4954 = vmatprep.subr.mxu0 0.0
    %4955 = vmatpush1.msra.mxu0 0.0
    %4956 = vmatprep.subr.mxu0 0.0
    %4957 = vmatpush1.msra.mxu0 0.0
    %4958 = vmatprep.subr.mxu0 0.0
    %4959 = vmatpush1.msra.mxu0 0.0
    %4960 = vmatprep.subr.mxu0 0.0
    %4961 = vmatpush1.msra.mxu0 0.0
    %4962 = vmatprep.subr.mxu0 0.0
    %4963 = vmatpush1.msra.mxu0 0.0
    %4964 = vmatprep.subr.mxu0 0.0
    %4965 = vmatpush1.msra.mxu0 0.0
    %4966 = vmatprep.subr.mxu0 0.0
    %4967 = vmatpush1.msra.mxu0 0.0
    %4968 = vmatprep.subr.mxu0 0.0
    %4969 = vmatpush1.msra.mxu0 0.0
    %4970 = vmatprep.subr.mxu0 0.0
    %4971 = vmatpush1.msra.mxu0 0.0
    %4972 = vmatprep.subr.mxu0 0.0
    %4973 = vmatpush1.msra.mxu0 0.0
    %4974 = vmatprep.subr.mxu0 0.0
    %4975 = vmatpush1.msra.mxu0 0.0
    %4976 = vmatprep.subr.mxu0 0.0
    %4977 = vmatpush1.msra.mxu0 0.0
    %4978 = vmatprep.subr.mxu0 0.0
    %4979 = vmatpush1.msra.mxu0 0.0
    %4980 = vmatprep.subr.mxu0 0.0
    %4981 = vmatpush1.msra.mxu0 0.0
    %4982 = vmatprep.subr.mxu0 0.0
    %4983 = vmatpush1.msra.mxu0 0.0
    %4984 = vmatprep.subr.mxu0 0.0
    %4985 = vmatpush1.msra.mxu0 0.0
    %4986 = vmatprep.subr.mxu0 0.0
    %4987 = vmatpush1.msra.mxu0 0.0
    %4988 = vmatprep.subr.mxu0 0.0
    %4989 = vmatpush1.msra.mxu0 0.0
    %4990 = vmatprep.mubr.f32.mxu0 0.0
    %4991 = vmatmul.mubr.f32.gmra.mrb[0].mxu0 %v4921
    %v4992 = vpop.f32.mrb[0].mxu0
    %v4993 = vadd.f32 %v4322, %v4992
    %v4994 = vpop.f32.mrb[0].mxu0
    %4995 = vmatprep.mubr.f32.mxu0 0.0
    %4996 = vmatmul.mubr.f32.gmra.mrb[0].mxu0 %v4924
    %v4997 = vpop.f32.mrb[0].mxu0
    %v4998 = vadd.f32 %v4322, %v4997
    %v4999 = vpop.f32.mrb[0].mxu0
    %5000 = vdwg.mxu0
    %v5001 = vmax.f32 %v4993, 0.0
    %v5002 = vmax.f32 %v4998, 0.0
    %s5003 = scalar_lea.vmem %s3, 512
    %v5004 = vld [vmem:[%s5003] sm:$0xff]
    %v5005 = vld [vmem:[%s5003 + $0x8] sm:$0xff]
    %v5006 = vld [vmem:[%s5003 + $0x10] sm:$0xff]
    %v5007 = vld [vmem:[%s5003 + $0x18] sm:$0xff]
    %v5008 = vld [vmem:[%s5003 + $0x20] sm:$0xff]
    %v5009 = vld [vmem:[%s5003 + $0x28] sm:$0xff]
    %v5010 = vld [vmem:[%s5003 + $0x30] sm:$0xff]
    %v5011 = vld [vmem:[%s5003 + $0x38] sm:$0xff]
    %v5012 = vld [vmem:[%s5003 + $0x40] sm:$0xff]
    %v5013 = vld [vmem:[%s5003 + $0x48] sm:$0xff]
    %v5014 = vld [vmem:[%s5003 + $0x50] sm:$0xff]
    %v5015 = vld [vmem:[%s5003 + $0x58] sm:$0xff]
    %v5016 = vld [vmem:[%s5003 + $0x60] sm:$0xff]
    %v5017 = vld [vmem:[%s5003 + $0x68] sm:$0xff]
    %v5018 = vld [vmem:[%s5003 + $0x70] sm:$0xff]
    %v5019 = vld [vmem:[%s5003 + $0x78] sm:$0xff]
    %s5020 = scalar_lea.vmem %s4, 16
    %v5021 = vld [vmem:[%s5020] sm:$0xf]
    %s5022 = scalar_lea.vmem %s5, 32
    %v5023 = vld [vmem:[%s5022] sm:$0x3f]
    %s5024 = scalar_lea.vmem %s6, 4
    %v5025 = vld [vmem:[%s5024] sm:$0x1]
    %5026 = vmatprep.subr.mxu0 0.0
    %5027 = vmatpush1.msra.mxu0 %v4408
    %5028 = vmatprep.subr.mxu0 0.0
    %5029 = vmatpush1.msra.mxu0 %v4409
    %5030 = vmatprep.subr.mxu0 0.0
    %5031 = vmatpush1.msra.mxu0 0.0
    %5032 = vmatprep.subr.mxu0 0.0
    %5033 = vmatpush1.msra.mxu0 0.0
    %5034 = vmatprep.subr.mxu0 0.0
    %5035 = vmatpush1.msra.mxu0 0.0
    %5036 = vmatprep.subr.mxu0 0.0
    %5037 = vmatpush1.msra.mxu0 0.0
    %5038 = vmatprep.subr.mxu0 0.0
    %5039 = vmatpush1.msra.mxu0 0.0
    %5040 = vmatprep.subr.mxu0 0.0
    %5041 = vmatpush1.msra.mxu0 0.0
    %5042 = vmatprep.subr.mxu0 0.0
    %5043 = vmatpush1.msra.mxu0 0.0
    %5044 = vmatprep.subr.mxu0 0.0
    %5045 = vmatpush1.msra.mxu0 0.0
    %5046 = vmatprep.subr.mxu0 0.0
    %5047 = vmatpush1.msra.mxu0 0.0
    %5048 = vmatprep.subr.mxu0 0.0
    %5049 = vmatpush1.msra.mxu0 0.0
    %5050 = vmatprep.subr.mxu0 0.0
    %5051 = vmatpush1.msra.mxu0 0.0
    %5052 = vmatprep.subr.mxu0 0.0
    %5053 = vmatpush1.msra.mxu0 0.0
    %5054 = vmatprep.subr.mxu0 0.0
    %5055 = vmatpush1.msra.mxu0 0.0
    %5056 = vmatprep.subr.mxu0 0.0
    %5057 = vmatpush1.msra.mxu0 0.0
    %5058 = vmatprep.subr.mxu0 0.0
    %5059 = vmatpush1.msra.mxu0 0.0
    %5060 = vmatprep.subr.mxu0 0.0
    %5061 = vmatpush1.msra.mxu0 0.0
    %5062 = vmatprep.subr.mxu0 0.0
    %5063 = vmatpush1.msra.mxu0 0.0
    %5064 = vmatprep.subr.mxu0 0.0
    %5065 = vmatpush1.msra.mxu0 0.0
    %5066 = vmatprep.subr.mxu0 0.0
    %5067 = vmatpush1.msra.mxu0 0.0
    %5068 = vmatprep.subr.mxu0 0.0
    %5069 = vmatpush1.msra.mxu0 0.0
    %5070 = vmatprep.subr.mxu0 0.0
    %5071 = vmatpush1.msra.mxu0 0.0
    %5072 = vmatprep.subr.mxu0 0.0
    %5073 = vmatpush1.msra.mxu0 0.0
    %5074 = vmatprep.subr.mxu0 0.0
    %5075 = vmatpush1.msra.mxu0 0.0
    %5076 = vmatprep.subr.mxu0 0.0
    %5077 = vmatpush1.msra.mxu0 0.0
    %5078 = vmatprep.subr.mxu0 0.0
    %5079 = vmatpush1.msra.mxu0 0.0
    %5080 = vmatprep.subr.mxu0 0.0
    %5081 = vmatpush1.msra.mxu0 0.0
    %5082 = vmatprep.subr.mxu0 0.0
    %5083 = vmatpush1.msra.mxu0 0.0
    %5084 = vmatprep.subr.mxu0 0.0
    %5085 = vmatpush1.msra.mxu0 0.0
    %5086 = vmatprep.subr.mxu0 0.0
    %5087 = vmatpush1.msra.mxu0 0.0
    %5088 = vmatprep.subr.mxu0 0.0
    %5089 = vmatpush1.msra.mxu0 0.0
    %5090 = vmatprep.mubr.f32.mxu0 0.0
    %5091 = vmatmul.mubr.f32.gmra.mrb[0].mxu0 %v64
    %v5092 = vpop.f32.mrb[0].mxu0
    %v5093 = vadd.f32 0.0, %v5092
    %v5094 = vpop.f32.mrb[0].mxu0
    %5095 = vmatprep.mubr.f32.mxu0 0.0
    %5096 = vmatmul.mubr.f32.gmra.mrb[0].mxu0 %v67
    %v5097 = vpop.f32.mrb[0].mxu0
    %v5098 = vadd.f32 0.0, %v5097
    %v5099 = vpop.f32.mrb[0].mxu0
    %5100 = vmatprep.mubr.f32.mxu0 0.0
    %5101 = vmatmul.mubr.f32.gmra.mrb[0].mxu0 %v70
    %v5102 = vpop.f32.mrb[0].mxu0
    %v5103 = vadd.f32 0.0, %v5102
    %v5104 = vpop.f32.mrb[0].mxu0
    %5105 = vmatprep.mubr.f32.mxu0 0.0
    %5106 = vmatmul.mubr.f32.gmra.mrb[0].mxu0 %v73
    %v5107 = vpop.f32.mrb[0].mxu0
    %v5108 = vadd.f32 0.0, %v5107
    %v5109 = vpop.f32.mrb[0].mxu0
    %5110 = vmatprep.mubr.f32.mxu0 0.0
    %5111 = vmatmul.mubr.f32.gmra.mrb[0].mxu0 %v76
    %v5112 = vpop.f32.mrb[0].mxu0
    %v5113 = vadd.f32 0.0, %v5112
    %v5114 = vpop.f32.mrb[0].mxu0
    %5115 = vmatprep.mubr.f32.mxu0 0.0
    %5116 = vmatmul.mubr.f32.gmra.mrb[0].mxu0 %v79
    %v5117 = vpop.f32.mrb[0].mxu0
    %v5118 = vadd.f32 0.0, %v5117
    %v5119 = vpop.f32.mrb[0].mxu0
    %5120 = vmatprep.mubr.f32.mxu0 0.0
    %5121 = vmatmul.mubr.f32.gmra.mrb[0].mxu0 %v82
    %v5122 = vpop.f32.mrb[0].mxu0
    %v5123 = vadd.f32 0.0, %v5122
    %v5124 = vpop.f32.mrb[0].mxu0
    %5125 = vmatprep.mubr.f32.mxu0 0.0
    %5126 = vmatmul.mubr.f32.gmra.mrb[0].mxu0 %v85
    %v5127 = vpop.f32.mrb[0].mxu0
    %v5128 = vadd.f32 0.0, %v5127
    %v5129 = vpop.f32.mrb[0].mxu0
    %5130 = vdwg.mxu0
    %v5132 = vsel %vm194, %v5093, 0
    %v5135 = vsel %vm194, %v5098, 0
    %5137 = vmatprep.subr.mxu0 0.0
    %5138 = vmatpush1.msra.mxu0 %v5004
    %5139 = vmatprep.subr.mxu0 0.0
    %5140 = vmatpush1.msra.mxu0 %v5005
    %5141 = vmatprep.subr.mxu0 0.0
    %5142 = vmatpush1.msra.mxu0 %v5006
    %5143 = vmatprep.subr.mxu0 0.0
    %5144 = vmatpush1.msra.mxu0 %v5007
    %5145 = vmatprep.subr.mxu0 0.0
    %5146 = vmatpush1.msra.mxu0 0.0
    %5147 = vmatprep.subr.mxu0 0.0
    %5148 = vmatpush1.msra.mxu0 0.0
    %5149 = vmatprep.subr.mxu0 0.0
    %5150 = vmatpush1.msra.mxu0 0.0
    %5151 = vmatprep.subr.mxu0 0.0
    %5152 = vmatpush1.msra.mxu0 0.0
    %5153 = vmatprep.subr.mxu0 0.0
    %5154 = vmatpush1.msra.mxu0 0.0
    %5155 = vmatprep.subr.mxu0 0.0
    %5156 = vmatpush1.msra.mxu0 0.0
    %5157 = vmatprep.subr.mxu0 0.0
    %5158 = vmatpush1.msra.mxu0 0.0
    %5159 = vmatprep.subr.mxu0 0.0
    %5160 = vmatpush1.msra.mxu0 0.0
    %5161 = vmatprep.subr.mxu0 0.0
    %5162 = vmatpush1.msra.mxu0 0.0
    %5163 = vmatprep.subr.mxu0 0.0
    %5164 = vmatpush1.msra.mxu0 0.0
    %5165 = vmatprep.subr.mxu0 0.0
    %5166 = vmatpush1.msra.mxu0 0.0
    %5167 = vmatprep.subr.mxu0 0.0
    %5168 = vmatpush1.msra.mxu0 0.0
    %5169 = vmatprep.subr.mxu0 0.0
    %5170 = vmatpush1.msra.mxu0 0.0
    %5171 = vmatprep.subr.mxu0 0.0
    %5172 = vmatpush1.msra.mxu0 0.0
    %5173 = vmatprep.subr.mxu0 0.0
    %5174 = vmatpush1.msra.mxu0 0.0
    %5175 = vmatprep.subr.mxu0 0.0
    %5176 = vmatpush1.msra.mxu0 0.0
    %5177 = vmatprep.subr.mxu0 0.0
    %5178 = vmatpush1.msra.mxu0 0.0
    %5179 = vmatprep.subr.mxu0 0.0
    %5180 = vmatpush1.msra.mxu0 0.0
    %5181 = vmatprep.subr.mxu0 0.0
    %5182 = vmatpush1.msra.mxu0 0.0
    %5183 = vmatprep.subr.mxu0 0.0
    %5184 = vmatpush1.msra.mxu0 0.0
    %5185 = vmatprep.subr.mxu0 0.0
    %5186 = vmatpush1.msra.mxu0 0.0
    %5187 = vmatprep.subr.mxu0 0.0
    %5188 = vmatpush1.msra.mxu0 0.0
    %5189 = vmatprep.subr.mxu0 0.0
    %5190 = vmatpush1.msra.mxu0 0.0
    %5191 = vmatprep.subr.mxu0 0.0
    %5192 = vmatpush1.msra.mxu0 0.0
    %5193 = vmatprep.subr.mxu0 0.0
    %5194 = vmatpush1.msra.mxu0 0.0
    %5195 = vmatprep.subr.mxu0 0.0
    %5196 = vmatpush1.msra.mxu0 0.0
    %5197 = vmatprep.subr.mxu0 0.0
    %5198 = vmatpush1.msra.mxu0 0.0
    %5199 = vmatprep.subr.mxu0 0.0
    %5200 = vmatpush1.msra.mxu0 0.0
    %5201 = vmatprep.mubr.f32.mxu0 0.0
    %5202 = vmatmul.mubr.f32.gmra.mrb[0].mxu0 %v5132
    %v5203 = vpop.f32.mrb[0].mxu0
    %v5204 = vadd.f32 0.0, %v5203
    %v5205 = vpop.f32.mrb[0].mxu0
    %5206 = vmatprep.mubr.f32.mxu0 0.0
    %5207 = vmatmul.mubr.f32.gmra.mrb[0].mxu0 %v5135
    %v5208 = vpop.f32.mrb[0].mxu0
    %v5209 = vadd.f32 0.0, %v5208
    %v5210 = vpop.f32.mrb[0].mxu0
    %5211 = vdwg.mxu0
    %v5213 = vsel %vm283, %v5021, 0
    %5215 = vmatprep.subr.mxu0 0.0
    %5216 = vmatpush1.msra.mxu0 %v5213
    %5217 = vmatprep.subr.mxu0 0.0
    %5218 = vmatpush1.msra.mxu0 0.0
    %5219 = vmatprep.subr.mxu0 0.0
    %5220 = vmatpush1.msra.mxu0 0.0
    %5221 = vmatprep.subr.mxu0 0.0
    %5222 = vmatpush1.msra.mxu0 0.0
    %5223 = vmatprep.subr.mxu0 0.0
    %5224 = vmatpush1.msra.mxu0 0.0
    %5225 = vmatprep.subr.mxu0 0.0
    %5226 = vmatpush1.msra.mxu0 0.0
    %5227 = vmatprep.subr.mxu0 0.0
    %5228 = vmatpush1.msra.mxu0 0.0
    %5229 = vmatprep.subr.mxu0 0.0
    %5230 = vmatpush1.msra.mxu0 0.0
    %5231 = vmatprep.subr.mxu0 0.0
    %5232 = vmatpush1.msra.mxu0 0.0
    %5233 = vmatprep.subr.mxu0 0.0
    %5234 = vmatpush1.msra.mxu0 0.0
    %5235 = vmatprep.subr.mxu0 0.0
    %5236 = vmatpush1.msra.mxu0 0.0
    %5237 = vmatprep.subr.mxu0 0.0
    %5238 = vmatpush1.msra.mxu0 0.0
    %5239 = vmatprep.subr.mxu0 0.0
    %5240 = vmatpush1.msra.mxu0 0.0
    %5241 = vmatprep.subr.mxu0 0.0
    %5242 = vmatpush1.msra.mxu0 0.0
    %5243 = vmatprep.subr.mxu0 0.0
    %5244 = vmatpush1.msra.mxu0 0.0
    %5245 = vmatprep.subr.mxu0 0.0
    %5246 = vmatpush1.msra.mxu0 0.0
    %5247 = vmatprep.subr.mxu0 0.0
    %5248 = vmatpush1.msra.mxu0 0.0
    %5249 = vmatprep.subr.mxu0 0.0
    %5250 = vmatpush1.msra.mxu0 0.0
    %5251 = vmatprep.subr.mxu0 0.0
    %5252 = vmatpush1.msra.mxu0 0.0
    %5253 = vmatprep.subr.mxu0 0.0
    %5254 = vmatpush1.msra.mxu0 0.0
    %5255 = vmatprep.subr.mxu0 0.0
    %5256 = vmatpush1.msra.mxu0 0.0
    %5257 = vmatprep.subr.mxu0 0.0
    %5258 = vmatpush1.msra.mxu0 0.0
    %5259 = vmatprep.subr.mxu0 0.0
    %5260 = vmatpush1.msra.mxu0 0.0
    %5261 = vmatprep.subr.mxu0 0.0
    %5262 = vmatpush1.msra.mxu0 0.0
    %5263 = vmatprep.subr.mxu0 0.0
    %5264 = vmatpush1.msra.mxu0 0.0
    %5265 = vmatprep.subr.mxu0 0.0
    %5266 = vmatpush1.msra.mxu0 0.0
    %5267 = vmatprep.subr.mxu0 0.0
    %5268 = vmatpush1.msra.mxu0 0.0
    %5269 = vmatprep.subr.mxu0 0.0
    %5270 = vmatpush1.msra.mxu0 0.0
    %5271 = vmatprep.subr.mxu0 0.0
    %5272 = vmatpush1.msra.mxu0 0.0
    %5273 = vmatprep.subr.mxu0 0.0
    %5274 = vmatpush1.msra.mxu0 0.0
    %5275 = vmatprep.subr.mxu0 0.0
    %5276 = vmatpush1.msra.mxu0 0.0
    %5277 = vmatprep.subr.mxu0 0.0
    %5278 = vmatpush1.msra.mxu0 0.0
    %5279 = vmatprep.mubr.f32.mxu0 0.0
    %5280 = vmatmul.mubr.f32.gmra.mrb[0].mxu0 %v278
    %v5281 = vpop.f32.mrb[0].mxu0
    %v5282 = vadd.f32 %v5204, %v5281
    %v5283 = vpop.f32.mrb[0].mxu0
    %5284 = vmatprep.mubr.f32.mxu0 0.0
    %5285 = vmatmul.mubr.f32.gmra.mrb[0].mxu0 %v281
    %v5286 = vpop.f32.mrb[0].mxu0
    %v5287 = vadd.f32 %v5209, %v5286
    %v5288 = vpop.f32.mrb[0].mxu0
    %5289 = vdwg.mxu0
    %v5291 = vsel %vm194, %v5103, 0
    %v5294 = vsel %vm194, %v5108, 0
    %5296 = vmatprep.subr.mxu0 0.0
    %5297 = vmatpush1.msra.mxu0 %v5008
    %5298 = vmatprep.subr.mxu0 0.0
    %5299 = vmatpush1.msra.mxu0 %v5009
    %5300 = vmatprep.subr.mxu0 0.0
    %5301 = vmatpush1.msra.mxu0 %v5010
    %5302 = vmatprep.subr.mxu0 0.0
    %5303 = vmatpush1.msra.mxu0 %v5011
    %5304 = vmatprep.subr.mxu0 0.0
    %5305 = vmatpush1.msra.mxu0 0.0
    %5306 = vmatprep.subr.mxu0 0.0
    %5307 = vmatpush1.msra.mxu0 0.0
    %5308 = vmatprep.subr.mxu0 0.0
    %5309 = vmatpush1.msra.mxu0 0.0
    %5310 = vmatprep.subr.mxu0 0.0
    %5311 = vmatpush1.msra.mxu0 0.0
    %5312 = vmatprep.subr.mxu0 0.0
    %5313 = vmatpush1.msra.mxu0 0.0
    %5314 = vmatprep.subr.mxu0 0.0
    %5315 = vmatpush1.msra.mxu0 0.0
    %5316 = vmatprep.subr.mxu0 0.0
    %5317 = vmatpush1.msra.mxu0 0.0
    %5318 = vmatprep.subr.mxu0 0.0
    %5319 = vmatpush1.msra.mxu0 0.0
    %5320 = vmatprep.subr.mxu0 0.0
    %5321 = vmatpush1.msra.mxu0 0.0
    %5322 = vmatprep.subr.mxu0 0.0
    %5323 = vmatpush1.msra.mxu0 0.0
    %5324 = vmatprep.subr.mxu0 0.0
    %5325 = vmatpush1.msra.mxu0 0.0
    %5326 = vmatprep.subr.mxu0 0.0
    %5327 = vmatpush1.msra.mxu0 0.0
    %5328 = vmatprep.subr.mxu0 0.0
    %5329 = vmatpush1.msra.mxu0 0.0
    %5330 = vmatprep.subr.mxu0 0.0
    %5331 = vmatpush1.msra.mxu0 0.0
    %5332 = vmatprep.subr.mxu0 0.0
    %5333 = vmatpush1.msra.mxu0 0.0
    %5334 = vmatprep.subr.mxu0 0.0
    %5335 = vmatpush1.msra.mxu0 0.0
    %5336 = vmatprep.subr.mxu0 0.0
    %5337 = vmatpush1.msra.mxu0 0.0
    %5338 = vmatprep.subr.mxu0 0.0
    %5339 = vmatpush1.msra.mxu0 0.0
    %5340 = vmatprep.subr.mxu0 0.0
    %5341 = vmatpush1.msra.mxu0 0.0
    %5342 = vmatprep.subr.mxu0 0.0
    %5343 = vmatpush1.msra.mxu0 0.0
    %5344 = vmatprep.subr.mxu0 0.0
    %5345 = vmatpush1.msra.mxu0 0.0
    %5346 = vmatprep.subr.mxu0 0.0
    %5347 = vmatpush1.msra.mxu0 0.0
    %5348 = vmatprep.subr.mxu0 0.0
    %5349 = vmatpush1.msra.mxu0 0.0
    %5350 = vmatprep.subr.mxu0 0.0
    %5351 = vmatpush1.msra.mxu0 0.0
    %5352 = vmatprep.subr.mxu0 0.0
    %5353 = vmatpush1.msra.mxu0 0.0
    %5354 = vmatprep.subr.mxu0 0.0
    %5355 = vmatpush1.msra.mxu0 0.0
    %5356 = vmatprep.subr.mxu0 0.0
    %5357 = vmatpush1.msra.mxu0 0.0
    %5358 = vmatprep.subr.mxu0 0.0
    %5359 = vmatpush1.msra.mxu0 0.0
    %5360 = vmatprep.mubr.f32.mxu0 0.0
    %5361 = vmatmul.mubr.f32.gmra.mrb[0].mxu0 %v5291
    %v5362 = vpop.f32.mrb[0].mxu0
    %v5363 = vadd.f32 0.0, %v5362
    %v5364 = vpop.f32.mrb[0].mxu0
    %5365 = vmatprep.mubr.f32.mxu0 0.0
    %5366 = vmatmul.mubr.f32.gmra.mrb[0].mxu0 %v5294
    %v5367 = vpop.f32.mrb[0].mxu0
    %v5368 = vadd.f32 0.0, %v5367
    %v5369 = vpop.f32.mrb[0].mxu0
    %5370 = vdwg.mxu0
    %v5371 = vadd.f32 %v5282, %v5363
    %v5372 = vadd.f32 %v5287, %v5368
    %v5374 = vsel %vm194, %v5113, 0
    %v5377 = vsel %vm194, %v5118, 0
    %5379 = vmatprep.subr.mxu0 0.0
    %5380 = vmatpush1.msra.mxu0 %v5012
    %5381 = vmatprep.subr.mxu0 0.0
    %5382 = vmatpush1.msra.mxu0 %v5013
    %5383 = vmatprep.subr.mxu0 0.0
    %5384 = vmatpush1.msra.mxu0 %v5014
    %5385 = vmatprep.subr.mxu0 0.0
    %5386 = vmatpush1.msra.mxu0 %v5015
    %5387 = vmatprep.subr.mxu0 0.0
    %5388 = vmatpush1.msra.mxu0 0.0
    %5389 = vmatprep.subr.mxu0 0.0
    %5390 = vmatpush1.msra.mxu0 0.0
    %5391 = vmatprep.subr.mxu0 0.0
    %5392 = vmatpush1.msra.mxu0 0.0
    %5393 = vmatprep.subr.mxu0 0.0
    %5394 = vmatpush1.msra.mxu0 0.0
    %5395 = vmatprep.subr.mxu0 0.0
    %5396 = vmatpush1.msra.mxu0 0.0
    %5397 = vmatprep.subr.mxu0 0.0
    %5398 = vmatpush1.msra.mxu0 0.0
    %5399 = vmatprep.subr.mxu0 0.0
    %5400 = vmatpush1.msra.mxu0 0.0
    %5401 = vmatprep.subr.mxu0 0.0
    %5402 = vmatpush1.msra.mxu0 0.0
    %5403 = vmatprep.subr.mxu0 0.0
    %5404 = vmatpush1.msra.mxu0 0.0
    %5405 = vmatprep.subr.mxu0 0.0
    %5406 = vmatpush1.msra.mxu0 0.0
    %5407 = vmatprep.subr.mxu0 0.0
    %5408 = vmatpush1.msra.mxu0 0.0
    %5409 = vmatprep.subr.mxu0 0.0
    %5410 = vmatpush1.msra.mxu0 0.0
    %5411 = vmatprep.subr.mxu0 0.0
    %5412 = vmatpush1.msra.mxu0 0.0
    %5413 = vmatprep.subr.mxu0 0.0
    %5414 = vmatpush1.msra.mxu0 0.0
    %5415 = vmatprep.subr.mxu0 0.0
    %5416 = vmatpush1.msra.mxu0 0.0
    %5417 = vmatprep.subr.mxu0 0.0
    %5418 = vmatpush1.msra.mxu0 0.0
    %5419 = vmatprep.subr.mxu0 0.0
    %5420 = vmatpush1.msra.mxu0 0.0
    %5421 = vmatprep.subr.mxu0 0.0
    %5422 = vmatpush1.msra.mxu0 0.0
    %5423 = vmatprep.subr.mxu0 0.0
    %5424 = vmatpush1.msra.mxu0 0.0
    %5425 = vmatprep.subr.mxu0 0.0
    %5426 = vmatpush1.msra.mxu0 0.0
    %5427 = vmatprep.subr.mxu0 0.0
    %5428 = vmatpush1.msra.mxu0 0.0
    %5429 = vmatprep.subr.mxu0 0.0
    %5430 = vmatpush1.msra.mxu0 0.0
    %5431 = vmatprep.subr.mxu0 0.0
    %5432 = vmatpush1.msra.mxu0 0.0
    %5433 = vmatprep.subr.mxu0 0.0
    %5434 = vmatpush1.msra.mxu0 0.0
    %5435 = vmatprep.subr.mxu0 0.0
    %5436 = vmatpush1.msra.mxu0 0.0
    %5437 = vmatprep.subr.mxu0 0.0
    %5438 = vmatpush1.msra.mxu0 0.0
    %5439 = vmatprep.subr.mxu0 0.0
    %5440 = vmatpush1.msra.mxu0 0.0
    %5441 = vmatprep.subr.mxu0 0.0
    %5442 = vmatpush1.msra.mxu0 0.0
    %5443 = vmatprep.mubr.f32.mxu0 0.0
    %5444 = vmatmul.mubr.f32.gmra.mrb[0].mxu0 %v5374
    %v5445 = vpop.f32.mrb[0].mxu0
    %v5446 = vadd.f32 0.0, %v5445
    %v5447 = vpop.f32.mrb[0].mxu0
    %5448 = vmatprep.mubr.f32.mxu0 0.0
    %5449 = vmatmul.mubr.f32.gmra.mrb[0].mxu0 %v5377
    %v5450 = vpop.f32.mrb[0].mxu0
    %v5451 = vadd.f32 0.0, %v5450
    %v5452 = vpop.f32.mrb[0].mxu0
    %5453 = vdwg.mxu0
    %v5454 = vadd.f32 %v5371, %v5446
    %v5455 = vadd.f32 %v5372, %v5451
    %v5457 = vsel %vm194, %v5123, 0
    %v5460 = vsel %vm194, %v5128, 0
    %5462 = vmatprep.subr.mxu0 0.0
    %5463 = vmatpush1.msra.mxu0 %v5016
    %5464 = vmatprep.subr.mxu0 0.0
    %5465 = vmatpush1.msra.mxu0 %v5017
    %5466 = vmatprep.subr.mxu0 0.0
    %5467 = vmatpush1.msra.mxu0 %v5018
    %5468 = vmatprep.subr.mxu0 0.0
    %5469 = vmatpush1.msra.mxu0 %v5019
    %5470 = vmatprep.subr.mxu0 0.0
    %5471 = vmatpush1.msra.mxu0 0.0
    %5472 = vmatprep.subr.mxu0 0.0
    %5473 = vmatpush1.msra.mxu0 0.0
    %5474 = vmatprep.subr.mxu0 0.0
    %5475 = vmatpush1.msra.mxu0 0.0
    %5476 = vmatprep.subr.mxu0 0.0
    %5477 = vmatpush1.msra.mxu0 0.0
    %5478 = vmatprep.subr.mxu0 0.0
    %5479 = vmatpush1.msra.mxu0 0.0
    %5480 = vmatprep.subr.mxu0 0.0
    %5481 = vmatpush1.msra.mxu0 0.0
    %5482 = vmatprep.subr.mxu0 0.0
    %5483 = vmatpush1.msra.mxu0 0.0
    %5484 = vmatprep.subr.mxu0 0.0
    %5485 = vmatpush1.msra.mxu0 0.0
    %5486 = vmatprep.subr.mxu0 0.0
    %5487 = vmatpush1.msra.mxu0 0.0
    %5488 = vmatprep.subr.mxu0 0.0
    %5489 = vmatpush1.msra.mxu0 0.0
    %5490 = vmatprep.subr.mxu0 0.0
    %5491 = vmatpush1.msra.mxu0 0.0
    %5492 = vmatprep.subr.mxu0 0.0
    %5493 = vmatpush1.msra.mxu0 0.0
    %5494 = vmatprep.subr.mxu0 0.0
    %5495 = vmatpush1.msra.mxu0 0.0
    %5496 = vmatprep.subr.mxu0 0.0
    %5497 = vmatpush1.msra.mxu0 0.0
    %5498 = vmatprep.subr.mxu0 0.0
    %5499 = vmatpush1.msra.mxu0 0.0
    %5500 = vmatprep.subr.mxu0 0.0
    %5501 = vmatpush1.msra.mxu0 0.0
    %5502 = vmatprep.subr.mxu0 0.0
    %5503 = vmatpush1.msra.mxu0 0.0
    %5504 = vmatprep.subr.mxu0 0.0
    %5505 = vmatpush1.msra.mxu0 0.0
    %5506 = vmatprep.subr.mxu0 0.0
    %5507 = vmatpush1.msra.mxu0 0.0
    %5508 = vmatprep.subr.mxu0 0.0
    %5509 = vmatpush1.msra.mxu0 0.0
    %5510 = vmatprep.subr.mxu0 0.0
    %5511 = vmatpush1.msra.mxu0 0.0
    %5512 = vmatprep.subr.mxu0 0.0
    %5513 = vmatpush1.msra.mxu0 0.0
    %5514 = vmatprep.subr.mxu0 0.0
    %5515 = vmatpush1.msra.mxu0 0.0
    %5516 = vmatprep.subr.mxu0 0.0
    %5517 = vmatpush1.msra.mxu0 0.0
    %5518 = vmatprep.subr.mxu0 0.0
    %5519 = vmatpush1.msra.mxu0 0.0
    %5520 = vmatprep.subr.mxu0 0.0
    %5521 = vmatpush1.msra.mxu0 0.0
    %5522 = vmatprep.subr.mxu0 0.0
    %5523 = vmatpush1.msra.mxu0 0.0
    %5524 = vmatprep.subr.mxu0 0.0
    %5525 = vmatpush1.msra.mxu0 0.0
    %5526 = vmatprep.mubr.f32.mxu0 0.0
    %5527 = vmatmul.mubr.f32.gmra.mrb[0].mxu0 %v5457
    %v5528 = vpop.f32.mrb[0].mxu0
    %v5529 = vadd.f32 0.0, %v5528
    %v5530 = vpop.f32.mrb[0].mxu0
    %5531 = vmatprep.mubr.f32.mxu0 0.0
    %5532 = vmatmul.mubr.f32.gmra.mrb[0].mxu0 %v5460
    %v5533 = vpop.f32.mrb[0].mxu0
    %v5534 = vadd.f32 0.0, %v5533
    %v5535 = vpop.f32.mrb[0].mxu0
    %5536 = vdwg.mxu0
    %v5537 = vadd.f32 %v5454, %v5529
    %v5538 = vadd.f32 %v5455, %v5534
    %v5540 = vlaneseq
    %v5541 = vshrl.u32 %v5540, 7
    %v5542 = vsub.s32 0, %v5541
    %v5543 = vrot.slane %v5025, %v5542
    %v5546 = vsel %vm617, %v5537, 0
    %v5549 = vsel %vm617, %v5538, 0
    %v5552 = vsel %vm624, %v5023, 0
    %5554 = vmatprep.subr.mxu0 0.0
    %5555 = vmatpush1.msra.mxu0 %v5552
    %5556 = vmatprep.subr.mxu0 0.0
    %5557 = vmatpush1.msra.mxu0 0.0
    %5558 = vmatprep.subr.mxu0 0.0
    %5559 = vmatpush1.msra.mxu0 0.0
    %5560 = vmatprep.subr.mxu0 0.0
    %5561 = vmatpush1.msra.mxu0 0.0
    %5562 = vmatprep.subr.mxu0 0.0
    %5563 = vmatpush1.msra.mxu0 0.0
    %5564 = vmatprep.subr.mxu0 0.0
    %5565 = vmatpush1.msra.mxu0 0.0
    %5566 = vmatprep.subr.mxu0 0.0
    %5567 = vmatpush1.msra.mxu0 0.0
    %5568 = vmatprep.subr.mxu0 0.0
    %5569 = vmatpush1.msra.mxu0 0.0
    %5570 = vmatprep.subr.mxu0 0.0
    %5571 = vmatpush1.msra.mxu0 0.0
    %5572 = vmatprep.subr.mxu0 0.0
    %5573 = vmatpush1.msra.mxu0 0.0
    %5574 = vmatprep.subr.mxu0 0.0
    %5575 = vmatpush1.msra.mxu0 0.0
    %5576 = vmatprep.subr.mxu0 0.0
    %5577 = vmatpush1.msra.mxu0 0.0
    %5578 = vmatprep.subr.mxu0 0.0
    %5579 = vmatpush1.msra.mxu0 0.0
    %5580 = vmatprep.subr.mxu0 0.0
    %5581 = vmatpush1.msra.mxu0 0.0
    %5582 = vmatprep.subr.mxu0 0.0
    %5583 = vmatpush1.msra.mxu0 0.0
    %5584 = vmatprep.subr.mxu0 0.0
    %5585 = vmatpush1.msra.mxu0 0.0
    %5586 = vmatprep.subr.mxu0 0.0
    %5587 = vmatpush1.msra.mxu0 0.0
    %5588 = vmatprep.subr.mxu0 0.0
    %5589 = vmatpush1.msra.mxu0 0.0
    %5590 = vmatprep.subr.mxu0 0.0
    %5591 = vmatpush1.msra.mxu0 0.0
    %5592 = vmatprep.subr.mxu0 0.0
    %5593 = vmatpush1.msra.mxu0 0.0
    %5594 = vmatprep.subr.mxu0 0.0
    %5595 = vmatpush1.msra.mxu0 0.0
    %5596 = vmatprep.subr.mxu0 0.0
    %5597 = vmatpush1.msra.mxu0 0.0
    %5598 = vmatprep.subr.mxu0 0.0
    %5599 = vmatpush1.msra.mxu0 0.0
    %5600 = vmatprep.subr.mxu0 0.0
    %5601 = vmatpush1.msra.mxu0 0.0
    %5602 = vmatprep.subr.mxu0 0.0
    %5603 = vmatpush1.msra.mxu0 0.0
    %5604 = vmatprep.subr.mxu0 0.0
    %5605 = vmatpush1.msra.mxu0 0.0
    %5606 = vmatprep.subr.mxu0 0.0
    %5607 = vmatpush1.msra.mxu0 0.0
    %5608 = vmatprep.subr.mxu0 0.0
    %5609 = vmatpush1.msra.mxu0 0.0
    %5610 = vmatprep.subr.mxu0 0.0
    %5611 = vmatpush1.msra.mxu0 0.0
    %5612 = vmatprep.subr.mxu0 0.0
    %5613 = vmatpush1.msra.mxu0 0.0
    %5614 = vmatprep.subr.mxu0 0.0
    %5615 = vmatpush1.msra.mxu0 0.0
    %5616 = vmatprep.subr.mxu0 0.0
    %5617 = vmatpush1.msra.mxu0 0.0
    %5618 = vmatprep.mubr.f32.mxu0 0.0
    %5619 = vmatmul.mubr.f32.gmra.mrb[0].mxu0 %v5546
    %v5620 = vpop.f32.mrb[0].mxu0
    %v5621 = vadd.f32 %v5543, %v5620
    %v5622 = vpop.f32.mrb[0].mxu0
    %5623 = vmatprep.mubr.f32.mxu0 0.0
    %5624 = vmatmul.mubr.f32.gmra.mrb[0].mxu0 %v5549
    %v5625 = vpop.f32.mrb[0].mxu0
    %v5626 = vadd.f32 %v5543, %v5625
    %v5627 = vpop.f32.mrb[0].mxu0
    %5628 = vdwg.mxu0
    %v5629 = vmax.f32 %v5621, 0.0
    %v5630 = vmax.f32 %v5626, 0.0
    %5631 = vmatprep.subr.mxu0 0.0
    %5632 = vmatpush1.msra.mxu0 %v5001
    %5633 = vmatprep.subr.mxu0 0.0
    %5634 = vmatpush1.msra.mxu0 %v5002
    %5635 = vmatprep.subr.mxu0 0.0
    %5636 = vmatpush1.msra.mxu0 0.0
    %5637 = vmatprep.subr.mxu0 0.0
    %5638 = vmatpush1.msra.mxu0 0.0
    %5639 = vmatprep.subr.mxu0 0.0
    %5640 = vmatpush1.msra.mxu0 0.0
    %5641 = vmatprep.subr.mxu0 0.0
    %5642 = vmatpush1.msra.mxu0 0.0
    %5643 = vmatprep.subr.mxu0 0.0
    %5644 = vmatpush1.msra.mxu0 0.0
    %5645 = vmatprep.subr.mxu0 0.0
    %5646 = vmatpush1.msra.mxu0 0.0
    %5647 = vmatprep.subr.mxu0 0.0
    %5648 = vmatpush1.msra.mxu0 0.0
    %5649 = vmatprep.subr.mxu0 0.0
    %5650 = vmatpush1.msra.mxu0 0.0
    %5651 = vmatprep.subr.mxu0 0.0
    %5652 = vmatpush1.msra.mxu0 0.0
    %5653 = vmatprep.subr.mxu0 0.0
    %5654 = vmatpush1.msra.mxu0 0.0
    %5655 = vmatprep.subr.mxu0 0.0
    %5656 = vmatpush1.msra.mxu0 0.0
    %5657 = vmatprep.subr.mxu0 0.0
    %5658 = vmatpush1.msra.mxu0 0.0
    %5659 = vmatprep.subr.mxu0 0.0
    %5660 = vmatpush1.msra.mxu0 0.0
    %5661 = vmatprep.subr.mxu0 0.0
    %5662 = vmatpush1.msra.mxu0 0.0
    %5663 = vmatprep.subr.mxu0 0.0
    %5664 = vmatpush1.msra.mxu0 0.0
    %5665 = vmatprep.subr.mxu0 0.0
    %5666 = vmatpush1.msra.mxu0 0.0
    %5667 = vmatprep.subr.mxu0 0.0
    %5668 = vmatpush1.msra.mxu0 0.0
    %5669 = vmatprep.subr.mxu0 0.0
    %5670 = vmatpush1.msra.mxu0 0.0
    %5671 = vmatprep.subr.mxu0 0.0
    %5672 = vmatpush1.msra.mxu0 0.0
    %5673 = vmatprep.subr.mxu0 0.0
    %5674 = vmatpush1.msra.mxu0 0.0
    %5675 = vmatprep.subr.mxu0 0.0
    %5676 = vmatpush1.msra.mxu0 0.0
    %5677 = vmatprep.subr.mxu0 0.0
    %5678 = vmatpush1.msra.mxu0 0.0
    %5679 = vmatprep.subr.mxu0 0.0
    %5680 = vmatpush1.msra.mxu0 0.0
    %5681 = vmatprep.subr.mxu0 0.0
    %5682 = vmatpush1.msra.mxu0 0.0
    %5683 = vmatprep.subr.mxu0 0.0
    %5684 = vmatpush1.msra.mxu0 0.0
    %5685 = vmatprep.subr.mxu0 0.0
    %5686 = vmatpush1.msra.mxu0 0.0
    %5687 = vmatprep.subr.mxu0 0.0
    %5688 = vmatpush1.msra.mxu0 0.0
    %5689 = vmatprep.subr.mxu0 0.0
    %5690 = vmatpush1.msra.mxu0 0.0
    %5691 = vmatprep.subr.mxu0 0.0
    %5692 = vmatpush1.msra.mxu0 0.0
    %5693 = vmatprep.subr.mxu0 0.0
    %5694 = vmatpush1.msra.mxu0 0.0
    %5695 = vmatprep.mubr.f32.mxu0 0.0
    %5696 = vmatmul.mubr.f32.gmra.mrb[0].mxu0 %v715
    %v5697 = vpop.f32.mrb[0].mxu0
    %v5698 = vadd.f32 0.0, %v5697
    %v5699 = vpop.f32.mrb[0].mxu0
    %5700 = vmatprep.mubr.f32.mxu0 0.0
    %5701 = vmatmul.mubr.f32.gmra.mrb[0].mxu0 %v718
    %v5702 = vpop.f32.mrb[0].mxu0
    %v5703 = vadd.f32 0.0, %v5702
    %v5704 = vpop.f32.mrb[0].mxu0
    %5705 = vmatprep.mubr.f32.mxu0 0.0
    %5706 = vmatmul.mubr.f32.gmra.mrb[0].mxu0 %v721
    %v5707 = vpop.f32.mrb[0].mxu0
    %v5708 = vadd.f32 0.0, %v5707
    %v5709 = vpop.f32.mrb[0].mxu0
    %5710 = vmatprep.mubr.f32.mxu0 0.0
    %5711 = vmatmul.mubr.f32.gmra.mrb[0].mxu0 %v724
    %v5712 = vpop.f32.mrb[0].mxu0
    %v5713 = vadd.f32 0.0, %v5712
    %v5714 = vpop.f32.mrb[0].mxu0
    %5715 = vmatprep.mubr.f32.mxu0 0.0
    %5716 = vmatmul.mubr.f32.gmra.mrb[0].mxu0 %v727
    %v5717 = vpop.f32.mrb[0].mxu0
    %v5718 = vadd.f32 0.0, %v5717
    %v5719 = vpop.f32.mrb[0].mxu0
    %5720 = vmatprep.mubr.f32.mxu0 0.0
    %5721 = vmatmul.mubr.f32.gmra.mrb[0].mxu0 %v730
    %v5722 = vpop.f32.mrb[0].mxu0
    %v5723 = vadd.f32 0.0, %v5722
    %v5724 = vpop.f32.mrb[0].mxu0
    %5725 = vmatprep.mubr.f32.mxu0 0.0
    %5726 = vmatmul.mubr.f32.gmra.mrb[0].mxu0 %v733
    %v5727 = vpop.f32.mrb[0].mxu0
    %v5728 = vadd.f32 0.0, %v5727
    %v5729 = vpop.f32.mrb[0].mxu0
    %5730 = vmatprep.mubr.f32.mxu0 0.0
    %5731 = vmatmul.mubr.f32.gmra.mrb[0].mxu0 %v736
    %v5732 = vpop.f32.mrb[0].mxu0
    %v5733 = vadd.f32 0.0, %v5732
    %v5734 = vpop.f32.mrb[0].mxu0
    %5735 = vdwg.mxu0
    %v5737 = vsel %vm194, %v5698, 0
    %v5740 = vsel %vm194, %v5703, 0
    %5742 = vmatprep.subr.mxu0 0.0
    %5743 = vmatpush1.msra.mxu0 %v5004
    %5744 = vmatprep.subr.mxu0 0.0
    %5745 = vmatpush1.msra.mxu0 %v5005
    %5746 = vmatprep.subr.mxu0 0.0
    %5747 = vmatpush1.msra.mxu0 %v5006
    %5748 = vmatprep.subr.mxu0 0.0
    %5749 = vmatpush1.msra.mxu0 %v5007
    %5750 = vmatprep.subr.mxu0 0.0
    %5751 = vmatpush1.msra.mxu0 0.0
    %5752 = vmatprep.subr.mxu0 0.0
    %5753 = vmatpush1.msra.mxu0 0.0
    %5754 = vmatprep.subr.mxu0 0.0
    %5755 = vmatpush1.msra.mxu0 0.0
    %5756 = vmatprep.subr.mxu0 0.0
    %5757 = vmatpush1.msra.mxu0 0.0
    %5758 = vmatprep.subr.mxu0 0.0
    %5759 = vmatpush1.msra.mxu0 0.0
    %5760 = vmatprep.subr.mxu0 0.0
    %5761 = vmatpush1.msra.mxu0 0.0
    %5762 = vmatprep.subr.mxu0 0.0
    %5763 = vmatpush1.msra.mxu0 0.0
    %5764 = vmatprep.subr.mxu0 0.0
    %5765 = vmatpush1.msra.mxu0 0.0
    %5766 = vmatprep.subr.mxu0 0.0
    %5767 = vmatpush1.msra.mxu0 0.0
    %5768 = vmatprep.subr.mxu0 0.0
    %5769 = vmatpush1.msra.mxu0 0.0
    %5770 = vmatprep.subr.mxu0 0.0
    %5771 = vmatpush1.msra.mxu0 0.0
    %5772 = vmatprep.subr.mxu0 0.0
    %5773 = vmatpush1.msra.mxu0 0.0
    %5774 = vmatprep.subr.mxu0 0.0
    %5775 = vmatpush1.msra.mxu0 0.0
    %5776 = vmatprep.subr.mxu0 0.0
    %5777 = vmatpush1.msra.mxu0 0.0
    %5778 = vmatprep.subr.mxu0 0.0
    %5779 = vmatpush1.msra.mxu0 0.0
    %5780 = vmatprep.subr.mxu0 0.0
    %5781 = vmatpush1.msra.mxu0 0.0
    %5782 = vmatprep.subr.mxu0 0.0
    %5783 = vmatpush1.msra.mxu0 0.0
    %5784 = vmatprep.subr.mxu0 0.0
    %5785 = vmatpush1.msra.mxu0 0.0
    %5786 = vmatprep.subr.mxu0 0.0
    %5787 = vmatpush1.msra.mxu0 0.0
    %5788 = vmatprep.subr.mxu0 0.0
    %5789 = vmatpush1.msra.mxu0 0.0
    %5790 = vmatprep.subr.mxu0 0.0
    %5791 = vmatpush1.msra.mxu0 0.0
    %5792 = vmatprep.subr.mxu0 0.0
    %5793 = vmatpush1.msra.mxu0 0.0
    %5794 = vmatprep.subr.mxu0 0.0
    %5795 = vmatpush1.msra.mxu0 0.0
    %5796 = vmatprep.subr.mxu0 0.0
    %5797 = vmatpush1.msra.mxu0 0.0
    %5798 = vmatprep.subr.mxu0 0.0
    %5799 = vmatpush1.msra.mxu0 0.0
    %5800 = vmatprep.subr.mxu0 0.0
    %5801 = vmatpush1.msra.mxu0 0.0
    %5802 = vmatprep.subr.mxu0 0.0
    %5803 = vmatpush1.msra.mxu0 0.0
    %5804 = vmatprep.subr.mxu0 0.0
    %5805 = vmatpush1.msra.mxu0 0.0
    %5806 = vmatprep.mubr.f32.mxu0 0.0
    %5807 = vmatmul.mubr.f32.gmra.mrb[0].mxu0 %v5737
    %v5808 = vpop.f32.mrb[0].mxu0
    %v5809 = vadd.f32 0.0, %v5808
    %v5810 = vpop.f32.mrb[0].mxu0
    %5811 = vmatprep.mubr.f32.mxu0 0.0
    %5812 = vmatmul.mubr.f32.gmra.mrb[0].mxu0 %v5740
    %v5813 = vpop.f32.mrb[0].mxu0
    %v5814 = vadd.f32 0.0, %v5813
    %v5815 = vpop.f32.mrb[0].mxu0
    %5816 = vdwg.mxu0
    %5817 = vmatprep.subr.mxu0 0.0
    %5818 = vmatpush1.msra.mxu0 %v5213
    %5819 = vmatprep.subr.mxu0 0.0
    %5820 = vmatpush1.msra.mxu0 0.0
    %5821 = vmatprep.subr.mxu0 0.0
    %5822 = vmatpush1.msra.mxu0 0.0
    %5823 = vmatprep.subr.mxu0 0.0
    %5824 = vmatpush1.msra.mxu0 0.0
    %5825 = vmatprep.subr.mxu0 0.0
    %5826 = vmatpush1.msra.mxu0 0.0
    %5827 = vmatprep.subr.mxu0 0.0
    %5828 = vmatpush1.msra.mxu0 0.0
    %5829 = vmatprep.subr.mxu0 0.0
    %5830 = vmatpush1.msra.mxu0 0.0
    %5831 = vmatprep.subr.mxu0 0.0
    %5832 = vmatpush1.msra.mxu0 0.0
    %5833 = vmatprep.subr.mxu0 0.0
    %5834 = vmatpush1.msra.mxu0 0.0
    %5835 = vmatprep.subr.mxu0 0.0
    %5836 = vmatpush1.msra.mxu0 0.0
    %5837 = vmatprep.subr.mxu0 0.0
    %5838 = vmatpush1.msra.mxu0 0.0
    %5839 = vmatprep.subr.mxu0 0.0
    %5840 = vmatpush1.msra.mxu0 0.0
    %5841 = vmatprep.subr.mxu0 0.0
    %5842 = vmatpush1.msra.mxu0 0.0
    %5843 = vmatprep.subr.mxu0 0.0
    %5844 = vmatpush1.msra.mxu0 0.0
    %5845 = vmatprep.subr.mxu0 0.0
    %5846 = vmatpush1.msra.mxu0 0.0
    %5847 = vmatprep.subr.mxu0 0.0
    %5848 = vmatpush1.msra.mxu0 0.0
    %5849 = vmatprep.subr.mxu0 0.0
    %5850 = vmatpush1.msra.mxu0 0.0
    %5851 = vmatprep.subr.mxu0 0.0
    %5852 = vmatpush1.msra.mxu0 0.0
    %5853 = vmatprep.subr.mxu0 0.0
    %5854 = vmatpush1.msra.mxu0 0.0
    %5855 = vmatprep.subr.mxu0 0.0
    %5856 = vmatpush1.msra.mxu0 0.0
    %5857 = vmatprep.subr.mxu0 0.0
    %5858 = vmatpush1.msra.mxu0 0.0
    %5859 = vmatprep.subr.mxu0 0.0
    %5860 = vmatpush1.msra.mxu0 0.0
    %5861 = vmatprep.subr.mxu0 0.0
    %5862 = vmatpush1.msra.mxu0 0.0
    %5863 = vmatprep.subr.mxu0 0.0
    %5864 = vmatpush1.msra.mxu0 0.0
    %5865 = vmatprep.subr.mxu0 0.0
    %5866 = vmatpush1.msra.mxu0 0.0
    %5867 = vmatprep.subr.mxu0 0.0
    %5868 = vmatpush1.msra.mxu0 0.0
    %5869 = vmatprep.subr.mxu0 0.0
    %5870 = vmatpush1.msra.mxu0 0.0
    %5871 = vmatprep.subr.mxu0 0.0
    %5872 = vmatpush1.msra.mxu0 0.0
    %5873 = vmatprep.subr.mxu0 0.0
    %5874 = vmatpush1.msra.mxu0 0.0
    %5875 = vmatprep.subr.mxu0 0.0
    %5876 = vmatpush1.msra.mxu0 0.0
    %5877 = vmatprep.subr.mxu0 0.0
    %5878 = vmatpush1.msra.mxu0 0.0
    %5879 = vmatprep.subr.mxu0 0.0
    %5880 = vmatpush1.msra.mxu0 0.0
    %5881 = vmatprep.mubr.f32.mxu0 0.0
    %5882 = vmatmul.mubr.f32.gmra.mrb[0].mxu0 %v928
    %v5883 = vpop.f32.mrb[0].mxu0
    %v5884 = vadd.f32 %v5809, %v5883
    %v5885 = vpop.f32.mrb[0].mxu0
    %5886 = vmatprep.mubr.f32.mxu0 0.0
    %5887 = vmatmul.mubr.f32.gmra.mrb[0].mxu0 %v931
    %v5888 = vpop.f32.mrb[0].mxu0
    %v5889 = vadd.f32 %v5814, %v5888
    %v5890 = vpop.f32.mrb[0].mxu0
    %5891 = vdwg.mxu0
    %v5893 = vsel %vm194, %v5708, 0
    %v5896 = vsel %vm194, %v5713, 0
    %5898 = vmatprep.subr.mxu0 0.0
    %5899 = vmatpush1.msra.mxu0 %v5008
    %5900 = vmatprep.subr.mxu0 0.0
    %5901 = vmatpush1.msra.mxu0 %v5009
    %5902 = vmatprep.subr.mxu0 0.0
    %5903 = vmatpush1.msra.mxu0 %v5010
    %5904 = vmatprep.subr.mxu0 0.0
    %5905 = vmatpush1.msra.mxu0 %v5011
    %5906 = vmatprep.subr.mxu0 0.0
    %5907 = vmatpush1.msra.mxu0 0.0
    %5908 = vmatprep.subr.mxu0 0.0
    %5909 = vmatpush1.msra.mxu0 0.0
    %5910 = vmatprep.subr.mxu0 0.0
    %5911 = vmatpush1.msra.mxu0 0.0
    %5912 = vmatprep.subr.mxu0 0.0
    %5913 = vmatpush1.msra.mxu0 0.0
    %5914 = vmatprep.subr.mxu0 0.0
    %5915 = vmatpush1.msra.mxu0 0.0
    %5916 = vmatprep.subr.mxu0 0.0
    %5917 = vmatpush1.msra.mxu0 0.0
    %5918 = vmatprep.subr.mxu0 0.0
    %5919 = vmatpush1.msra.mxu0 0.0
    %5920 = vmatprep.subr.mxu0 0.0
    %5921 = vmatpush1.msra.mxu0 0.0
    %5922 = vmatprep.subr.mxu0 0.0
    %5923 = vmatpush1.msra.mxu0 0.0
    %5924 = vmatprep.subr.mxu0 0.0
    %5925 = vmatpush1.msra.mxu0 0.0
    %5926 = vmatprep.subr.mxu0 0.0
    %5927 = vmatpush1.msra.mxu0 0.0
    %5928 = vmatprep.subr.mxu0 0.0
    %5929 = vmatpush1.msra.mxu0 0.0
    %5930 = vmatprep.subr.mxu0 0.0
    %5931 = vmatpush1.msra.mxu0 0.0
    %5932 = vmatprep.subr.mxu0 0.0
    %5933 = vmatpush1.msra.mxu0 0.0
    %5934 = vmatprep.subr.mxu0 0.0
    %5935 = vmatpush1.msra.mxu0 0.0
    %5936 = vmatprep.subr.mxu0 0.0
    %5937 = vmatpush1.msra.mxu0 0.0
    %5938 = vmatprep.subr.mxu0 0.0
    %5939 = vmatpush1.msra.mxu0 0.0
    %5940 = vmatprep.subr.mxu0 0.0
    %5941 = vmatpush1.msra.mxu0 0.0
    %5942 = vmatprep.subr.mxu0 0.0
    %5943 = vmatpush1.msra.mxu0 0.0
    %5944 = vmatprep.subr.mxu0 0.0
    %5945 = vmatpush1.msra.mxu0 0.0
    %5946 = vmatprep.subr.mxu0 0.0
    %5947 = vmatpush1.msra.mxu0 0.0
    %5948 = vmatprep.subr.mxu0 0.0
    %5949 = vmatpush1.msra.mxu0 0.0
    %5950 = vmatprep.subr.mxu0 0.0
    %5951 = vmatpush1.msra.mxu0 0.0
    %5952 = vmatprep.subr.mxu0 0.0
    %5953 = vmatpush1.msra.mxu0 0.0
    %5954 = vmatprep.subr.mxu0 0.0
    %5955 = vmatpush1.msra.mxu0 0.0
    %5956 = vmatprep.subr.mxu0 0.0
    %5957 = vmatpush1.msra.mxu0 0.0
    %5958 = vmatprep.subr.mxu0 0.0
    %5959 = vmatpush1.msra.mxu0 0.0
    %5960 = vmatprep.subr.mxu0 0.0
    %5961 = vmatpush1.msra.mxu0 0.0
    %5962 = vmatprep.mubr.f32.mxu0 0.0
    %5963 = vmatmul.mubr.f32.gmra.mrb[0].mxu0 %v5893
    %v5964 = vpop.f32.mrb[0].mxu0
    %v5965 = vadd.f32 0.0, %v5964
    %v5966 = vpop.f32.mrb[0].mxu0
    %5967 = vmatprep.mubr.f32.mxu0 0.0
    %5968 = vmatmul.mubr.f32.gmra.mrb[0].mxu0 %v5896
    %v5969 = vpop.f32.mrb[0].mxu0
    %v5970 = vadd.f32 0.0, %v5969
    %v5971 = vpop.f32.mrb[0].mxu0
    %5972 = vdwg.mxu0
    %v5973 = vadd.f32 %v5884, %v5965
    %v5974 = vadd.f32 %v5889, %v5970
    %v5976 = vsel %vm194, %v5718, 0
    %v5979 = vsel %vm194, %v5723, 0
    %5981 = vmatprep.subr.mxu0 0.0
    %5982 = vmatpush1.msra.mxu0 %v5012
    %5983 = vmatprep.subr.mxu0 0.0
    %5984 = vmatpush1.msra.mxu0 %v5013
    %5985 = vmatprep.subr.mxu0 0.0
    %5986 = vmatpush1.msra.mxu0 %v5014
    %5987 = vmatprep.subr.mxu0 0.0
    %5988 = vmatpush1.msra.mxu0 %v5015
    %5989 = vmatprep.subr.mxu0 0.0
    %5990 = vmatpush1.msra.mxu0 0.0
    %5991 = vmatprep.subr.mxu0 0.0
    %5992 = vmatpush1.msra.mxu0 0.0
    %5993 = vmatprep.subr.mxu0 0.0
    %5994 = vmatpush1.msra.mxu0 0.0
    %5995 = vmatprep.subr.mxu0 0.0
    %5996 = vmatpush1.msra.mxu0 0.0
    %5997 = vmatprep.subr.mxu0 0.0
    %5998 = vmatpush1.msra.mxu0 0.0
    %5999 = vmatprep.subr.mxu0 0.0
    %6000 = vmatpush1.msra.mxu0 0.0
    %6001 = vmatprep.subr.mxu0 0.0
    %6002 = vmatpush1.msra.mxu0 0.0
    %6003 = vmatprep.subr.mxu0 0.0
    %6004 = vmatpush1.msra.mxu0 0.0
    %6005 = vmatprep.subr.mxu0 0.0
    %6006 = vmatpush1.msra.mxu0 0.0
    %6007 = vmatprep.subr.mxu0 0.0
    %6008 = vmatpush1.msra.mxu0 0.0
    %6009 = vmatprep.subr.mxu0 0.0
    %6010 = vmatpush1.msra.mxu0 0.0
    %6011 = vmatprep.subr.mxu0 0.0
    %6012 = vmatpush1.msra.mxu0 0.0
    %6013 = vmatprep.subr.mxu0 0.0
    %6014 = vmatpush1.msra.mxu0 0.0
    %6015 = vmatprep.subr.mxu0 0.0
    %6016 = vmatpush1.msra.mxu0 0.0
    %6017 = vmatprep.subr.mxu0 0.0
    %6018 = vmatpush1.msra.mxu0 0.0
    %6019 = vmatprep.subr.mxu0 0.0
    %6020 = vmatpush1.msra.mxu0 0.0
    %6021 = vmatprep.subr.mxu0 0.0
    %6022 = vmatpush1.msra.mxu0 0.0
    %6023 = vmatprep.subr.mxu0 0.0
    %6024 = vmatpush1.msra.mxu0 0.0
    %6025 = vmatprep.subr.mxu0 0.0
    %6026 = vmatpush1.msra.mxu0 0.0
    %6027 = vmatprep.subr.mxu0 0.0
    %6028 = vmatpush1.msra.mxu0 0.0
    %6029 = vmatprep.subr.mxu0 0.0
    %6030 = vmatpush1.msra.mxu0 0.0
    %6031 = vmatprep.subr.mxu0 0.0
    %6032 = vmatpush1.msra.mxu0 0.0
    %6033 = vmatprep.subr.mxu0 0.0
    %6034 = vmatpush1.msra.mxu0 0.0
    %6035 = vmatprep.subr.mxu0 0.0
    %6036 = vmatpush1.msra.mxu0 0.0
    %6037 = vmatprep.subr.mxu0 0.0
    %6038 = vmatpush1.msra.mxu0 0.0
    %6039 = vmatprep.subr.mxu0 0.0
    %6040 = vmatpush1.msra.mxu0 0.0
    %6041 = vmatprep.subr.mxu0 0.0
    %6042 = vmatpush1.msra.mxu0 0.0
    %6043 = vmatprep.subr.mxu0 0.0
    %6044 = vmatpush1.msra.mxu0 0.0
    %6045 = vmatprep.mubr.f32.mxu0 0.0
    %6046 = vmatmul.mubr.f32.gmra.mrb[0].mxu0 %v5976
    %v6047 = vpop.f32.mrb[0].mxu0
    %v6048 = vadd.f32 0.0, %v6047
    %v6049 = vpop.f32.mrb[0].mxu0
    %6050 = vmatprep.mubr.f32.mxu0 0.0
    %6051 = vmatmul.mubr.f32.gmra.mrb[0].mxu0 %v5979
    %v6052 = vpop.f32.mrb[0].mxu0
    %v6053 = vadd.f32 0.0, %v6052
    %v6054 = vpop.f32.mrb[0].mxu0
    %6055 = vdwg.mxu0
    %v6056 = vadd.f32 %v5973, %v6048
    %v6057 = vadd.f32 %v5974, %v6053
    %v6059 = vsel %vm194, %v5728, 0
    %v6062 = vsel %vm194, %v5733, 0
    %6064 = vmatprep.subr.mxu0 0.0
    %6065 = vmatpush1.msra.mxu0 %v5016
    %6066 = vmatprep.subr.mxu0 0.0
    %6067 = vmatpush1.msra.mxu0 %v5017
    %6068 = vmatprep.subr.mxu0 0.0
    %6069 = vmatpush1.msra.mxu0 %v5018
    %6070 = vmatprep.subr.mxu0 0.0
    %6071 = vmatpush1.msra.mxu0 %v5019
    %6072 = vmatprep.subr.mxu0 0.0
    %6073 = vmatpush1.msra.mxu0 0.0
    %6074 = vmatprep.subr.mxu0 0.0
    %6075 = vmatpush1.msra.mxu0 0.0
    %6076 = vmatprep.subr.mxu0 0.0
    %6077 = vmatpush1.msra.mxu0 0.0
    %6078 = vmatprep.subr.mxu0 0.0
    %6079 = vmatpush1.msra.mxu0 0.0
    %6080 = vmatprep.subr.mxu0 0.0
    %6081 = vmatpush1.msra.mxu0 0.0
    %6082 = vmatprep.subr.mxu0 0.0
    %6083 = vmatpush1.msra.mxu0 0.0
    %6084 = vmatprep.subr.mxu0 0.0
    %6085 = vmatpush1.msra.mxu0 0.0
    %6086 = vmatprep.subr.mxu0 0.0
    %6087 = vmatpush1.msra.mxu0 0.0
    %6088 = vmatprep.subr.mxu0 0.0
    %6089 = vmatpush1.msra.mxu0 0.0
    %6090 = vmatprep.subr.mxu0 0.0
    %6091 = vmatpush1.msra.mxu0 0.0
    %6092 = vmatprep.subr.mxu0 0.0
    %6093 = vmatpush1.msra.mxu0 0.0
    %6094 = vmatprep.subr.mxu0 0.0
    %6095 = vmatpush1.msra.mxu0 0.0
    %6096 = vmatprep.subr.mxu0 0.0
    %6097 = vmatpush1.msra.mxu0 0.0
    %6098 = vmatprep.subr.mxu0 0.0
    %6099 = vmatpush1.msra.mxu0 0.0
    %6100 = vmatprep.subr.mxu0 0.0
    %6101 = vmatpush1.msra.mxu0 0.0
    %6102 = vmatprep.subr.mxu0 0.0
    %6103 = vmatpush1.msra.mxu0 0.0
    %6104 = vmatprep.subr.mxu0 0.0
    %6105 = vmatpush1.msra.mxu0 0.0
    %6106 = vmatprep.subr.mxu0 0.0
    %6107 = vmatpush1.msra.mxu0 0.0
    %6108 = vmatprep.subr.mxu0 0.0
    %6109 = vmatpush1.msra.mxu0 0.0
    %6110 = vmatprep.subr.mxu0 0.0
    %6111 = vmatpush1.msra.mxu0 0.0
    %6112 = vmatprep.subr.mxu0 0.0
    %6113 = vmatpush1.msra.mxu0 0.0
    %6114 = vmatprep.subr.mxu0 0.0
    %6115 = vmatpush1.msra.mxu0 0.0
    %6116 = vmatprep.subr.mxu0 0.0
    %6117 = vmatpush1.msra.mxu0 0.0
    %6118 = vmatprep.subr.mxu0 0.0
    %6119 = vmatpush1.msra.mxu0 0.0
    %6120 = vmatprep.subr.mxu0 0.0
    %6121 = vmatpush1.msra.mxu0 0.0
    %6122 = vmatprep.subr.mxu0 0.0
    %6123 = vmatpush1.msra.mxu0 0.0
    %6124 = vmatprep.subr.mxu0 0.0
    %6125 = vmatpush1.msra.mxu0 0.0
    %6126 = vmatprep.subr.mxu0 0.0
    %6127 = vmatpush1.msra.mxu0 0.0
    %6128 = vmatprep.mubr.f32.mxu0 0.0
    %6129 = vmatmul.mubr.f32.gmra.mrb[0].mxu0 %v6059
    %v6130 = vpop.f32.mrb[0].mxu0
    %v6131 = vadd.f32 0.0, %v6130
    %v6132 = vpop.f32.mrb[0].mxu0
    %6133 = vmatprep.mubr.f32.mxu0 0.0
    %6134 = vmatmul.mubr.f32.gmra.mrb[0].mxu0 %v6062
    %v6135 = vpop.f32.mrb[0].mxu0
    %v6136 = vadd.f32 0.0, %v6135
    %v6137 = vpop.f32.mrb[0].mxu0
    %6138 = vdwg.mxu0
    %v6139 = vadd.f32 %v6056, %v6131
    %v6140 = vadd.f32 %v6057, %v6136
    %v6142 = vsel %vm617, %v6139, 0
    %v6145 = vsel %vm617, %v6140, 0
    %6147 = vmatprep.subr.mxu0 0.0
    %6148 = vmatpush1.msra.mxu0 %v5552
    %6149 = vmatprep.subr.mxu0 0.0
    %6150 = vmatpush1.msra.mxu0 0.0
    %6151 = vmatprep.subr.mxu0 0.0
    %6152 = vmatpush1.msra.mxu0 0.0
    %6153 = vmatprep.subr.mxu0 0.0
    %6154 = vmatpush1.msra.mxu0 0.0
    %6155 = vmatprep.subr.mxu0 0.0
    %6156 = vmatpush1.msra.mxu0 0.0
    %6157 = vmatprep.subr.mxu0 0.0
    %6158 = vmatpush1.msra.mxu0 0.0
    %6159 = vmatprep.subr.mxu0 0.0
    %6160 = vmatpush1.msra.mxu0 0.0
    %6161 = vmatprep.subr.mxu0 0.0
    %6162 = vmatpush1.msra.mxu0 0.0
    %6163 = vmatprep.subr.mxu0 0.0
    %6164 = vmatpush1.msra.mxu0 0.0
    %6165 = vmatprep.subr.mxu0 0.0
    %6166 = vmatpush1.msra.mxu0 0.0
    %6167 = vmatprep.subr.mxu0 0.0
    %6168 = vmatpush1.msra.mxu0 0.0
    %6169 = vmatprep.subr.mxu0 0.0
    %6170 = vmatpush1.msra.mxu0 0.0
    %6171 = vmatprep.subr.mxu0 0.0
    %6172 = vmatpush1.msra.mxu0 0.0
    %6173 = vmatprep.subr.mxu0 0.0
    %6174 = vmatpush1.msra.mxu0 0.0
    %6175 = vmatprep.subr.mxu0 0.0
    %6176 = vmatpush1.msra.mxu0 0.0
    %6177 = vmatprep.subr.mxu0 0.0
    %6178 = vmatpush1.msra.mxu0 0.0
    %6179 = vmatprep.subr.mxu0 0.0
    %6180 = vmatpush1.msra.mxu0 0.0
    %6181 = vmatprep.subr.mxu0 0.0
    %6182 = vmatpush1.msra.mxu0 0.0
    %6183 = vmatprep.subr.mxu0 0.0
    %6184 = vmatpush1.msra.mxu0 0.0
    %6185 = vmatprep.subr.mxu0 0.0
    %6186 = vmatpush1.msra.mxu0 0.0
    %6187 = vmatprep.subr.mxu0 0.0
    %6188 = vmatpush1.msra.mxu0 0.0
    %6189 = vmatprep.subr.mxu0 0.0
    %6190 = vmatpush1.msra.mxu0 0.0
    %6191 = vmatprep.subr.mxu0 0.0
    %6192 = vmatpush1.msra.mxu0 0.0
    %6193 = vmatprep.subr.mxu0 0.0
    %6194 = vmatpush1.msra.mxu0 0.0
    %6195 = vmatprep.subr.mxu0 0.0
    %6196 = vmatpush1.msra.mxu0 0.0
    %6197 = vmatprep.subr.mxu0 0.0
    %6198 = vmatpush1.msra.mxu0 0.0
    %6199 = vmatprep.subr.mxu0 0.0
    %6200 = vmatpush1.msra.mxu0 0.0
    %6201 = vmatprep.subr.mxu0 0.0
    %6202 = vmatpush1.msra.mxu0 0.0
    %6203 = vmatprep.subr.mxu0 0.0
    %6204 = vmatpush1.msra.mxu0 0.0
    %6205 = vmatprep.subr.mxu0 0.0
    %6206 = vmatpush1.msra.mxu0 0.0
    %6207 = vmatprep.subr.mxu0 0.0
    %6208 = vmatpush1.msra.mxu0 0.0
    %6209 = vmatprep.subr.mxu0 0.0
    %6210 = vmatpush1.msra.mxu0 0.0
    %6211 = vmatprep.mubr.f32.mxu0 0.0
    %6212 = vmatmul.mubr.f32.gmra.mrb[0].mxu0 %v6142
    %v6213 = vpop.f32.mrb[0].mxu0
    %v6214 = vadd.f32 %v5543, %v6213
    %v6215 = vpop.f32.mrb[0].mxu0
    %6216 = vmatprep.mubr.f32.mxu0 0.0
    %6217 = vmatmul.mubr.f32.gmra.mrb[0].mxu0 %v6145
    %v6218 = vpop.f32.mrb[0].mxu0
    %v6219 = vadd.f32 %v5543, %v6218
    %v6220 = vpop.f32.mrb[0].mxu0
    %6221 = vdwg.mxu0
    %v6222 = vmax.f32 %v6214, 0.0
    %v6223 = vmax.f32 %v6219, 0.0
    %s6224 = scalar_lea.vmem %s3, 640
    %v6225 = vld [vmem:[%s6224] sm:$0xff]
    %v6226 = vld [vmem:[%s6224 + $0x8] sm:$0xff]
    %v6227 = vld [vmem:[%s6224 + $0x10] sm:$0xff]
    %v6228 = vld [vmem:[%s6224 + $0x18] sm:$0xff]
    %v6229 = vld [vmem:[%s6224 + $0x20] sm:$0xff]
    %v6230 = vld [vmem:[%s6224 + $0x28] sm:$0xff]
    %v6231 = vld [vmem:[%s6224 + $0x30] sm:$0xff]
    %v6232 = vld [vmem:[%s6224 + $0x38] sm:$0xff]
    %v6233 = vld [vmem:[%s6224 + $0x40] sm:$0xff]
    %v6234 = vld [vmem:[%s6224 + $0x48] sm:$0xff]
    %v6235 = vld [vmem:[%s6224 + $0x50] sm:$0xff]
    %v6236 = vld [vmem:[%s6224 + $0x58] sm:$0xff]
    %v6237 = vld [vmem:[%s6224 + $0x60] sm:$0xff]
    %v6238 = vld [vmem:[%s6224 + $0x68] sm:$0xff]
    %v6239 = vld [vmem:[%s6224 + $0x70] sm:$0xff]
    %v6240 = vld [vmem:[%s6224 + $0x78] sm:$0xff]
    %s6241 = scalar_lea.vmem %s4, 20
    %v6242 = vld [vmem:[%s6241] sm:$0xf]
    %s6243 = scalar_lea.vmem %s5, 40
    %v6244 = vld [vmem:[%s6243] sm:$0x3f]
    %s6245 = scalar_lea.vmem %s6, 5
    %v6246 = vld [vmem:[%s6245] sm:$0x1]
    %6247 = vmatprep.subr.mxu0 0.0
    %6248 = vmatpush1.msra.mxu0 %v5629
    %6249 = vmatprep.subr.mxu0 0.0
    %6250 = vmatpush1.msra.mxu0 %v5630
    %6251 = vmatprep.subr.mxu0 0.0
    %6252 = vmatpush1.msra.mxu0 0.0
    %6253 = vmatprep.subr.mxu0 0.0
    %6254 = vmatpush1.msra.mxu0 0.0
    %6255 = vmatprep.subr.mxu0 0.0
    %6256 = vmatpush1.msra.mxu0 0.0
    %6257 = vmatprep.subr.mxu0 0.0
    %6258 = vmatpush1.msra.mxu0 0.0
    %6259 = vmatprep.subr.mxu0 0.0
    %6260 = vmatpush1.msra.mxu0 0.0
    %6261 = vmatprep.subr.mxu0 0.0
    %6262 = vmatpush1.msra.mxu0 0.0
    %6263 = vmatprep.subr.mxu0 0.0
    %6264 = vmatpush1.msra.mxu0 0.0
    %6265 = vmatprep.subr.mxu0 0.0
    %6266 = vmatpush1.msra.mxu0 0.0
    %6267 = vmatprep.subr.mxu0 0.0
    %6268 = vmatpush1.msra.mxu0 0.0
    %6269 = vmatprep.subr.mxu0 0.0
    %6270 = vmatpush1.msra.mxu0 0.0
    %6271 = vmatprep.subr.mxu0 0.0
    %6272 = vmatpush1.msra.mxu0 0.0
    %6273 = vmatprep.subr.mxu0 0.0
    %6274 = vmatpush1.msra.mxu0 0.0
    %6275 = vmatprep.subr.mxu0 0.0
    %6276 = vmatpush1.msra.mxu0 0.0
    %6277 = vmatprep.subr.mxu0 0.0
    %6278 = vmatpush1.msra.mxu0 0.0
    %6279 = vmatprep.subr.mxu0 0.0
    %6280 = vmatpush1.msra.mxu0 0.0
    %6281 = vmatprep.subr.mxu0 0.0
    %6282 = vmatpush1.msra.mxu0 0.0
    %6283 = vmatprep.subr.mxu0 0.0
    %6284 = vmatpush1.msra.mxu0 0.0
    %6285 = vmatprep.subr.mxu0 0.0
    %6286 = vmatpush1.msra.mxu0 0.0
    %6287 = vmatprep.subr.mxu0 0.0
    %6288 = vmatpush1.msra.mxu0 0.0
    %6289 = vmatprep.subr.mxu0 0.0
    %6290 = vmatpush1.msra.mxu0 0.0
    %6291 = vmatprep.subr.mxu0 0.0
    %6292 = vmatpush1.msra.mxu0 0.0
    %6293 = vmatprep.subr.mxu0 0.0
    %6294 = vmatpush1.msra.mxu0 0.0
    %6295 = vmatprep.subr.mxu0 0.0
    %6296 = vmatpush1.msra.mxu0 0.0
    %6297 = vmatprep.subr.mxu0 0.0
    %6298 = vmatpush1.msra.mxu0 0.0
    %6299 = vmatprep.subr.mxu0 0.0
    %6300 = vmatpush1.msra.mxu0 0.0
    %6301 = vmatprep.subr.mxu0 0.0
    %6302 = vmatpush1.msra.mxu0 0.0
    %6303 = vmatprep.subr.mxu0 0.0
    %6304 = vmatpush1.msra.mxu0 0.0
    %6305 = vmatprep.subr.mxu0 0.0
    %6306 = vmatpush1.msra.mxu0 0.0
    %6307 = vmatprep.subr.mxu0 0.0
    %6308 = vmatpush1.msra.mxu0 0.0
    %6309 = vmatprep.subr.mxu0 0.0
    %6310 = vmatpush1.msra.mxu0 0.0
    %6311 = vmatprep.mubr.f32.mxu0 0.0
    %6312 = vmatmul.mubr.f32.gmra.mrb[0].mxu0 %v64
    %v6313 = vpop.f32.mrb[0].mxu0
    %v6314 = vadd.f32 0.0, %v6313
    %v6315 = vpop.f32.mrb[0].mxu0
    %6316 = vmatprep.mubr.f32.mxu0 0.0
    %6317 = vmatmul.mubr.f32.gmra.mrb[0].mxu0 %v67
    %v6318 = vpop.f32.mrb[0].mxu0
    %v6319 = vadd.f32 0.0, %v6318
    %v6320 = vpop.f32.mrb[0].mxu0
    %6321 = vmatprep.mubr.f32.mxu0 0.0
    %6322 = vmatmul.mubr.f32.gmra.mrb[0].mxu0 %v70
    %v6323 = vpop.f32.mrb[0].mxu0
    %v6324 = vadd.f32 0.0, %v6323
    %v6325 = vpop.f32.mrb[0].mxu0
    %6326 = vmatprep.mubr.f32.mxu0 0.0
    %6327 = vmatmul.mubr.f32.gmra.mrb[0].mxu0 %v73
    %v6328 = vpop.f32.mrb[0].mxu0
    %v6329 = vadd.f32 0.0, %v6328
    %v6330 = vpop.f32.mrb[0].mxu0
    %6331 = vmatprep.mubr.f32.mxu0 0.0
    %6332 = vmatmul.mubr.f32.gmra.mrb[0].mxu0 %v76
    %v6333 = vpop.f32.mrb[0].mxu0
    %v6334 = vadd.f32 0.0, %v6333
    %v6335 = vpop.f32.mrb[0].mxu0
    %6336 = vmatprep.mubr.f32.mxu0 0.0
    %6337 = vmatmul.mubr.f32.gmra.mrb[0].mxu0 %v79
    %v6338 = vpop.f32.mrb[0].mxu0
    %v6339 = vadd.f32 0.0, %v6338
    %v6340 = vpop.f32.mrb[0].mxu0
    %6341 = vmatprep.mubr.f32.mxu0 0.0
    %6342 = vmatmul.mubr.f32.gmra.mrb[0].mxu0 %v82
    %v6343 = vpop.f32.mrb[0].mxu0
    %v6344 = vadd.f32 0.0, %v6343
    %v6345 = vpop.f32.mrb[0].mxu0
    %6346 = vmatprep.mubr.f32.mxu0 0.0
    %6347 = vmatmul.mubr.f32.gmra.mrb[0].mxu0 %v85
    %v6348 = vpop.f32.mrb[0].mxu0
    %v6349 = vadd.f32 0.0, %v6348
    %v6350 = vpop.f32.mrb[0].mxu0
    %6351 = vdwg.mxu0
    %v6353 = vsel %vm194, %v6314, 0
    %v6356 = vsel %vm194, %v6319, 0
    %6358 = vmatprep.subr.mxu0 0.0
    %6359 = vmatpush1.msra.mxu0 %v6225
    %6360 = vmatprep.subr.mxu0 0.0
    %6361 = vmatpush1.msra.mxu0 %v6226
    %6362 = vmatprep.subr.mxu0 0.0
    %6363 = vmatpush1.msra.mxu0 %v6227
    %6364 = vmatprep.subr.mxu0 0.0
    %6365 = vmatpush1.msra.mxu0 %v6228
    %6366 = vmatprep.subr.mxu0 0.0
    %6367 = vmatpush1.msra.mxu0 0.0
    %6368 = vmatprep.subr.mxu0 0.0
    %6369 = vmatpush1.msra.mxu0 0.0
    %6370 = vmatprep.subr.mxu0 0.0
    %6371 = vmatpush1.msra.mxu0 0.0
    %6372 = vmatprep.subr.mxu0 0.0
    %6373 = vmatpush1.msra.mxu0 0.0
    %6374 = vmatprep.subr.mxu0 0.0
    %6375 = vmatpush1.msra.mxu0 0.0
    %6376 = vmatprep.subr.mxu0 0.0
    %6377 = vmatpush1.msra.mxu0 0.0
    %6378 = vmatprep.subr.mxu0 0.0
    %6379 = vmatpush1.msra.mxu0 0.0
    %6380 = vmatprep.subr.mxu0 0.0
    %6381 = vmatpush1.msra.mxu0 0.0
    %6382 = vmatprep.subr.mxu0 0.0
    %6383 = vmatpush1.msra.mxu0 0.0
    %6384 = vmatprep.subr.mxu0 0.0
    %6385 = vmatpush1.msra.mxu0 0.0
    %6386 = vmatprep.subr.mxu0 0.0
    %6387 = vmatpush1.msra.mxu0 0.0
    %6388 = vmatprep.subr.mxu0 0.0
    %6389 = vmatpush1.msra.mxu0 0.0
    %6390 = vmatprep.subr.mxu0 0.0
    %6391 = vmatpush1.msra.mxu0 0.0
    %6392 = vmatprep.subr.mxu0 0.0
    %6393 = vmatpush1.msra.mxu0 0.0
    %6394 = vmatprep.subr.mxu0 0.0
    %6395 = vmatpush1.msra.mxu0 0.0
    %6396 = vmatprep.subr.mxu0 0.0
    %6397 = vmatpush1.msra.mxu0 0.0
    %6398 = vmatprep.subr.mxu0 0.0
    %6399 = vmatpush1.msra.mxu0 0.0
    %6400 = vmatprep.subr.mxu0 0.0
    %6401 = vmatpush1.msra.mxu0 0.0
    %6402 = vmatprep.subr.mxu0 0.0
    %6403 = vmatpush1.msra.mxu0 0.0
    %6404 = vmatprep.subr.mxu0 0.0
    %6405 = vmatpush1.msra.mxu0 0.0
    %6406 = vmatprep.subr.mxu0 0.0
    %6407 = vmatpush1.msra.mxu0 0.0
    %6408 = vmatprep.subr.mxu0 0.0
    %6409 = vmatpush1.msra.mxu0 0.0
    %6410 = vmatprep.subr.mxu0 0.0
    %6411 = vmatpush1.msra.mxu0 0.0
    %6412 = vmatprep.subr.mxu0 0.0
    %6413 = vmatpush1.msra.mxu0 0.0
    %6414 = vmatprep.subr.mxu0 0.0
    %6415 = vmatpush1.msra.mxu0 0.0
    %6416 = vmatprep.subr.mxu0 0.0
    %6417 = vmatpush1.msra.mxu0 0.0
    %6418 = vmatprep.subr.mxu0 0.0
    %6419 = vmatpush1.msra.mxu0 0.0
    %6420 = vmatprep.subr.mxu0 0.0
    %6421 = vmatpush1.msra.mxu0 0.0
    %6422 = vmatprep.mubr.f32.mxu0 0.0
    %6423 = vmatmul.mubr.f32.gmra.mrb[0].mxu0 %v6353
    %v6424 = vpop.f32.mrb[0].mxu0
    %v6425 = vadd.f32 0.0, %v6424
    %v6426 = vpop.f32.mrb[0].mxu0
    %6427 = vmatprep.mubr.f32.mxu0 0.0
    %6428 = vmatmul.mubr.f32.gmra.mrb[0].mxu0 %v6356
    %v6429 = vpop.f32.mrb[0].mxu0
    %v6430 = vadd.f32 0.0, %v6429
    %v6431 = vpop.f32.mrb[0].mxu0
    %6432 = vdwg.mxu0
    %v6434 = vsel %vm283, %v6242, 0
    %6436 = vmatprep.subr.mxu0 0.0
    %6437 = vmatpush1.msra.mxu0 %v6434
    %6438 = vmatprep.subr.mxu0 0.0
    %6439 = vmatpush1.msra.mxu0 0.0
    %6440 = vmatprep.subr.mxu0 0.0
    %6441 = vmatpush1.msra.mxu0 0.0
    %6442 = vmatprep.subr.mxu0 0.0
    %6443 = vmatpush1.msra.mxu0 0.0
    %6444 = vmatprep.subr.mxu0 0.0
    %6445 = vmatpush1.msra.mxu0 0.0
    %6446 = vmatprep.subr.mxu0 0.0
    %6447 = vmatpush1.msra.mxu0 0.0
    %6448 = vmatprep.subr.mxu0 0.0
    %6449 = vmatpush1.msra.mxu0 0.0
    %6450 = vmatprep.subr.mxu0 0.0
    %6451 = vmatpush1.msra.mxu0 0.0
    %6452 = vmatprep.subr.mxu0 0.0
    %6453 = vmatpush1.msra.mxu0 0.0
    %6454 = vmatprep.subr.mxu0 0.0
    %6455 = vmatpush1.msra.mxu0 0.0
    %6456 = vmatprep.subr.mxu0 0.0
    %6457 = vmatpush1.msra.mxu0 0.0
    %6458 = vmatprep.subr.mxu0 0.0
    %6459 = vmatpush1.msra.mxu0 0.0
    %6460 = vmatprep.subr.mxu0 0.0
    %6461 = vmatpush1.msra.mxu0 0.0
    %6462 = vmatprep.subr.mxu0 0.0
    %6463 = vmatpush1.msra.mxu0 0.0
    %6464 = vmatprep.subr.mxu0 0.0
    %6465 = vmatpush1.msra.mxu0 0.0
    %6466 = vmatprep.subr.mxu0 0.0
    %6467 = vmatpush1.msra.mxu0 0.0
    %6468 = vmatprep.subr.mxu0 0.0
    %6469 = vmatpush1.msra.mxu0 0.0
    %6470 = vmatprep.subr.mxu0 0.0
    %6471 = vmatpush1.msra.mxu0 0.0
    %6472 = vmatprep.subr.mxu0 0.0
    %6473 = vmatpush1.msra.mxu0 0.0
    %6474 = vmatprep.subr.mxu0 0.0
    %6475 = vmatpush1.msra.mxu0 0.0
    %6476 = vmatprep.subr.mxu0 0.0
    %6477 = vmatpush1.msra.mxu0 0.0
    %6478 = vmatprep.subr.mxu0 0.0
    %6479 = vmatpush1.msra.mxu0 0.0
    %6480 = vmatprep.subr.mxu0 0.0
    %6481 = vmatpush1.msra.mxu0 0.0
    %6482 = vmatprep.subr.mxu0 0.0
    %6483 = vmatpush1.msra.mxu0 0.0
    %6484 = vmatprep.subr.mxu0 0.0
    %6485 = vmatpush1.msra.mxu0 0.0
    %6486 = vmatprep.subr.mxu0 0.0
    %6487 = vmatpush1.msra.mxu0 0.0
    %6488 = vmatprep.subr.mxu0 0.0
    %6489 = vmatpush1.msra.mxu0 0.0
    %6490 = vmatprep.subr.mxu0 0.0
    %6491 = vmatpush1.msra.mxu0 0.0
    %6492 = vmatprep.subr.mxu0 0.0
    %6493 = vmatpush1.msra.mxu0 0.0
    %6494 = vmatprep.subr.mxu0 0.0
    %6495 = vmatpush1.msra.mxu0 0.0
    %6496 = vmatprep.subr.mxu0 0.0
    %6497 = vmatpush1.msra.mxu0 0.0
    %6498 = vmatprep.subr.mxu0 0.0
    %6499 = vmatpush1.msra.mxu0 0.0
    %6500 = vmatprep.mubr.f32.mxu0 0.0
    %6501 = vmatmul.mubr.f32.gmra.mrb[0].mxu0 %v278
    %v6502 = vpop.f32.mrb[0].mxu0
    %v6503 = vadd.f32 %v6425, %v6502
    %v6504 = vpop.f32.mrb[0].mxu0
    %6505 = vmatprep.mubr.f32.mxu0 0.0
    %6506 = vmatmul.mubr.f32.gmra.mrb[0].mxu0 %v281
    %v6507 = vpop.f32.mrb[0].mxu0
    %v6508 = vadd.f32 %v6430, %v6507
    %v6509 = vpop.f32.mrb[0].mxu0
    %6510 = vdwg.mxu0
    %v6512 = vsel %vm194, %v6324, 0
    %v6515 = vsel %vm194, %v6329, 0
    %6517 = vmatprep.subr.mxu0 0.0
    %6518 = vmatpush1.msra.mxu0 %v6229
    %6519 = vmatprep.subr.mxu0 0.0
    %6520 = vmatpush1.msra.mxu0 %v6230
    %6521 = vmatprep.subr.mxu0 0.0
    %6522 = vmatpush1.msra.mxu0 %v6231
    %6523 = vmatprep.subr.mxu0 0.0
    %6524 = vmatpush1.msra.mxu0 %v6232
    %6525 = vmatprep.subr.mxu0 0.0
    %6526 = vmatpush1.msra.mxu0 0.0
    %6527 = vmatprep.subr.mxu0 0.0
    %6528 = vmatpush1.msra.mxu0 0.0
    %6529 = vmatprep.subr.mxu0 0.0
    %6530 = vmatpush1.msra.mxu0 0.0
    %6531 = vmatprep.subr.mxu0 0.0
    %6532 = vmatpush1.msra.mxu0 0.0
    %6533 = vmatprep.subr.mxu0 0.0
    %6534 = vmatpush1.msra.mxu0 0.0
    %6535 = vmatprep.subr.mxu0 0.0
    %6536 = vmatpush1.msra.mxu0 0.0
    %6537 = vmatprep.subr.mxu0 0.0
    %6538 = vmatpush1.msra.mxu0 0.0
    %6539 = vmatprep.subr.mxu0 0.0
    %6540 = vmatpush1.msra.mxu0 0.0
    %6541 = vmatprep.subr.mxu0 0.0
    %6542 = vmatpush1.msra.mxu0 0.0
    %6543 = vmatprep.subr.mxu0 0.0
    %6544 = vmatpush1.msra.mxu0 0.0
    %6545 = vmatprep.subr.mxu0 0.0
    %6546 = vmatpush1.msra.mxu0 0.0
    %6547 = vmatprep.subr.mxu0 0.0
    %6548 = vmatpush1.msra.mxu0 0.0
    %6549 = vmatprep.subr.mxu0 0.0
    %6550 = vmatpush1.msra.mxu0 0.0
    %6551 = vmatprep.subr.mxu0 0.0
    %6552 = vmatpush1.msra.mxu0 0.0
    %6553 = vmatprep.subr.mxu0 0.0
    %6554 = vmatpush1.msra.mxu0 0.0
    %6555 = vmatprep.subr.mxu0 0.0
    %6556 = vmatpush1.msra.mxu0 0.0
    %6557 = vmatprep.subr.mxu0 0.0
    %6558 = vmatpush1.msra.mxu0 0.0
    %6559 = vmatprep.subr.mxu0 0.0
    %6560 = vmatpush1.msra.mxu0 0.0
    %6561 = vmatprep.subr.mxu0 0.0
    %6562 = vmatpush1.msra.mxu0 0.0
    %6563 = vmatprep.subr.mxu0 0.0
    %6564 = vmatpush1.msra.mxu0 0.0
    %6565 = vmatprep.subr.mxu0 0.0
    %6566 = vmatpush1.msra.mxu0 0.0
    %6567 = vmatprep.subr.mxu0 0.0
    %6568 = vmatpush1.msra.mxu0 0.0
    %6569 = vmatprep.subr.mxu0 0.0
    %6570 = vmatpush1.msra.mxu0 0.0
    %6571 = vmatprep.subr.mxu0 0.0
    %6572 = vmatpush1.msra.mxu0 0.0
    %6573 = vmatprep.subr.mxu0 0.0
    %6574 = vmatpush1.msra.mxu0 0.0
    %6575 = vmatprep.subr.mxu0 0.0
    %6576 = vmatpush1.msra.mxu0 0.0
    %6577 = vmatprep.subr.mxu0 0.0
    %6578 = vmatpush1.msra.mxu0 0.0
    %6579 = vmatprep.subr.mxu0 0.0
    %6580 = vmatpush1.msra.mxu0 0.0
    %6581 = vmatprep.mubr.f32.mxu0 0.0
    %6582 = vmatmul.mubr.f32.gmra.mrb[0].mxu0 %v6512
    %v6583 = vpop.f32.mrb[0].mxu0
    %v6584 = vadd.f32 0.0, %v6583
    %v6585 = vpop.f32.mrb[0].mxu0
    %6586 = vmatprep.mubr.f32.mxu0 0.0
    %6587 = vmatmul.mubr.f32.gmra.mrb[0].mxu0 %v6515
    %v6588 = vpop.f32.mrb[0].mxu0
    %v6589 = vadd.f32 0.0, %v6588
    %v6590 = vpop.f32.mrb[0].mxu0
    %6591 = vdwg.mxu0
    %v6592 = vadd.f32 %v6503, %v6584
    %v6593 = vadd.f32 %v6508, %v6589
    %v6595 = vsel %vm194, %v6334, 0
    %v6598 = vsel %vm194, %v6339, 0
    %6600 = vmatprep.subr.mxu0 0.0
    %6601 = vmatpush1.msra.mxu0 %v6233
    %6602 = vmatprep.subr.mxu0 0.0
    %6603 = vmatpush1.msra.mxu0 %v6234
    %6604 = vmatprep.subr.mxu0 0.0
    %6605 = vmatpush1.msra.mxu0 %v6235
    %6606 = vmatprep.subr.mxu0 0.0
    %6607 = vmatpush1.msra.mxu0 %v6236
    %6608 = vmatprep.subr.mxu0 0.0
    %6609 = vmatpush1.msra.mxu0 0.0
    %6610 = vmatprep.subr.mxu0 0.0
    %6611 = vmatpush1.msra.mxu0 0.0
    %6612 = vmatprep.subr.mxu0 0.0
    %6613 = vmatpush1.msra.mxu0 0.0
    %6614 = vmatprep.subr.mxu0 0.0
    %6615 = vmatpush1.msra.mxu0 0.0
    %6616 = vmatprep.subr.mxu0 0.0
    %6617 = vmatpush1.msra.mxu0 0.0
    %6618 = vmatprep.subr.mxu0 0.0
    %6619 = vmatpush1.msra.mxu0 0.0
    %6620 = vmatprep.subr.mxu0 0.0
    %6621 = vmatpush1.msra.mxu0 0.0
    %6622 = vmatprep.subr.mxu0 0.0
    %6623 = vmatpush1.msra.mxu0 0.0
    %6624 = vmatprep.subr.mxu0 0.0
    %6625 = vmatpush1.msra.mxu0 0.0
    %6626 = vmatprep.subr.mxu0 0.0
    %6627 = vmatpush1.msra.mxu0 0.0
    %6628 = vmatprep.subr.mxu0 0.0
    %6629 = vmatpush1.msra.mxu0 0.0
    %6630 = vmatprep.subr.mxu0 0.0
    %6631 = vmatpush1.msra.mxu0 0.0
    %6632 = vmatprep.subr.mxu0 0.0
    %6633 = vmatpush1.msra.mxu0 0.0
    %6634 = vmatprep.subr.mxu0 0.0
    %6635 = vmatpush1.msra.mxu0 0.0
    %6636 = vmatprep.subr.mxu0 0.0
    %6637 = vmatpush1.msra.mxu0 0.0
    %6638 = vmatprep.subr.mxu0 0.0
    %6639 = vmatpush1.msra.mxu0 0.0
    %6640 = vmatprep.subr.mxu0 0.0
    %6641 = vmatpush1.msra.mxu0 0.0
    %6642 = vmatprep.subr.mxu0 0.0
    %6643 = vmatpush1.msra.mxu0 0.0
    %6644 = vmatprep.subr.mxu0 0.0
    %6645 = vmatpush1.msra.mxu0 0.0
    %6646 = vmatprep.subr.mxu0 0.0
    %6647 = vmatpush1.msra.mxu0 0.0
    %6648 = vmatprep.subr.mxu0 0.0
    %6649 = vmatpush1.msra.mxu0 0.0
    %6650 = vmatprep.subr.mxu0 0.0
    %6651 = vmatpush1.msra.mxu0 0.0
    %6652 = vmatprep.subr.mxu0 0.0
    %6653 = vmatpush1.msra.mxu0 0.0
    %6654 = vmatprep.subr.mxu0 0.0
    %6655 = vmatpush1.msra.mxu0 0.0
    %6656 = vmatprep.subr.mxu0 0.0
    %6657 = vmatpush1.msra.mxu0 0.0
    %6658 = vmatprep.subr.mxu0 0.0
    %6659 = vmatpush1.msra.mxu0 0.0
    %6660 = vmatprep.subr.mxu0 0.0
    %6661 = vmatpush1.msra.mxu0 0.0
    %6662 = vmatprep.subr.mxu0 0.0
    %6663 = vmatpush1.msra.mxu0 0.0
    %6664 = vmatprep.mubr.f32.mxu0 0.0
    %6665 = vmatmul.mubr.f32.gmra.mrb[0].mxu0 %v6595
    %v6666 = vpop.f32.mrb[0].mxu0
    %v6667 = vadd.f32 0.0, %v6666
    %v6668 = vpop.f32.mrb[0].mxu0
    %6669 = vmatprep.mubr.f32.mxu0 0.0
    %6670 = vmatmul.mubr.f32.gmra.mrb[0].mxu0 %v6598
    %v6671 = vpop.f32.mrb[0].mxu0
    %v6672 = vadd.f32 0.0, %v6671
    %v6673 = vpop.f32.mrb[0].mxu0
    %6674 = vdwg.mxu0
    %v6675 = vadd.f32 %v6592, %v6667
    %v6676 = vadd.f32 %v6593, %v6672
    %v6678 = vsel %vm194, %v6344, 0
    %v6681 = vsel %vm194, %v6349, 0
    %6683 = vmatprep.subr.mxu0 0.0
    %6684 = vmatpush1.msra.mxu0 %v6237
    %6685 = vmatprep.subr.mxu0 0.0
    %6686 = vmatpush1.msra.mxu0 %v6238
    %6687 = vmatprep.subr.mxu0 0.0
    %6688 = vmatpush1.msra.mxu0 %v6239
    %6689 = vmatprep.subr.mxu0 0.0
    %6690 = vmatpush1.msra.mxu0 %v6240
    %6691 = vmatprep.subr.mxu0 0.0
    %6692 = vmatpush1.msra.mxu0 0.0
    %6693 = vmatprep.subr.mxu0 0.0
    %6694 = vmatpush1.msra.mxu0 0.0
    %6695 = vmatprep.subr.mxu0 0.0
    %6696 = vmatpush1.msra.mxu0 0.0
    %6697 = vmatprep.subr.mxu0 0.0
    %6698 = vmatpush1.msra.mxu0 0.0
    %6699 = vmatprep.subr.mxu0 0.0
    %6700 = vmatpush1.msra.mxu0 0.0
    %6701 = vmatprep.subr.mxu0 0.0
    %6702 = vmatpush1.msra.mxu0 0.0
    %6703 = vmatprep.subr.mxu0 0.0
    %6704 = vmatpush1.msra.mxu0 0.0
    %6705 = vmatprep.subr.mxu0 0.0
    %6706 = vmatpush1.msra.mxu0 0.0
    %6707 = vmatprep.subr.mxu0 0.0
    %6708 = vmatpush1.msra.mxu0 0.0
    %6709 = vmatprep.subr.mxu0 0.0
    %6710 = vmatpush1.msra.mxu0 0.0
    %6711 = vmatprep.subr.mxu0 0.0
    %6712 = vmatpush1.msra.mxu0 0.0
    %6713 = vmatprep.subr.mxu0 0.0
    %6714 = vmatpush1.msra.mxu0 0.0
    %6715 = vmatprep.subr.mxu0 0.0
    %6716 = vmatpush1.msra.mxu0 0.0
    %6717 = vmatprep.subr.mxu0 0.0
    %6718 = vmatpush1.msra.mxu0 0.0
    %6719 = vmatprep.subr.mxu0 0.0
    %6720 = vmatpush1.msra.mxu0 0.0
    %6721 = vmatprep.subr.mxu0 0.0
    %6722 = vmatpush1.msra.mxu0 0.0
    %6723 = vmatprep.subr.mxu0 0.0
    %6724 = vmatpush1.msra.mxu0 0.0
    %6725 = vmatprep.subr.mxu0 0.0
    %6726 = vmatpush1.msra.mxu0 0.0
    %6727 = vmatprep.subr.mxu0 0.0
    %6728 = vmatpush1.msra.mxu0 0.0
    %6729 = vmatprep.subr.mxu0 0.0
    %6730 = vmatpush1.msra.mxu0 0.0
    %6731 = vmatprep.subr.mxu0 0.0
    %6732 = vmatpush1.msra.mxu0 0.0
    %6733 = vmatprep.subr.mxu0 0.0
    %6734 = vmatpush1.msra.mxu0 0.0
    %6735 = vmatprep.subr.mxu0 0.0
    %6736 = vmatpush1.msra.mxu0 0.0
    %6737 = vmatprep.subr.mxu0 0.0
    %6738 = vmatpush1.msra.mxu0 0.0
    %6739 = vmatprep.subr.mxu0 0.0
    %6740 = vmatpush1.msra.mxu0 0.0
    %6741 = vmatprep.subr.mxu0 0.0
    %6742 = vmatpush1.msra.mxu0 0.0
    %6743 = vmatprep.subr.mxu0 0.0
    %6744 = vmatpush1.msra.mxu0 0.0
    %6745 = vmatprep.subr.mxu0 0.0
    %6746 = vmatpush1.msra.mxu0 0.0
    %6747 = vmatprep.mubr.f32.mxu0 0.0
    %6748 = vmatmul.mubr.f32.gmra.mrb[0].mxu0 %v6678
    %v6749 = vpop.f32.mrb[0].mxu0
    %v6750 = vadd.f32 0.0, %v6749
    %v6751 = vpop.f32.mrb[0].mxu0
    %6752 = vmatprep.mubr.f32.mxu0 0.0
    %6753 = vmatmul.mubr.f32.gmra.mrb[0].mxu0 %v6681
    %v6754 = vpop.f32.mrb[0].mxu0
    %v6755 = vadd.f32 0.0, %v6754
    %v6756 = vpop.f32.mrb[0].mxu0
    %6757 = vdwg.mxu0
    %v6758 = vadd.f32 %v6675, %v6750
    %v6759 = vadd.f32 %v6676, %v6755
    %v6761 = vlaneseq
    %v6762 = vshrl.u32 %v6761, 7
    %v6763 = vsub.s32 0, %v6762
    %v6764 = vrot.slane %v6246, %v6763
    %v6767 = vsel %vm617, %v6758, 0
    %v6770 = vsel %vm617, %v6759, 0
    %v6773 = vsel %vm624, %v6244, 0
    %6775 = vmatprep.subr.mxu0 0.0
    %6776 = vmatpush1.msra.mxu0 %v6773
    %6777 = vmatprep.subr.mxu0 0.0
    %6778 = vmatpush1.msra.mxu0 0.0
    %6779 = vmatprep.subr.mxu0 0.0
    %6780 = vmatpush1.msra.mxu0 0.0
    %6781 = vmatprep.subr.mxu0 0.0
    %6782 = vmatpush1.msra.mxu0 0.0
    %6783 = vmatprep.subr.mxu0 0.0
    %6784 = vmatpush1.msra.mxu0 0.0
    %6785 = vmatprep.subr.mxu0 0.0
    %6786 = vmatpush1.msra.mxu0 0.0
    %6787 = vmatprep.subr.mxu0 0.0
    %6788 = vmatpush1.msra.mxu0 0.0
    %6789 = vmatprep.subr.mxu0 0.0
    %6790 = vmatpush1.msra.mxu0 0.0
    %6791 = vmatprep.subr.mxu0 0.0
    %6792 = vmatpush1.msra.mxu0 0.0
    %6793 = vmatprep.subr.mxu0 0.0
    %6794 = vmatpush1.msra.mxu0 0.0
    %6795 = vmatprep.subr.mxu0 0.0
    %6796 = vmatpush1.msra.mxu0 0.0
    %6797 = vmatprep.subr.mxu0 0.0
    %6798 = vmatpush1.msra.mxu0 0.0
    %6799 = vmatprep.subr.mxu0 0.0
    %6800 = vmatpush1.msra.mxu0 0.0
    %6801 = vmatprep.subr.mxu0 0.0
    %6802 = vmatpush1.msra.mxu0 0.0
    %6803 = vmatprep.subr.mxu0 0.0
    %6804 = vmatpush1.msra.mxu0 0.0
    %6805 = vmatprep.subr.mxu0 0.0
    %6806 = vmatpush1.msra.mxu0 0.0
    %6807 = vmatprep.subr.mxu0 0.0
    %6808 = vmatpush1.msra.mxu0 0.0
    %6809 = vmatprep.subr.mxu0 0.0
    %6810 = vmatpush1.msra.mxu0 0.0
    %6811 = vmatprep.subr.mxu0 0.0
    %6812 = vmatpush1.msra.mxu0 0.0
    %6813 = vmatprep.subr.mxu0 0.0
    %6814 = vmatpush1.msra.mxu0 0.0
    %6815 = vmatprep.subr.mxu0 0.0
    %6816 = vmatpush1.msra.mxu0 0.0
    %6817 = vmatprep.subr.mxu0 0.0
    %6818 = vmatpush1.msra.mxu0 0.0
    %6819 = vmatprep.subr.mxu0 0.0
    %6820 = vmatpush1.msra.mxu0 0.0
    %6821 = vmatprep.subr.mxu0 0.0
    %6822 = vmatpush1.msra.mxu0 0.0
    %6823 = vmatprep.subr.mxu0 0.0
    %6824 = vmatpush1.msra.mxu0 0.0
    %6825 = vmatprep.subr.mxu0 0.0
    %6826 = vmatpush1.msra.mxu0 0.0
    %6827 = vmatprep.subr.mxu0 0.0
    %6828 = vmatpush1.msra.mxu0 0.0
    %6829 = vmatprep.subr.mxu0 0.0
    %6830 = vmatpush1.msra.mxu0 0.0
    %6831 = vmatprep.subr.mxu0 0.0
    %6832 = vmatpush1.msra.mxu0 0.0
    %6833 = vmatprep.subr.mxu0 0.0
    %6834 = vmatpush1.msra.mxu0 0.0
    %6835 = vmatprep.subr.mxu0 0.0
    %6836 = vmatpush1.msra.mxu0 0.0
    %6837 = vmatprep.subr.mxu0 0.0
    %6838 = vmatpush1.msra.mxu0 0.0
    %6839 = vmatprep.mubr.f32.mxu0 0.0
    %6840 = vmatmul.mubr.f32.gmra.mrb[0].mxu0 %v6767
    %v6841 = vpop.f32.mrb[0].mxu0
    %v6842 = vadd.f32 %v6764, %v6841
    %v6843 = vpop.f32.mrb[0].mxu0
    %6844 = vmatprep.mubr.f32.mxu0 0.0
    %6845 = vmatmul.mubr.f32.gmra.mrb[0].mxu0 %v6770
    %v6846 = vpop.f32.mrb[0].mxu0
    %v6847 = vadd.f32 %v6764, %v6846
    %v6848 = vpop.f32.mrb[0].mxu0
    %6849 = vdwg.mxu0
    %v6850 = vmax.f32 %v6842, 0.0
    %v6851 = vmax.f32 %v6847, 0.0
    %6852 = vmatprep.subr.mxu0 0.0
    %6853 = vmatpush1.msra.mxu0 %v6222
    %6854 = vmatprep.subr.mxu0 0.0
    %6855 = vmatpush1.msra.mxu0 %v6223
    %6856 = vmatprep.subr.mxu0 0.0
    %6857 = vmatpush1.msra.mxu0 0.0
    %6858 = vmatprep.subr.mxu0 0.0
    %6859 = vmatpush1.msra.mxu0 0.0
    %6860 = vmatprep.subr.mxu0 0.0
    %6861 = vmatpush1.msra.mxu0 0.0
    %6862 = vmatprep.subr.mxu0 0.0
    %6863 = vmatpush1.msra.mxu0 0.0
    %6864 = vmatprep.subr.mxu0 0.0
    %6865 = vmatpush1.msra.mxu0 0.0
    %6866 = vmatprep.subr.mxu0 0.0
    %6867 = vmatpush1.msra.mxu0 0.0
    %6868 = vmatprep.subr.mxu0 0.0
    %6869 = vmatpush1.msra.mxu0 0.0
    %6870 = vmatprep.subr.mxu0 0.0
    %6871 = vmatpush1.msra.mxu0 0.0
    %6872 = vmatprep.subr.mxu0 0.0
    %6873 = vmatpush1.msra.mxu0 0.0
    %6874 = vmatprep.subr.mxu0 0.0
    %6875 = vmatpush1.msra.mxu0 0.0
    %6876 = vmatprep.subr.mxu0 0.0
    %6877 = vmatpush1.msra.mxu0 0.0
    %6878 = vmatprep.subr.mxu0 0.0
    %6879 = vmatpush1.msra.mxu0 0.0
    %6880 = vmatprep.subr.mxu0 0.0
    %6881 = vmatpush1.msra.mxu0 0.0
    %6882 = vmatprep.subr.mxu0 0.0
    %6883 = vmatpush1.msra.mxu0 0.0
    %6884 = vmatprep.subr.mxu0 0.0
    %6885 = vmatpush1.msra.mxu0 0.0
    %6886 = vmatprep.subr.mxu0 0.0
    %6887 = vmatpush1.msra.mxu0 0.0
    %6888 = vmatprep.subr.mxu0 0.0
    %6889 = vmatpush1.msra.mxu0 0.0
    %6890 = vmatprep.subr.mxu0 0.0
    %6891 = vmatpush1.msra.mxu0 0.0
    %6892 = vmatprep.subr.mxu0 0.0
    %6893 = vmatpush1.msra.mxu0 0.0
    %6894 = vmatprep.subr.mxu0 0.0
    %6895 = vmatpush1.msra.mxu0 0.0
    %6896 = vmatprep.subr.mxu0 0.0
    %6897 = vmatpush1.msra.mxu0 0.0
    %6898 = vmatprep.subr.mxu0 0.0
    %6899 = vmatpush1.msra.mxu0 0.0
    %6900 = vmatprep.subr.mxu0 0.0
    %6901 = vmatpush1.msra.mxu0 0.0
    %6902 = vmatprep.subr.mxu0 0.0
    %6903 = vmatpush1.msra.mxu0 0.0
    %6904 = vmatprep.subr.mxu0 0.0
    %6905 = vmatpush1.msra.mxu0 0.0
    %6906 = vmatprep.subr.mxu0 0.0
    %6907 = vmatpush1.msra.mxu0 0.0
    %6908 = vmatprep.subr.mxu0 0.0
    %6909 = vmatpush1.msra.mxu0 0.0
    %6910 = vmatprep.subr.mxu0 0.0
    %6911 = vmatpush1.msra.mxu0 0.0
    %6912 = vmatprep.subr.mxu0 0.0
    %6913 = vmatpush1.msra.mxu0 0.0
    %6914 = vmatprep.subr.mxu0 0.0
    %6915 = vmatpush1.msra.mxu0 0.0
    %6916 = vmatprep.mubr.f32.mxu0 0.0
    %6917 = vmatmul.mubr.f32.gmra.mrb[0].mxu0 %v715
    %v6918 = vpop.f32.mrb[0].mxu0
    %v6919 = vadd.f32 0.0, %v6918
    %v6920 = vpop.f32.mrb[0].mxu0
    %6921 = vmatprep.mubr.f32.mxu0 0.0
    %6922 = vmatmul.mubr.f32.gmra.mrb[0].mxu0 %v718
    %v6923 = vpop.f32.mrb[0].mxu0
    %v6924 = vadd.f32 0.0, %v6923
    %v6925 = vpop.f32.mrb[0].mxu0
    %6926 = vmatprep.mubr.f32.mxu0 0.0
    %6927 = vmatmul.mubr.f32.gmra.mrb[0].mxu0 %v721
    %v6928 = vpop.f32.mrb[0].mxu0
    %v6929 = vadd.f32 0.0, %v6928
    %v6930 = vpop.f32.mrb[0].mxu0
    %6931 = vmatprep.mubr.f32.mxu0 0.0
    %6932 = vmatmul.mubr.f32.gmra.mrb[0].mxu0 %v724
    %v6933 = vpop.f32.mrb[0].mxu0
    %v6934 = vadd.f32 0.0, %v6933
    %v6935 = vpop.f32.mrb[0].mxu0
    %6936 = vmatprep.mubr.f32.mxu0 0.0
    %6937 = vmatmul.mubr.f32.gmra.mrb[0].mxu0 %v727
    %v6938 = vpop.f32.mrb[0].mxu0
    %v6939 = vadd.f32 0.0, %v6938
    %v6940 = vpop.f32.mrb[0].mxu0
    %6941 = vmatprep.mubr.f32.mxu0 0.0
    %6942 = vmatmul.mubr.f32.gmra.mrb[0].mxu0 %v730
    %v6943 = vpop.f32.mrb[0].mxu0
    %v6944 = vadd.f32 0.0, %v6943
    %v6945 = vpop.f32.mrb[0].mxu0
    %6946 = vmatprep.mubr.f32.mxu0 0.0
    %6947 = vmatmul.mubr.f32.gmra.mrb[0].mxu0 %v733
    %v6948 = vpop.f32.mrb[0].mxu0
    %v6949 = vadd.f32 0.0, %v6948
    %v6950 = vpop.f32.mrb[0].mxu0
    %6951 = vmatprep.mubr.f32.mxu0 0.0
    %6952 = vmatmul.mubr.f32.gmra.mrb[0].mxu0 %v736
    %v6953 = vpop.f32.mrb[0].mxu0
    %v6954 = vadd.f32 0.0, %v6953
    %v6955 = vpop.f32.mrb[0].mxu0
    %6956 = vdwg.mxu0
    %v6958 = vsel %vm194, %v6919, 0
    %v6961 = vsel %vm194, %v6924, 0
    %6963 = vmatprep.subr.mxu0 0.0
    %6964 = vmatpush1.msra.mxu0 %v6225
    %6965 = vmatprep.subr.mxu0 0.0
    %6966 = vmatpush1.msra.mxu0 %v6226
    %6967 = vmatprep.subr.mxu0 0.0
    %6968 = vmatpush1.msra.mxu0 %v6227
    %6969 = vmatprep.subr.mxu0 0.0
    %6970 = vmatpush1.msra.mxu0 %v6228
    %6971 = vmatprep.subr.mxu0 0.0
    %6972 = vmatpush1.msra.mxu0 0.0
    %6973 = vmatprep.subr.mxu0 0.0
    %6974 = vmatpush1.msra.mxu0 0.0
    %6975 = vmatprep.subr.mxu0 0.0
    %6976 = vmatpush1.msra.mxu0 0.0
    %6977 = vmatprep.subr.mxu0 0.0
    %6978 = vmatpush1.msra.mxu0 0.0
    %6979 = vmatprep.subr.mxu0 0.0
    %6980 = vmatpush1.msra.mxu0 0.0
    %6981 = vmatprep.subr.mxu0 0.0
    %6982 = vmatpush1.msra.mxu0 0.0
    %6983 = vmatprep.subr.mxu0 0.0
    %6984 = vmatpush1.msra.mxu0 0.0
    %6985 = vmatprep.subr.mxu0 0.0
    %6986 = vmatpush1.msra.mxu0 0.0
    %6987 = vmatprep.subr.mxu0 0.0
    %6988 = vmatpush1.msra.mxu0 0.0
    %6989 = vmatprep.subr.mxu0 0.0
    %6990 = vmatpush1.msra.mxu0 0.0
    %6991 = vmatprep.subr.mxu0 0.0
    %6992 = vmatpush1.msra.mxu0 0.0
    %6993 = vmatprep.subr.mxu0 0.0
    %6994 = vmatpush1.msra.mxu0 0.0
    %6995 = vmatprep.subr.mxu0 0.0
    %6996 = vmatpush1.msra.mxu0 0.0
    %6997 = vmatprep.subr.mxu0 0.0
    %6998 = vmatpush1.msra.mxu0 0.0
    %6999 = vmatprep.subr.mxu0 0.0
    %7000 = vmatpush1.msra.mxu0 0.0
    %7001 = vmatprep.subr.mxu0 0.0
    %7002 = vmatpush1.msra.mxu0 0.0
    %7003 = vmatprep.subr.mxu0 0.0
    %7004 = vmatpush1.msra.mxu0 0.0
    %7005 = vmatprep.subr.mxu0 0.0
    %7006 = vmatpush1.msra.mxu0 0.0
    %7007 = vmatprep.subr.mxu0 0.0
    %7008 = vmatpush1.msra.mxu0 0.0
    %7009 = vmatprep.subr.mxu0 0.0
    %7010 = vmatpush1.msra.mxu0 0.0
    %7011 = vmatprep.subr.mxu0 0.0
    %7012 = vmatpush1.msra.mxu0 0.0
    %7013 = vmatprep.subr.mxu0 0.0
    %7014 = vmatpush1.msra.mxu0 0.0
    %7015 = vmatprep.subr.mxu0 0.0
    %7016 = vmatpush1.msra.mxu0 0.0
    %7017 = vmatprep.subr.mxu0 0.0
    %7018 = vmatpush1.msra.mxu0 0.0
    %7019 = vmatprep.subr.mxu0 0.0
    %7020 = vmatpush1.msra.mxu0 0.0
    %7021 = vmatprep.subr.mxu0 0.0
    %7022 = vmatpush1.msra.mxu0 0.0
    %7023 = vmatprep.subr.mxu0 0.0
    %7024 = vmatpush1.msra.mxu0 0.0
    %7025 = vmatprep.subr.mxu0 0.0
    %7026 = vmatpush1.msra.mxu0 0.0
    %7027 = vmatprep.mubr.f32.mxu0 0.0
    %7028 = vmatmul.mubr.f32.gmra.mrb[0].mxu0 %v6958
    %v7029 = vpop.f32.mrb[0].mxu0
    %v7030 = vadd.f32 0.0, %v7029
    %v7031 = vpop.f32.mrb[0].mxu0
    %7032 = vmatprep.mubr.f32.mxu0 0.0
    %7033 = vmatmul.mubr.f32.gmra.mrb[0].mxu0 %v6961
    %v7034 = vpop.f32.mrb[0].mxu0
    %v7035 = vadd.f32 0.0, %v7034
    %v7036 = vpop.f32.mrb[0].mxu0
    %7037 = vdwg.mxu0
    %7038 = vmatprep.subr.mxu0 0.0
    %7039 = vmatpush1.msra.mxu0 %v6434
    %7040 = vmatprep.subr.mxu0 0.0
    %7041 = vmatpush1.msra.mxu0 0.0
    %7042 = vmatprep.subr.mxu0 0.0
    %7043 = vmatpush1.msra.mxu0 0.0
    %7044 = vmatprep.subr.mxu0 0.0
    %7045 = vmatpush1.msra.mxu0 0.0
    %7046 = vmatprep.subr.mxu0 0.0
    %7047 = vmatpush1.msra.mxu0 0.0
    %7048 = vmatprep.subr.mxu0 0.0
    %7049 = vmatpush1.msra.mxu0 0.0
    %7050 = vmatprep.subr.mxu0 0.0
    %7051 = vmatpush1.msra.mxu0 0.0
    %7052 = vmatprep.subr.mxu0 0.0
    %7053 = vmatpush1.msra.mxu0 0.0
    %7054 = vmatprep.subr.mxu0 0.0
    %7055 = vmatpush1.msra.mxu0 0.0
    %7056 = vmatprep.subr.mxu0 0.0
    %7057 = vmatpush1.msra.mxu0 0.0
    %7058 = vmatprep.subr.mxu0 0.0
    %7059 = vmatpush1.msra.mxu0 0.0
    %7060 = vmatprep.subr.mxu0 0.0
    %7061 = vmatpush1.msra.mxu0 0.0
    %7062 = vmatprep.subr.mxu0 0.0
    %7063 = vmatpush1.msra.mxu0 0.0
    %7064 = vmatprep.subr.mxu0 0.0
    %7065 = vmatpush1.msra.mxu0 0.0
    %7066 = vmatprep.subr.mxu0 0.0
    %7067 = vmatpush1.msra.mxu0 0.0
    %7068 = vmatprep.subr.mxu0 0.0
    %7069 = vmatpush1.msra.mxu0 0.0
    %7070 = vmatprep.subr.mxu0 0.0
    %7071 = vmatpush1.msra.mxu0 0.0
    %7072 = vmatprep.subr.mxu0 0.0
    %7073 = vmatpush1.msra.mxu0 0.0
    %7074 = vmatprep.subr.mxu0 0.0
    %7075 = vmatpush1.msra.mxu0 0.0
    %7076 = vmatprep.subr.mxu0 0.0
    %7077 = vmatpush1.msra.mxu0 0.0
    %7078 = vmatprep.subr.mxu0 0.0
    %7079 = vmatpush1.msra.mxu0 0.0
    %7080 = vmatprep.subr.mxu0 0.0
    %7081 = vmatpush1.msra.mxu0 0.0
    %7082 = vmatprep.subr.mxu0 0.0
    %7083 = vmatpush1.msra.mxu0 0.0
    %7084 = vmatprep.subr.mxu0 0.0
    %7085 = vmatpush1.msra.mxu0 0.0
    %7086 = vmatprep.subr.mxu0 0.0
    %7087 = vmatpush1.msra.mxu0 0.0
    %7088 = vmatprep.subr.mxu0 0.0
    %7089 = vmatpush1.msra.mxu0 0.0
    %7090 = vmatprep.subr.mxu0 0.0
    %7091 = vmatpush1.msra.mxu0 0.0
    %7092 = vmatprep.subr.mxu0 0.0
    %7093 = vmatpush1.msra.mxu0 0.0
    %7094 = vmatprep.subr.mxu0 0.0
    %7095 = vmatpush1.msra.mxu0 0.0
    %7096 = vmatprep.subr.mxu0 0.0
    %7097 = vmatpush1.msra.mxu0 0.0
    %7098 = vmatprep.subr.mxu0 0.0
    %7099 = vmatpush1.msra.mxu0 0.0
    %7100 = vmatprep.subr.mxu0 0.0
    %7101 = vmatpush1.msra.mxu0 0.0
    %7102 = vmatprep.mubr.f32.mxu0 0.0
    %7103 = vmatmul.mubr.f32.gmra.mrb[0].mxu0 %v928
    %v7104 = vpop.f32.mrb[0].mxu0
    %v7105 = vadd.f32 %v7030, %v7104
    %v7106 = vpop.f32.mrb[0].mxu0
    %7107 = vmatprep.mubr.f32.mxu0 0.0
    %7108 = vmatmul.mubr.f32.gmra.mrb[0].mxu0 %v931
    %v7109 = vpop.f32.mrb[0].mxu0
    %v7110 = vadd.f32 %v7035, %v7109
    %v7111 = vpop.f32.mrb[0].mxu0
    %7112 = vdwg.mxu0
    %v7114 = vsel %vm194, %v6929, 0
    %v7117 = vsel %vm194, %v6934, 0
    %7119 = vmatprep.subr.mxu0 0.0
    %7120 = vmatpush1.msra.mxu0 %v6229
    %7121 = vmatprep.subr.mxu0 0.0
    %7122 = vmatpush1.msra.mxu0 %v6230
    %7123 = vmatprep.subr.mxu0 0.0
    %7124 = vmatpush1.msra.mxu0 %v6231
    %7125 = vmatprep.subr.mxu0 0.0
    %7126 = vmatpush1.msra.mxu0 %v6232
    %7127 = vmatprep.subr.mxu0 0.0
    %7128 = vmatpush1.msra.mxu0 0.0
    %7129 = vmatprep.subr.mxu0 0.0
    %7130 = vmatpush1.msra.mxu0 0.0
    %7131 = vmatprep.subr.mxu0 0.0
    %7132 = vmatpush1.msra.mxu0 0.0
    %7133 = vmatprep.subr.mxu0 0.0
    %7134 = vmatpush1.msra.mxu0 0.0
    %7135 = vmatprep.subr.mxu0 0.0
    %7136 = vmatpush1.msra.mxu0 0.0
    %7137 = vmatprep.subr.mxu0 0.0
    %7138 = vmatpush1.msra.mxu0 0.0
    %7139 = vmatprep.subr.mxu0 0.0
    %7140 = vmatpush1.msra.mxu0 0.0
    %7141 = vmatprep.subr.mxu0 0.0
    %7142 = vmatpush1.msra.mxu0 0.0
    %7143 = vmatprep.subr.mxu0 0.0
    %7144 = vmatpush1.msra.mxu0 0.0
    %7145 = vmatprep.subr.mxu0 0.0
    %7146 = vmatpush1.msra.mxu0 0.0
    %7147 = vmatprep.subr.mxu0 0.0
    %7148 = vmatpush1.msra.mxu0 0.0
    %7149 = vmatprep.subr.mxu0 0.0
    %7150 = vmatpush1.msra.mxu0 0.0
    %7151 = vmatprep.subr.mxu0 0.0
    %7152 = vmatpush1.msra.mxu0 0.0
    %7153 = vmatprep.subr.mxu0 0.0
    %7154 = vmatpush1.msra.mxu0 0.0
    %7155 = vmatprep.subr.mxu0 0.0
    %7156 = vmatpush1.msra.mxu0 0.0
    %7157 = vmatprep.subr.mxu0 0.0
    %7158 = vmatpush1.msra.mxu0 0.0
    %7159 = vmatprep.subr.mxu0 0.0
    %7160 = vmatpush1.msra.mxu0 0.0
    %7161 = vmatprep.subr.mxu0 0.0
    %7162 = vmatpush1.msra.mxu0 0.0
    %7163 = vmatprep.subr.mxu0 0.0
    %7164 = vmatpush1.msra.mxu0 0.0
    %7165 = vmatprep.subr.mxu0 0.0
    %7166 = vmatpush1.msra.mxu0 0.0
    %7167 = vmatprep.subr.mxu0 0.0
    %7168 = vmatpush1.msra.mxu0 0.0
    %7169 = vmatprep.subr.mxu0 0.0
    %7170 = vmatpush1.msra.mxu0 0.0
    %7171 = vmatprep.subr.mxu0 0.0
    %7172 = vmatpush1.msra.mxu0 0.0
    %7173 = vmatprep.subr.mxu0 0.0
    %7174 = vmatpush1.msra.mxu0 0.0
    %7175 = vmatprep.subr.mxu0 0.0
    %7176 = vmatpush1.msra.mxu0 0.0
    %7177 = vmatprep.subr.mxu0 0.0
    %7178 = vmatpush1.msra.mxu0 0.0
    %7179 = vmatprep.subr.mxu0 0.0
    %7180 = vmatpush1.msra.mxu0 0.0
    %7181 = vmatprep.subr.mxu0 0.0
    %7182 = vmatpush1.msra.mxu0 0.0
    %7183 = vmatprep.mubr.f32.mxu0 0.0
    %7184 = vmatmul.mubr.f32.gmra.mrb[0].mxu0 %v7114
    %v7185 = vpop.f32.mrb[0].mxu0
    %v7186 = vadd.f32 0.0, %v7185
    %v7187 = vpop.f32.mrb[0].mxu0
    %7188 = vmatprep.mubr.f32.mxu0 0.0
    %7189 = vmatmul.mubr.f32.gmra.mrb[0].mxu0 %v7117
    %v7190 = vpop.f32.mrb[0].mxu0
    %v7191 = vadd.f32 0.0, %v7190
    %v7192 = vpop.f32.mrb[0].mxu0
    %7193 = vdwg.mxu0
    %v7194 = vadd.f32 %v7105, %v7186
    %v7195 = vadd.f32 %v7110, %v7191
    %v7197 = vsel %vm194, %v6939, 0
    %v7200 = vsel %vm194, %v6944, 0
    %7202 = vmatprep.subr.mxu0 0.0
    %7203 = vmatpush1.msra.mxu0 %v6233
    %7204 = vmatprep.subr.mxu0 0.0
    %7205 = vmatpush1.msra.mxu0 %v6234
    %7206 = vmatprep.subr.mxu0 0.0
    %7207 = vmatpush1.msra.mxu0 %v6235
    %7208 = vmatprep.subr.mxu0 0.0
    %7209 = vmatpush1.msra.mxu0 %v6236
    %7210 = vmatprep.subr.mxu0 0.0
    %7211 = vmatpush1.msra.mxu0 0.0
    %7212 = vmatprep.subr.mxu0 0.0
    %7213 = vmatpush1.msra.mxu0 0.0
    %7214 = vmatprep.subr.mxu0 0.0
    %7215 = vmatpush1.msra.mxu0 0.0
    %7216 = vmatprep.subr.mxu0 0.0
    %7217 = vmatpush1.msra.mxu0 0.0
    %7218 = vmatprep.subr.mxu0 0.0
    %7219 = vmatpush1.msra.mxu0 0.0
    %7220 = vmatprep.subr.mxu0 0.0
    %7221 = vmatpush1.msra.mxu0 0.0
    %7222 = vmatprep.subr.mxu0 0.0
    %7223 = vmatpush1.msra.mxu0 0.0
    %7224 = vmatprep.subr.mxu0 0.0
    %7225 = vmatpush1.msra.mxu0 0.0
    %7226 = vmatprep.subr.mxu0 0.0
    %7227 = vmatpush1.msra.mxu0 0.0
    %7228 = vmatprep.subr.mxu0 0.0
    %7229 = vmatpush1.msra.mxu0 0.0
    %7230 = vmatprep.subr.mxu0 0.0
    %7231 = vmatpush1.msra.mxu0 0.0
    %7232 = vmatprep.subr.mxu0 0.0
    %7233 = vmatpush1.msra.mxu0 0.0
    %7234 = vmatprep.subr.mxu0 0.0
    %7235 = vmatpush1.msra.mxu0 0.0
    %7236 = vmatprep.subr.mxu0 0.0
    %7237 = vmatpush1.msra.mxu0 0.0
    %7238 = vmatprep.subr.mxu0 0.0
    %7239 = vmatpush1.msra.mxu0 0.0
    %7240 = vmatprep.subr.mxu0 0.0
    %7241 = vmatpush1.msra.mxu0 0.0
    %7242 = vmatprep.subr.mxu0 0.0
    %7243 = vmatpush1.msra.mxu0 0.0
    %7244 = vmatprep.subr.mxu0 0.0
    %7245 = vmatpush1.msra.mxu0 0.0
    %7246 = vmatprep.subr.mxu0 0.0
    %7247 = vmatpush1.msra.mxu0 0.0
    %7248 = vmatprep.subr.mxu0 0.0
    %7249 = vmatpush1.msra.mxu0 0.0
    %7250 = vmatprep.subr.mxu0 0.0
    %7251 = vmatpush1.msra.mxu0 0.0
    %7252 = vmatprep.subr.mxu0 0.0
    %7253 = vmatpush1.msra.mxu0 0.0
    %7254 = vmatprep.subr.mxu0 0.0
    %7255 = vmatpush1.msra.mxu0 0.0
    %7256 = vmatprep.subr.mxu0 0.0
    %7257 = vmatpush1.msra.mxu0 0.0
    %7258 = vmatprep.subr.mxu0 0.0
    %7259 = vmatpush1.msra.mxu0 0.0
    %7260 = vmatprep.subr.mxu0 0.0
    %7261 = vmatpush1.msra.mxu0 0.0
    %7262 = vmatprep.subr.mxu0 0.0
    %7263 = vmatpush1.msra.mxu0 0.0
    %7264 = vmatprep.subr.mxu0 0.0
    %7265 = vmatpush1.msra.mxu0 0.0
    %7266 = vmatprep.mubr.f32.mxu0 0.0
    %7267 = vmatmul.mubr.f32.gmra.mrb[0].mxu0 %v7197
    %v7268 = vpop.f32.mrb[0].mxu0
    %v7269 = vadd.f32 0.0, %v7268
    %v7270 = vpop.f32.mrb[0].mxu0
    %7271 = vmatprep.mubr.f32.mxu0 0.0
    %7272 = vmatmul.mubr.f32.gmra.mrb[0].mxu0 %v7200
    %v7273 = vpop.f32.mrb[0].mxu0
    %v7274 = vadd.f32 0.0, %v7273
    %v7275 = vpop.f32.mrb[0].mxu0
    %7276 = vdwg.mxu0
    %v7277 = vadd.f32 %v7194, %v7269
    %v7278 = vadd.f32 %v7195, %v7274
    %v7280 = vsel %vm194, %v6949, 0
    %v7283 = vsel %vm194, %v6954, 0
    %7285 = vmatprep.subr.mxu0 0.0
    %7286 = vmatpush1.msra.mxu0 %v6237
    %7287 = vmatprep.subr.mxu0 0.0
    %7288 = vmatpush1.msra.mxu0 %v6238
    %7289 = vmatprep.subr.mxu0 0.0
    %7290 = vmatpush1.msra.mxu0 %v6239
    %7291 = vmatprep.subr.mxu0 0.0
    %7292 = vmatpush1.msra.mxu0 %v6240
    %7293 = vmatprep.subr.mxu0 0.0
    %7294 = vmatpush1.msra.mxu0 0.0
    %7295 = vmatprep.subr.mxu0 0.0
    %7296 = vmatpush1.msra.mxu0 0.0
    %7297 = vmatprep.subr.mxu0 0.0
    %7298 = vmatpush1.msra.mxu0 0.0
    %7299 = vmatprep.subr.mxu0 0.0
    %7300 = vmatpush1.msra.mxu0 0.0
    %7301 = vmatprep.subr.mxu0 0.0
    %7302 = vmatpush1.msra.mxu0 0.0
    %7303 = vmatprep.subr.mxu0 0.0
    %7304 = vmatpush1.msra.mxu0 0.0
    %7305 = vmatprep.subr.mxu0 0.0
    %7306 = vmatpush1.msra.mxu0 0.0
    %7307 = vmatprep.subr.mxu0 0.0
    %7308 = vmatpush1.msra.mxu0 0.0
    %7309 = vmatprep.subr.mxu0 0.0
    %7310 = vmatpush1.msra.mxu0 0.0
    %7311 = vmatprep.subr.mxu0 0.0
    %7312 = vmatpush1.msra.mxu0 0.0
    %7313 = vmatprep.subr.mxu0 0.0
    %7314 = vmatpush1.msra.mxu0 0.0
    %7315 = vmatprep.subr.mxu0 0.0
    %7316 = vmatpush1.msra.mxu0 0.0
    %7317 = vmatprep.subr.mxu0 0.0
    %7318 = vmatpush1.msra.mxu0 0.0
    %7319 = vmatprep.subr.mxu0 0.0
    %7320 = vmatpush1.msra.mxu0 0.0
    %7321 = vmatprep.subr.mxu0 0.0
    %7322 = vmatpush1.msra.mxu0 0.0
    %7323 = vmatprep.subr.mxu0 0.0
    %7324 = vmatpush1.msra.mxu0 0.0
    %7325 = vmatprep.subr.mxu0 0.0
    %7326 = vmatpush1.msra.mxu0 0.0
    %7327 = vmatprep.subr.mxu0 0.0
    %7328 = vmatpush1.msra.mxu0 0.0
    %7329 = vmatprep.subr.mxu0 0.0
    %7330 = vmatpush1.msra.mxu0 0.0
    %7331 = vmatprep.subr.mxu0 0.0
    %7332 = vmatpush1.msra.mxu0 0.0
    %7333 = vmatprep.subr.mxu0 0.0
    %7334 = vmatpush1.msra.mxu0 0.0
    %7335 = vmatprep.subr.mxu0 0.0
    %7336 = vmatpush1.msra.mxu0 0.0
    %7337 = vmatprep.subr.mxu0 0.0
    %7338 = vmatpush1.msra.mxu0 0.0
    %7339 = vmatprep.subr.mxu0 0.0
    %7340 = vmatpush1.msra.mxu0 0.0
    %7341 = vmatprep.subr.mxu0 0.0
    %7342 = vmatpush1.msra.mxu0 0.0
    %7343 = vmatprep.subr.mxu0 0.0
    %7344 = vmatpush1.msra.mxu0 0.0
    %7345 = vmatprep.subr.mxu0 0.0
    %7346 = vmatpush1.msra.mxu0 0.0
    %7347 = vmatprep.subr.mxu0 0.0
    %7348 = vmatpush1.msra.mxu0 0.0
    %7349 = vmatprep.mubr.f32.mxu0 0.0
    %7350 = vmatmul.mubr.f32.gmra.mrb[0].mxu0 %v7280
    %v7351 = vpop.f32.mrb[0].mxu0
    %v7352 = vadd.f32 0.0, %v7351
    %v7353 = vpop.f32.mrb[0].mxu0
    %7354 = vmatprep.mubr.f32.mxu0 0.0
    %7355 = vmatmul.mubr.f32.gmra.mrb[0].mxu0 %v7283
    %v7356 = vpop.f32.mrb[0].mxu0
    %v7357 = vadd.f32 0.0, %v7356
    %v7358 = vpop.f32.mrb[0].mxu0
    %7359 = vdwg.mxu0
    %v7360 = vadd.f32 %v7277, %v7352
    %v7361 = vadd.f32 %v7278, %v7357
    %v7363 = vsel %vm617, %v7360, 0
    %v7366 = vsel %vm617, %v7361, 0
    %7368 = vmatprep.subr.mxu0 0.0
    %7369 = vmatpush1.msra.mxu0 %v6773
    %7370 = vmatprep.subr.mxu0 0.0
    %7371 = vmatpush1.msra.mxu0 0.0
    %7372 = vmatprep.subr.mxu0 0.0
    %7373 = vmatpush1.msra.mxu0 0.0
    %7374 = vmatprep.subr.mxu0 0.0
    %7375 = vmatpush1.msra.mxu0 0.0
    %7376 = vmatprep.subr.mxu0 0.0
    %7377 = vmatpush1.msra.mxu0 0.0
    %7378 = vmatprep.subr.mxu0 0.0
    %7379 = vmatpush1.msra.mxu0 0.0
    %7380 = vmatprep.subr.mxu0 0.0
    %7381 = vmatpush1.msra.mxu0 0.0
    %7382 = vmatprep.subr.mxu0 0.0
    %7383 = vmatpush1.msra.mxu0 0.0
    %7384 = vmatprep.subr.mxu0 0.0
    %7385 = vmatpush1.msra.mxu0 0.0
    %7386 = vmatprep.subr.mxu0 0.0
    %7387 = vmatpush1.msra.mxu0 0.0
    %7388 = vmatprep.subr.mxu0 0.0
    %7389 = vmatpush1.msra.mxu0 0.0
    %7390 = vmatprep.subr.mxu0 0.0
    %7391 = vmatpush1.msra.mxu0 0.0
    %7392 = vmatprep.subr.mxu0 0.0
    %7393 = vmatpush1.msra.mxu0 0.0
    %7394 = vmatprep.subr.mxu0 0.0
    %7395 = vmatpush1.msra.mxu0 0.0
    %7396 = vmatprep.subr.mxu0 0.0
    %7397 = vmatpush1.msra.mxu0 0.0
    %7398 = vmatprep.subr.mxu0 0.0
    %7399 = vmatpush1.msra.mxu0 0.0
    %7400 = vmatprep.subr.mxu0 0.0
    %7401 = vmatpush1.msra.mxu0 0.0
    %7402 = vmatprep.subr.mxu0 0.0
    %7403 = vmatpush1.msra.mxu0 0.0
    %7404 = vmatprep.subr.mxu0 0.0
    %7405 = vmatpush1.msra.mxu0 0.0
    %7406 = vmatprep.subr.mxu0 0.0
    %7407 = vmatpush1.msra.mxu0 0.0
    %7408 = vmatprep.subr.mxu0 0.0
    %7409 = vmatpush1.msra.mxu0 0.0
    %7410 = vmatprep.subr.mxu0 0.0
    %7411 = vmatpush1.msra.mxu0 0.0
    %7412 = vmatprep.subr.mxu0 0.0
    %7413 = vmatpush1.msra.mxu0 0.0
    %7414 = vmatprep.subr.mxu0 0.0
    %7415 = vmatpush1.msra.mxu0 0.0
    %7416 = vmatprep.subr.mxu0 0.0
    %7417 = vmatpush1.msra.mxu0 0.0
    %7418 = vmatprep.subr.mxu0 0.0
    %7419 = vmatpush1.msra.mxu0 0.0
    %7420 = vmatprep.subr.mxu0 0.0
    %7421 = vmatpush1.msra.mxu0 0.0
    %7422 = vmatprep.subr.mxu0 0.0
    %7423 = vmatpush1.msra.mxu0 0.0
    %7424 = vmatprep.subr.mxu0 0.0
    %7425 = vmatpush1.msra.mxu0 0.0
    %7426 = vmatprep.subr.mxu0 0.0
    %7427 = vmatpush1.msra.mxu0 0.0
    %7428 = vmatprep.subr.mxu0 0.0
    %7429 = vmatpush1.msra.mxu0 0.0
    %7430 = vmatprep.subr.mxu0 0.0
    %7431 = vmatpush1.msra.mxu0 0.0
    %7432 = vmatprep.mubr.f32.mxu0 0.0
    %7433 = vmatmul.mubr.f32.gmra.mrb[0].mxu0 %v7363
    %v7434 = vpop.f32.mrb[0].mxu0
    %v7435 = vadd.f32 %v6764, %v7434
    %v7436 = vpop.f32.mrb[0].mxu0
    %7437 = vmatprep.mubr.f32.mxu0 0.0
    %7438 = vmatmul.mubr.f32.gmra.mrb[0].mxu0 %v7366
    %v7439 = vpop.f32.mrb[0].mxu0
    %v7440 = vadd.f32 %v6764, %v7439
    %v7441 = vpop.f32.mrb[0].mxu0
    %7442 = vdwg.mxu0
    %v7443 = vmax.f32 %v7435, 0.0
    %v7444 = vmax.f32 %v7440, 0.0
    %v7445 = vld [vmem:[%s7] sm:$0xff]
    %v7446 = vld [vmem:[%s7 + $0x8] sm:$0xff]
    %v7447 = vld [vmem:[%s7 + $0x10] sm:$0xff]
    %v7448 = vld [vmem:[%s7 + $0x18] sm:$0xff]
    %s7449 = scalar_lea.vmem %s7, 32
    %v7450 = vld [vmem:[%s7449] sm:$0xff]
    %v7451 = vld [vmem:[%s7449 + $0x8] sm:$0xff]
    %v7452 = vld [vmem:[%s7449 + $0x10] sm:$0xff]
    %v7453 = vld [vmem:[%s7449 + $0x18] sm:$0xff]
    %v7455 = vrot.slane %v6850, 1
    %v7456 = vsel %vm194, %v7455, 0
    %7458 = vmatprep.subr.mxu0 0.0
    %7459 = vmatpush1.msra.mxu0 %v7450
    %7460 = vmatprep.subr.mxu0 0.0
    %7461 = vmatpush1.msra.mxu0 %v7451
    %7462 = vmatprep.subr.mxu0 0.0
    %7463 = vmatpush1.msra.mxu0 %v7452
    %7464 = vmatprep.subr.mxu0 0.0
    %7465 = vmatpush1.msra.mxu0 %v7453
    %7466 = vmatprep.subr.mxu0 0.0
    %7467 = vmatpush1.msra.mxu0 0.0
    %7468 = vmatprep.subr.mxu0 0.0
    %7469 = vmatpush1.msra.mxu0 0.0
    %7470 = vmatprep.subr.mxu0 0.0
    %7471 = vmatpush1.msra.mxu0 0.0
    %7472 = vmatprep.subr.mxu0 0.0
    %7473 = vmatpush1.msra.mxu0 0.0
    %7474 = vmatprep.subr.mxu0 0.0
    %7475 = vmatpush1.msra.mxu0 0.0
    %7476 = vmatprep.subr.mxu0 0.0
    %7477 = vmatpush1.msra.mxu0 0.0
    %7478 = vmatprep.subr.mxu0 0.0
    %7479 = vmatpush1.msra.mxu0 0.0
    %7480 = vmatprep.subr.mxu0 0.0
    %7481 = vmatpush1.msra.mxu0 0.0
    %7482 = vmatprep.subr.mxu0 0.0
    %7483 = vmatpush1.msra.mxu0 0.0
    %7484 = vmatprep.subr.mxu0 0.0
    %7485 = vmatpush1.msra.mxu0 0.0
    %7486 = vmatprep.subr.mxu0 0.0
    %7487 = vmatpush1.msra.mxu0 0.0
    %7488 = vmatprep.subr.mxu0 0.0
    %7489 = vmatpush1.msra.mxu0 0.0
    %7490 = vmatprep.subr.mxu0 0.0
    %7491 = vmatpush1.msra.mxu0 0.0
    %7492 = vmatprep.subr.mxu0 0.0
    %7493 = vmatpush1.msra.mxu0 0.0
    %7494 = vmatprep.subr.mxu0 0.0
    %7495 = vmatpush1.msra.mxu0 0.0
    %7496 = vmatprep.subr.mxu0 0.0
    %7497 = vmatpush1.msra.mxu0 0.0
    %7498 = vmatprep.subr.mxu0 0.0
    %7499 = vmatpush1.msra.mxu0 0.0
    %7500 = vmatprep.subr.mxu0 0.0
    %7501 = vmatpush1.msra.mxu0 0.0
    %7502 = vmatprep.subr.mxu0 0.0
    %7503 = vmatpush1.msra.mxu0 0.0
    %7504 = vmatprep.subr.mxu0 0.0
    %7505 = vmatpush1.msra.mxu0 0.0
    %7506 = vmatprep.subr.mxu0 0.0
    %7507 = vmatpush1.msra.mxu0 0.0
    %7508 = vmatprep.subr.mxu0 0.0
    %7509 = vmatpush1.msra.mxu0 0.0
    %7510 = vmatprep.subr.mxu0 0.0
    %7511 = vmatpush1.msra.mxu0 0.0
    %7512 = vmatprep.subr.mxu0 0.0
    %7513 = vmatpush1.msra.mxu0 0.0
    %7514 = vmatprep.subr.mxu0 0.0
    %7515 = vmatpush1.msra.mxu0 0.0
    %7516 = vmatprep.subr.mxu0 0.0
    %7517 = vmatpush1.msra.mxu0 0.0
    %7518 = vmatprep.subr.mxu0 0.0
    %7519 = vmatpush1.msra.mxu0 0.0
    %7520 = vmatprep.subr.mxu0 0.0
    %7521 = vmatpush1.msra.mxu0 0.0
    %7522 = vmatprep.mubr.f32.mxu0 0.0
    %7523 = vmatmul.mubr.f32.gmra.mrb[0].mxu0 %v7456
    %v7524 = vpop.f32.mrb[0].mxu0
    %v7525 = vadd.f32 0.0, %v7524
    %v7526 = vpop.f32.mrb[0].mxu0
    %7527 = vdwg.mxu0
    %v7528 = vsel %vm194, %v6850, 0
    %7530 = vmatprep.subr.mxu0 0.0
    %7531 = vmatpush1.msra.mxu0 %v7445
    %7532 = vmatprep.subr.mxu0 0.0
    %7533 = vmatpush1.msra.mxu0 %v7446
    %7534 = vmatprep.subr.mxu0 0.0
    %7535 = vmatpush1.msra.mxu0 %v7447
    %7536 = vmatprep.subr.mxu0 0.0
    %7537 = vmatpush1.msra.mxu0 %v7448
    %7538 = vmatprep.subr.mxu0 0.0
    %7539 = vmatpush1.msra.mxu0 0.0
    %7540 = vmatprep.subr.mxu0 0.0
    %7541 = vmatpush1.msra.mxu0 0.0
    %7542 = vmatprep.subr.mxu0 0.0
    %7543 = vmatpush1.msra.mxu0 0.0
    %7544 = vmatprep.subr.mxu0 0.0
    %7545 = vmatpush1.msra.mxu0 0.0
    %7546 = vmatprep.subr.mxu0 0.0
    %7547 = vmatpush1.msra.mxu0 0.0
    %7548 = vmatprep.subr.mxu0 0.0
    %7549 = vmatpush1.msra.mxu0 0.0
    %7550 = vmatprep.subr.mxu0 0.0
    %7551 = vmatpush1.msra.mxu0 0.0
    %7552 = vmatprep.subr.mxu0 0.0
    %7553 = vmatpush1.msra.mxu0 0.0
    %7554 = vmatprep.subr.mxu0 0.0
    %7555 = vmatpush1.msra.mxu0 0.0
    %7556 = vmatprep.subr.mxu0 0.0
    %7557 = vmatpush1.msra.mxu0 0.0
    %7558 = vmatprep.subr.mxu0 0.0
    %7559 = vmatpush1.msra.mxu0 0.0
    %7560 = vmatprep.subr.mxu0 0.0
    %7561 = vmatpush1.msra.mxu0 0.0
    %7562 = vmatprep.subr.mxu0 0.0
    %7563 = vmatpush1.msra.mxu0 0.0
    %7564 = vmatprep.subr.mxu0 0.0
    %7565 = vmatpush1.msra.mxu0 0.0
    %7566 = vmatprep.subr.mxu0 0.0
    %7567 = vmatpush1.msra.mxu0 0.0
    %7568 = vmatprep.subr.mxu0 0.0
    %7569 = vmatpush1.msra.mxu0 0.0
    %7570 = vmatprep.subr.mxu0 0.0
    %7571 = vmatpush1.msra.mxu0 0.0
    %7572 = vmatprep.subr.mxu0 0.0
    %7573 = vmatpush1.msra.mxu0 0.0
    %7574 = vmatprep.subr.mxu0 0.0
    %7575 = vmatpush1.msra.mxu0 0.0
    %7576 = vmatprep.subr.mxu0 0.0
    %7577 = vmatpush1.msra.mxu0 0.0
    %7578 = vmatprep.subr.mxu0 0.0
    %7579 = vmatpush1.msra.mxu0 0.0
    %7580 = vmatprep.subr.mxu0 0.0
    %7581 = vmatpush1.msra.mxu0 0.0
    %7582 = vmatprep.subr.mxu0 0.0
    %7583 = vmatpush1.msra.mxu0 0.0
    %7584 = vmatprep.subr.mxu0 0.0
    %7585 = vmatpush1.msra.mxu0 0.0
    %7586 = vmatprep.subr.mxu0 0.0
    %7587 = vmatpush1.msra.mxu0 0.0
    %7588 = vmatprep.subr.mxu0 0.0
    %7589 = vmatpush1.msra.mxu0 0.0
    %7590 = vmatprep.subr.mxu0 0.0
    %7591 = vmatpush1.msra.mxu0 0.0
    %7592 = vmatprep.subr.mxu0 0.0
    %7593 = vmatpush1.msra.mxu0 0.0
    %7594 = vmatprep.mubr.f32.mxu0 0.0
    %7595 = vmatmul.mubr.f32.gmra.mrb[0].mxu0 %v7528
    %v7596 = vpop.f32.mrb[0].mxu0
    %v7597 = vadd.f32 %v7525, %v7596
    %v7598 = vpop.f32.mrb[0].mxu0
    %7599 = vdwg.mxu0
    %s7600 = scalar_lea.vmem %s7, 64
    %v7601 = vld [vmem:[%s7600] sm:$0xff]
    %v7602 = vld [vmem:[%s7600 + $0x8] sm:$0xff]
    %v7603 = vld [vmem:[%s7600 + $0x10] sm:$0xff]
    %v7604 = vld [vmem:[%s7600 + $0x18] sm:$0xff]
    %v7605 = vrot.slane %v6850, 2
    %v7606 = vsel %vm194, %v7605, 0
    %7608 = vmatprep.subr.mxu0 0.0
    %7609 = vmatpush1.msra.mxu0 %v7601
    %7610 = vmatprep.subr.mxu0 0.0
    %7611 = vmatpush1.msra.mxu0 %v7602
    %7612 = vmatprep.subr.mxu0 0.0
    %7613 = vmatpush1.msra.mxu0 %v7603
    %7614 = vmatprep.subr.mxu0 0.0
    %7615 = vmatpush1.msra.mxu0 %v7604
    %7616 = vmatprep.subr.mxu0 0.0
    %7617 = vmatpush1.msra.mxu0 0.0
    %7618 = vmatprep.subr.mxu0 0.0
    %7619 = vmatpush1.msra.mxu0 0.0
    %7620 = vmatprep.subr.mxu0 0.0
    %7621 = vmatpush1.msra.mxu0 0.0
    %7622 = vmatprep.subr.mxu0 0.0
    %7623 = vmatpush1.msra.mxu0 0.0
    %7624 = vmatprep.subr.mxu0 0.0
    %7625 = vmatpush1.msra.mxu0 0.0
    %7626 = vmatprep.subr.mxu0 0.0
    %7627 = vmatpush1.msra.mxu0 0.0
    %7628 = vmatprep.subr.mxu0 0.0
    %7629 = vmatpush1.msra.mxu0 0.0
    %7630 = vmatprep.subr.mxu0 0.0
    %7631 = vmatpush1.msra.mxu0 0.0
    %7632 = vmatprep.subr.mxu0 0.0
    %7633 = vmatpush1.msra.mxu0 0.0
    %7634 = vmatprep.subr.mxu0 0.0
    %7635 = vmatpush1.msra.mxu0 0.0
    %7636 = vmatprep.subr.mxu0 0.0
    %7637 = vmatpush1.msra.mxu0 0.0
    %7638 = vmatprep.subr.mxu0 0.0
    %7639 = vmatpush1.msra.mxu0 0.0
    %7640 = vmatprep.subr.mxu0 0.0
    %7641 = vmatpush1.msra.mxu0 0.0
    %7642 = vmatprep.subr.mxu0 0.0
    %7643 = vmatpush1.msra.mxu0 0.0
    %7644 = vmatprep.subr.mxu0 0.0
    %7645 = vmatpush1.msra.mxu0 0.0
    %7646 = vmatprep.subr.mxu0 0.0
    %7647 = vmatpush1.msra.mxu0 0.0
    %7648 = vmatprep.subr.mxu0 0.0
    %7649 = vmatpush1.msra.mxu0 0.0
    %7650 = vmatprep.subr.mxu0 0.0
    %7651 = vmatpush1.msra.mxu0 0.0
    %7652 = vmatprep.subr.mxu0 0.0
    %7653 = vmatpush1.msra.mxu0 0.0
    %7654 = vmatprep.subr.mxu0 0.0
    %7655 = vmatpush1.msra.mxu0 0.0
    %7656 = vmatprep.subr.mxu0 0.0
    %7657 = vmatpush1.msra.mxu0 0.0
    %7658 = vmatprep.subr.mxu0 0.0
    %7659 = vmatpush1.msra.mxu0 0.0
    %7660 = vmatprep.subr.mxu0 0.0
    %7661 = vmatpush1.msra.mxu0 0.0
    %7662 = vmatprep.subr.mxu0 0.0
    %7663 = vmatpush1.msra.mxu0 0.0
    %7664 = vmatprep.subr.mxu0 0.0
    %7665 = vmatpush1.msra.mxu0 0.0
    %7666 = vmatprep.subr.mxu0 0.0
    %7667 = vmatpush1.msra.mxu0 0.0
    %7668 = vmatprep.subr.mxu0 0.0
    %7669 = vmatpush1.msra.mxu0 0.0
    %7670 = vmatprep.subr.mxu0 0.0
    %7671 = vmatpush1.msra.mxu0 0.0
    %7672 = vmatprep.mubr.f32.mxu0 0.0
    %7673 = vmatmul.mubr.f32.gmra.mrb[0].mxu0 %v7606
    %v7674 = vpop.f32.mrb[0].mxu0
    %v7675 = vadd.f32 0.0, %v7674
    %v7676 = vpop.f32.mrb[0].mxu0
    %7677 = vdwg.mxu0
    %v7678 = vadd.f32 %v7597, %v7675
    %s7679 = scalar_lea.vmem %s7, 96
    %v7680 = vld [vmem:[%s7679] sm:$0xff]
    %v7681 = vld [vmem:[%s7679 + $0x8] sm:$0xff]
    %v7682 = vld [vmem:[%s7679 + $0x10] sm:$0xff]
    %v7683 = vld [vmem:[%s7679 + $0x18] sm:$0xff]
    %v7684 = vrot.slane %v6850, 3
    %v7685 = vsel %vm194, %v7684, 0
    %7687 = vmatprep.subr.mxu0 0.0
    %7688 = vmatpush1.msra.mxu0 %v7680
    %7689 = vmatprep.subr.mxu0 0.0
    %7690 = vmatpush1.msra.mxu0 %v7681
    %7691 = vmatprep.subr.mxu0 0.0
    %7692 = vmatpush1.msra.mxu0 %v7682
    %7693 = vmatprep.subr.mxu0 0.0
    %7694 = vmatpush1.msra.mxu0 %v7683
    %7695 = vmatprep.subr.mxu0 0.0
    %7696 = vmatpush1.msra.mxu0 0.0
    %7697 = vmatprep.subr.mxu0 0.0
    %7698 = vmatpush1.msra.mxu0 0.0
    %7699 = vmatprep.subr.mxu0 0.0
    %7700 = vmatpush1.msra.mxu0 0.0
    %7701 = vmatprep.subr.mxu0 0.0
    %7702 = vmatpush1.msra.mxu0 0.0
    %7703 = vmatprep.subr.mxu0 0.0
    %7704 = vmatpush1.msra.mxu0 0.0
    %7705 = vmatprep.subr.mxu0 0.0
    %7706 = vmatpush1.msra.mxu0 0.0
    %7707 = vmatprep.subr.mxu0 0.0
    %7708 = vmatpush1.msra.mxu0 0.0
    %7709 = vmatprep.subr.mxu0 0.0
    %7710 = vmatpush1.msra.mxu0 0.0
    %7711 = vmatprep.subr.mxu0 0.0
    %7712 = vmatpush1.msra.mxu0 0.0
    %7713 = vmatprep.subr.mxu0 0.0
    %7714 = vmatpush1.msra.mxu0 0.0
    %7715 = vmatprep.subr.mxu0 0.0
    %7716 = vmatpush1.msra.mxu0 0.0
    %7717 = vmatprep.subr.mxu0 0.0
    %7718 = vmatpush1.msra.mxu0 0.0
    %7719 = vmatprep.subr.mxu0 0.0
    %7720 = vmatpush1.msra.mxu0 0.0
    %7721 = vmatprep.subr.mxu0 0.0
    %7722 = vmatpush1.msra.mxu0 0.0
    %7723 = vmatprep.subr.mxu0 0.0
    %7724 = vmatpush1.msra.mxu0 0.0
    %7725 = vmatprep.subr.mxu0 0.0
    %7726 = vmatpush1.msra.mxu0 0.0
    %7727 = vmatprep.subr.mxu0 0.0
    %7728 = vmatpush1.msra.mxu0 0.0
    %7729 = vmatprep.subr.mxu0 0.0
    %7730 = vmatpush1.msra.mxu0 0.0
    %7731 = vmatprep.subr.mxu0 0.0
    %7732 = vmatpush1.msra.mxu0 0.0
    %7733 = vmatprep.subr.mxu0 0.0
    %7734 = vmatpush1.msra.mxu0 0.0
    %7735 = vmatprep.subr.mxu0 0.0
    %7736 = vmatpush1.msra.mxu0 0.0
    %7737 = vmatprep.subr.mxu0 0.0
    %7738 = vmatpush1.msra.mxu0 0.0
    %7739 = vmatprep.subr.mxu0 0.0
    %7740 = vmatpush1.msra.mxu0 0.0
    %7741 = vmatprep.subr.mxu0 0.0
    %7742 = vmatpush1.msra.mxu0 0.0
    %7743 = vmatprep.subr.mxu0 0.0
    %7744 = vmatpush1.msra.mxu0 0.0
    %7745 = vmatprep.subr.mxu0 0.0
    %7746 = vmatpush1.msra.mxu0 0.0
    %7747 = vmatprep.subr.mxu0 0.0
    %7748 = vmatpush1.msra.mxu0 0.0
    %7749 = vmatprep.subr.mxu0 0.0
    %7750 = vmatpush1.msra.mxu0 0.0
    %7751 = vmatprep.mubr.f32.mxu0 0.0
    %7752 = vmatmul.mubr.f32.gmra.mrb[0].mxu0 %v7685
    %v7753 = vpop.f32.mrb[0].mxu0
    %v7754 = vadd.f32 0.0, %v7753
    %v7755 = vpop.f32.mrb[0].mxu0
    %7756 = vdwg.mxu0
    %v7757 = vadd.f32 %v7678, %v7754
    %s7758 = scalar_lea.vmem %s7, 128
    %v7759 = vld [vmem:[%s7758] sm:$0xff]
    %v7760 = vld [vmem:[%s7758 + $0x8] sm:$0xff]
    %v7761 = vld [vmem:[%s7758 + $0x10] sm:$0xff]
    %v7762 = vld [vmem:[%s7758 + $0x18] sm:$0xff]
    %v7763 = vrot.slane %v6850, 4
    %v7764 = vsel %vm194, %v7763, 0
    %7766 = vmatprep.subr.mxu0 0.0
    %7767 = vmatpush1.msra.mxu0 %v7759
    %7768 = vmatprep.subr.mxu0 0.0
    %7769 = vmatpush1.msra.mxu0 %v7760
    %7770 = vmatprep.subr.mxu0 0.0
    %7771 = vmatpush1.msra.mxu0 %v7761
    %7772 = vmatprep.subr.mxu0 0.0
    %7773 = vmatpush1.msra.mxu0 %v7762
    %7774 = vmatprep.subr.mxu0 0.0
    %7775 = vmatpush1.msra.mxu0 0.0
    %7776 = vmatprep.subr.mxu0 0.0
    %7777 = vmatpush1.msra.mxu0 0.0
    %7778 = vmatprep.subr.mxu0 0.0
    %7779 = vmatpush1.msra.mxu0 0.0
    %7780 = vmatprep.subr.mxu0 0.0
    %7781 = vmatpush1.msra.mxu0 0.0
    %7782 = vmatprep.subr.mxu0 0.0
    %7783 = vmatpush1.msra.mxu0 0.0
    %7784 = vmatprep.subr.mxu0 0.0
    %7785 = vmatpush1.msra.mxu0 0.0
    %7786 = vmatprep.subr.mxu0 0.0
    %7787 = vmatpush1.msra.mxu0 0.0
    %7788 = vmatprep.subr.mxu0 0.0
    %7789 = vmatpush1.msra.mxu0 0.0
    %7790 = vmatprep.subr.mxu0 0.0
    %7791 = vmatpush1.msra.mxu0 0.0
    %7792 = vmatprep.subr.mxu0 0.0
    %7793 = vmatpush1.msra.mxu0 0.0
    %7794 = vmatprep.subr.mxu0 0.0
    %7795 = vmatpush1.msra.mxu0 0.0
    %7796 = vmatprep.subr.mxu0 0.0
    %7797 = vmatpush1.msra.mxu0 0.0
    %7798 = vmatprep.subr.mxu0 0.0
    %7799 = vmatpush1.msra.mxu0 0.0
    %7800 = vmatprep.subr.mxu0 0.0
    %7801 = vmatpush1.msra.mxu0 0.0
    %7802 = vmatprep.subr.mxu0 0.0
    %7803 = vmatpush1.msra.mxu0 0.0
    %7804 = vmatprep.subr.mxu0 0.0
    %7805 = vmatpush1.msra.mxu0 0.0
    %7806 = vmatprep.subr.mxu0 0.0
    %7807 = vmatpush1.msra.mxu0 0.0
    %7808 = vmatprep.subr.mxu0 0.0
    %7809 = vmatpush1.msra.mxu0 0.0
    %7810 = vmatprep.subr.mxu0 0.0
    %7811 = vmatpush1.msra.mxu0 0.0
    %7812 = vmatprep.subr.mxu0 0.0
    %7813 = vmatpush1.msra.mxu0 0.0
    %7814 = vmatprep.subr.mxu0 0.0
    %7815 = vmatpush1.msra.mxu0 0.0
    %7816 = vmatprep.subr.mxu0 0.0
    %7817 = vmatpush1.msra.mxu0 0.0
    %7818 = vmatprep.subr.mxu0 0.0
    %7819 = vmatpush1.msra.mxu0 0.0
    %7820 = vmatprep.subr.mxu0 0.0
    %7821 = vmatpush1.msra.mxu0 0.0
    %7822 = vmatprep.subr.mxu0 0.0
    %7823 = vmatpush1.msra.mxu0 0.0
    %7824 = vmatprep.subr.mxu0 0.0
    %7825 = vmatpush1.msra.mxu0 0.0
    %7826 = vmatprep.subr.mxu0 0.0
    %7827 = vmatpush1.msra.mxu0 0.0
    %7828 = vmatprep.subr.mxu0 0.0
    %7829 = vmatpush1.msra.mxu0 0.0
    %7830 = vmatprep.mubr.f32.mxu0 0.0
    %7831 = vmatmul.mubr.f32.gmra.mrb[0].mxu0 %v7764
    %v7832 = vpop.f32.mrb[0].mxu0
    %v7833 = vadd.f32 0.0, %v7832
    %v7834 = vpop.f32.mrb[0].mxu0
    %7835 = vdwg.mxu0
    %v7836 = vadd.f32 %v7757, %v7833
    %s7837 = scalar_lea.vmem %s7, 160
    %v7838 = vld [vmem:[%s7837] sm:$0xff]
    %v7839 = vld [vmem:[%s7837 + $0x8] sm:$0xff]
    %v7840 = vld [vmem:[%s7837 + $0x10] sm:$0xff]
    %v7841 = vld [vmem:[%s7837 + $0x18] sm:$0xff]
    %v7842 = vrot.slane %v6850, 5
    %v7843 = vsel %vm194, %v7842, 0
    %7845 = vmatprep.subr.mxu0 0.0
    %7846 = vmatpush1.msra.mxu0 %v7838
    %7847 = vmatprep.subr.mxu0 0.0
    %7848 = vmatpush1.msra.mxu0 %v7839
    %7849 = vmatprep.subr.mxu0 0.0
    %7850 = vmatpush1.msra.mxu0 %v7840
    %7851 = vmatprep.subr.mxu0 0.0
    %7852 = vmatpush1.msra.mxu0 %v7841
    %7853 = vmatprep.subr.mxu0 0.0
    %7854 = vmatpush1.msra.mxu0 0.0
    %7855 = vmatprep.subr.mxu0 0.0
    %7856 = vmatpush1.msra.mxu0 0.0
    %7857 = vmatprep.subr.mxu0 0.0
    %7858 = vmatpush1.msra.mxu0 0.0
    %7859 = vmatprep.subr.mxu0 0.0
    %7860 = vmatpush1.msra.mxu0 0.0
    %7861 = vmatprep.subr.mxu0 0.0
    %7862 = vmatpush1.msra.mxu0 0.0
    %7863 = vmatprep.subr.mxu0 0.0
    %7864 = vmatpush1.msra.mxu0 0.0
    %7865 = vmatprep.subr.mxu0 0.0
    %7866 = vmatpush1.msra.mxu0 0.0
    %7867 = vmatprep.subr.mxu0 0.0
    %7868 = vmatpush1.msra.mxu0 0.0
    %7869 = vmatprep.subr.mxu0 0.0
    %7870 = vmatpush1.msra.mxu0 0.0
    %7871 = vmatprep.subr.mxu0 0.0
    %7872 = vmatpush1.msra.mxu0 0.0
    %7873 = vmatprep.subr.mxu0 0.0
    %7874 = vmatpush1.msra.mxu0 0.0
    %7875 = vmatprep.subr.mxu0 0.0
    %7876 = vmatpush1.msra.mxu0 0.0
    %7877 = vmatprep.subr.mxu0 0.0
    %7878 = vmatpush1.msra.mxu0 0.0
    %7879 = vmatprep.subr.mxu0 0.0
    %7880 = vmatpush1.msra.mxu0 0.0
    %7881 = vmatprep.subr.mxu0 0.0
    %7882 = vmatpush1.msra.mxu0 0.0
    %7883 = vmatprep.subr.mxu0 0.0
    %7884 = vmatpush1.msra.mxu0 0.0
    %7885 = vmatprep.subr.mxu0 0.0
    %7886 = vmatpush1.msra.mxu0 0.0
    %7887 = vmatprep.subr.mxu0 0.0
    %7888 = vmatpush1.msra.mxu0 0.0
    %7889 = vmatprep.subr.mxu0 0.0
    %7890 = vmatpush1.msra.mxu0 0.0
    %7891 = vmatprep.subr.mxu0 0.0
    %7892 = vmatpush1.msra.mxu0 0.0
    %7893 = vmatprep.subr.mxu0 0.0
    %7894 = vmatpush1.msra.mxu0 0.0
    %7895 = vmatprep.subr.mxu0 0.0
    %7896 = vmatpush1.msra.mxu0 0.0
    %7897 = vmatprep.subr.mxu0 0.0
    %7898 = vmatpush1.msra.mxu0 0.0
    %7899 = vmatprep.subr.mxu0 0.0
    %7900 = vmatpush1.msra.mxu0 0.0
    %7901 = vmatprep.subr.mxu0 0.0
    %7902 = vmatpush1.msra.mxu0 0.0
    %7903 = vmatprep.subr.mxu0 0.0
    %7904 = vmatpush1.msra.mxu0 0.0
    %7905 = vmatprep.subr.mxu0 0.0
    %7906 = vmatpush1.msra.mxu0 0.0
    %7907 = vmatprep.subr.mxu0 0.0
    %7908 = vmatpush1.msra.mxu0 0.0
    %7909 = vmatprep.mubr.f32.mxu0 0.0
    %7910 = vmatmul.mubr.f32.gmra.mrb[0].mxu0 %v7843
    %v7911 = vpop.f32.mrb[0].mxu0
    %v7912 = vadd.f32 0.0, %v7911
    %v7913 = vpop.f32.mrb[0].mxu0
    %7914 = vdwg.mxu0
    %v7915 = vadd.f32 %v7836, %v7912
    %s7916 = scalar_lea.vmem %s7, 192
    %v7917 = vld [vmem:[%s7916] sm:$0xff]
    %v7918 = vld [vmem:[%s7916 + $0x8] sm:$0xff]
    %v7919 = vld [vmem:[%s7916 + $0x10] sm:$0xff]
    %v7920 = vld [vmem:[%s7916 + $0x18] sm:$0xff]
    %v7921 = vrot.slane %v6850, 6
    %v7922 = vsel %vm194, %v7921, 0
    %7924 = vmatprep.subr.mxu0 0.0
    %7925 = vmatpush1.msra.mxu0 %v7917
    %7926 = vmatprep.subr.mxu0 0.0
    %7927 = vmatpush1.msra.mxu0 %v7918
    %7928 = vmatprep.subr.mxu0 0.0
    %7929 = vmatpush1.msra.mxu0 %v7919
    %7930 = vmatprep.subr.mxu0 0.0
    %7931 = vmatpush1.msra.mxu0 %v7920
    %7932 = vmatprep.subr.mxu0 0.0
    %7933 = vmatpush1.msra.mxu0 0.0
    %7934 = vmatprep.subr.mxu0 0.0
    %7935 = vmatpush1.msra.mxu0 0.0
    %7936 = vmatprep.subr.mxu0 0.0
    %7937 = vmatpush1.msra.mxu0 0.0
    %7938 = vmatprep.subr.mxu0 0.0
    %7939 = vmatpush1.msra.mxu0 0.0
    %7940 = vmatprep.subr.mxu0 0.0
    %7941 = vmatpush1.msra.mxu0 0.0
    %7942 = vmatprep.subr.mxu0 0.0
    %7943 = vmatpush1.msra.mxu0 0.0
    %7944 = vmatprep.subr.mxu0 0.0
    %7945 = vmatpush1.msra.mxu0 0.0
    %7946 = vmatprep.subr.mxu0 0.0
    %7947 = vmatpush1.msra.mxu0 0.0
    %7948 = vmatprep.subr.mxu0 0.0
    %7949 = vmatpush1.msra.mxu0 0.0
    %7950 = vmatprep.subr.mxu0 0.0
    %7951 = vmatpush1.msra.mxu0 0.0
    %7952 = vmatprep.subr.mxu0 0.0
    %7953 = vmatpush1.msra.mxu0 0.0
    %7954 = vmatprep.subr.mxu0 0.0
    %7955 = vmatpush1.msra.mxu0 0.0
    %7956 = vmatprep.subr.mxu0 0.0
    %7957 = vmatpush1.msra.mxu0 0.0
    %7958 = vmatprep.subr.mxu0 0.0
    %7959 = vmatpush1.msra.mxu0 0.0
    %7960 = vmatprep.subr.mxu0 0.0
    %7961 = vmatpush1.msra.mxu0 0.0
    %7962 = vmatprep.subr.mxu0 0.0
    %7963 = vmatpush1.msra.mxu0 0.0
    %7964 = vmatprep.subr.mxu0 0.0
    %7965 = vmatpush1.msra.mxu0 0.0
    %7966 = vmatprep.subr.mxu0 0.0
    %7967 = vmatpush1.msra.mxu0 0.0
    %7968 = vmatprep.subr.mxu0 0.0
    %7969 = vmatpush1.msra.mxu0 0.0
    %7970 = vmatprep.subr.mxu0 0.0
    %7971 = vmatpush1.msra.mxu0 0.0
    %7972 = vmatprep.subr.mxu0 0.0
    %7973 = vmatpush1.msra.mxu0 0.0
    %7974 = vmatprep.subr.mxu0 0.0
    %7975 = vmatpush1.msra.mxu0 0.0
    %7976 = vmatprep.subr.mxu0 0.0
    %7977 = vmatpush1.msra.mxu0 0.0
    %7978 = vmatprep.subr.mxu0 0.0
    %7979 = vmatpush1.msra.mxu0 0.0
    %7980 = vmatprep.subr.mxu0 0.0
    %7981 = vmatpush1.msra.mxu0 0.0
    %7982 = vmatprep.subr.mxu0 0.0
    %7983 = vmatpush1.msra.mxu0 0.0
    %7984 = vmatprep.subr.mxu0 0.0
    %7985 = vmatpush1.msra.mxu0 0.0
    %7986 = vmatprep.subr.mxu0 0.0
    %7987 = vmatpush1.msra.mxu0 0.0
    %7988 = vmatprep.mubr.f32.mxu0 0.0
    %7989 = vmatmul.mubr.f32.gmra.mrb[0].mxu0 %v7922
    %v7990 = vpop.f32.mrb[0].mxu0
    %v7991 = vadd.f32 0.0, %v7990
    %v7992 = vpop.f32.mrb[0].mxu0
    %7993 = vdwg.mxu0
    %v7994 = vadd.f32 %v7915, %v7991
    %s7995 = scalar_lea.vmem %s7, 224
    %v7996 = vld [vmem:[%s7995] sm:$0xff]
    %v7997 = vld [vmem:[%s7995 + $0x8] sm:$0xff]
    %v7998 = vld [vmem:[%s7995 + $0x10] sm:$0xff]
    %v7999 = vld [vmem:[%s7995 + $0x18] sm:$0xff]
    %v8000 = vrot.slane %v6850, 7
    %v8001 = vsel %vm194, %v8000, 0
    %8003 = vmatprep.subr.mxu0 0.0
    %8004 = vmatpush1.msra.mxu0 %v7996
    %8005 = vmatprep.subr.mxu0 0.0
    %8006 = vmatpush1.msra.mxu0 %v7997
    %8007 = vmatprep.subr.mxu0 0.0
    %8008 = vmatpush1.msra.mxu0 %v7998
    %8009 = vmatprep.subr.mxu0 0.0
    %8010 = vmatpush1.msra.mxu0 %v7999
    %8011 = vmatprep.subr.mxu0 0.0
    %8012 = vmatpush1.msra.mxu0 0.0
    %8013 = vmatprep.subr.mxu0 0.0
    %8014 = vmatpush1.msra.mxu0 0.0
    %8015 = vmatprep.subr.mxu0 0.0
    %8016 = vmatpush1.msra.mxu0 0.0
    %8017 = vmatprep.subr.mxu0 0.0
    %8018 = vmatpush1.msra.mxu0 0.0
    %8019 = vmatprep.subr.mxu0 0.0
    %8020 = vmatpush1.msra.mxu0 0.0
    %8021 = vmatprep.subr.mxu0 0.0
    %8022 = vmatpush1.msra.mxu0 0.0
    %8023 = vmatprep.subr.mxu0 0.0
    %8024 = vmatpush1.msra.mxu0 0.0
    %8025 = vmatprep.subr.mxu0 0.0
    %8026 = vmatpush1.msra.mxu0 0.0
    %8027 = vmatprep.subr.mxu0 0.0
    %8028 = vmatpush1.msra.mxu0 0.0
    %8029 = vmatprep.subr.mxu0 0.0
    %8030 = vmatpush1.msra.mxu0 0.0
    %8031 = vmatprep.subr.mxu0 0.0
    %8032 = vmatpush1.msra.mxu0 0.0
    %8033 = vmatprep.subr.mxu0 0.0
    %8034 = vmatpush1.msra.mxu0 0.0
    %8035 = vmatprep.subr.mxu0 0.0
    %8036 = vmatpush1.msra.mxu0 0.0
    %8037 = vmatprep.subr.mxu0 0.0
    %8038 = vmatpush1.msra.mxu0 0.0
    %8039 = vmatprep.subr.mxu0 0.0
    %8040 = vmatpush1.msra.mxu0 0.0
    %8041 = vmatprep.subr.mxu0 0.0
    %8042 = vmatpush1.msra.mxu0 0.0
    %8043 = vmatprep.subr.mxu0 0.0
    %8044 = vmatpush1.msra.mxu0 0.0
    %8045 = vmatprep.subr.mxu0 0.0
    %8046 = vmatpush1.msra.mxu0 0.0
    %8047 = vmatprep.subr.mxu0 0.0
    %8048 = vmatpush1.msra.mxu0 0.0
    %8049 = vmatprep.subr.mxu0 0.0
    %8050 = vmatpush1.msra.mxu0 0.0
    %8051 = vmatprep.subr.mxu0 0.0
    %8052 = vmatpush1.msra.mxu0 0.0
    %8053 = vmatprep.subr.mxu0 0.0
    %8054 = vmatpush1.msra.mxu0 0.0
    %8055 = vmatprep.subr.mxu0 0.0
    %8056 = vmatpush1.msra.mxu0 0.0
    %8057 = vmatprep.subr.mxu0 0.0
    %8058 = vmatpush1.msra.mxu0 0.0
    %8059 = vmatprep.subr.mxu0 0.0
    %8060 = vmatpush1.msra.mxu0 0.0
    %8061 = vmatprep.subr.mxu0 0.0
    %8062 = vmatpush1.msra.mxu0 0.0
    %8063 = vmatprep.subr.mxu0 0.0
    %8064 = vmatpush1.msra.mxu0 0.0
    %8065 = vmatprep.subr.mxu0 0.0
    %8066 = vmatpush1.msra.mxu0 0.0
    %8067 = vmatprep.mubr.f32.mxu0 0.0
    %8068 = vmatmul.mubr.f32.gmra.mrb[0].mxu0 %v8001
    %v8069 = vpop.f32.mrb[0].mxu0
    %v8070 = vadd.f32 0.0, %v8069
    %v8071 = vpop.f32.mrb[0].mxu0
    %8072 = vdwg.mxu0
    %v8073 = vadd.f32 %v7994, %v8070
    %s8074 = scalar_lea.vmem %s7, 256
    %v8075 = vld [vmem:[%s8074] sm:$0xff]
    %v8076 = vld [vmem:[%s8074 + $0x8] sm:$0xff]
    %v8077 = vld [vmem:[%s8074 + $0x10] sm:$0xff]
    %v8078 = vld [vmem:[%s8074 + $0x18] sm:$0xff]
    %v8080 = vsel %vm194, %v6851, 0
    %8082 = vmatprep.subr.mxu0 0.0
    %8083 = vmatpush1.msra.mxu0 %v8075
    %8084 = vmatprep.subr.mxu0 0.0
    %8085 = vmatpush1.msra.mxu0 %v8076
    %8086 = vmatprep.subr.mxu0 0.0
    %8087 = vmatpush1.msra.mxu0 %v8077
    %8088 = vmatprep.subr.mxu0 0.0
    %8089 = vmatpush1.msra.mxu0 %v8078
    %8090 = vmatprep.subr.mxu0 0.0
    %8091 = vmatpush1.msra.mxu0 0.0
    %8092 = vmatprep.subr.mxu0 0.0
    %8093 = vmatpush1.msra.mxu0 0.0
    %8094 = vmatprep.subr.mxu0 0.0
    %8095 = vmatpush1.msra.mxu0 0.0
    %8096 = vmatprep.subr.mxu0 0.0
    %8097 = vmatpush1.msra.mxu0 0.0
    %8098 = vmatprep.subr.mxu0 0.0
    %8099 = vmatpush1.msra.mxu0 0.0
    %8100 = vmatprep.subr.mxu0 0.0
    %8101 = vmatpush1.msra.mxu0 0.0
    %8102 = vmatprep.subr.mxu0 0.0
    %8103 = vmatpush1.msra.mxu0 0.0
    %8104 = vmatprep.subr.mxu0 0.0
    %8105 = vmatpush1.msra.mxu0 0.0
    %8106 = vmatprep.subr.mxu0 0.0
    %8107 = vmatpush1.msra.mxu0 0.0
    %8108 = vmatprep.subr.mxu0 0.0
    %8109 = vmatpush1.msra.mxu0 0.0
    %8110 = vmatprep.subr.mxu0 0.0
    %8111 = vmatpush1.msra.mxu0 0.0
    %8112 = vmatprep.subr.mxu0 0.0
    %8113 = vmatpush1.msra.mxu0 0.0
    %8114 = vmatprep.subr.mxu0 0.0
    %8115 = vmatpush1.msra.mxu0 0.0
    %8116 = vmatprep.subr.mxu0 0.0
    %8117 = vmatpush1.msra.mxu0 0.0
    %8118 = vmatprep.subr.mxu0 0.0
    %8119 = vmatpush1.msra.mxu0 0.0
    %8120 = vmatprep.subr.mxu0 0.0
    %8121 = vmatpush1.msra.mxu0 0.0
    %8122 = vmatprep.subr.mxu0 0.0
    %8123 = vmatpush1.msra.mxu0 0.0
    %8124 = vmatprep.subr.mxu0 0.0
    %8125 = vmatpush1.msra.mxu0 0.0
    %8126 = vmatprep.subr.mxu0 0.0
    %8127 = vmatpush1.msra.mxu0 0.0
    %8128 = vmatprep.subr.mxu0 0.0
    %8129 = vmatpush1.msra.mxu0 0.0
    %8130 = vmatprep.subr.mxu0 0.0
    %8131 = vmatpush1.msra.mxu0 0.0
    %8132 = vmatprep.subr.mxu0 0.0
    %8133 = vmatpush1.msra.mxu0 0.0
    %8134 = vmatprep.subr.mxu0 0.0
    %8135 = vmatpush1.msra.mxu0 0.0
    %8136 = vmatprep.subr.mxu0 0.0
    %8137 = vmatpush1.msra.mxu0 0.0
    %8138 = vmatprep.subr.mxu0 0.0
    %8139 = vmatpush1.msra.mxu0 0.0
    %8140 = vmatprep.subr.mxu0 0.0
    %8141 = vmatpush1.msra.mxu0 0.0
    %8142 = vmatprep.subr.mxu0 0.0
    %8143 = vmatpush1.msra.mxu0 0.0
    %8144 = vmatprep.subr.mxu0 0.0
    %8145 = vmatpush1.msra.mxu0 0.0
    %8146 = vmatprep.mubr.f32.mxu0 0.0
    %8147 = vmatmul.mubr.f32.gmra.mrb[0].mxu0 %v8080
    %v8148 = vpop.f32.mrb[0].mxu0
    %v8149 = vadd.f32 0.0, %v8148
    %v8150 = vpop.f32.mrb[0].mxu0
    %8151 = vdwg.mxu0
    %v8152 = vadd.f32 %v8073, %v8149
    %s8153 = scalar_lea.vmem %s7, 288
    %v8154 = vld [vmem:[%s8153] sm:$0xff]
    %v8155 = vld [vmem:[%s8153 + $0x8] sm:$0xff]
    %v8156 = vld [vmem:[%s8153 + $0x10] sm:$0xff]
    %v8157 = vld [vmem:[%s8153 + $0x18] sm:$0xff]
    %v8158 = vrot.slane %v6851, 1
    %v8159 = vsel %vm194, %v8158, 0
    %8161 = vmatprep.subr.mxu0 0.0
    %8162 = vmatpush1.msra.mxu0 %v8154
    %8163 = vmatprep.subr.mxu0 0.0
    %8164 = vmatpush1.msra.mxu0 %v8155
    %8165 = vmatprep.subr.mxu0 0.0
    %8166 = vmatpush1.msra.mxu0 %v8156
    %8167 = vmatprep.subr.mxu0 0.0
    %8168 = vmatpush1.msra.mxu0 %v8157
    %8169 = vmatprep.subr.mxu0 0.0
    %8170 = vmatpush1.msra.mxu0 0.0
    %8171 = vmatprep.subr.mxu0 0.0
    %8172 = vmatpush1.msra.mxu0 0.0
    %8173 = vmatprep.subr.mxu0 0.0
    %8174 = vmatpush1.msra.mxu0 0.0
    %8175 = vmatprep.subr.mxu0 0.0
    %8176 = vmatpush1.msra.mxu0 0.0
    %8177 = vmatprep.subr.mxu0 0.0
    %8178 = vmatpush1.msra.mxu0 0.0
    %8179 = vmatprep.subr.mxu0 0.0
    %8180 = vmatpush1.msra.mxu0 0.0
    %8181 = vmatprep.subr.mxu0 0.0
    %8182 = vmatpush1.msra.mxu0 0.0
    %8183 = vmatprep.subr.mxu0 0.0
    %8184 = vmatpush1.msra.mxu0 0.0
    %8185 = vmatprep.subr.mxu0 0.0
    %8186 = vmatpush1.msra.mxu0 0.0
    %8187 = vmatprep.subr.mxu0 0.0
    %8188 = vmatpush1.msra.mxu0 0.0
    %8189 = vmatprep.subr.mxu0 0.0
    %8190 = vmatpush1.msra.mxu0 0.0
    %8191 = vmatprep.subr.mxu0 0.0
    %8192 = vmatpush1.msra.mxu0 0.0
    %8193 = vmatprep.subr.mxu0 0.0
    %8194 = vmatpush1.msra.mxu0 0.0
    %8195 = vmatprep.subr.mxu0 0.0
    %8196 = vmatpush1.msra.mxu0 0.0
    %8197 = vmatprep.subr.mxu0 0.0
    %8198 = vmatpush1.msra.mxu0 0.0
    %8199 = vmatprep.subr.mxu0 0.0
    %8200 = vmatpush1.msra.mxu0 0.0
    %8201 = vmatprep.subr.mxu0 0.0
    %8202 = vmatpush1.msra.mxu0 0.0
    %8203 = vmatprep.subr.mxu0 0.0
    %8204 = vmatpush1.msra.mxu0 0.0
    %8205 = vmatprep.subr.mxu0 0.0
    %8206 = vmatpush1.msra.mxu0 0.0
    %8207 = vmatprep.subr.mxu0 0.0
    %8208 = vmatpush1.msra.mxu0 0.0
    %8209 = vmatprep.subr.mxu0 0.0
    %8210 = vmatpush1.msra.mxu0 0.0
    %8211 = vmatprep.subr.mxu0 0.0
    %8212 = vmatpush1.msra.mxu0 0.0
    %8213 = vmatprep.subr.mxu0 0.0
    %8214 = vmatpush1.msra.mxu0 0.0
    %8215 = vmatprep.subr.mxu0 0.0
    %8216 = vmatpush1.msra.mxu0 0.0
    %8217 = vmatprep.subr.mxu0 0.0
    %8218 = vmatpush1.msra.mxu0 0.0
    %8219 = vmatprep.subr.mxu0 0.0
    %8220 = vmatpush1.msra.mxu0 0.0
    %8221 = vmatprep.subr.mxu0 0.0
    %8222 = vmatpush1.msra.mxu0 0.0
    %8223 = vmatprep.subr.mxu0 0.0
    %8224 = vmatpush1.msra.mxu0 0.0
    %8225 = vmatprep.mubr.f32.mxu0 0.0
    %8226 = vmatmul.mubr.f32.gmra.mrb[0].mxu0 %v8159
    %v8227 = vpop.f32.mrb[0].mxu0
    %v8228 = vadd.f32 0.0, %v8227
    %v8229 = vpop.f32.mrb[0].mxu0
    %8230 = vdwg.mxu0
    %v8231 = vadd.f32 %v8152, %v8228
    %s8232 = scalar_lea.vmem %s7, 320
    %v8233 = vld [vmem:[%s8232] sm:$0xff]
    %v8234 = vld [vmem:[%s8232 + $0x8] sm:$0xff]
    %v8235 = vld [vmem:[%s8232 + $0x10] sm:$0xff]
    %v8236 = vld [vmem:[%s8232 + $0x18] sm:$0xff]
    %v8237 = vrot.slane %v6851, 2
    %v8238 = vsel %vm194, %v8237, 0
    %8240 = vmatprep.subr.mxu0 0.0
    %8241 = vmatpush1.msra.mxu0 %v8233
    %8242 = vmatprep.subr.mxu0 0.0
    %8243 = vmatpush1.msra.mxu0 %v8234
    %8244 = vmatprep.subr.mxu0 0.0
    %8245 = vmatpush1.msra.mxu0 %v8235
    %8246 = vmatprep.subr.mxu0 0.0
    %8247 = vmatpush1.msra.mxu0 %v8236
    %8248 = vmatprep.subr.mxu0 0.0
    %8249 = vmatpush1.msra.mxu0 0.0
    %8250 = vmatprep.subr.mxu0 0.0
    %8251 = vmatpush1.msra.mxu0 0.0
    %8252 = vmatprep.subr.mxu0 0.0
    %8253 = vmatpush1.msra.mxu0 0.0
    %8254 = vmatprep.subr.mxu0 0.0
    %8255 = vmatpush1.msra.mxu0 0.0
    %8256 = vmatprep.subr.mxu0 0.0
    %8257 = vmatpush1.msra.mxu0 0.0
    %8258 = vmatprep.subr.mxu0 0.0
    %8259 = vmatpush1.msra.mxu0 0.0
    %8260 = vmatprep.subr.mxu0 0.0
    %8261 = vmatpush1.msra.mxu0 0.0
    %8262 = vmatprep.subr.mxu0 0.0
    %8263 = vmatpush1.msra.mxu0 0.0
    %8264 = vmatprep.subr.mxu0 0.0
    %8265 = vmatpush1.msra.mxu0 0.0
    %8266 = vmatprep.subr.mxu0 0.0
    %8267 = vmatpush1.msra.mxu0 0.0
    %8268 = vmatprep.subr.mxu0 0.0
    %8269 = vmatpush1.msra.mxu0 0.0
    %8270 = vmatprep.subr.mxu0 0.0
    %8271 = vmatpush1.msra.mxu0 0.0
    %8272 = vmatprep.subr.mxu0 0.0
    %8273 = vmatpush1.msra.mxu0 0.0
    %8274 = vmatprep.subr.mxu0 0.0
    %8275 = vmatpush1.msra.mxu0 0.0
    %8276 = vmatprep.subr.mxu0 0.0
    %8277 = vmatpush1.msra.mxu0 0.0
    %8278 = vmatprep.subr.mxu0 0.0
    %8279 = vmatpush1.msra.mxu0 0.0
    %8280 = vmatprep.subr.mxu0 0.0
    %8281 = vmatpush1.msra.mxu0 0.0
    %8282 = vmatprep.subr.mxu0 0.0
    %8283 = vmatpush1.msra.mxu0 0.0
    %8284 = vmatprep.subr.mxu0 0.0
    %8285 = vmatpush1.msra.mxu0 0.0
    %8286 = vmatprep.subr.mxu0 0.0
    %8287 = vmatpush1.msra.mxu0 0.0
    %8288 = vmatprep.subr.mxu0 0.0
    %8289 = vmatpush1.msra.mxu0 0.0
    %8290 = vmatprep.subr.mxu0 0.0
    %8291 = vmatpush1.msra.mxu0 0.0
    %8292 = vmatprep.subr.mxu0 0.0
    %8293 = vmatpush1.msra.mxu0 0.0
    %8294 = vmatprep.subr.mxu0 0.0
    %8295 = vmatpush1.msra.mxu0 0.0
    %8296 = vmatprep.subr.mxu0 0.0
    %8297 = vmatpush1.msra.mxu0 0.0
    %8298 = vmatprep.subr.mxu0 0.0
    %8299 = vmatpush1.msra.mxu0 0.0
    %8300 = vmatprep.subr.mxu0 0.0
    %8301 = vmatpush1.msra.mxu0 0.0
    %8302 = vmatprep.subr.mxu0 0.0
    %8303 = vmatpush1.msra.mxu0 0.0
    %8304 = vmatprep.mubr.f32.mxu0 0.0
    %8305 = vmatmul.mubr.f32.gmra.mrb[0].mxu0 %v8238
    %v8306 = vpop.f32.mrb[0].mxu0
    %v8307 = vadd.f32 0.0, %v8306
    %v8308 = vpop.f32.mrb[0].mxu0
    %8309 = vdwg.mxu0
    %v8310 = vadd.f32 %v8231, %v8307
    %s8311 = scalar_lea.vmem %s7, 352
    %v8312 = vld [vmem:[%s8311] sm:$0xff]
    %v8313 = vld [vmem:[%s8311 + $0x8] sm:$0xff]
    %v8314 = vld [vmem:[%s8311 + $0x10] sm:$0xff]
    %v8315 = vld [vmem:[%s8311 + $0x18] sm:$0xff]
    %v8316 = vrot.slane %v6851, 3
    %v8317 = vsel %vm194, %v8316, 0
    %8319 = vmatprep.subr.mxu0 0.0
    %8320 = vmatpush1.msra.mxu0 %v8312
    %8321 = vmatprep.subr.mxu0 0.0
    %8322 = vmatpush1.msra.mxu0 %v8313
    %8323 = vmatprep.subr.mxu0 0.0
    %8324 = vmatpush1.msra.mxu0 %v8314
    %8325 = vmatprep.subr.mxu0 0.0
    %8326 = vmatpush1.msra.mxu0 %v8315
    %8327 = vmatprep.subr.mxu0 0.0
    %8328 = vmatpush1.msra.mxu0 0.0
    %8329 = vmatprep.subr.mxu0 0.0
    %8330 = vmatpush1.msra.mxu0 0.0
    %8331 = vmatprep.subr.mxu0 0.0
    %8332 = vmatpush1.msra.mxu0 0.0
    %8333 = vmatprep.subr.mxu0 0.0
    %8334 = vmatpush1.msra.mxu0 0.0
    %8335 = vmatprep.subr.mxu0 0.0
    %8336 = vmatpush1.msra.mxu0 0.0
    %8337 = vmatprep.subr.mxu0 0.0
    %8338 = vmatpush1.msra.mxu0 0.0
    %8339 = vmatprep.subr.mxu0 0.0
    %8340 = vmatpush1.msra.mxu0 0.0
    %8341 = vmatprep.subr.mxu0 0.0
    %8342 = vmatpush1.msra.mxu0 0.0
    %8343 = vmatprep.subr.mxu0 0.0
    %8344 = vmatpush1.msra.mxu0 0.0
    %8345 = vmatprep.subr.mxu0 0.0
    %8346 = vmatpush1.msra.mxu0 0.0
    %8347 = vmatprep.subr.mxu0 0.0
    %8348 = vmatpush1.msra.mxu0 0.0
    %8349 = vmatprep.subr.mxu0 0.0
    %8350 = vmatpush1.msra.mxu0 0.0
    %8351 = vmatprep.subr.mxu0 0.0
    %8352 = vmatpush1.msra.mxu0 0.0
    %8353 = vmatprep.subr.mxu0 0.0
    %8354 = vmatpush1.msra.mxu0 0.0
    %8355 = vmatprep.subr.mxu0 0.0
    %8356 = vmatpush1.msra.mxu0 0.0
    %8357 = vmatprep.subr.mxu0 0.0
    %8358 = vmatpush1.msra.mxu0 0.0
    %8359 = vmatprep.subr.mxu0 0.0
    %8360 = vmatpush1.msra.mxu0 0.0
    %8361 = vmatprep.subr.mxu0 0.0
    %8362 = vmatpush1.msra.mxu0 0.0
    %8363 = vmatprep.subr.mxu0 0.0
    %8364 = vmatpush1.msra.mxu0 0.0
    %8365 = vmatprep.subr.mxu0 0.0
    %8366 = vmatpush1.msra.mxu0 0.0
    %8367 = vmatprep.subr.mxu0 0.0
    %8368 = vmatpush1.msra.mxu0 0.0
    %8369 = vmatprep.subr.mxu0 0.0
    %8370 = vmatpush1.msra.mxu0 0.0
    %8371 = vmatprep.subr.mxu0 0.0
    %8372 = vmatpush1.msra.mxu0 0.0
    %8373 = vmatprep.subr.mxu0 0.0
    %8374 = vmatpush1.msra.mxu0 0.0
    %8375 = vmatprep.subr.mxu0 0.0
    %8376 = vmatpush1.msra.mxu0 0.0
    %8377 = vmatprep.subr.mxu0 0.0
    %8378 = vmatpush1.msra.mxu0 0.0
    %8379 = vmatprep.subr.mxu0 0.0
    %8380 = vmatpush1.msra.mxu0 0.0
    %8381 = vmatprep.subr.mxu0 0.0
    %8382 = vmatpush1.msra.mxu0 0.0
    %8383 = vmatprep.mubr.f32.mxu0 0.0
    %8384 = vmatmul.mubr.f32.gmra.mrb[0].mxu0 %v8317
    %v8385 = vpop.f32.mrb[0].mxu0
    %v8386 = vadd.f32 0.0, %v8385
    %v8387 = vpop.f32.mrb[0].mxu0
    %8388 = vdwg.mxu0
    %v8389 = vadd.f32 %v8310, %v8386
    %s8390 = scalar_lea.vmem %s7, 384
    %v8391 = vld [vmem:[%s8390] sm:$0xff]
    %v8392 = vld [vmem:[%s8390 + $0x8] sm:$0xff]
    %v8393 = vld [vmem:[%s8390 + $0x10] sm:$0xff]
    %v8394 = vld [vmem:[%s8390 + $0x18] sm:$0xff]
    %v8395 = vrot.slane %v6851, 4
    %v8396 = vsel %vm194, %v8395, 0
    %8398 = vmatprep.subr.mxu0 0.0
    %8399 = vmatpush1.msra.mxu0 %v8391
    %8400 = vmatprep.subr.mxu0 0.0
    %8401 = vmatpush1.msra.mxu0 %v8392
    %8402 = vmatprep.subr.mxu0 0.0
    %8403 = vmatpush1.msra.mxu0 %v8393
    %8404 = vmatprep.subr.mxu0 0.0
    %8405 = vmatpush1.msra.mxu0 %v8394
    %8406 = vmatprep.subr.mxu0 0.0
    %8407 = vmatpush1.msra.mxu0 0.0
    %8408 = vmatprep.subr.mxu0 0.0
    %8409 = vmatpush1.msra.mxu0 0.0
    %8410 = vmatprep.subr.mxu0 0.0
    %8411 = vmatpush1.msra.mxu0 0.0
    %8412 = vmatprep.subr.mxu0 0.0
    %8413 = vmatpush1.msra.mxu0 0.0
    %8414 = vmatprep.subr.mxu0 0.0
    %8415 = vmatpush1.msra.mxu0 0.0
    %8416 = vmatprep.subr.mxu0 0.0
    %8417 = vmatpush1.msra.mxu0 0.0
    %8418 = vmatprep.subr.mxu0 0.0
    %8419 = vmatpush1.msra.mxu0 0.0
    %8420 = vmatprep.subr.mxu0 0.0
    %8421 = vmatpush1.msra.mxu0 0.0
    %8422 = vmatprep.subr.mxu0 0.0
    %8423 = vmatpush1.msra.mxu0 0.0
    %8424 = vmatprep.subr.mxu0 0.0
    %8425 = vmatpush1.msra.mxu0 0.0
    %8426 = vmatprep.subr.mxu0 0.0
    %8427 = vmatpush1.msra.mxu0 0.0
    %8428 = vmatprep.subr.mxu0 0.0
    %8429 = vmatpush1.msra.mxu0 0.0
    %8430 = vmatprep.subr.mxu0 0.0
    %8431 = vmatpush1.msra.mxu0 0.0
    %8432 = vmatprep.subr.mxu0 0.0
    %8433 = vmatpush1.msra.mxu0 0.0
    %8434 = vmatprep.subr.mxu0 0.0
    %8435 = vmatpush1.msra.mxu0 0.0
    %8436 = vmatprep.subr.mxu0 0.0
    %8437 = vmatpush1.msra.mxu0 0.0
    %8438 = vmatprep.subr.mxu0 0.0
    %8439 = vmatpush1.msra.mxu0 0.0
    %8440 = vmatprep.subr.mxu0 0.0
    %8441 = vmatpush1.msra.mxu0 0.0
    %8442 = vmatprep.subr.mxu0 0.0
    %8443 = vmatpush1.msra.mxu0 0.0
    %8444 = vmatprep.subr.mxu0 0.0
    %8445 = vmatpush1.msra.mxu0 0.0
    %8446 = vmatprep.subr.mxu0 0.0
    %8447 = vmatpush1.msra.mxu0 0.0
    %8448 = vmatprep.subr.mxu0 0.0
    %8449 = vmatpush1.msra.mxu0 0.0
    %8450 = vmatprep.subr.mxu0 0.0
    %8451 = vmatpush1.msra.mxu0 0.0
    %8452 = vmatprep.subr.mxu0 0.0
    %8453 = vmatpush1.msra.mxu0 0.0
    %8454 = vmatprep.subr.mxu0 0.0
    %8455 = vmatpush1.msra.mxu0 0.0
    %8456 = vmatprep.subr.mxu0 0.0
    %8457 = vmatpush1.msra.mxu0 0.0
    %8458 = vmatprep.subr.mxu0 0.0
    %8459 = vmatpush1.msra.mxu0 0.0
    %8460 = vmatprep.subr.mxu0 0.0
    %8461 = vmatpush1.msra.mxu0 0.0
    %8462 = vmatprep.mubr.f32.mxu0 0.0
    %8463 = vmatmul.mubr.f32.gmra.mrb[0].mxu0 %v8396
    %v8464 = vpop.f32.mrb[0].mxu0
    %v8465 = vadd.f32 0.0, %v8464
    %v8466 = vpop.f32.mrb[0].mxu0
    %8467 = vdwg.mxu0
    %v8468 = vadd.f32 %v8389, %v8465
    %s8469 = scalar_lea.vmem %s7, 416
    %v8470 = vld [vmem:[%s8469] sm:$0xff]
    %v8471 = vld [vmem:[%s8469 + $0x8] sm:$0xff]
    %v8472 = vld [vmem:[%s8469 + $0x10] sm:$0xff]
    %v8473 = vld [vmem:[%s8469 + $0x18] sm:$0xff]
    %v8474 = vrot.slane %v6851, 5
    %v8475 = vsel %vm194, %v8474, 0
    %8477 = vmatprep.subr.mxu0 0.0
    %8478 = vmatpush1.msra.mxu0 %v8470
    %8479 = vmatprep.subr.mxu0 0.0
    %8480 = vmatpush1.msra.mxu0 %v8471
    %8481 = vmatprep.subr.mxu0 0.0
    %8482 = vmatpush1.msra.mxu0 %v8472
    %8483 = vmatprep.subr.mxu0 0.0
    %8484 = vmatpush1.msra.mxu0 %v8473
    %8485 = vmatprep.subr.mxu0 0.0
    %8486 = vmatpush1.msra.mxu0 0.0
    %8487 = vmatprep.subr.mxu0 0.0
    %8488 = vmatpush1.msra.mxu0 0.0
    %8489 = vmatprep.subr.mxu0 0.0
    %8490 = vmatpush1.msra.mxu0 0.0
    %8491 = vmatprep.subr.mxu0 0.0
    %8492 = vmatpush1.msra.mxu0 0.0
    %8493 = vmatprep.subr.mxu0 0.0
    %8494 = vmatpush1.msra.mxu0 0.0
    %8495 = vmatprep.subr.mxu0 0.0
    %8496 = vmatpush1.msra.mxu0 0.0
    %8497 = vmatprep.subr.mxu0 0.0
    %8498 = vmatpush1.msra.mxu0 0.0
    %8499 = vmatprep.subr.mxu0 0.0
    %8500 = vmatpush1.msra.mxu0 0.0
    %8501 = vmatprep.subr.mxu0 0.0
    %8502 = vmatpush1.msra.mxu0 0.0
    %8503 = vmatprep.subr.mxu0 0.0
    %8504 = vmatpush1.msra.mxu0 0.0
    %8505 = vmatprep.subr.mxu0 0.0
    %8506 = vmatpush1.msra.mxu0 0.0
    %8507 = vmatprep.subr.mxu0 0.0
    %8508 = vmatpush1.msra.mxu0 0.0
    %8509 = vmatprep.subr.mxu0 0.0
    %8510 = vmatpush1.msra.mxu0 0.0
    %8511 = vmatprep.subr.mxu0 0.0
    %8512 = vmatpush1.msra.mxu0 0.0
    %8513 = vmatprep.subr.mxu0 0.0
    %8514 = vmatpush1.msra.mxu0 0.0
    %8515 = vmatprep.subr.mxu0 0.0
    %8516 = vmatpush1.msra.mxu0 0.0
    %8517 = vmatprep.subr.mxu0 0.0
    %8518 = vmatpush1.msra.mxu0 0.0
    %8519 = vmatprep.subr.mxu0 0.0
    %8520 = vmatpush1.msra.mxu0 0.0
    %8521 = vmatprep.subr.mxu0 0.0
    %8522 = vmatpush1.msra.mxu0 0.0
    %8523 = vmatprep.subr.mxu0 0.0
    %8524 = vmatpush1.msra.mxu0 0.0
    %8525 = vmatprep.subr.mxu0 0.0
    %8526 = vmatpush1.msra.mxu0 0.0
    %8527 = vmatprep.subr.mxu0 0.0
    %8528 = vmatpush1.msra.mxu0 0.0
    %8529 = vmatprep.subr.mxu0 0.0
    %8530 = vmatpush1.msra.mxu0 0.0
    %8531 = vmatprep.subr.mxu0 0.0
    %8532 = vmatpush1.msra.mxu0 0.0
    %8533 = vmatprep.subr.mxu0 0.0
    %8534 = vmatpush1.msra.mxu0 0.0
    %8535 = vmatprep.subr.mxu0 0.0
    %8536 = vmatpush1.msra.mxu0 0.0
    %8537 = vmatprep.subr.mxu0 0.0
    %8538 = vmatpush1.msra.mxu0 0.0
    %8539 = vmatprep.subr.mxu0 0.0
    %8540 = vmatpush1.msra.mxu0 0.0
    %8541 = vmatprep.mubr.f32.mxu0 0.0
    %8542 = vmatmul.mubr.f32.gmra.mrb[0].mxu0 %v8475
    %v8543 = vpop.f32.mrb[0].mxu0
    %v8544 = vadd.f32 0.0, %v8543
    %v8545 = vpop.f32.mrb[0].mxu0
    %8546 = vdwg.mxu0
    %v8547 = vadd.f32 %v8468, %v8544
    %s8548 = scalar_lea.vmem %s7, 448
    %v8549 = vld [vmem:[%s8548] sm:$0xff]
    %v8550 = vld [vmem:[%s8548 + $0x8] sm:$0xff]
    %v8551 = vld [vmem:[%s8548 + $0x10] sm:$0xff]
    %v8552 = vld [vmem:[%s8548 + $0x18] sm:$0xff]
    %v8553 = vrot.slane %v6851, 6
    %v8554 = vsel %vm194, %v8553, 0
    %8556 = vmatprep.subr.mxu0 0.0
    %8557 = vmatpush1.msra.mxu0 %v8549
    %8558 = vmatprep.subr.mxu0 0.0
    %8559 = vmatpush1.msra.mxu0 %v8550
    %8560 = vmatprep.subr.mxu0 0.0
    %8561 = vmatpush1.msra.mxu0 %v8551
    %8562 = vmatprep.subr.mxu0 0.0
    %8563 = vmatpush1.msra.mxu0 %v8552
    %8564 = vmatprep.subr.mxu0 0.0
    %8565 = vmatpush1.msra.mxu0 0.0
    %8566 = vmatprep.subr.mxu0 0.0
    %8567 = vmatpush1.msra.mxu0 0.0
    %8568 = vmatprep.subr.mxu0 0.0
    %8569 = vmatpush1.msra.mxu0 0.0
    %8570 = vmatprep.subr.mxu0 0.0
    %8571 = vmatpush1.msra.mxu0 0.0
    %8572 = vmatprep.subr.mxu0 0.0
    %8573 = vmatpush1.msra.mxu0 0.0
    %8574 = vmatprep.subr.mxu0 0.0
    %8575 = vmatpush1.msra.mxu0 0.0
    %8576 = vmatprep.subr.mxu0 0.0
    %8577 = vmatpush1.msra.mxu0 0.0
    %8578 = vmatprep.subr.mxu0 0.0
    %8579 = vmatpush1.msra.mxu0 0.0
    %8580 = vmatprep.subr.mxu0 0.0
    %8581 = vmatpush1.msra.mxu0 0.0
    %8582 = vmatprep.subr.mxu0 0.0
    %8583 = vmatpush1.msra.mxu0 0.0
    %8584 = vmatprep.subr.mxu0 0.0
    %8585 = vmatpush1.msra.mxu0 0.0
    %8586 = vmatprep.subr.mxu0 0.0
    %8587 = vmatpush1.msra.mxu0 0.0
    %8588 = vmatprep.subr.mxu0 0.0
    %8589 = vmatpush1.msra.mxu0 0.0
    %8590 = vmatprep.subr.mxu0 0.0
    %8591 = vmatpush1.msra.mxu0 0.0
    %8592 = vmatprep.subr.mxu0 0.0
    %8593 = vmatpush1.msra.mxu0 0.0
    %8594 = vmatprep.subr.mxu0 0.0
    %8595 = vmatpush1.msra.mxu0 0.0
    %8596 = vmatprep.subr.mxu0 0.0
    %8597 = vmatpush1.msra.mxu0 0.0
    %8598 = vmatprep.subr.mxu0 0.0
    %8599 = vmatpush1.msra.mxu0 0.0
    %8600 = vmatprep.subr.mxu0 0.0
    %8601 = vmatpush1.msra.mxu0 0.0
    %8602 = vmatprep.subr.mxu0 0.0
    %8603 = vmatpush1.msra.mxu0 0.0
    %8604 = vmatprep.subr.mxu0 0.0
    %8605 = vmatpush1.msra.mxu0 0.0
    %8606 = vmatprep.subr.mxu0 0.0
    %8607 = vmatpush1.msra.mxu0 0.0
    %8608 = vmatprep.subr.mxu0 0.0
    %8609 = vmatpush1.msra.mxu0 0.0
    %8610 = vmatprep.subr.mxu0 0.0
    %8611 = vmatpush1.msra.mxu0 0.0
    %8612 = vmatprep.subr.mxu0 0.0
    %8613 = vmatpush1.msra.mxu0 0.0
    %8614 = vmatprep.subr.mxu0 0.0
    %8615 = vmatpush1.msra.mxu0 0.0
    %8616 = vmatprep.subr.mxu0 0.0
    %8617 = vmatpush1.msra.mxu0 0.0
    %8618 = vmatprep.subr.mxu0 0.0
    %8619 = vmatpush1.msra.mxu0 0.0
    %8620 = vmatprep.mubr.f32.mxu0 0.0
    %8621 = vmatmul.mubr.f32.gmra.mrb[0].mxu0 %v8554
    %v8622 = vpop.f32.mrb[0].mxu0
    %v8623 = vadd.f32 0.0, %v8622
    %v8624 = vpop.f32.mrb[0].mxu0
    %8625 = vdwg.mxu0
    %v8626 = vadd.f32 %v8547, %v8623
    %s8627 = scalar_lea.vmem %s7, 480
    %v8628 = vld [vmem:[%s8627] sm:$0xff]
    %v8629 = vld [vmem:[%s8627 + $0x8] sm:$0xff]
    %v8630 = vld [vmem:[%s8627 + $0x10] sm:$0xff]
    %v8631 = vld [vmem:[%s8627 + $0x18] sm:$0xff]
    %v8632 = vrot.slane %v6851, 7
    %v8633 = vsel %vm194, %v8632, 0
    %8635 = vmatprep.subr.mxu0 0.0
    %8636 = vmatpush1.msra.mxu0 %v8628
    %8637 = vmatprep.subr.mxu0 0.0
    %8638 = vmatpush1.msra.mxu0 %v8629
    %8639 = vmatprep.subr.mxu0 0.0
    %8640 = vmatpush1.msra.mxu0 %v8630
    %8641 = vmatprep.subr.mxu0 0.0
    %8642 = vmatpush1.msra.mxu0 %v8631
    %8643 = vmatprep.subr.mxu0 0.0
    %8644 = vmatpush1.msra.mxu0 0.0
    %8645 = vmatprep.subr.mxu0 0.0
    %8646 = vmatpush1.msra.mxu0 0.0
    %8647 = vmatprep.subr.mxu0 0.0
    %8648 = vmatpush1.msra.mxu0 0.0
    %8649 = vmatprep.subr.mxu0 0.0
    %8650 = vmatpush1.msra.mxu0 0.0
    %8651 = vmatprep.subr.mxu0 0.0
    %8652 = vmatpush1.msra.mxu0 0.0
    %8653 = vmatprep.subr.mxu0 0.0
    %8654 = vmatpush1.msra.mxu0 0.0
    %8655 = vmatprep.subr.mxu0 0.0
    %8656 = vmatpush1.msra.mxu0 0.0
    %8657 = vmatprep.subr.mxu0 0.0
    %8658 = vmatpush1.msra.mxu0 0.0
    %8659 = vmatprep.subr.mxu0 0.0
    %8660 = vmatpush1.msra.mxu0 0.0
    %8661 = vmatprep.subr.mxu0 0.0
    %8662 = vmatpush1.msra.mxu0 0.0
    %8663 = vmatprep.subr.mxu0 0.0
    %8664 = vmatpush1.msra.mxu0 0.0
    %8665 = vmatprep.subr.mxu0 0.0
    %8666 = vmatpush1.msra.mxu0 0.0
    %8667 = vmatprep.subr.mxu0 0.0
    %8668 = vmatpush1.msra.mxu0 0.0
    %8669 = vmatprep.subr.mxu0 0.0
    %8670 = vmatpush1.msra.mxu0 0.0
    %8671 = vmatprep.subr.mxu0 0.0
    %8672 = vmatpush1.msra.mxu0 0.0
    %8673 = vmatprep.subr.mxu0 0.0
    %8674 = vmatpush1.msra.mxu0 0.0
    %8675 = vmatprep.subr.mxu0 0.0
    %8676 = vmatpush1.msra.mxu0 0.0
    %8677 = vmatprep.subr.mxu0 0.0
    %8678 = vmatpush1.msra.mxu0 0.0
    %8679 = vmatprep.subr.mxu0 0.0
    %8680 = vmatpush1.msra.mxu0 0.0
    %8681 = vmatprep.subr.mxu0 0.0
    %8682 = vmatpush1.msra.mxu0 0.0
    %8683 = vmatprep.subr.mxu0 0.0
    %8684 = vmatpush1.msra.mxu0 0.0
    %8685 = vmatprep.subr.mxu0 0.0
    %8686 = vmatpush1.msra.mxu0 0.0
    %8687 = vmatprep.subr.mxu0 0.0
    %8688 = vmatpush1.msra.mxu0 0.0
    %8689 = vmatprep.subr.mxu0 0.0
    %8690 = vmatpush1.msra.mxu0 0.0
    %8691 = vmatprep.subr.mxu0 0.0
    %8692 = vmatpush1.msra.mxu0 0.0
    %8693 = vmatprep.subr.mxu0 0.0
    %8694 = vmatpush1.msra.mxu0 0.0
    %8695 = vmatprep.subr.mxu0 0.0
    %8696 = vmatpush1.msra.mxu0 0.0
    %8697 = vmatprep.subr.mxu0 0.0
    %8698 = vmatpush1.msra.mxu0 0.0
    %8699 = vmatprep.mubr.f32.mxu0 0.0
    %8700 = vmatmul.mubr.f32.gmra.mrb[0].mxu0 %v8633
    %v8701 = vpop.f32.mrb[0].mxu0
    %v8702 = vadd.f32 0.0, %v8701
    %v8703 = vpop.f32.mrb[0].mxu0
    %8704 = vdwg.mxu0
    %v8705 = vadd.f32 %v8626, %v8702
    %v8707 = vrot.slane %v7443, 1
    %v8708 = vsel %vm194, %v8707, 0
    %8710 = vmatprep.subr.mxu0 0.0
    %8711 = vmatpush1.msra.mxu0 %v7450
    %8712 = vmatprep.subr.mxu0 0.0
    %8713 = vmatpush1.msra.mxu0 %v7451
    %8714 = vmatprep.subr.mxu0 0.0
    %8715 = vmatpush1.msra.mxu0 %v7452
    %8716 = vmatprep.subr.mxu0 0.0
    %8717 = vmatpush1.msra.mxu0 %v7453
    %8718 = vmatprep.subr.mxu0 0.0
    %8719 = vmatpush1.msra.mxu0 0.0
    %8720 = vmatprep.subr.mxu0 0.0
    %8721 = vmatpush1.msra.mxu0 0.0
    %8722 = vmatprep.subr.mxu0 0.0
    %8723 = vmatpush1.msra.mxu0 0.0
    %8724 = vmatprep.subr.mxu0 0.0
    %8725 = vmatpush1.msra.mxu0 0.0
    %8726 = vmatprep.subr.mxu0 0.0
    %8727 = vmatpush1.msra.mxu0 0.0
    %8728 = vmatprep.subr.mxu0 0.0
    %8729 = vmatpush1.msra.mxu0 0.0
    %8730 = vmatprep.subr.mxu0 0.0
    %8731 = vmatpush1.msra.mxu0 0.0
    %8732 = vmatprep.subr.mxu0 0.0
    %8733 = vmatpush1.msra.mxu0 0.0
    %8734 = vmatprep.subr.mxu0 0.0
    %8735 = vmatpush1.msra.mxu0 0.0
    %8736 = vmatprep.subr.mxu0 0.0
    %8737 = vmatpush1.msra.mxu0 0.0
    %8738 = vmatprep.subr.mxu0 0.0
    %8739 = vmatpush1.msra.mxu0 0.0
    %8740 = vmatprep.subr.mxu0 0.0
    %8741 = vmatpush1.msra.mxu0 0.0
    %8742 = vmatprep.subr.mxu0 0.0
    %8743 = vmatpush1.msra.mxu0 0.0
    %8744 = vmatprep.subr.mxu0 0.0
    %8745 = vmatpush1.msra.mxu0 0.0
    %8746 = vmatprep.subr.mxu0 0.0
    %8747 = vmatpush1.msra.mxu0 0.0
    %8748 = vmatprep.subr.mxu0 0.0
    %8749 = vmatpush1.msra.mxu0 0.0
    %8750 = vmatprep.subr.mxu0 0.0
    %8751 = vmatpush1.msra.mxu0 0.0
    %8752 = vmatprep.subr.mxu0 0.0
    %8753 = vmatpush1.msra.mxu0 0.0
    %8754 = vmatprep.subr.mxu0 0.0
    %8755 = vmatpush1.msra.mxu0 0.0
    %8756 = vmatprep.subr.mxu0 0.0
    %8757 = vmatpush1.msra.mxu0 0.0
    %8758 = vmatprep.subr.mxu0 0.0
    %8759 = vmatpush1.msra.mxu0 0.0
    %8760 = vmatprep.subr.mxu0 0.0
    %8761 = vmatpush1.msra.mxu0 0.0
    %8762 = vmatprep.subr.mxu0 0.0
    %8763 = vmatpush1.msra.mxu0 0.0
    %8764 = vmatprep.subr.mxu0 0.0
    %8765 = vmatpush1.msra.mxu0 0.0
    %8766 = vmatprep.subr.mxu0 0.0
    %8767 = vmatpush1.msra.mxu0 0.0
    %8768 = vmatprep.subr.mxu0 0.0
    %8769 = vmatpush1.msra.mxu0 0.0
    %8770 = vmatprep.subr.mxu0 0.0
    %8771 = vmatpush1.msra.mxu0 0.0
    %8772 = vmatprep.subr.mxu0 0.0
    %8773 = vmatpush1.msra.mxu0 0.0
    %8774 = vmatprep.mubr.f32.mxu0 0.0
    %8775 = vmatmul.mubr.f32.gmra.mrb[0].mxu0 %v8708
    %v8776 = vpop.f32.mrb[0].mxu0
    %v8777 = vadd.f32 0.0, %v8776
    %v8778 = vpop.f32.mrb[0].mxu0
    %8779 = vdwg.mxu0
    %v8780 = vsel %vm194, %v7443, 0
    %8782 = vmatprep.subr.mxu0 0.0
    %8783 = vmatpush1.msra.mxu0 %v7445
    %8784 = vmatprep.subr.mxu0 0.0
    %8785 = vmatpush1.msra.mxu0 %v7446
    %8786 = vmatprep.subr.mxu0 0.0
    %8787 = vmatpush1.msra.mxu0 %v7447
    %8788 = vmatprep.subr.mxu0 0.0
    %8789 = vmatpush1.msra.mxu0 %v7448
    %8790 = vmatprep.subr.mxu0 0.0
    %8791 = vmatpush1.msra.mxu0 0.0
    %8792 = vmatprep.subr.mxu0 0.0
    %8793 = vmatpush1.msra.mxu0 0.0
    %8794 = vmatprep.subr.mxu0 0.0
    %8795 = vmatpush1.msra.mxu0 0.0
    %8796 = vmatprep.subr.mxu0 0.0
    %8797 = vmatpush1.msra.mxu0 0.0
    %8798 = vmatprep.subr.mxu0 0.0
    %8799 = vmatpush1.msra.mxu0 0.0
    %8800 = vmatprep.subr.mxu0 0.0
    %8801 = vmatpush1.msra.mxu0 0.0
    %8802 = vmatprep.subr.mxu0 0.0
    %8803 = vmatpush1.msra.mxu0 0.0
    %8804 = vmatprep.subr.mxu0 0.0
    %8805 = vmatpush1.msra.mxu0 0.0
    %8806 = vmatprep.subr.mxu0 0.0
    %8807 = vmatpush1.msra.mxu0 0.0
    %8808 = vmatprep.subr.mxu0 0.0
    %8809 = vmatpush1.msra.mxu0 0.0
    %8810 = vmatprep.subr.mxu0 0.0
    %8811 = vmatpush1.msra.mxu0 0.0
    %8812 = vmatprep.subr.mxu0 0.0
    %8813 = vmatpush1.msra.mxu0 0.0
    %8814 = vmatprep.subr.mxu0 0.0
    %8815 = vmatpush1.msra.mxu0 0.0
    %8816 = vmatprep.subr.mxu0 0.0
    %8817 = vmatpush1.msra.mxu0 0.0
    %8818 = vmatprep.subr.mxu0 0.0
    %8819 = vmatpush1.msra.mxu0 0.0
    %8820 = vmatprep.subr.mxu0 0.0
    %8821 = vmatpush1.msra.mxu0 0.0
    %8822 = vmatprep.subr.mxu0 0.0
    %8823 = vmatpush1.msra.mxu0 0.0
    %8824 = vmatprep.subr.mxu0 0.0
    %8825 = vmatpush1.msra.mxu0 0.0
    %8826 = vmatprep.subr.mxu0 0.0
    %8827 = vmatpush1.msra.mxu0 0.0
    %8828 = vmatprep.subr.mxu0 0.0
    %8829 = vmatpush1.msra.mxu0 0.0
    %8830 = vmatprep.subr.mxu0 0.0
    %8831 = vmatpush1.msra.mxu0 0.0
    %8832 = vmatprep.subr.mxu0 0.0
    %8833 = vmatpush1.msra.mxu0 0.0
    %8834 = vmatprep.subr.mxu0 0.0
    %8835 = vmatpush1.msra.mxu0 0.0
    %8836 = vmatprep.subr.mxu0 0.0
    %8837 = vmatpush1.msra.mxu0 0.0
    %8838 = vmatprep.subr.mxu0 0.0
    %8839 = vmatpush1.msra.mxu0 0.0
    %8840 = vmatprep.subr.mxu0 0.0
    %8841 = vmatpush1.msra.mxu0 0.0
    %8842 = vmatprep.subr.mxu0 0.0
    %8843 = vmatpush1.msra.mxu0 0.0
    %8844 = vmatprep.subr.mxu0 0.0
    %8845 = vmatpush1.msra.mxu0 0.0
    %8846 = vmatprep.mubr.f32.mxu0 0.0
    %8847 = vmatmul.mubr.f32.gmra.mrb[0].mxu0 %v8780
    %v8848 = vpop.f32.mrb[0].mxu0
    %v8849 = vadd.f32 %v8777, %v8848
    %v8850 = vpop.f32.mrb[0].mxu0
    %8851 = vdwg.mxu0
    %v8852 = vrot.slane %v7443, 2
    %v8853 = vsel %vm194, %v8852, 0
    %8855 = vmatprep.subr.mxu0 0.0
    %8856 = vmatpush1.msra.mxu0 %v7601
    %8857 = vmatprep.subr.mxu0 0.0
    %8858 = vmatpush1.msra.mxu0 %v7602
    %8859 = vmatprep.subr.mxu0 0.0
    %8860 = vmatpush1.msra.mxu0 %v7603
    %8861 = vmatprep.subr.mxu0 0.0
    %8862 = vmatpush1.msra.mxu0 %v7604
    %8863 = vmatprep.subr.mxu0 0.0
    %8864 = vmatpush1.msra.mxu0 0.0
    %8865 = vmatprep.subr.mxu0 0.0
    %8866 = vmatpush1.msra.mxu0 0.0
    %8867 = vmatprep.subr.mxu0 0.0
    %8868 = vmatpush1.msra.mxu0 0.0
    %8869 = vmatprep.subr.mxu0 0.0
    %8870 = vmatpush1.msra.mxu0 0.0
    %8871 = vmatprep.subr.mxu0 0.0
    %8872 = vmatpush1.msra.mxu0 0.0
    %8873 = vmatprep.subr.mxu0 0.0
    %8874 = vmatpush1.msra.mxu0 0.0
    %8875 = vmatprep.subr.mxu0 0.0
    %8876 = vmatpush1.msra.mxu0 0.0
    %8877 = vmatprep.subr.mxu0 0.0
    %8878 = vmatpush1.msra.mxu0 0.0
    %8879 = vmatprep.subr.mxu0 0.0
    %8880 = vmatpush1.msra.mxu0 0.0
    %8881 = vmatprep.subr.mxu0 0.0
    %8882 = vmatpush1.msra.mxu0 0.0
    %8883 = vmatprep.subr.mxu0 0.0
    %8884 = vmatpush1.msra.mxu0 0.0
    %8885 = vmatprep.subr.mxu0 0.0
    %8886 = vmatpush1.msra.mxu0 0.0
    %8887 = vmatprep.subr.mxu0 0.0
    %8888 = vmatpush1.msra.mxu0 0.0
    %8889 = vmatprep.subr.mxu0 0.0
    %8890 = vmatpush1.msra.mxu0 0.0
    %8891 = vmatprep.subr.mxu0 0.0
    %8892 = vmatpush1.msra.mxu0 0.0
    %8893 = vmatprep.subr.mxu0 0.0
    %8894 = vmatpush1.msra.mxu0 0.0
    %8895 = vmatprep.subr.mxu0 0.0
    %8896 = vmatpush1.msra.mxu0 0.0
    %8897 = vmatprep.subr.mxu0 0.0
    %8898 = vmatpush1.msra.mxu0 0.0
    %8899 = vmatprep.subr.mxu0 0.0
    %8900 = vmatpush1.msra.mxu0 0.0
    %8901 = vmatprep.subr.mxu0 0.0
    %8902 = vmatpush1.msra.mxu0 0.0
    %8903 = vmatprep.subr.mxu0 0.0
    %8904 = vmatpush1.msra.mxu0 0.0
    %8905 = vmatprep.subr.mxu0 0.0
    %8906 = vmatpush1.msra.mxu0 0.0
    %8907 = vmatprep.subr.mxu0 0.0
    %8908 = vmatpush1.msra.mxu0 0.0
    %8909 = vmatprep.subr.mxu0 0.0
    %8910 = vmatpush1.msra.mxu0 0.0
    %8911 = vmatprep.subr.mxu0 0.0
    %8912 = vmatpush1.msra.mxu0 0.0
    %8913 = vmatprep.subr.mxu0 0.0
    %8914 = vmatpush1.msra.mxu0 0.0
    %8915 = vmatprep.subr.mxu0 0.0
    %8916 = vmatpush1.msra.mxu0 0.0
    %8917 = vmatprep.subr.mxu0 0.0
    %8918 = vmatpush1.msra.mxu0 0.0
    %8919 = vmatprep.mubr.f32.mxu0 0.0
    %8920 = vmatmul.mubr.f32.gmra.mrb[0].mxu0 %v8853
    %v8921 = vpop.f32.mrb[0].mxu0
    %v8922 = vadd.f32 0.0, %v8921
    %v8923 = vpop.f32.mrb[0].mxu0
    %8924 = vdwg.mxu0
    %v8925 = vadd.f32 %v8849, %v8922
    %v8926 = vrot.slane %v7443, 3
    %v8927 = vsel %vm194, %v8926, 0
    %8929 = vmatprep.subr.mxu0 0.0
    %8930 = vmatpush1.msra.mxu0 %v7680
    %8931 = vmatprep.subr.mxu0 0.0
    %8932 = vmatpush1.msra.mxu0 %v7681
    %8933 = vmatprep.subr.mxu0 0.0
    %8934 = vmatpush1.msra.mxu0 %v7682
    %8935 = vmatprep.subr.mxu0 0.0
    %8936 = vmatpush1.msra.mxu0 %v7683
    %8937 = vmatprep.subr.mxu0 0.0
    %8938 = vmatpush1.msra.mxu0 0.0
    %8939 = vmatprep.subr.mxu0 0.0
    %8940 = vmatpush1.msra.mxu0 0.0
    %8941 = vmatprep.subr.mxu0 0.0
    %8942 = vmatpush1.msra.mxu0 0.0
    %8943 = vmatprep.subr.mxu0 0.0
    %8944 = vmatpush1.msra.mxu0 0.0
    %8945 = vmatprep.subr.mxu0 0.0
    %8946 = vmatpush1.msra.mxu0 0.0
    %8947 = vmatprep.subr.mxu0 0.0
    %8948 = vmatpush1.msra.mxu0 0.0
    %8949 = vmatprep.subr.mxu0 0.0
    %8950 = vmatpush1.msra.mxu0 0.0
    %8951 = vmatprep.subr.mxu0 0.0
    %8952 = vmatpush1.msra.mxu0 0.0
    %8953 = vmatprep.subr.mxu0 0.0
    %8954 = vmatpush1.msra.mxu0 0.0
    %8955 = vmatprep.subr.mxu0 0.0
    %8956 = vmatpush1.msra.mxu0 0.0
    %8957 = vmatprep.subr.mxu0 0.0
    %8958 = vmatpush1.msra.mxu0 0.0
    %8959 = vmatprep.subr.mxu0 0.0
    %8960 = vmatpush1.msra.mxu0 0.0
    %8961 = vmatprep.subr.mxu0 0.0
    %8962 = vmatpush1.msra.mxu0 0.0
    %8963 = vmatprep.subr.mxu0 0.0
    %8964 = vmatpush1.msra.mxu0 0.0
    %8965 = vmatprep.subr.mxu0 0.0
    %8966 = vmatpush1.msra.mxu0 0.0
    %8967 = vmatprep.subr.mxu0 0.0
    %8968 = vmatpush1.msra.mxu0 0.0
    %8969 = vmatprep.subr.mxu0 0.0
    %8970 = vmatpush1.msra.mxu0 0.0
    %8971 = vmatprep.subr.mxu0 0.0
    %8972 = vmatpush1.msra.mxu0 0.0
    %8973 = vmatprep.subr.mxu0 0.0
    %8974 = vmatpush1.msra.mxu0 0.0
    %8975 = vmatprep.subr.mxu0 0.0
    %8976 = vmatpush1.msra.mxu0 0.0
    %8977 = vmatprep.subr.mxu0 0.0
    %8978 = vmatpush1.msra.mxu0 0.0
    %8979 = vmatprep.subr.mxu0 0.0
    %8980 = vmatpush1.msra.mxu0 0.0
    %8981 = vmatprep.subr.mxu0 0.0
    %8982 = vmatpush1.msra.mxu0 0.0
    %8983 = vmatprep.subr.mxu0 0.0
    %8984 = vmatpush1.msra.mxu0 0.0
    %8985 = vmatprep.subr.mxu0 0.0
    %8986 = vmatpush1.msra.mxu0 0.0
    %8987 = vmatprep.subr.mxu0 0.0
    %8988 = vmatpush1.msra.mxu0 0.0
    %8989 = vmatprep.subr.mxu0 0.0
    %8990 = vmatpush1.msra.mxu0 0.0
    %8991 = vmatprep.subr.mxu0 0.0
    %8992 = vmatpush1.msra.mxu0 0.0
    %8993 = vmatprep.mubr.f32.mxu0 0.0
    %8994 = vmatmul.mubr.f32.gmra.mrb[0].mxu0 %v8927
    %v8995 = vpop.f32.mrb[0].mxu0
    %v8996 = vadd.f32 0.0, %v8995
    %v8997 = vpop.f32.mrb[0].mxu0
    %8998 = vdwg.mxu0
    %v8999 = vadd.f32 %v8925, %v8996
    %v9000 = vrot.slane %v7443, 4
    %v9001 = vsel %vm194, %v9000, 0
    %9003 = vmatprep.subr.mxu0 0.0
    %9004 = vmatpush1.msra.mxu0 %v7759
    %9005 = vmatprep.subr.mxu0 0.0
    %9006 = vmatpush1.msra.mxu0 %v7760
    %9007 = vmatprep.subr.mxu0 0.0
    %9008 = vmatpush1.msra.mxu0 %v7761
    %9009 = vmatprep.subr.mxu0 0.0
    %9010 = vmatpush1.msra.mxu0 %v7762
    %9011 = vmatprep.subr.mxu0 0.0
    %9012 = vmatpush1.msra.mxu0 0.0
    %9013 = vmatprep.subr.mxu0 0.0
    %9014 = vmatpush1.msra.mxu0 0.0
    %9015 = vmatprep.subr.mxu0 0.0
    %9016 = vmatpush1.msra.mxu0 0.0
    %9017 = vmatprep.subr.mxu0 0.0
    %9018 = vmatpush1.msra.mxu0 0.0
    %9019 = vmatprep.subr.mxu0 0.0
    %9020 = vmatpush1.msra.mxu0 0.0
    %9021 = vmatprep.subr.mxu0 0.0
    %9022 = vmatpush1.msra.mxu0 0.0
    %9023 = vmatprep.subr.mxu0 0.0
    %9024 = vmatpush1.msra.mxu0 0.0
    %9025 = vmatprep.subr.mxu0 0.0
    %9026 = vmatpush1.msra.mxu0 0.0
    %9027 = vmatprep.subr.mxu0 0.0
    %9028 = vmatpush1.msra.mxu0 0.0
    %9029 = vmatprep.subr.mxu0 0.0
    %9030 = vmatpush1.msra.mxu0 0.0
    %9031 = vmatprep.subr.mxu0 0.0
    %9032 = vmatpush1.msra.mxu0 0.0
    %9033 = vmatprep.subr.mxu0 0.0
    %9034 = vmatpush1.msra.mxu0 0.0
    %9035 = vmatprep.subr.mxu0 0.0
    %9036 = vmatpush1.msra.mxu0 0.0
    %9037 = vmatprep.subr.mxu0 0.0
    %9038 = vmatpush1.msra.mxu0 0.0
    %9039 = vmatprep.subr.mxu0 0.0
    %9040 = vmatpush1.msra.mxu0 0.0
    %9041 = vmatprep.subr.mxu0 0.0
    %9042 = vmatpush1.msra.mxu0 0.0
    %9043 = vmatprep.subr.mxu0 0.0
    %9044 = vmatpush1.msra.mxu0 0.0
    %9045 = vmatprep.subr.mxu0 0.0
    %9046 = vmatpush1.msra.mxu0 0.0
    %9047 = vmatprep.subr.mxu0 0.0
    %9048 = vmatpush1.msra.mxu0 0.0
    %9049 = vmatprep.subr.mxu0 0.0
    %9050 = vmatpush1.msra.mxu0 0.0
    %9051 = vmatprep.subr.mxu0 0.0
    %9052 = vmatpush1.msra.mxu0 0.0
    %9053 = vmatprep.subr.mxu0 0.0
    %9054 = vmatpush1.msra.mxu0 0.0
    %9055 = vmatprep.subr.mxu0 0.0
    %9056 = vmatpush1.msra.mxu0 0.0
    %9057 = vmatprep.subr.mxu0 0.0
    %9058 = vmatpush1.msra.mxu0 0.0
    %9059 = vmatprep.subr.mxu0 0.0
    %9060 = vmatpush1.msra.mxu0 0.0
    %9061 = vmatprep.subr.mxu0 0.0
    %9062 = vmatpush1.msra.mxu0 0.0
    %9063 = vmatprep.subr.mxu0 0.0
    %9064 = vmatpush1.msra.mxu0 0.0
    %9065 = vmatprep.subr.mxu0 0.0
    %9066 = vmatpush1.msra.mxu0 0.0
    %9067 = vmatprep.mubr.f32.mxu0 0.0
    %9068 = vmatmul.mubr.f32.gmra.mrb[0].mxu0 %v9001
    %v9069 = vpop.f32.mrb[0].mxu0
    %v9070 = vadd.f32 0.0, %v9069
    %v9071 = vpop.f32.mrb[0].mxu0
    %9072 = vdwg.mxu0
    %v9073 = vadd.f32 %v8999, %v9070
    %v9074 = vrot.slane %v7443, 5
    %v9075 = vsel %vm194, %v9074, 0
    %9077 = vmatprep.subr.mxu0 0.0
    %9078 = vmatpush1.msra.mxu0 %v7838
    %9079 = vmatprep.subr.mxu0 0.0
    %9080 = vmatpush1.msra.mxu0 %v7839
    %9081 = vmatprep.subr.mxu0 0.0
    %9082 = vmatpush1.msra.mxu0 %v7840
    %9083 = vmatprep.subr.mxu0 0.0
    %9084 = vmatpush1.msra.mxu0 %v7841
    %9085 = vmatprep.subr.mxu0 0.0
    %9086 = vmatpush1.msra.mxu0 0.0
    %9087 = vmatprep.subr.mxu0 0.0
    %9088 = vmatpush1.msra.mxu0 0.0
    %9089 = vmatprep.subr.mxu0 0.0
    %9090 = vmatpush1.msra.mxu0 0.0
    %9091 = vmatprep.subr.mxu0 0.0
    %9092 = vmatpush1.msra.mxu0 0.0
    %9093 = vmatprep.subr.mxu0 0.0
    %9094 = vmatpush1.msra.mxu0 0.0
    %9095 = vmatprep.subr.mxu0 0.0
    %9096 = vmatpush1.msra.mxu0 0.0
    %9097 = vmatprep.subr.mxu0 0.0
    %9098 = vmatpush1.msra.mxu0 0.0
    %9099 = vmatprep.subr.mxu0 0.0
    %9100 = vmatpush1.msra.mxu0 0.0
    %9101 = vmatprep.subr.mxu0 0.0
    %9102 = vmatpush1.msra.mxu0 0.0
    %9103 = vmatprep.subr.mxu0 0.0
    %9104 = vmatpush1.msra.mxu0 0.0
    %9105 = vmatprep.subr.mxu0 0.0
    %9106 = vmatpush1.msra.mxu0 0.0
    %9107 = vmatprep.subr.mxu0 0.0
    %9108 = vmatpush1.msra.mxu0 0.0
    %9109 = vmatprep.subr.mxu0 0.0
    %9110 = vmatpush1.msra.mxu0 0.0
    %9111 = vmatprep.subr.mxu0 0.0
    %9112 = vmatpush1.msra.mxu0 0.0
    %9113 = vmatprep.subr.mxu0 0.0
    %9114 = vmatpush1.msra.mxu0 0.0
    %9115 = vmatprep.subr.mxu0 0.0
    %9116 = vmatpush1.msra.mxu0 0.0
    %9117 = vmatprep.subr.mxu0 0.0
    %9118 = vmatpush1.msra.mxu0 0.0
    %9119 = vmatprep.subr.mxu0 0.0
    %9120 = vmatpush1.msra.mxu0 0.0
    %9121 = vmatprep.subr.mxu0 0.0
    %9122 = vmatpush1.msra.mxu0 0.0
    %9123 = vmatprep.subr.mxu0 0.0
    %9124 = vmatpush1.msra.mxu0 0.0
    %9125 = vmatprep.subr.mxu0 0.0
    %9126 = vmatpush1.msra.mxu0 0.0
    %9127 = vmatprep.subr.mxu0 0.0
    %9128 = vmatpush1.msra.mxu0 0.0
    %9129 = vmatprep.subr.mxu0 0.0
    %9130 = vmatpush1.msra.mxu0 0.0
    %9131 = vmatprep.subr.mxu0 0.0
    %9132 = vmatpush1.msra.mxu0 0.0
    %9133 = vmatprep.subr.mxu0 0.0
    %9134 = vmatpush1.msra.mxu0 0.0
    %9135 = vmatprep.subr.mxu0 0.0
    %9136 = vmatpush1.msra.mxu0 0.0
    %9137 = vmatprep.subr.mxu0 0.0
    %9138 = vmatpush1.msra.mxu0 0.0
    %9139 = vmatprep.subr.mxu0 0.0
    %9140 = vmatpush1.msra.mxu0 0.0
    %9141 = vmatprep.mubr.f32.mxu0 0.0
    %9142 = vmatmul.mubr.f32.gmra.mrb[0].mxu0 %v9075
    %v9143 = vpop.f32.mrb[0].mxu0
    %v9144 = vadd.f32 0.0, %v9143
    %v9145 = vpop.f32.mrb[0].mxu0
    %9146 = vdwg.mxu0
    %v9147 = vadd.f32 %v9073, %v9144
    %v9148 = vrot.slane %v7443, 6
    %v9149 = vsel %vm194, %v9148, 0
    %9151 = vmatprep.subr.mxu0 0.0
    %9152 = vmatpush1.msra.mxu0 %v7917
    %9153 = vmatprep.subr.mxu0 0.0
    %9154 = vmatpush1.msra.mxu0 %v7918
    %9155 = vmatprep.subr.mxu0 0.0
    %9156 = vmatpush1.msra.mxu0 %v7919
    %9157 = vmatprep.subr.mxu0 0.0
    %9158 = vmatpush1.msra.mxu0 %v7920
    %9159 = vmatprep.subr.mxu0 0.0
    %9160 = vmatpush1.msra.mxu0 0.0
    %9161 = vmatprep.subr.mxu0 0.0
    %9162 = vmatpush1.msra.mxu0 0.0
    %9163 = vmatprep.subr.mxu0 0.0
    %9164 = vmatpush1.msra.mxu0 0.0
    %9165 = vmatprep.subr.mxu0 0.0
    %9166 = vmatpush1.msra.mxu0 0.0
    %9167 = vmatprep.subr.mxu0 0.0
    %9168 = vmatpush1.msra.mxu0 0.0
    %9169 = vmatprep.subr.mxu0 0.0
    %9170 = vmatpush1.msra.mxu0 0.0
    %9171 = vmatprep.subr.mxu0 0.0
    %9172 = vmatpush1.msra.mxu0 0.0
    %9173 = vmatprep.subr.mxu0 0.0
    %9174 = vmatpush1.msra.mxu0 0.0
    %9175 = vmatprep.subr.mxu0 0.0
    %9176 = vmatpush1.msra.mxu0 0.0
    %9177 = vmatprep.subr.mxu0 0.0
    %9178 = vmatpush1.msra.mxu0 0.0
    %9179 = vmatprep.subr.mxu0 0.0
    %9180 = vmatpush1.msra.mxu0 0.0
    %9181 = vmatprep.subr.mxu0 0.0
    %9182 = vmatpush1.msra.mxu0 0.0
    %9183 = vmatprep.subr.mxu0 0.0
    %9184 = vmatpush1.msra.mxu0 0.0
    %9185 = vmatprep.subr.mxu0 0.0
    %9186 = vmatpush1.msra.mxu0 0.0
    %9187 = vmatprep.subr.mxu0 0.0
    %9188 = vmatpush1.msra.mxu0 0.0
    %9189 = vmatprep.subr.mxu0 0.0
    %9190 = vmatpush1.msra.mxu0 0.0
    %9191 = vmatprep.subr.mxu0 0.0
    %9192 = vmatpush1.msra.mxu0 0.0
    %9193 = vmatprep.subr.mxu0 0.0
    %9194 = vmatpush1.msra.mxu0 0.0
    %9195 = vmatprep.subr.mxu0 0.0
    %9196 = vmatpush1.msra.mxu0 0.0
    %9197 = vmatprep.subr.mxu0 0.0
    %9198 = vmatpush1.msra.mxu0 0.0
    %9199 = vmatprep.subr.mxu0 0.0
    %9200 = vmatpush1.msra.mxu0 0.0
    %9201 = vmatprep.subr.mxu0 0.0
    %9202 = vmatpush1.msra.mxu0 0.0
    %9203 = vmatprep.subr.mxu0 0.0
    %9204 = vmatpush1.msra.mxu0 0.0
    %9205 = vmatprep.subr.mxu0 0.0
    %9206 = vmatpush1.msra.mxu0 0.0
    %9207 = vmatprep.subr.mxu0 0.0
    %9208 = vmatpush1.msra.mxu0 0.0
    %9209 = vmatprep.subr.mxu0 0.0
    %9210 = vmatpush1.msra.mxu0 0.0
    %9211 = vmatprep.subr.mxu0 0.0
    %9212 = vmatpush1.msra.mxu0 0.0
    %9213 = vmatprep.subr.mxu0 0.0
    %9214 = vmatpush1.msra.mxu0 0.0
    %9215 = vmatprep.mubr.f32.mxu0 0.0
    %9216 = vmatmul.mubr.f32.gmra.mrb[0].mxu0 %v9149
    %v9217 = vpop.f32.mrb[0].mxu0
    %v9218 = vadd.f32 0.0, %v9217
    %v9219 = vpop.f32.mrb[0].mxu0
    %9220 = vdwg.mxu0
    %v9221 = vadd.f32 %v9147, %v9218
    %v9222 = vrot.slane %v7443, 7
    %v9223 = vsel %vm194, %v9222, 0
    %9225 = vmatprep.subr.mxu0 0.0
    %9226 = vmatpush1.msra.mxu0 %v7996
    %9227 = vmatprep.subr.mxu0 0.0
    %9228 = vmatpush1.msra.mxu0 %v7997
    %9229 = vmatprep.subr.mxu0 0.0
    %9230 = vmatpush1.msra.mxu0 %v7998
    %9231 = vmatprep.subr.mxu0 0.0
    %9232 = vmatpush1.msra.mxu0 %v7999
    %9233 = vmatprep.subr.mxu0 0.0
    %9234 = vmatpush1.msra.mxu0 0.0
    %9235 = vmatprep.subr.mxu0 0.0
    %9236 = vmatpush1.msra.mxu0 0.0
    %9237 = vmatprep.subr.mxu0 0.0
    %9238 = vmatpush1.msra.mxu0 0.0
    %9239 = vmatprep.subr.mxu0 0.0
    %9240 = vmatpush1.msra.mxu0 0.0
    %9241 = vmatprep.subr.mxu0 0.0
    %9242 = vmatpush1.msra.mxu0 0.0
    %9243 = vmatprep.subr.mxu0 0.0
    %9244 = vmatpush1.msra.mxu0 0.0
    %9245 = vmatprep.subr.mxu0 0.0
    %9246 = vmatpush1.msra.mxu0 0.0
    %9247 = vmatprep.subr.mxu0 0.0
    %9248 = vmatpush1.msra.mxu0 0.0
    %9249 = vmatprep.subr.mxu0 0.0
    %9250 = vmatpush1.msra.mxu0 0.0
    %9251 = vmatprep.subr.mxu0 0.0
    %9252 = vmatpush1.msra.mxu0 0.0
    %9253 = vmatprep.subr.mxu0 0.0
    %9254 = vmatpush1.msra.mxu0 0.0
    %9255 = vmatprep.subr.mxu0 0.0
    %9256 = vmatpush1.msra.mxu0 0.0
    %9257 = vmatprep.subr.mxu0 0.0
    %9258 = vmatpush1.msra.mxu0 0.0
    %9259 = vmatprep.subr.mxu0 0.0
    %9260 = vmatpush1.msra.mxu0 0.0
    %9261 = vmatprep.subr.mxu0 0.0
    %9262 = vmatpush1.msra.mxu0 0.0
    %9263 = vmatprep.subr.mxu0 0.0
    %9264 = vmatpush1.msra.mxu0 0.0
    %9265 = vmatprep.subr.mxu0 0.0
    %9266 = vmatpush1.msra.mxu0 0.0
    %9267 = vmatprep.subr.mxu0 0.0
    %9268 = vmatpush1.msra.mxu0 0.0
    %9269 = vmatprep.subr.mxu0 0.0
    %9270 = vmatpush1.msra.mxu0 0.0
    %9271 = vmatprep.subr.mxu0 0.0
    %9272 = vmatpush1.msra.mxu0 0.0
    %9273 = vmatprep.subr.mxu0 0.0
    %9274 = vmatpush1.msra.mxu0 0.0
    %9275 = vmatprep.subr.mxu0 0.0
    %9276 = vmatpush1.msra.mxu0 0.0
    %9277 = vmatprep.subr.mxu0 0.0
    %9278 = vmatpush1.msra.mxu0 0.0
    %9279 = vmatprep.subr.mxu0 0.0
    %9280 = vmatpush1.msra.mxu0 0.0
    %9281 = vmatprep.subr.mxu0 0.0
    %9282 = vmatpush1.msra.mxu0 0.0
    %9283 = vmatprep.subr.mxu0 0.0
    %9284 = vmatpush1.msra.mxu0 0.0
    %9285 = vmatprep.subr.mxu0 0.0
    %9286 = vmatpush1.msra.mxu0 0.0
    %9287 = vmatprep.subr.mxu0 0.0
    %9288 = vmatpush1.msra.mxu0 0.0
    %9289 = vmatprep.mubr.f32.mxu0 0.0
    %9290 = vmatmul.mubr.f32.gmra.mrb[0].mxu0 %v9223
    %v9291 = vpop.f32.mrb[0].mxu0
    %v9292 = vadd.f32 0.0, %v9291
    %v9293 = vpop.f32.mrb[0].mxu0
    %9294 = vdwg.mxu0
    %v9295 = vadd.f32 %v9221, %v9292
    %v9297 = vsel %vm194, %v7444, 0
    %9299 = vmatprep.subr.mxu0 0.0
    %9300 = vmatpush1.msra.mxu0 %v8075
    %9301 = vmatprep.subr.mxu0 0.0
    %9302 = vmatpush1.msra.mxu0 %v8076
    %9303 = vmatprep.subr.mxu0 0.0
    %9304 = vmatpush1.msra.mxu0 %v8077
    %9305 = vmatprep.subr.mxu0 0.0
    %9306 = vmatpush1.msra.mxu0 %v8078
    %9307 = vmatprep.subr.mxu0 0.0
    %9308 = vmatpush1.msra.mxu0 0.0
    %9309 = vmatprep.subr.mxu0 0.0
    %9310 = vmatpush1.msra.mxu0 0.0
    %9311 = vmatprep.subr.mxu0 0.0
    %9312 = vmatpush1.msra.mxu0 0.0
    %9313 = vmatprep.subr.mxu0 0.0
    %9314 = vmatpush1.msra.mxu0 0.0
    %9315 = vmatprep.subr.mxu0 0.0
    %9316 = vmatpush1.msra.mxu0 0.0
    %9317 = vmatprep.subr.mxu0 0.0
    %9318 = vmatpush1.msra.mxu0 0.0
    %9319 = vmatprep.subr.mxu0 0.0
    %9320 = vmatpush1.msra.mxu0 0.0
    %9321 = vmatprep.subr.mxu0 0.0
    %9322 = vmatpush1.msra.mxu0 0.0
    %9323 = vmatprep.subr.mxu0 0.0
    %9324 = vmatpush1.msra.mxu0 0.0
    %9325 = vmatprep.subr.mxu0 0.0
    %9326 = vmatpush1.msra.mxu0 0.0
    %9327 = vmatprep.subr.mxu0 0.0
    %9328 = vmatpush1.msra.mxu0 0.0
    %9329 = vmatprep.subr.mxu0 0.0
    %9330 = vmatpush1.msra.mxu0 0.0
    %9331 = vmatprep.subr.mxu0 0.0
    %9332 = vmatpush1.msra.mxu0 0.0
    %9333 = vmatprep.subr.mxu0 0.0
    %9334 = vmatpush1.msra.mxu0 0.0
    %9335 = vmatprep.subr.mxu0 0.0
    %9336 = vmatpush1.msra.mxu0 0.0
    %9337 = vmatprep.subr.mxu0 0.0
    %9338 = vmatpush1.msra.mxu0 0.0
    %9339 = vmatprep.subr.mxu0 0.0
    %9340 = vmatpush1.msra.mxu0 0.0
    %9341 = vmatprep.subr.mxu0 0.0
    %9342 = vmatpush1.msra.mxu0 0.0
    %9343 = vmatprep.subr.mxu0 0.0
    %9344 = vmatpush1.msra.mxu0 0.0
    %9345 = vmatprep.subr.mxu0 0.0
    %9346 = vmatpush1.msra.mxu0 0.0
    %9347 = vmatprep.subr.mxu0 0.0
    %9348 = vmatpush1.msra.mxu0 0.0
    %9349 = vmatprep.subr.mxu0 0.0
    %9350 = vmatpush1.msra.mxu0 0.0
    %9351 = vmatprep.subr.mxu0 0.0
    %9352 = vmatpush1.msra.mxu0 0.0
    %9353 = vmatprep.subr.mxu0 0.0
    %9354 = vmatpush1.msra.mxu0 0.0
    %9355 = vmatprep.subr.mxu0 0.0
    %9356 = vmatpush1.msra.mxu0 0.0
    %9357 = vmatprep.subr.mxu0 0.0
    %9358 = vmatpush1.msra.mxu0 0.0
    %9359 = vmatprep.subr.mxu0 0.0
    %9360 = vmatpush1.msra.mxu0 0.0
    %9361 = vmatprep.subr.mxu0 0.0
    %9362 = vmatpush1.msra.mxu0 0.0
    %9363 = vmatprep.mubr.f32.mxu0 0.0
    %9364 = vmatmul.mubr.f32.gmra.mrb[0].mxu0 %v9297
    %v9365 = vpop.f32.mrb[0].mxu0
    %v9366 = vadd.f32 0.0, %v9365
    %v9367 = vpop.f32.mrb[0].mxu0
    %9368 = vdwg.mxu0
    %v9369 = vadd.f32 %v9295, %v9366
    %v9370 = vrot.slane %v7444, 1
    %v9371 = vsel %vm194, %v9370, 0
    %9373 = vmatprep.subr.mxu0 0.0
    %9374 = vmatpush1.msra.mxu0 %v8154
    %9375 = vmatprep.subr.mxu0 0.0
    %9376 = vmatpush1.msra.mxu0 %v8155
    %9377 = vmatprep.subr.mxu0 0.0
    %9378 = vmatpush1.msra.mxu0 %v8156
    %9379 = vmatprep.subr.mxu0 0.0
    %9380 = vmatpush1.msra.mxu0 %v8157
    %9381 = vmatprep.subr.mxu0 0.0
    %9382 = vmatpush1.msra.mxu0 0.0
    %9383 = vmatprep.subr.mxu0 0.0
    %9384 = vmatpush1.msra.mxu0 0.0
    %9385 = vmatprep.subr.mxu0 0.0
    %9386 = vmatpush1.msra.mxu0 0.0
    %9387 = vmatprep.subr.mxu0 0.0
    %9388 = vmatpush1.msra.mxu0 0.0
    %9389 = vmatprep.subr.mxu0 0.0
    %9390 = vmatpush1.msra.mxu0 0.0
    %9391 = vmatprep.subr.mxu0 0.0
    %9392 = vmatpush1.msra.mxu0 0.0
    %9393 = vmatprep.subr.mxu0 0.0
    %9394 = vmatpush1.msra.mxu0 0.0
    %9395 = vmatprep.subr.mxu0 0.0
    %9396 = vmatpush1.msra.mxu0 0.0
    %9397 = vmatprep.subr.mxu0 0.0
    %9398 = vmatpush1.msra.mxu0 0.0
    %9399 = vmatprep.subr.mxu0 0.0
    %9400 = vmatpush1.msra.mxu0 0.0
    %9401 = vmatprep.subr.mxu0 0.0
    %9402 = vmatpush1.msra.mxu0 0.0
    %9403 = vmatprep.subr.mxu0 0.0
    %9404 = vmatpush1.msra.mxu0 0.0
    %9405 = vmatprep.subr.mxu0 0.0
    %9406 = vmatpush1.msra.mxu0 0.0
    %9407 = vmatprep.subr.mxu0 0.0
    %9408 = vmatpush1.msra.mxu0 0.0
    %9409 = vmatprep.subr.mxu0 0.0
    %9410 = vmatpush1.msra.mxu0 0.0
    %9411 = vmatprep.subr.mxu0 0.0
    %9412 = vmatpush1.msra.mxu0 0.0
    %9413 = vmatprep.subr.mxu0 0.0
    %9414 = vmatpush1.msra.mxu0 0.0
    %9415 = vmatprep.subr.mxu0 0.0
    %9416 = vmatpush1.msra.mxu0 0.0
    %9417 = vmatprep.subr.mxu0 0.0
    %9418 = vmatpush1.msra.mxu0 0.0
    %9419 = vmatprep.subr.mxu0 0.0
    %9420 = vmatpush1.msra.mxu0 0.0
    %9421 = vmatprep.subr.mxu0 0.0
    %9422 = vmatpush1.msra.mxu0 0.0
    %9423 = vmatprep.subr.mxu0 0.0
    %9424 = vmatpush1.msra.mxu0 0.0
    %9425 = vmatprep.subr.mxu0 0.0
    %9426 = vmatpush1.msra.mxu0 0.0
    %9427 = vmatprep.subr.mxu0 0.0
    %9428 = vmatpush1.msra.mxu0 0.0
    %9429 = vmatprep.subr.mxu0 0.0
    %9430 = vmatpush1.msra.mxu0 0.0
    %9431 = vmatprep.subr.mxu0 0.0
    %9432 = vmatpush1.msra.mxu0 0.0
    %9433 = vmatprep.subr.mxu0 0.0
    %9434 = vmatpush1.msra.mxu0 0.0
    %9435 = vmatprep.subr.mxu0 0.0
    %9436 = vmatpush1.msra.mxu0 0.0
    %9437 = vmatprep.mubr.f32.mxu0 0.0
    %9438 = vmatmul.mubr.f32.gmra.mrb[0].mxu0 %v9371
    %v9439 = vpop.f32.mrb[0].mxu0
    %v9440 = vadd.f32 0.0, %v9439
    %v9441 = vpop.f32.mrb[0].mxu0
    %9442 = vdwg.mxu0
    %v9443 = vadd.f32 %v9369, %v9440
    %v9444 = vrot.slane %v7444, 2
    %v9445 = vsel %vm194, %v9444, 0
    %9447 = vmatprep.subr.mxu0 0.0
    %9448 = vmatpush1.msra.mxu0 %v8233
    %9449 = vmatprep.subr.mxu0 0.0
    %9450 = vmatpush1.msra.mxu0 %v8234
    %9451 = vmatprep.subr.mxu0 0.0
    %9452 = vmatpush1.msra.mxu0 %v8235
    %9453 = vmatprep.subr.mxu0 0.0
    %9454 = vmatpush1.msra.mxu0 %v8236
    %9455 = vmatprep.subr.mxu0 0.0
    %9456 = vmatpush1.msra.mxu0 0.0
    %9457 = vmatprep.subr.mxu0 0.0
    %9458 = vmatpush1.msra.mxu0 0.0
    %9459 = vmatprep.subr.mxu0 0.0
    %9460 = vmatpush1.msra.mxu0 0.0
    %9461 = vmatprep.subr.mxu0 0.0
    %9462 = vmatpush1.msra.mxu0 0.0
    %9463 = vmatprep.subr.mxu0 0.0
    %9464 = vmatpush1.msra.mxu0 0.0
    %9465 = vmatprep.subr.mxu0 0.0
    %9466 = vmatpush1.msra.mxu0 0.0
    %9467 = vmatprep.subr.mxu0 0.0
    %9468 = vmatpush1.msra.mxu0 0.0
    %9469 = vmatprep.subr.mxu0 0.0
    %9470 = vmatpush1.msra.mxu0 0.0
    %9471 = vmatprep.subr.mxu0 0.0
    %9472 = vmatpush1.msra.mxu0 0.0
    %9473 = vmatprep.subr.mxu0 0.0
    %9474 = vmatpush1.msra.mxu0 0.0
    %9475 = vmatprep.subr.mxu0 0.0
    %9476 = vmatpush1.msra.mxu0 0.0
    %9477 = vmatprep.subr.mxu0 0.0
    %9478 = vmatpush1.msra.mxu0 0.0
    %9479 = vmatprep.subr.mxu0 0.0
    %9480 = vmatpush1.msra.mxu0 0.0
    %9481 = vmatprep.subr.mxu0 0.0
    %9482 = vmatpush1.msra.mxu0 0.0
    %9483 = vmatprep.subr.mxu0 0.0
    %9484 = vmatpush1.msra.mxu0 0.0
    %9485 = vmatprep.subr.mxu0 0.0
    %9486 = vmatpush1.msra.mxu0 0.0
    %9487 = vmatprep.subr.mxu0 0.0
    %9488 = vmatpush1.msra.mxu0 0.0
    %9489 = vmatprep.subr.mxu0 0.0
    %9490 = vmatpush1.msra.mxu0 0.0
    %9491 = vmatprep.subr.mxu0 0.0
    %9492 = vmatpush1.msra.mxu0 0.0
    %9493 = vmatprep.subr.mxu0 0.0
    %9494 = vmatpush1.msra.mxu0 0.0
    %9495 = vmatprep.subr.mxu0 0.0
    %9496 = vmatpush1.msra.mxu0 0.0
    %9497 = vmatprep.subr.mxu0 0.0
    %9498 = vmatpush1.msra.mxu0 0.0
    %9499 = vmatprep.subr.mxu0 0.0
    %9500 = vmatpush1.msra.mxu0 0.0
    %9501 = vmatprep.subr.mxu0 0.0
    %9502 = vmatpush1.msra.mxu0 0.0
    %9503 = vmatprep.subr.mxu0 0.0
    %9504 = vmatpush1.msra.mxu0 0.0
    %9505 = vmatprep.subr.mxu0 0.0
    %9506 = vmatpush1.msra.mxu0 0.0
    %9507 = vmatprep.subr.mxu0 0.0
    %9508 = vmatpush1.msra.mxu0 0.0
    %9509 = vmatprep.subr.mxu0 0.0
    %9510 = vmatpush1.msra.mxu0 0.0
    %9511 = vmatprep.mubr.f32.mxu0 0.0
    %9512 = vmatmul.mubr.f32.gmra.mrb[0].mxu0 %v9445
    %v9513 = vpop.f32.mrb[0].mxu0
    %v9514 = vadd.f32 0.0, %v9513
    %v9515 = vpop.f32.mrb[0].mxu0
    %9516 = vdwg.mxu0
    %v9517 = vadd.f32 %v9443, %v9514
    %v9518 = vrot.slane %v7444, 3
    %v9519 = vsel %vm194, %v9518, 0
    %9521 = vmatprep.subr.mxu0 0.0
    %9522 = vmatpush1.msra.mxu0 %v8312
    %9523 = vmatprep.subr.mxu0 0.0
    %9524 = vmatpush1.msra.mxu0 %v8313
    %9525 = vmatprep.subr.mxu0 0.0
    %9526 = vmatpush1.msra.mxu0 %v8314
    %9527 = vmatprep.subr.mxu0 0.0
    %9528 = vmatpush1.msra.mxu0 %v8315
    %9529 = vmatprep.subr.mxu0 0.0
    %9530 = vmatpush1.msra.mxu0 0.0
    %9531 = vmatprep.subr.mxu0 0.0
    %9532 = vmatpush1.msra.mxu0 0.0
    %9533 = vmatprep.subr.mxu0 0.0
    %9534 = vmatpush1.msra.mxu0 0.0
    %9535 = vmatprep.subr.mxu0 0.0
    %9536 = vmatpush1.msra.mxu0 0.0
    %9537 = vmatprep.subr.mxu0 0.0
    %9538 = vmatpush1.msra.mxu0 0.0
    %9539 = vmatprep.subr.mxu0 0.0
    %9540 = vmatpush1.msra.mxu0 0.0
    %9541 = vmatprep.subr.mxu0 0.0
    %9542 = vmatpush1.msra.mxu0 0.0
    %9543 = vmatprep.subr.mxu0 0.0
    %9544 = vmatpush1.msra.mxu0 0.0
    %9545 = vmatprep.subr.mxu0 0.0
    %9546 = vmatpush1.msra.mxu0 0.0
    %9547 = vmatprep.subr.mxu0 0.0
    %9548 = vmatpush1.msra.mxu0 0.0
    %9549 = vmatprep.subr.mxu0 0.0
    %9550 = vmatpush1.msra.mxu0 0.0
    %9551 = vmatprep.subr.mxu0 0.0
    %9552 = vmatpush1.msra.mxu0 0.0
    %9553 = vmatprep.subr.mxu0 0.0
    %9554 = vmatpush1.msra.mxu0 0.0
    %9555 = vmatprep.subr.mxu0 0.0
    %9556 = vmatpush1.msra.mxu0 0.0
    %9557 = vmatprep.subr.mxu0 0.0
    %9558 = vmatpush1.msra.mxu0 0.0
    %9559 = vmatprep.subr.mxu0 0.0
    %9560 = vmatpush1.msra.mxu0 0.0
    %9561 = vmatprep.subr.mxu0 0.0
    %9562 = vmatpush1.msra.mxu0 0.0
    %9563 = vmatprep.subr.mxu0 0.0
    %9564 = vmatpush1.msra.mxu0 0.0
    %9565 = vmatprep.subr.mxu0 0.0
    %9566 = vmatpush1.msra.mxu0 0.0
    %9567 = vmatprep.subr.mxu0 0.0
    %9568 = vmatpush1.msra.mxu0 0.0
    %9569 = vmatprep.subr.mxu0 0.0
    %9570 = vmatpush1.msra.mxu0 0.0
    %9571 = vmatprep.subr.mxu0 0.0
    %9572 = vmatpush1.msra.mxu0 0.0
    %9573 = vmatprep.subr.mxu0 0.0
    %9574 = vmatpush1.msra.mxu0 0.0
    %9575 = vmatprep.subr.mxu0 0.0
    %9576 = vmatpush1.msra.mxu0 0.0
    %9577 = vmatprep.subr.mxu0 0.0
    %9578 = vmatpush1.msra.mxu0 0.0
    %9579 = vmatprep.subr.mxu0 0.0
    %9580 = vmatpush1.msra.mxu0 0.0
    %9581 = vmatprep.subr.mxu0 0.0
    %9582 = vmatpush1.msra.mxu0 0.0
    %9583 = vmatprep.subr.mxu0 0.0
    %9584 = vmatpush1.msra.mxu0 0.0
    %9585 = vmatprep.mubr.f32.mxu0 0.0
    %9586 = vmatmul.mubr.f32.gmra.mrb[0].mxu0 %v9519
    %v9587 = vpop.f32.mrb[0].mxu0
    %v9588 = vadd.f32 0.0, %v9587
    %v9589 = vpop.f32.mrb[0].mxu0
    %9590 = vdwg.mxu0
    %v9591 = vadd.f32 %v9517, %v9588
    %v9592 = vrot.slane %v7444, 4
    %v9593 = vsel %vm194, %v9592, 0
    %9595 = vmatprep.subr.mxu0 0.0
    %9596 = vmatpush1.msra.mxu0 %v8391
    %9597 = vmatprep.subr.mxu0 0.0
    %9598 = vmatpush1.msra.mxu0 %v8392
    %9599 = vmatprep.subr.mxu0 0.0
    %9600 = vmatpush1.msra.mxu0 %v8393
    %9601 = vmatprep.subr.mxu0 0.0
    %9602 = vmatpush1.msra.mxu0 %v8394
    %9603 = vmatprep.subr.mxu0 0.0
    %9604 = vmatpush1.msra.mxu0 0.0
    %9605 = vmatprep.subr.mxu0 0.0
    %9606 = vmatpush1.msra.mxu0 0.0
    %9607 = vmatprep.subr.mxu0 0.0
    %9608 = vmatpush1.msra.mxu0 0.0
    %9609 = vmatprep.subr.mxu0 0.0
    %9610 = vmatpush1.msra.mxu0 0.0
    %9611 = vmatprep.subr.mxu0 0.0
    %9612 = vmatpush1.msra.mxu0 0.0
    %9613 = vmatprep.subr.mxu0 0.0
    %9614 = vmatpush1.msra.mxu0 0.0
    %9615 = vmatprep.subr.mxu0 0.0
    %9616 = vmatpush1.msra.mxu0 0.0
    %9617 = vmatprep.subr.mxu0 0.0
    %9618 = vmatpush1.msra.mxu0 0.0
    %9619 = vmatprep.subr.mxu0 0.0
    %9620 = vmatpush1.msra.mxu0 0.0
    %9621 = vmatprep.subr.mxu0 0.0
    %9622 = vmatpush1.msra.mxu0 0.0
    %9623 = vmatprep.subr.mxu0 0.0
    %9624 = vmatpush1.msra.mxu0 0.0
    %9625 = vmatprep.subr.mxu0 0.0
    %9626 = vmatpush1.msra.mxu0 0.0
    %9627 = vmatprep.subr.mxu0 0.0
    %9628 = vmatpush1.msra.mxu0 0.0
    %9629 = vmatprep.subr.mxu0 0.0
    %9630 = vmatpush1.msra.mxu0 0.0
    %9631 = vmatprep.subr.mxu0 0.0
    %9632 = vmatpush1.msra.mxu0 0.0
    %9633 = vmatprep.subr.mxu0 0.0
    %9634 = vmatpush1.msra.mxu0 0.0
    %9635 = vmatprep.subr.mxu0 0.0
    %9636 = vmatpush1.msra.mxu0 0.0
    %9637 = vmatprep.subr.mxu0 0.0
    %9638 = vmatpush1.msra.mxu0 0.0
    %9639 = vmatprep.subr.mxu0 0.0
    %9640 = vmatpush1.msra.mxu0 0.0
    %9641 = vmatprep.subr.mxu0 0.0
    %9642 = vmatpush1.msra.mxu0 0.0
    %9643 = vmatprep.subr.mxu0 0.0
    %9644 = vmatpush1.msra.mxu0 0.0
    %9645 = vmatprep.subr.mxu0 0.0
    %9646 = vmatpush1.msra.mxu0 0.0
    %9647 = vmatprep.subr.mxu0 0.0
    %9648 = vmatpush1.msra.mxu0 0.0
    %9649 = vmatprep.subr.mxu0 0.0
    %9650 = vmatpush1.msra.mxu0 0.0
    %9651 = vmatprep.subr.mxu0 0.0
    %9652 = vmatpush1.msra.mxu0 0.0
    %9653 = vmatprep.subr.mxu0 0.0
    %9654 = vmatpush1.msra.mxu0 0.0
    %9655 = vmatprep.subr.mxu0 0.0
    %9656 = vmatpush1.msra.mxu0 0.0
    %9657 = vmatprep.subr.mxu0 0.0
    %9658 = vmatpush1.msra.mxu0 0.0
    %9659 = vmatprep.mubr.f32.mxu0 0.0
    %9660 = vmatmul.mubr.f32.gmra.mrb[0].mxu0 %v9593
    %v9661 = vpop.f32.mrb[0].mxu0
    %v9662 = vadd.f32 0.0, %v9661
    %v9663 = vpop.f32.mrb[0].mxu0
    %9664 = vdwg.mxu0
    %v9665 = vadd.f32 %v9591, %v9662
    %v9666 = vrot.slane %v7444, 5
    %v9667 = vsel %vm194, %v9666, 0
    %9669 = vmatprep.subr.mxu0 0.0
    %9670 = vmatpush1.msra.mxu0 %v8470
    %9671 = vmatprep.subr.mxu0 0.0
    %9672 = vmatpush1.msra.mxu0 %v8471
    %9673 = vmatprep.subr.mxu0 0.0
    %9674 = vmatpush1.msra.mxu0 %v8472
    %9675 = vmatprep.subr.mxu0 0.0
    %9676 = vmatpush1.msra.mxu0 %v8473
    %9677 = vmatprep.subr.mxu0 0.0
    %9678 = vmatpush1.msra.mxu0 0.0
    %9679 = vmatprep.subr.mxu0 0.0
    %9680 = vmatpush1.msra.mxu0 0.0
    %9681 = vmatprep.subr.mxu0 0.0
    %9682 = vmatpush1.msra.mxu0 0.0
    %9683 = vmatprep.subr.mxu0 0.0
    %9684 = vmatpush1.msra.mxu0 0.0
    %9685 = vmatprep.subr.mxu0 0.0
    %9686 = vmatpush1.msra.mxu0 0.0
    %9687 = vmatprep.subr.mxu0 0.0
    %9688 = vmatpush1.msra.mxu0 0.0
    %9689 = vmatprep.subr.mxu0 0.0
    %9690 = vmatpush1.msra.mxu0 0.0
    %9691 = vmatprep.subr.mxu0 0.0
    %9692 = vmatpush1.msra.mxu0 0.0
    %9693 = vmatprep.subr.mxu0 0.0
    %9694 = vmatpush1.msra.mxu0 0.0
    %9695 = vmatprep.subr.mxu0 0.0
    %9696 = vmatpush1.msra.mxu0 0.0
    %9697 = vmatprep.subr.mxu0 0.0
    %9698 = vmatpush1.msra.mxu0 0.0
    %9699 = vmatprep.subr.mxu0 0.0
    %9700 = vmatpush1.msra.mxu0 0.0
    %9701 = vmatprep.subr.mxu0 0.0
    %9702 = vmatpush1.msra.mxu0 0.0
    %9703 = vmatprep.subr.mxu0 0.0
    %9704 = vmatpush1.msra.mxu0 0.0
    %9705 = vmatprep.subr.mxu0 0.0
    %9706 = vmatpush1.msra.mxu0 0.0
    %9707 = vmatprep.subr.mxu0 0.0
    %9708 = vmatpush1.msra.mxu0 0.0
    %9709 = vmatprep.subr.mxu0 0.0
    %9710 = vmatpush1.msra.mxu0 0.0
    %9711 = vmatprep.subr.mxu0 0.0
    %9712 = vmatpush1.msra.mxu0 0.0
    %9713 = vmatprep.subr.mxu0 0.0
    %9714 = vmatpush1.msra.mxu0 0.0
    %9715 = vmatprep.subr.mxu0 0.0
    %9716 = vmatpush1.msra.mxu0 0.0
    %9717 = vmatprep.subr.mxu0 0.0
    %9718 = vmatpush1.msra.mxu0 0.0
    %9719 = vmatprep.subr.mxu0 0.0
    %9720 = vmatpush1.msra.mxu0 0.0
    %9721 = vmatprep.subr.mxu0 0.0
    %9722 = vmatpush1.msra.mxu0 0.0
    %9723 = vmatprep.subr.mxu0 0.0
    %9724 = vmatpush1.msra.mxu0 0.0
    %9725 = vmatprep.subr.mxu0 0.0
    %9726 = vmatpush1.msra.mxu0 0.0
    %9727 = vmatprep.subr.mxu0 0.0
    %9728 = vmatpush1.msra.mxu0 0.0
    %9729 = vmatprep.subr.mxu0 0.0
    %9730 = vmatpush1.msra.mxu0 0.0
    %9731 = vmatprep.subr.mxu0 0.0
    %9732 = vmatpush1.msra.mxu0 0.0
    %9733 = vmatprep.mubr.f32.mxu0 0.0
    %9734 = vmatmul.mubr.f32.gmra.mrb[0].mxu0 %v9667
    %v9735 = vpop.f32.mrb[0].mxu0
    %v9736 = vadd.f32 0.0, %v9735
    %v9737 = vpop.f32.mrb[0].mxu0
    %9738 = vdwg.mxu0
    %v9739 = vadd.f32 %v9665, %v9736
    %v9740 = vrot.slane %v7444, 6
    %v9741 = vsel %vm194, %v9740, 0
    %9743 = vmatprep.subr.mxu0 0.0
    %9744 = vmatpush1.msra.mxu0 %v8549
    %9745 = vmatprep.subr.mxu0 0.0
    %9746 = vmatpush1.msra.mxu0 %v8550
    %9747 = vmatprep.subr.mxu0 0.0
    %9748 = vmatpush1.msra.mxu0 %v8551
    %9749 = vmatprep.subr.mxu0 0.0
    %9750 = vmatpush1.msra.mxu0 %v8552
    %9751 = vmatprep.subr.mxu0 0.0
    %9752 = vmatpush1.msra.mxu0 0.0
    %9753 = vmatprep.subr.mxu0 0.0
    %9754 = vmatpush1.msra.mxu0 0.0
    %9755 = vmatprep.subr.mxu0 0.0
    %9756 = vmatpush1.msra.mxu0 0.0
    %9757 = vmatprep.subr.mxu0 0.0
    %9758 = vmatpush1.msra.mxu0 0.0
    %9759 = vmatprep.subr.mxu0 0.0
    %9760 = vmatpush1.msra.mxu0 0.0
    %9761 = vmatprep.subr.mxu0 0.0
    %9762 = vmatpush1.msra.mxu0 0.0
    %9763 = vmatprep.subr.mxu0 0.0
    %9764 = vmatpush1.msra.mxu0 0.0
    %9765 = vmatprep.subr.mxu0 0.0
    %9766 = vmatpush1.msra.mxu0 0.0
    %9767 = vmatprep.subr.mxu0 0.0
    %9768 = vmatpush1.msra.mxu0 0.0
    %9769 = vmatprep.subr.mxu0 0.0
    %9770 = vmatpush1.msra.mxu0 0.0
    %9771 = vmatprep.subr.mxu0 0.0
    %9772 = vmatpush1.msra.mxu0 0.0
    %9773 = vmatprep.subr.mxu0 0.0
    %9774 = vmatpush1.msra.mxu0 0.0
    %9775 = vmatprep.subr.mxu0 0.0
    %9776 = vmatpush1.msra.mxu0 0.0
    %9777 = vmatprep.subr.mxu0 0.0
    %9778 = vmatpush1.msra.mxu0 0.0
    %9779 = vmatprep.subr.mxu0 0.0
    %9780 = vmatpush1.msra.mxu0 0.0
    %9781 = vmatprep.subr.mxu0 0.0
    %9782 = vmatpush1.msra.mxu0 0.0
    %9783 = vmatprep.subr.mxu0 0.0
    %9784 = vmatpush1.msra.mxu0 0.0
    %9785 = vmatprep.subr.mxu0 0.0
    %9786 = vmatpush1.msra.mxu0 0.0
    %9787 = vmatprep.subr.mxu0 0.0
    %9788 = vmatpush1.msra.mxu0 0.0
    %9789 = vmatprep.subr.mxu0 0.0
    %9790 = vmatpush1.msra.mxu0 0.0
    %9791 = vmatprep.subr.mxu0 0.0
    %9792 = vmatpush1.msra.mxu0 0.0
    %9793 = vmatprep.subr.mxu0 0.0
    %9794 = vmatpush1.msra.mxu0 0.0
    %9795 = vmatprep.subr.mxu0 0.0
    %9796 = vmatpush1.msra.mxu0 0.0
    %9797 = vmatprep.subr.mxu0 0.0
    %9798 = vmatpush1.msra.mxu0 0.0
    %9799 = vmatprep.subr.mxu0 0.0
    %9800 = vmatpush1.msra.mxu0 0.0
    %9801 = vmatprep.subr.mxu0 0.0
    %9802 = vmatpush1.msra.mxu0 0.0
    %9803 = vmatprep.subr.mxu0 0.0
    %9804 = vmatpush1.msra.mxu0 0.0
    %9805 = vmatprep.subr.mxu0 0.0
    %9806 = vmatpush1.msra.mxu0 0.0
    %9807 = vmatprep.mubr.f32.mxu0 0.0
    %9808 = vmatmul.mubr.f32.gmra.mrb[0].mxu0 %v9741
    %v9809 = vpop.f32.mrb[0].mxu0
    %v9810 = vadd.f32 0.0, %v9809
    %v9811 = vpop.f32.mrb[0].mxu0
    %9812 = vdwg.mxu0
    %v9813 = vadd.f32 %v9739, %v9810
    %v9814 = vrot.slane %v7444, 7
    %v9815 = vsel %vm194, %v9814, 0
    %9817 = vmatprep.subr.mxu0 0.0
    %9818 = vmatpush1.msra.mxu0 %v8628
    %9819 = vmatprep.subr.mxu0 0.0
    %9820 = vmatpush1.msra.mxu0 %v8629
    %9821 = vmatprep.subr.mxu0 0.0
    %9822 = vmatpush1.msra.mxu0 %v8630
    %9823 = vmatprep.subr.mxu0 0.0
    %9824 = vmatpush1.msra.mxu0 %v8631
    %9825 = vmatprep.subr.mxu0 0.0
    %9826 = vmatpush1.msra.mxu0 0.0
    %9827 = vmatprep.subr.mxu0 0.0
    %9828 = vmatpush1.msra.mxu0 0.0
    %9829 = vmatprep.subr.mxu0 0.0
    %9830 = vmatpush1.msra.mxu0 0.0
    %9831 = vmatprep.subr.mxu0 0.0
    %9832 = vmatpush1.msra.mxu0 0.0
    %9833 = vmatprep.subr.mxu0 0.0
    %9834 = vmatpush1.msra.mxu0 0.0
    %9835 = vmatprep.subr.mxu0 0.0
    %9836 = vmatpush1.msra.mxu0 0.0
    %9837 = vmatprep.subr.mxu0 0.0
    %9838 = vmatpush1.msra.mxu0 0.0
    %9839 = vmatprep.subr.mxu0 0.0
    %9840 = vmatpush1.msra.mxu0 0.0
    %9841 = vmatprep.subr.mxu0 0.0
    %9842 = vmatpush1.msra.mxu0 0.0
    %9843 = vmatprep.subr.mxu0 0.0
    %9844 = vmatpush1.msra.mxu0 0.0
    %9845 = vmatprep.subr.mxu0 0.0
    %9846 = vmatpush1.msra.mxu0 0.0
    %9847 = vmatprep.subr.mxu0 0.0
    %9848 = vmatpush1.msra.mxu0 0.0
    %9849 = vmatprep.subr.mxu0 0.0
    %9850 = vmatpush1.msra.mxu0 0.0
    %9851 = vmatprep.subr.mxu0 0.0
    %9852 = vmatpush1.msra.mxu0 0.0
    %9853 = vmatprep.subr.mxu0 0.0
    %9854 = vmatpush1.msra.mxu0 0.0
    %9855 = vmatprep.subr.mxu0 0.0
    %9856 = vmatpush1.msra.mxu0 0.0
    %9857 = vmatprep.subr.mxu0 0.0
    %9858 = vmatpush1.msra.mxu0 0.0
    %9859 = vmatprep.subr.mxu0 0.0
    %9860 = vmatpush1.msra.mxu0 0.0
    %9861 = vmatprep.subr.mxu0 0.0
    %9862 = vmatpush1.msra.mxu0 0.0
    %9863 = vmatprep.subr.mxu0 0.0
    %9864 = vmatpush1.msra.mxu0 0.0
    %9865 = vmatprep.subr.mxu0 0.0
    %9866 = vmatpush1.msra.mxu0 0.0
    %9867 = vmatprep.subr.mxu0 0.0
    %9868 = vmatpush1.msra.mxu0 0.0
    %9869 = vmatprep.subr.mxu0 0.0
    %9870 = vmatpush1.msra.mxu0 0.0
    %9871 = vmatprep.subr.mxu0 0.0
    %9872 = vmatpush1.msra.mxu0 0.0
    %9873 = vmatprep.subr.mxu0 0.0
    %9874 = vmatpush1.msra.mxu0 0.0
    %9875 = vmatprep.subr.mxu0 0.0
    %9876 = vmatpush1.msra.mxu0 0.0
    %9877 = vmatprep.subr.mxu0 0.0
    %9878 = vmatpush1.msra.mxu0 0.0
    %9879 = vmatprep.subr.mxu0 0.0
    %9880 = vmatpush1.msra.mxu0 0.0
    %9881 = vmatprep.mubr.f32.mxu0 0.0
    %9882 = vmatmul.mubr.f32.gmra.mrb[0].mxu0 %v9815
    %v9883 = vpop.f32.mrb[0].mxu0
    %v9884 = vadd.f32 0.0, %v9883
    %v9885 = vpop.f32.mrb[0].mxu0
    %9886 = vdwg.mxu0
    %v9887 = vadd.f32 %v9813, %v9884
    %v9889 = vrot.slane %v9887, 7
    %vm9891 = vcmask 1040384
    %v9892 = vsel %vm9891, %v8705, %v9889
    %v9893 = vld [vmem:[%s8] sm:$0x1]
    %v9895 = vlaneseq
    %v9896 = vshrl.u32 %v9895, 7
    %v9897 = vsub.s32 0, %v9896
    %v9898 = vrot.slane %v9893, %v9897
    %v9900 = vadd.f32 %v9892, %v9898
    %9901 = vst [vmem:[#allocation2] sm:$0x3] %v9900
    // Predicated region
    $region38: #{state_network_forward.1} parent=1 // pred_check
      _
    $region39: #{state_network_forward.1} parent=1 // pred_check_branch
      %9903 = sbr.rel (0) target = $region41
    $region40: #{state_network_forward.1} parent=1 // pred_region
      %s9905 = ssub.s32 32, 32
      %9906 = vsyncadd [#allocation3], %s9905
      %s9908 = sshll.u32 [#allocation2], 4
      %s9909 = int_to_ptr.vmem [resolvable:$true] %s9908
      %9911 = dma.vmem_to_hbm [thread:$0]  %s9909, 32, %s9, [#allocation3]
    $region41: #{state_network_forward.1} parent=1 // pred_fallthru
      _
    // Predicated region
    $region42: #{state_network_forward.1} parent=1 // pred_check
      _
    $region43: #{state_network_forward.1} parent=1 // pred_check_branch
      %9913 = sbr.rel (0) target = $region45
    $region44: #{state_network_forward.1} parent=1 // pred_region
      %9914 = dma.done [#allocation3], 32
    $region45: #{state_network_forward.1} parent=1 // pred_fallthru
      _
    %9915 = vsyncpa [#allocation3], 1

</llo_original>
